<compile_context>
chip_gen: v7x
topology: tpu7x:2x2x1
jax: 0.10.0
libtpu: 0.0.40
codegen_flags: <defaults>
</compile_context>

<pallas_src>
import functools

import numpy as np
import jax
import jax.numpy as jnp
from jax import lax
from jax.experimental import pallas as pl
from jax.experimental.pallas import tpu as pltpu

EPS = 1e-5  # torch.nn.GroupNorm default eps


def _round_up(v, m):
    return ((v + m - 1) // m) * m


def decoder_block_kernel(x_ref, c_ref, mg_ref, w1_ref, w2_ref, o_ref,
                         pad_ref, taps_ref,
                         *, N, D, H, W, C, G, HP, P):
    WC = W * C
    DH = D * H
    NDH = N * DH
    ME = D * HP                                 # extended rows per sample
    inv_cnt = 1.0 / float(D * H * W * (C // G))  # 1 / (elements per GN group)

    mg = mg_ref[...]                            # (WC, G) lane -> group one-hot
    mgt = c_ref[8:8 + G, :]                     # (G, WC) group -> lane scatter
    g1, be1, cb1 = c_ref[0:1, :], c_ref[1:2, :], c_ref[2:3, :]
    g2, be2, cb2 = c_ref[3:4, :], c_ref[4:5, :], c_ref[5:6, :]

    # Zero the halo scratch unconditionally once per invocation (single grid
    # step -> no program_id-gated init, so no megacore-sharding hazard).
    # Only the halo rows must stay zero; the interior rows are fully
    # overwritten before every conv.
    pad_ref[...] = jnp.zeros(pad_ref.shape, pad_ref.dtype)

    def group_norm_relu(h, gamma, beta):
        # h: (NDH, WC) f32.  Per-sample per-lane sums over aligned DH-row
        # halves, then ONE gather dot and ONE scatter dot for all samples.
        h3 = h.reshape(N, DH, WC)
        s1 = jnp.sum(h3, axis=1)                              # (N, WC)
        s2 = jnp.sum(h3 * h3, axis=1)                         # (N, WC)
        gs = jnp.dot(jnp.concatenate([s1, s2], axis=0), mg,
                     preferred_element_type=jnp.float32)       # (2N, G)
        mean_g = gs[:N] * inv_cnt
        var_g = jnp.maximum(gs[N:] * inv_cnt - mean_g * mean_g, 0.0)
        inv_g = lax.rsqrt(var_g + EPS)
        back = jnp.dot(jnp.concatenate([mean_g, inv_g], axis=0), mgt,
                       preferred_element_type=jnp.float32)     # (2N, WC)
        scale = back[N:] * gamma                               # fold affine
        shift = beta - back[:N] * scale
        y = jnp.maximum(h3 * scale[:, None, :] + shift[:, None, :], 0.0)
        return y.reshape(NDH, WC)                              # fused ReLU

    def conv3x3x3(h, w_ref, cbias):
        # h: (NDH, WC) f32, compact lane-dense GN/ReLU output.
        h4 = h.reshape(N, D, H, WC)
        # 1) Interior writes: N*D aligned (H, WC) f32 row blocks; offsets are
        #    multiples of 8 -> full-tile stores, no relayout.
        for n in range(N):
            for d in range(D):
                r0 = P + (d + 1) * HP
                pad_ref[n, r0:r0 + H, :] = h4[n, d]
        # 2) Build the K-stacked LHS: each (kd, kh) tap is ONE contiguous
        #    row-slab of the flat per-sample pad scratch (kw taps + W padding
        #    live in the weights); destination blocks are fully aligned.
        for n in range(N):
            for kd in range(3):
                for kh in range(3):
                    t = kd * 3 + kh
                    off = P + kd * HP + kh - 1
                    taps_ref[n * ME:(n + 1) * ME, t * WC:(t + 1) * WC] = (
                        pad_ref[n, off:off + ME, :].astype(jnp.bfloat16))
        # 3) ONE bf16 MXU matmul per conv; accumulation over K=9*WC stays
        #    inside the MXU (f32 accumulator).
        c_ext = jnp.dot(taps_ref[...], w_ref[...],
                        preferred_element_type=jnp.float32)    # (N*ME, WC)
        # 4) Extract the H-interior once (whole-tile row selection) + bias.
        c = c_ext.reshape(N, D, HP, WC)[:, :, :H, :].reshape(NDH, WC)
        return c + cbias

    x0 = x_ref[...].astype(jnp.float32)
    h1 = group_norm_relu(x0, g1, be1)
    c1 = conv3x3x3(h1, w1_ref, cb1)
    h2 = group_norm_relu(c1, g2, be2)
    c2 = conv3x3x3(h2, w2_ref, cb2)
    o_ref[...] = (c2 + x_ref[...].astype(jnp.float32)).astype(o_ref.dtype)


def backbone_decoder_block(x_ncdhw, params, num_groups=8):
    N, C, D, H, W = x_ncdhw.shape
    G = num_groups
    assert C % G == 0
    WC = W * C
    DH = D * H
    NDH = N * DH
    # Hard layout assumptions of this implementation (flagged by the review).
    assert WC % 128 == 0, "folded lane dim W*C must be a multiple of 128"
    assert DH % 8 == 0, "D*H must be a multiple of 8 (sublane tiling)"

    HP = _round_up(H + 2, 8)   # padded plane stride (>= H+2, sublane aligned)
    P = 8                      # leading zero rows so all tap offsets are >= 0
    ME = D * HP                # extended output rows per sample per conv
    PR = _round_up(P + (D + 2) * HP + 1, 8)   # rows per per-sample pad slab

    # NCDHW -> NDHWC -> lane-dense (N*D*H, W*C); W*C maps to lanes.
    # TODO(synk): at real VAE sizes keep this lane-dense layout across
    # consecutive decoder blocks instead of transposing around every call.
    x = jnp.transpose(x_ncdhw, (0, 2, 3, 4, 1)).reshape(NDH, WC)

    def pack_conv(w27, b):
        # w27: (27, C, C) with k = kd*9 + kh*3 + kw, layout [k, c_in, c_out].
        # -> (9*WC, WC) bf16: kw taps and W zero-padding folded into band
        # blocks; the 9 (kd, kh) taps stacked along K for a single MXU matmul.
        w27 = np.asarray(w27, np.float32)
        big = np.zeros((9, WC, WC), np.float32)
        for kd in range(3):
            for kh in range(3):
                for w_out in range(W):
                    for kw in range(3):
                        w_in = w_out + kw - 1
                        if 0 <= w_in < W:
                            big[kd * 3 + kh,
                                w_in * C:(w_in + 1) * C,
                                w_out * C:(w_out + 1) * C] = \
                                w27[kd * 9 + kh * 3 + kw]
        bias = np.tile(np.asarray(b, np.float32).reshape(C), W)   # (WC,)
        return jnp.asarray(big.reshape(9 * WC, WC), jnp.bfloat16), bias

    def tile_vec(v):
        return np.tile(np.asarray(v, np.float32).reshape(C), W)   # (WC,)

    w1k, cb1 = pack_conv(params["w1"], params["b1"])
    w2k, cb2 = pack_conv(params["w2"], params["b2"])

    # one-hot lane -> group membership (host-built).
    grp = (np.arange(WC) % C) // (C // G)
    mg_np = (grp[:, None] == np.arange(G)[None, :]).astype(np.float32)

    # Merge all small per-lane constants into ONE input:
    # rows 0..5 = gamma1, beta1, bias1, gamma2, beta2, bias2; rows 8..8+G = mgt.
    n_const_rows = 8 + _round_up(G, 8)
    consts_np = np.zeros((n_const_rows, WC), np.float32)
    consts_np[0] = tile_vec(params["g1"])
    consts_np[1] = tile_vec(params["be1"])
    consts_np[2] = cb1
    consts_np[3] = tile_vec(params["g2"])
    consts_np[4] = tile_vec(params["be2"])
    consts_np[5] = cb2
    consts_np[8:8 + G] = mg_np.T
    consts = jnp.asarray(consts_np)
    mg = jnp.asarray(mg_np)

    kernel = functools.partial(decoder_block_kernel,
                               N=N, D=D, H=H, W=W, C=C, G=G, HP=HP, P=P)

    out = pl.pallas_call(
        kernel,
        out_shape=jax.ShapeDtypeStruct((NDH, WC), x.dtype),
        grid=(1,),
        in_specs=[
            pl.BlockSpec((NDH, WC), lambda i: (0, 0)),            # activations
            pl.BlockSpec((n_const_rows, WC), lambda i: (0, 0)),   # merged consts
            pl.BlockSpec((WC, G), lambda i: (0, 0)),              # lane->group
            pl.BlockSpec((9 * WC, WC), lambda i: (0, 0)),         # conv1 weights
            pl.BlockSpec((9 * WC, WC), lambda i: (0, 0)),         # conv2 weights
        ],
        out_specs=pl.BlockSpec((NDH, WC), lambda i: (0, 0)),
        scratch_shapes=[
            pltpu.VMEM((N, PR, WC), jnp.float32),        # flat halo pad slabs
            pltpu.VMEM((N * ME, 9 * WC), jnp.bfloat16),  # K-stacked conv taps
        ],
        compiler_params=pltpu.CompilerParams(
            dimension_semantics=("arbitrary",)),
        # NOTE: at real VAE channel counts, single-buffer the constant inputs
        # (pipeline_mode=pl.Buffered(1)) and set vmem_limit_bytes explicitly.
    )(x, consts, mg, w1k, w2k)

    out = out.reshape(N, D, H, W, C)
    return jnp.transpose(out, (0, 4, 1, 2, 3))  # -> NCDHW


def reference(x, params, num_groups=8):
    """Pure-JAX f32 reference in NCDHW (mirrors the PyTorch forward)."""
    def gn(h, gamma, beta):
        N, C, D, H, W = h.shape
        hg = h.reshape(N, num_groups, -1)
        mean = hg.mean(axis=2, keepdims=True)
        var = hg.var(axis=2, keepdims=True)
        hn = ((hg - mean) / jnp.sqrt(var + EPS)).reshape(N, C, D, H, W)
        return hn * gamma.reshape(1, C, 1, 1, 1) + beta.reshape(1, C, 1, 1, 1)

    def conv(h, w, b):
        C = h.shape[1]
        w5 = jnp.transpose(w.reshape(3, 3, 3, C, C), (4, 3, 0, 1, 2))  # OIDHW
        y = lax.conv_general_dilated(
            h, w5, window_strides=(1, 1, 1),
            padding=((1, 1), (1, 1), (1, 1)),
            dimension_numbers=("NCDHW", "OIDHW", "NCDHW"))
        return y + b.reshape(1, C, 1, 1, 1)

    res = x
    h = jax.nn.relu(gn(x, params["g1"], params["be1"]))
    h = conv(h, params["w1"], params["b1"])
    h = jax.nn.relu(gn(h, params["g2"], params["be2"]))
    h = conv(h, params["w2"], params["b2"])
    return h + res


if __name__ == "__main__":
    # small shapes: batch=2, channels=16 (8 groups -> 2 ch/group), spatial 8^3
    # chosen so the folded lane dim W*C = 128 is exactly one full lane width.
    N, C, D, H, W = 2, 16, 8, 8, 8
    G = 8
    key = jax.random.PRNGKey(0)
    ks = jax.random.split(key, 9)
    x = jax.random.normal(ks[0], (N, C, D, H, W), jnp.float32)
    scale = 1.0 / np.sqrt(27 * C)
    params = dict(
        g1=1.0 + 0.1 * jax.random.normal(ks[1], (1, C), jnp.float32),
        be1=0.1 * jax.random.normal(ks[2], (1, C), jnp.float32),
        w1=scale * jax.random.normal(ks[3], (27, C, C), jnp.float32),
        b1=0.05 * jax.random.normal(ks[4], (1, C), jnp.float32),
        g2=1.0 + 0.1 * jax.random.normal(ks[5], (1, C), jnp.float32),
        be2=0.1 * jax.random.normal(ks[6], (1, C), jnp.float32),
        w2=scale * jax.random.normal(ks[7], (27, C, C), jnp.float32),
        b2=0.05 * jax.random.normal(ks[8], (1, C), jnp.float32),
    )

    out = backbone_decoder_block(x, params, num_groups=G)
    out = jax.block_until_ready(out)

    ref = reference(x, params, num_groups=G)
    # Tolerance reflects bf16 MXU operands (f32 accumulation) vs. an f32 reference.
    np.testing.assert_allclose(np.asarray(out), np.asarray(ref),
                               atol=2e-2, rtol=2e-2)
    print("KERNEL_OK")
</pallas_src>

<mosaic_0001>
module attributes {stable_mosaic.version = 11 : i64} {
  func.func @decoder_block_kernel(%arg0: i32, %arg1: memref<128x128xf32, #tpu.memory_space<vmem>>, %arg2: memref<16x128xf32, #tpu.memory_space<vmem>>, %arg3: memref<128x8xf32, #tpu.memory_space<vmem>>, %arg4: memref<1152x128xbf16, #tpu.memory_space<vmem>>, %arg5: memref<1152x128xbf16, #tpu.memory_space<vmem>>, %arg6: memref<128x128xf32, #tpu.memory_space<vmem>>, %arg7: memref<2x176x128xf32, #tpu.memory_space<vmem>>, %arg8: memref<256x1152xbf16, #tpu.memory_space<vmem>>) attributes {dimension_semantics = [#tpu.dimension_semantics<arbitrary>], iteration_bounds = array<i64: 1>, scalar_prefetch = 0 : i64, scratch_operands = 2 : i64, tpu.core_type = #tpu.core_type<tc>, window_params = [{pipeline_mode = #tpu.pipeline_mode<synchronous>, transform_indices = @transform_0, window_bounds = array<i64: 128, 128>}, {pipeline_mode = #tpu.pipeline_mode<synchronous>, transform_indices = @transform_1, window_bounds = array<i64: 16, 128>}, {pipeline_mode = #tpu.pipeline_mode<synchronous>, transform_indices = @transform_2, window_bounds = array<i64: 128, 8>}, {pipeline_mode = #tpu.pipeline_mode<synchronous>, transform_indices = @transform_3, window_bounds = array<i64: 1152, 128>}, {pipeline_mode = #tpu.pipeline_mode<synchronous>, transform_indices = @transform_4, window_bounds = array<i64: 1152, 128>}, {pipeline_mode = #tpu.pipeline_mode<synchronous>, transform_indices = @transform_5, window_bounds = array<i64: 128, 128>}]} {
    %c0 = arith.constant 0 : index
    %c0_0 = arith.constant 0 : index
    %0 = vector.load %arg3[%c0, %c0_0] : memref<128x8xf32, #tpu.memory_space<vmem>>, vector<128x8xf32>
    %c8 = arith.constant 8 : index
    %c0_1 = arith.constant 0 : index
    %1 = vector.load %arg2[%c8, %c0_1] : memref<16x128xf32, #tpu.memory_space<vmem>>, vector<8x128xf32>
    %c0_2 = arith.constant 0 : index
    %c0_3 = arith.constant 0 : index
    %2 = vector.load %arg2[%c0_2, %c0_3] : memref<16x128xf32, #tpu.memory_space<vmem>>, vector<1x128xf32>
    %c1 = arith.constant 1 : index
    %c0_4 = arith.constant 0 : index
    %3 = vector.load %arg2[%c1, %c0_4] : memref<16x128xf32, #tpu.memory_space<vmem>>, vector<1x128xf32>
    %c2 = arith.constant 2 : index
    %c0_5 = arith.constant 0 : index
    %4 = vector.load %arg2[%c2, %c0_5] : memref<16x128xf32, #tpu.memory_space<vmem>>, vector<1x128xf32>
    %c3 = arith.constant 3 : index
    %c0_6 = arith.constant 0 : index
    %5 = vector.load %arg2[%c3, %c0_6] : memref<16x128xf32, #tpu.memory_space<vmem>>, vector<1x128xf32>
    %c4 = arith.constant 4 : index
    %c0_7 = arith.constant 0 : index
    %6 = vector.load %arg2[%c4, %c0_7] : memref<16x128xf32, #tpu.memory_space<vmem>>, vector<1x128xf32>
    %c5 = arith.constant 5 : index
    %c0_8 = arith.constant 0 : index
    %7 = vector.load %arg2[%c5, %c0_8] : memref<16x128xf32, #tpu.memory_space<vmem>>, vector<1x128xf32>
    %cst = arith.constant 0.000000e+00 : f32
    %8 = vector.broadcast %cst : f32 to vector<2x176x128xf32>
    %c0_9 = arith.constant 0 : index
    %c0_10 = arith.constant 0 : index
    %c0_11 = arith.constant 0 : index
    %9 = vector.load %arg7[%c0_9, %c0_10, %c0_11] : memref<2x176x128xf32, #tpu.memory_space<vmem>>, vector<2x176x128xf32>
    tpu.vector_store %arg7[%c0_9, %c0_10, %c0_11], %8 {strides = array<i32>} : memref<2x176x128xf32, #tpu.memory_space<vmem>>, vector<2x176x128xf32>,
    %c0_12 = arith.constant 0 : index
    %c0_13 = arith.constant 0 : index
    %10 = vector.load %arg1[%c0_12, %c0_13] : memref<128x128xf32, #tpu.memory_space<vmem>>, vector<128x128xf32>
    %11 = vector.shape_cast %10 : vector<128x128xf32> to vector<2x64x128xf32>
    %cst_14 = arith.constant dense<0.000000e+00> : vector<2x128xf32>
    %12 = vector.multi_reduction <add>, %11, %cst_14 [1] : vector<2x64x128xf32> to vector<2x128xf32>
    %13 = arith.mulf %11, %11 : vector<2x64x128xf32>
    %cst_15 = arith.constant dense<0.000000e+00> : vector<2x128xf32>
    %14 = vector.multi_reduction <add>, %13, %cst_15 [1] : vector<2x64x128xf32> to vector<2x128xf32>
    %15 = tpu.concatenate %12, %14 in 0 : vector<2x128xf32>, vector<2x128xf32> -> vector<4x128xf32>
    %cst_16 = arith.constant dense<0.000000e+00> : vector<4x8xf32>
    %16 = tpu.matmul %15, %0, %cst_16 {dimension_numbers = #tpu.dot_dimension_numbers<[1], [0], [0], [1], [0, 0, 1, 1], [], []>} : vector<4x128xf32>, vector<128x8xf32>, vector<4x8xf32> -> vector<4x8xf32>
    %17 = vector.extract_strided_slice %16 {offsets = [0, 0], sizes = [2, 8], strides = [1, 1]} : vector<4x8xf32> to vector<2x8xf32>
    %cst_17 = arith.constant 9.765625E-4 : f32
    %18 = vector.broadcast %cst_17 : f32 to vector<2x8xf32>
    %19 = arith.mulf %17, %18 : vector<2x8xf32>
    %20 = vector.extract_strided_slice %16 {offsets = [2, 0], sizes = [2, 8], strides = [1, 1]} : vector<4x8xf32> to vector<2x8xf32>
    %cst_18 = arith.constant 9.765625E-4 : f32
    %21 = vector.broadcast %cst_18 : f32 to vector<2x8xf32>
    %22 = arith.mulf %20, %21 : vector<2x8xf32>
    %23 = arith.mulf %19, %19 : vector<2x8xf32>
    %24 = arith.subf %22, %23 : vector<2x8xf32>
    %cst_19 = arith.constant 0.000000e+00 : f32
    %25 = vector.broadcast %cst_19 : f32 to vector<2x8xf32>
    %26 = arith.maximumf %24, %25 : vector<2x8xf32>
    %cst_20 = arith.constant 9.99999974E-6 : f32
    %27 = vector.broadcast %cst_20 : f32 to vector<2x8xf32>
    %28 = arith.addf %26, %27 : vector<2x8xf32>
    %29 = math.rsqrt %28 : vector<2x8xf32>
    %30 = tpu.concatenate %19, %29 in 0 : vector<2x8xf32>, vector<2x8xf32> -> vector<4x8xf32>
    %cst_21 = arith.constant dense<0.000000e+00> : vector<4x128xf32>
    %31 = tpu.matmul %30, %1, %cst_21 {dimension_numbers = #tpu.dot_dimension_numbers<[1], [0], [0], [1], [0, 0, 1, 1], [], []>} : vector<4x8xf32>, vector<8x128xf32>, vector<4x128xf32> -> vector<4x128xf32>
    %32 = vector.extract_strided_slice %31 {offsets = [2, 0], sizes = [2, 128], strides = [1, 1]} : vector<4x128xf32> to vector<2x128xf32>
    %33 = vector.broadcast %2 : vector<1x128xf32> to vector<2x128xf32>
    %34 = arith.mulf %32, %33 : vector<2x128xf32>
    %35 = vector.extract_strided_slice %31 {offsets = [0, 0], sizes = [2, 128], strides = [1, 1]} : vector<4x128xf32> to vector<2x128xf32>
    %36 = arith.mulf %35, %34 : vector<2x128xf32>
    %37 = vector.broadcast %3 : vector<1x128xf32> to vector<2x128xf32>
    %38 = arith.subf %37, %36 : vector<2x128xf32>
    %39 = vector.shape_cast %34 : vector<2x128xf32> to vector<2x1x128xf32>
    %40 = vector.broadcast %39 : vector<2x1x128xf32> to vector<2x64x128xf32>
    %41 = arith.mulf %11, %40 : vector<2x64x128xf32>
    %42 = vector.shape_cast %38 : vector<2x128xf32> to vector<2x1x128xf32>
    %43 = vector.broadcast %42 : vector<2x1x128xf32> to vector<2x64x128xf32>
    %44 = arith.addf %41, %43 : vector<2x64x128xf32>
    %cst_22 = arith.constant 0.000000e+00 : f32
    %45 = vector.broadcast %cst_22 : f32 to vector<2x64x128xf32>
    %46 = arith.maximumf %44, %45 : vector<2x64x128xf32>
    %47 = vector.shape_cast %46 : vector<2x64x128xf32> to vector<128x128xf32>
    %48 = vector.shape_cast %47 : vector<128x128xf32> to vector<2x8x8x128xf32>
    %49 = vector.extract_strided_slice %48 {offsets = [0, 0, 0, 0], sizes = [1, 1, 8, 128], strides = [1, 1, 1, 1]} : vector<2x8x8x128xf32> to vector<1x1x8x128xf32>
    %50 = vector.shape_cast %49 : vector<1x1x8x128xf32> to vector<8x128xf32>
    %c0_23 = arith.constant 0 : index
    %c24 = arith.constant 24 : index
    %c0_24 = arith.constant 0 : index
    %51 = vector.load %arg7[%c0_23, %c24, %c0_24] : memref<2x176x128xf32, #tpu.memory_space<vmem>>, vector<1x8x128xf32>
    %52 = vector.shape_cast %51 : vector<1x8x128xf32> to vector<8x128xf32>
    %53 = vector.shape_cast %50 : vector<8x128xf32> to vector<1x8x128xf32>
    tpu.vector_store %arg7[%c0_23, %c24, %c0_24], %53 {strides = array<i32>} : memref<2x176x128xf32, #tpu.memory_space<vmem>>, vector<1x8x128xf32>,
    %54 = vector.extract_strided_slice %48 {offsets = [0, 1, 0, 0], sizes = [1, 1, 8, 128], strides = [1, 1, 1, 1]} : vector<2x8x8x128xf32> to vector<1x1x8x128xf32>
    %55 = vector.shape_cast %54 : vector<1x1x8x128xf32> to vector<8x128xf32>
    %c0_25 = arith.constant 0 : index
    %c40 = arith.constant 40 : index
    %c0_26 = arith.constant 0 : index
    %56 = vector.load %arg7[%c0_25, %c40, %c0_26] : memref<2x176x128xf32, #tpu.memory_space<vmem>>, vector<1x8x128xf32>
    %57 = vector.shape_cast %56 : vector<1x8x128xf32> to vector<8x128xf32>
    %58 = vector.shape_cast %55 : vector<8x128xf32> to vector<1x8x128xf32>
    tpu.vector_store %arg7[%c0_25, %c40, %c0_26], %58 {strides = array<i32>} : memref<2x176x128xf32, #tpu.memory_space<vmem>>, vector<1x8x128xf32>,
    %59 = vector.extract_strided_slice %48 {offsets = [0, 2, 0, 0], sizes = [1, 1, 8, 128], strides = [1, 1, 1, 1]} : vector<2x8x8x128xf32> to vector<1x1x8x128xf32>
    %60 = vector.shape_cast %59 : vector<1x1x8x128xf32> to vector<8x128xf32>
    %c0_27 = arith.constant 0 : index
    %c56 = arith.constant 56 : index
    %c0_28 = arith.constant 0 : index
    %61 = vector.load %arg7[%c0_27, %c56, %c0_28] : memref<2x176x128xf32, #tpu.memory_space<vmem>>, vector<1x8x128xf32>
    %62 = vector.shape_cast %61 : vector<1x8x128xf32> to vector<8x128xf32>
    %63 = vector.shape_cast %60 : vector<8x128xf32> to vector<1x8x128xf32>
    tpu.vector_store %arg7[%c0_27, %c56, %c0_28], %63 {strides = array<i32>} : memref<2x176x128xf32, #tpu.memory_space<vmem>>, vector<1x8x128xf32>,
    %64 = vector.extract_strided_slice %48 {offsets = [0, 3, 0, 0], sizes = [1, 1, 8, 128], strides = [1, 1, 1, 1]} : vector<2x8x8x128xf32> to vector<1x1x8x128xf32>
    %65 = vector.shape_cast %64 : vector<1x1x8x128xf32> to vector<8x128xf32>
    %c0_29 = arith.constant 0 : index
    %c72 = arith.constant 72 : index
    %c0_30 = arith.constant 0 : index
    %66 = vector.load %arg7[%c0_29, %c72, %c0_30] : memref<2x176x128xf32, #tpu.memory_space<vmem>>, vector<1x8x128xf32>
    %67 = vector.shape_cast %66 : vector<1x8x128xf32> to vector<8x128xf32>
    %68 = vector.shape_cast %65 : vector<8x128xf32> to vector<1x8x128xf32>
    tpu.vector_store %arg7[%c0_29, %c72, %c0_30], %68 {strides = array<i32>} : memref<2x176x128xf32, #tpu.memory_space<vmem>>, vector<1x8x128xf32>,
    %69 = vector.extract_strided_slice %48 {offsets = [0, 4, 0, 0], sizes = [1, 1, 8, 128], strides = [1, 1, 1, 1]} : vector<2x8x8x128xf32> to vector<1x1x8x128xf32>
    %70 = vector.shape_cast %69 : vector<1x1x8x128xf32> to vector<8x128xf32>
    %c0_31 = arith.constant 0 : index
    %c88 = arith.constant 88 : index
    %c0_32 = arith.constant 0 : index
    %71 = vector.load %arg7[%c0_31, %c88, %c0_32] : memref<2x176x128xf32, #tpu.memory_space<vmem>>, vector<1x8x128xf32>
    %72 = vector.shape_cast %71 : vector<1x8x128xf32> to vector<8x128xf32>
    %73 = vector.shape_cast %70 : vector<8x128xf32> to vector<1x8x128xf32>
    tpu.vector_store %arg7[%c0_31, %c88, %c0_32], %73 {strides = array<i32>} : memref<2x176x128xf32, #tpu.memory_space<vmem>>, vector<1x8x128xf32>,
    %74 = vector.extract_strided_slice %48 {offsets = [0, 5, 0, 0], sizes = [1, 1, 8, 128], strides = [1, 1, 1, 1]} : vector<2x8x8x128xf32> to vector<1x1x8x128xf32>
    %75 = vector.shape_cast %74 : vector<1x1x8x128xf32> to vector<8x128xf32>
    %c0_33 = arith.constant 0 : index
    %c104 = arith.constant 104 : index
    %c0_34 = arith.constant 0 : index
    %76 = vector.load %arg7[%c0_33, %c104, %c0_34] : memref<2x176x128xf32, #tpu.memory_space<vmem>>, vector<1x8x128xf32>
    %77 = vector.shape_cast %76 : vector<1x8x128xf32> to vector<8x128xf32>
    %78 = vector.shape_cast %75 : vector<8x128xf32> to vector<1x8x128xf32>
    tpu.vector_store %arg7[%c0_33, %c104, %c0_34], %78 {strides = array<i32>} : memref<2x176x128xf32, #tpu.memory_space<vmem>>, vector<1x8x128xf32>,
    %79 = vector.extract_strided_slice %48 {offsets = [0, 6, 0, 0], sizes = [1, 1, 8, 128], strides = [1, 1, 1, 1]} : vector<2x8x8x128xf32> to vector<1x1x8x128xf32>
    %80 = vector.shape_cast %79 : vector<1x1x8x128xf32> to vector<8x128xf32>
    %c0_35 = arith.constant 0 : index
    %c120 = arith.constant 120 : index
    %c0_36 = arith.constant 0 : index
    %81 = vector.load %arg7[%c0_35, %c120, %c0_36] : memref<2x176x128xf32, #tpu.memory_space<vmem>>, vector<1x8x128xf32>
    %82 = vector.shape_cast %81 : vector<1x8x128xf32> to vector<8x128xf32>
    %83 = vector.shape_cast %80 : vector<8x128xf32> to vector<1x8x128xf32>
    tpu.vector_store %arg7[%c0_35, %c120, %c0_36], %83 {strides = array<i32>} : memref<2x176x128xf32, #tpu.memory_space<vmem>>, vector<1x8x128xf32>,
    %84 = vector.extract_strided_slice %48 {offsets = [0, 7, 0, 0], sizes = [1, 1, 8, 128], strides = [1, 1, 1, 1]} : vector<2x8x8x128xf32> to vector<1x1x8x128xf32>
    %85 = vector.shape_cast %84 : vector<1x1x8x128xf32> to vector<8x128xf32>
    %c0_37 = arith.constant 0 : index
    %c136 = arith.constant 136 : index
    %c0_38 = arith.constant 0 : index
    %86 = vector.load %arg7[%c0_37, %c136, %c0_38] : memref<2x176x128xf32, #tpu.memory_space<vmem>>, vector<1x8x128xf32>
    %87 = vector.shape_cast %86 : vector<1x8x128xf32> to vector<8x128xf32>
    %88 = vector.shape_cast %85 : vector<8x128xf32> to vector<1x8x128xf32>
    tpu.vector_store %arg7[%c0_37, %c136, %c0_38], %88 {strides = array<i32>} : memref<2x176x128xf32, #tpu.memory_space<vmem>>, vector<1x8x128xf32>,
    %89 = vector.extract_strided_slice %48 {offsets = [1, 0, 0, 0], sizes = [1, 1, 8, 128], strides = [1, 1, 1, 1]} : vector<2x8x8x128xf32> to vector<1x1x8x128xf32>
    %90 = vector.shape_cast %89 : vector<1x1x8x128xf32> to vector<8x128xf32>
    %c1_39 = arith.constant 1 : index
    %c24_40 = arith.constant 24 : index
    %c0_41 = arith.constant 0 : index
    %91 = vector.load %arg7[%c1_39, %c24_40, %c0_41] : memref<2x176x128xf32, #tpu.memory_space<vmem>>, vector<1x8x128xf32>
    %92 = vector.shape_cast %91 : vector<1x8x128xf32> to vector<8x128xf32>
    %93 = vector.shape_cast %90 : vector<8x128xf32> to vector<1x8x128xf32>
    tpu.vector_store %arg7[%c1_39, %c24_40, %c0_41], %93 {strides = array<i32>} : memref<2x176x128xf32, #tpu.memory_space<vmem>>, vector<1x8x128xf32>,
    %94 = vector.extract_strided_slice %48 {offsets = [1, 1, 0, 0], sizes = [1, 1, 8, 128], strides = [1, 1, 1, 1]} : vector<2x8x8x128xf32> to vector<1x1x8x128xf32>
    %95 = vector.shape_cast %94 : vector<1x1x8x128xf32> to vector<8x128xf32>
    %c1_42 = arith.constant 1 : index
    %c40_43 = arith.constant 40 : index
    %c0_44 = arith.constant 0 : index
    %96 = vector.load %arg7[%c1_42, %c40_43, %c0_44] : memref<2x176x128xf32, #tpu.memory_space<vmem>>, vector<1x8x128xf32>
    %97 = vector.shape_cast %96 : vector<1x8x128xf32> to vector<8x128xf32>
    %98 = vector.shape_cast %95 : vector<8x128xf32> to vector<1x8x128xf32>
    tpu.vector_store %arg7[%c1_42, %c40_43, %c0_44], %98 {strides = array<i32>} : memref<2x176x128xf32, #tpu.memory_space<vmem>>, vector<1x8x128xf32>,
    %99 = vector.extract_strided_slice %48 {offsets = [1, 2, 0, 0], sizes = [1, 1, 8, 128], strides = [1, 1, 1, 1]} : vector<2x8x8x128xf32> to vector<1x1x8x128xf32>
    %100 = vector.shape_cast %99 : vector<1x1x8x128xf32> to vector<8x128xf32>
    %c1_45 = arith.constant 1 : index
    %c56_46 = arith.constant 56 : index
    %c0_47 = arith.constant 0 : index
    %101 = vector.load %arg7[%c1_45, %c56_46, %c0_47] : memref<2x176x128xf32, #tpu.memory_space<vmem>>, vector<1x8x128xf32>
    %102 = vector.shape_cast %101 : vector<1x8x128xf32> to vector<8x128xf32>
    %103 = vector.shape_cast %100 : vector<8x128xf32> to vector<1x8x128xf32>
    tpu.vector_store %arg7[%c1_45, %c56_46, %c0_47], %103 {strides = array<i32>} : memref<2x176x128xf32, #tpu.memory_space<vmem>>, vector<1x8x128xf32>,
    %104 = vector.extract_strided_slice %48 {offsets = [1, 3, 0, 0], sizes = [1, 1, 8, 128], strides = [1, 1, 1, 1]} : vector<2x8x8x128xf32> to vector<1x1x8x128xf32>
    %105 = vector.shape_cast %104 : vector<1x1x8x128xf32> to vector<8x128xf32>
    %c1_48 = arith.constant 1 : index
    %c72_49 = arith.constant 72 : index
    %c0_50 = arith.constant 0 : index
    %106 = vector.load %arg7[%c1_48, %c72_49, %c0_50] : memref<2x176x128xf32, #tpu.memory_space<vmem>>, vector<1x8x128xf32>
    %107 = vector.shape_cast %106 : vector<1x8x128xf32> to vector<8x128xf32>
    %108 = vector.shape_cast %105 : vector<8x128xf32> to vector<1x8x128xf32>
    tpu.vector_store %arg7[%c1_48, %c72_49, %c0_50], %108 {strides = array<i32>} : memref<2x176x128xf32, #tpu.memory_space<vmem>>, vector<1x8x128xf32>,
    %109 = vector.extract_strided_slice %48 {offsets = [1, 4, 0, 0], sizes = [1, 1, 8, 128], strides = [1, 1, 1, 1]} : vector<2x8x8x128xf32> to vector<1x1x8x128xf32>
    %110 = vector.shape_cast %109 : vector<1x1x8x128xf32> to vector<8x128xf32>
    %c1_51 = arith.constant 1 : index
    %c88_52 = arith.constant 88 : index
    %c0_53 = arith.constant 0 : index
    %111 = vector.load %arg7[%c1_51, %c88_52, %c0_53] : memref<2x176x128xf32, #tpu.memory_space<vmem>>, vector<1x8x128xf32>
    %112 = vector.shape_cast %111 : vector<1x8x128xf32> to vector<8x128xf32>
    %113 = vector.shape_cast %110 : vector<8x128xf32> to vector<1x8x128xf32>
    tpu.vector_store %arg7[%c1_51, %c88_52, %c0_53], %113 {strides = array<i32>} : memref<2x176x128xf32, #tpu.memory_space<vmem>>, vector<1x8x128xf32>,
    %114 = vector.extract_strided_slice %48 {offsets = [1, 5, 0, 0], sizes = [1, 1, 8, 128], strides = [1, 1, 1, 1]} : vector<2x8x8x128xf32> to vector<1x1x8x128xf32>
    %115 = vector.shape_cast %114 : vector<1x1x8x128xf32> to vector<8x128xf32>
    %c1_54 = arith.constant 1 : index
    %c104_55 = arith.constant 104 : index
    %c0_56 = arith.constant 0 : index
    %116 = vector.load %arg7[%c1_54, %c104_55, %c0_56] : memref<2x176x128xf32, #tpu.memory_space<vmem>>, vector<1x8x128xf32>
    %117 = vector.shape_cast %116 : vector<1x8x128xf32> to vector<8x128xf32>
    %118 = vector.shape_cast %115 : vector<8x128xf32> to vector<1x8x128xf32>
    tpu.vector_store %arg7[%c1_54, %c104_55, %c0_56], %118 {strides = array<i32>} : memref<2x176x128xf32, #tpu.memory_space<vmem>>, vector<1x8x128xf32>,
    %119 = vector.extract_strided_slice %48 {offsets = [1, 6, 0, 0], sizes = [1, 1, 8, 128], strides = [1, 1, 1, 1]} : vector<2x8x8x128xf32> to vector<1x1x8x128xf32>
    %120 = vector.shape_cast %119 : vector<1x1x8x128xf32> to vector<8x128xf32>
    %c1_57 = arith.constant 1 : index
    %c120_58 = arith.constant 120 : index
    %c0_59 = arith.constant 0 : index
    %121 = vector.load %arg7[%c1_57, %c120_58, %c0_59] : memref<2x176x128xf32, #tpu.memory_space<vmem>>, vector<1x8x128xf32>
    %122 = vector.shape_cast %121 : vector<1x8x128xf32> to vector<8x128xf32>
    %123 = vector.shape_cast %120 : vector<8x128xf32> to vector<1x8x128xf32>
    tpu.vector_store %arg7[%c1_57, %c120_58, %c0_59], %123 {strides = array<i32>} : memref<2x176x128xf32, #tpu.memory_space<vmem>>, vector<1x8x128xf32>,
    %124 = vector.extract_strided_slice %48 {offsets = [1, 7, 0, 0], sizes = [1, 1, 8, 128], strides = [1, 1, 1, 1]} : vector<2x8x8x128xf32> to vector<1x1x8x128xf32>
    %125 = vector.shape_cast %124 : vector<1x1x8x128xf32> to vector<8x128xf32>
    %c1_60 = arith.constant 1 : index
    %c136_61 = arith.constant 136 : index
    %c0_62 = arith.constant 0 : index
    %126 = vector.load %arg7[%c1_60, %c136_61, %c0_62] : memref<2x176x128xf32, #tpu.memory_space<vmem>>, vector<1x8x128xf32>
    %127 = vector.shape_cast %126 : vector<1x8x128xf32> to vector<8x128xf32>
    %128 = vector.shape_cast %125 : vector<8x128xf32> to vector<1x8x128xf32>
    tpu.vector_store %arg7[%c1_60, %c136_61, %c0_62], %128 {strides = array<i32>} : memref<2x176x128xf32, #tpu.memory_space<vmem>>, vector<1x8x128xf32>,
    %c0_63 = arith.constant 0 : index
    %c7 = arith.constant 7 : index
    %c0_64 = arith.constant 0 : index
    %129 = vector.load %arg7[%c0_63, %c7, %c0_64] : memref<2x176x128xf32, #tpu.memory_space<vmem>>, vector<1x128x128xf32>
    %130 = vector.shape_cast %129 : vector<1x128x128xf32> to vector<128x128xf32>
    %131 = arith.truncf %130 : vector<128x128xf32> to vector<128x128xbf16>
    %c0_65 = arith.constant 0 : index
    %c0_66 = arith.constant 0 : index
    %132 = vector.load %arg8[%c0_65, %c0_66] : memref<256x1152xbf16, #tpu.memory_space<vmem>>, vector<128x128xbf16>
    tpu.vector_store %arg8[%c0_65, %c0_66], %131 {strides = array<i32>} : memref<256x1152xbf16, #tpu.memory_space<vmem>>, vector<128x128xbf16>,
    %c0_67 = arith.constant 0 : index
    %c8_68 = arith.constant 8 : index
    %c0_69 = arith.constant 0 : index
    %133 = vector.load %arg7[%c0_67, %c8_68, %c0_69] : memref<2x176x128xf32, #tpu.memory_space<vmem>>, vector<1x128x128xf32>
    %134 = vector.shape_cast %133 : vector<1x128x128xf32> to vector<128x128xf32>
    %135 = arith.truncf %134 : vector<128x128xf32> to vector<128x128xbf16>
    %c0_70 = arith.constant 0 : index
    %c128 = arith.constant 128 : index
    %136 = vector.load %arg8[%c0_70, %c128] : memref<256x1152xbf16, #tpu.memory_space<vmem>>, vector<128x128xbf16>
    tpu.vector_store %arg8[%c0_70, %c128], %135 {strides = array<i32>} : memref<256x1152xbf16, #tpu.memory_space<vmem>>, vector<128x128xbf16>,
    %c0_71 = arith.constant 0 : index
    %c9 = arith.constant 9 : index
    %c0_72 = arith.constant 0 : index
    %137 = vector.load %arg7[%c0_71, %c9, %c0_72] : memref<2x176x128xf32, #tpu.memory_space<vmem>>, vector<1x128x128xf32>
    %138 = vector.shape_cast %137 : vector<1x128x128xf32> to vector<128x128xf32>
    %139 = arith.truncf %138 : vector<128x128xf32> to vector<128x128xbf16>
    %c0_73 = arith.constant 0 : index
    %c256 = arith.constant 256 : index
    %140 = vector.load %arg8[%c0_73, %c256] : memref<256x1152xbf16, #tpu.memory_space<vmem>>, vector<128x128xbf16>
    tpu.vector_store %arg8[%c0_73, %c256], %139 {strides = array<i32>} : memref<256x1152xbf16, #tpu.memory_space<vmem>>, vector<128x128xbf16>,
    %c0_74 = arith.constant 0 : index
    %c23 = arith.constant 23 : index
    %c0_75 = arith.constant 0 : index
    %141 = vector.load %arg7[%c0_74, %c23, %c0_75] : memref<2x176x128xf32, #tpu.memory_space<vmem>>, vector<1x128x128xf32>
    %142 = vector.shape_cast %141 : vector<1x128x128xf32> to vector<128x128xf32>
    %143 = arith.truncf %142 : vector<128x128xf32> to vector<128x128xbf16>
    %c0_76 = arith.constant 0 : index
    %c384 = arith.constant 384 : index
    %144 = vector.load %arg8[%c0_76, %c384] : memref<256x1152xbf16, #tpu.memory_space<vmem>>, vector<128x128xbf16>
    tpu.vector_store %arg8[%c0_76, %c384], %143 {strides = array<i32>} : memref<256x1152xbf16, #tpu.memory_space<vmem>>, vector<128x128xbf16>,
    %c0_77 = arith.constant 0 : index
    %c24_78 = arith.constant 24 : index
    %c0_79 = arith.constant 0 : index
    %145 = vector.load %arg7[%c0_77, %c24_78, %c0_79] : memref<2x176x128xf32, #tpu.memory_space<vmem>>, vector<1x128x128xf32>
    %146 = vector.shape_cast %145 : vector<1x128x128xf32> to vector<128x128xf32>
    %147 = arith.truncf %146 : vector<128x128xf32> to vector<128x128xbf16>
    %c0_80 = arith.constant 0 : index
    %c512 = arith.constant 512 : index
    %148 = vector.load %arg8[%c0_80, %c512] : memref<256x1152xbf16, #tpu.memory_space<vmem>>, vector<128x128xbf16>
    tpu.vector_store %arg8[%c0_80, %c512], %147 {strides = array<i32>} : memref<256x1152xbf16, #tpu.memory_space<vmem>>, vector<128x128xbf16>,
    %c0_81 = arith.constant 0 : index
    %c25 = arith.constant 25 : index
    %c0_82 = arith.constant 0 : index
    %149 = vector.load %arg7[%c0_81, %c25, %c0_82] : memref<2x176x128xf32, #tpu.memory_space<vmem>>, vector<1x128x128xf32>
    %150 = vector.shape_cast %149 : vector<1x128x128xf32> to vector<128x128xf32>
    %151 = arith.truncf %150 : vector<128x128xf32> to vector<128x128xbf16>
    %c0_83 = arith.constant 0 : index
    %c640 = arith.constant 640 : index
    %152 = vector.load %arg8[%c0_83, %c640] : memref<256x1152xbf16, #tpu.memory_space<vmem>>, vector<128x128xbf16>
    tpu.vector_store %arg8[%c0_83, %c640], %151 {strides = array<i32>} : memref<256x1152xbf16, #tpu.memory_space<vmem>>, vector<128x128xbf16>,
    %c0_84 = arith.constant 0 : index
    %c39 = arith.constant 39 : index
    %c0_85 = arith.constant 0 : index
    %153 = vector.load %arg7[%c0_84, %c39, %c0_85] : memref<2x176x128xf32, #tpu.memory_space<vmem>>, vector<1x128x128xf32>
    %154 = vector.shape_cast %153 : vector<1x128x128xf32> to vector<128x128xf32>
    %155 = arith.truncf %154 : vector<128x128xf32> to vector<128x128xbf16>
    %c0_86 = arith.constant 0 : index
    %c768 = arith.constant 768 : index
    %156 = vector.load %arg8[%c0_86, %c768] : memref<256x1152xbf16, #tpu.memory_space<vmem>>, vector<128x128xbf16>
    tpu.vector_store %arg8[%c0_86, %c768], %155 {strides = array<i32>} : memref<256x1152xbf16, #tpu.memory_space<vmem>>, vector<128x128xbf16>,
    %c0_87 = arith.constant 0 : index
    %c40_88 = arith.constant 40 : index
    %c0_89 = arith.constant 0 : index
    %157 = vector.load %arg7[%c0_87, %c40_88, %c0_89] : memref<2x176x128xf32, #tpu.memory_space<vmem>>, vector<1x128x128xf32>
    %158 = vector.shape_cast %157 : vector<1x128x128xf32> to vector<128x128xf32>
    %159 = arith.truncf %158 : vector<128x128xf32> to vector<128x128xbf16>
    %c0_90 = arith.constant 0 : index
    %c896 = arith.constant 896 : index
    %160 = vector.load %arg8[%c0_90, %c896] : memref<256x1152xbf16, #tpu.memory_space<vmem>>, vector<128x128xbf16>
    tpu.vector_store %arg8[%c0_90, %c896], %159 {strides = array<i32>} : memref<256x1152xbf16, #tpu.memory_space<vmem>>, vector<128x128xbf16>,
    %c0_91 = arith.constant 0 : index
    %c41 = arith.constant 41 : index
    %c0_92 = arith.constant 0 : index
    %161 = vector.load %arg7[%c0_91, %c41, %c0_92] : memref<2x176x128xf32, #tpu.memory_space<vmem>>, vector<1x128x128xf32>
    %162 = vector.shape_cast %161 : vector<1x128x128xf32> to vector<128x128xf32>
    %163 = arith.truncf %162 : vector<128x128xf32> to vector<128x128xbf16>
    %c0_93 = arith.constant 0 : index
    %c1024 = arith.constant 1024 : index
    %164 = vector.load %arg8[%c0_93, %c1024] : memref<256x1152xbf16, #tpu.memory_space<vmem>>, vector<128x128xbf16>
    tpu.vector_store %arg8[%c0_93, %c1024], %163 {strides = array<i32>} : memref<256x1152xbf16, #tpu.memory_space<vmem>>, vector<128x128xbf16>,
    %c1_94 = arith.constant 1 : index
    %c7_95 = arith.constant 7 : index
    %c0_96 = arith.constant 0 : index
    %165 = vector.load %arg7[%c1_94, %c7_95, %c0_96] : memref<2x176x128xf32, #tpu.memory_space<vmem>>, vector<1x128x128xf32>
    %166 = vector.shape_cast %165 : vector<1x128x128xf32> to vector<128x128xf32>
    %167 = arith.truncf %166 : vector<128x128xf32> to vector<128x128xbf16>
    %c128_97 = arith.constant 128 : index
    %c0_98 = arith.constant 0 : index
    %168 = vector.load %arg8[%c128_97, %c0_98] : memref<256x1152xbf16, #tpu.memory_space<vmem>>, vector<128x128xbf16>
    tpu.vector_store %arg8[%c128_97, %c0_98], %167 {strides = array<i32>} : memref<256x1152xbf16, #tpu.memory_space<vmem>>, vector<128x128xbf16>,
    %c1_99 = arith.constant 1 : index
    %c8_100 = arith.constant 8 : index
    %c0_101 = arith.constant 0 : index
    %169 = vector.load %arg7[%c1_99, %c8_100, %c0_101] : memref<2x176x128xf32, #tpu.memory_space<vmem>>, vector<1x128x128xf32>
    %170 = vector.shape_cast %169 : vector<1x128x128xf32> to vector<128x128xf32>
    %171 = arith.truncf %170 : vector<128x128xf32> to vector<128x128xbf16>
    %c128_102 = arith.constant 128 : index
    %c128_103 = arith.constant 128 : index
    %172 = vector.load %arg8[%c128_102, %c128_103] : memref<256x1152xbf16, #tpu.memory_space<vmem>>, vector<128x128xbf16>
    tpu.vector_store %arg8[%c128_102, %c128_103], %171 {strides = array<i32>} : memref<256x1152xbf16, #tpu.memory_space<vmem>>, vector<128x128xbf16>,
    %c1_104 = arith.constant 1 : index
    %c9_105 = arith.constant 9 : index
    %c0_106 = arith.constant 0 : index
    %173 = vector.load %arg7[%c1_104, %c9_105, %c0_106] : memref<2x176x128xf32, #tpu.memory_space<vmem>>, vector<1x128x128xf32>
    %174 = vector.shape_cast %173 : vector<1x128x128xf32> to vector<128x128xf32>
    %175 = arith.truncf %174 : vector<128x128xf32> to vector<128x128xbf16>
    %c128_107 = arith.constant 128 : index
    %c256_108 = arith.constant 256 : index
    %176 = vector.load %arg8[%c128_107, %c256_108] : memref<256x1152xbf16, #tpu.memory_space<vmem>>, vector<128x128xbf16>
    tpu.vector_store %arg8[%c128_107, %c256_108], %175 {strides = array<i32>} : memref<256x1152xbf16, #tpu.memory_space<vmem>>, vector<128x128xbf16>,
    %c1_109 = arith.constant 1 : index
    %c23_110 = arith.constant 23 : index
    %c0_111 = arith.constant 0 : index
    %177 = vector.load %arg7[%c1_109, %c23_110, %c0_111] : memref<2x176x128xf32, #tpu.memory_space<vmem>>, vector<1x128x128xf32>
    %178 = vector.shape_cast %177 : vector<1x128x128xf32> to vector<128x128xf32>
    %179 = arith.truncf %178 : vector<128x128xf32> to vector<128x128xbf16>
    %c128_112 = arith.constant 128 : index
    %c384_113 = arith.constant 384 : index
    %180 = vector.load %arg8[%c128_112, %c384_113] : memref<256x1152xbf16, #tpu.memory_space<vmem>>, vector<128x128xbf16>
    tpu.vector_store %arg8[%c128_112, %c384_113], %179 {strides = array<i32>} : memref<256x1152xbf16, #tpu.memory_space<vmem>>, vector<128x128xbf16>,
    %c1_114 = arith.constant 1 : index
    %c24_115 = arith.constant 24 : index
    %c0_116 = arith.constant 0 : index
    %181 = vector.load %arg7[%c1_114, %c24_115, %c0_116] : memref<2x176x128xf32, #tpu.memory_space<vmem>>, vector<1x128x128xf32>
    %182 = vector.shape_cast %181 : vector<1x128x128xf32> to vector<128x128xf32>
    %183 = arith.truncf %182 : vector<128x128xf32> to vector<128x128xbf16>
    %c128_117 = arith.constant 128 : index
    %c512_118 = arith.constant 512 : index
    %184 = vector.load %arg8[%c128_117, %c512_118] : memref<256x1152xbf16, #tpu.memory_space<vmem>>, vector<128x128xbf16>
    tpu.vector_store %arg8[%c128_117, %c512_118], %183 {strides = array<i32>} : memref<256x1152xbf16, #tpu.memory_space<vmem>>, vector<128x128xbf16>,
    %c1_119 = arith.constant 1 : index
    %c25_120 = arith.constant 25 : index
    %c0_121 = arith.constant 0 : index
    %185 = vector.load %arg7[%c1_119, %c25_120, %c0_121] : memref<2x176x128xf32, #tpu.memory_space<vmem>>, vector<1x128x128xf32>
    %186 = vector.shape_cast %185 : vector<1x128x128xf32> to vector<128x128xf32>
    %187 = arith.truncf %186 : vector<128x128xf32> to vector<128x128xbf16>
    %c128_122 = arith.constant 128 : index
    %c640_123 = arith.constant 640 : index
    %188 = vector.load %arg8[%c128_122, %c640_123] : memref<256x1152xbf16, #tpu.memory_space<vmem>>, vector<128x128xbf16>
    tpu.vector_store %arg8[%c128_122, %c640_123], %187 {strides = array<i32>} : memref<256x1152xbf16, #tpu.memory_space<vmem>>, vector<128x128xbf16>,
    %c1_124 = arith.constant 1 : index
    %c39_125 = arith.constant 39 : index
    %c0_126 = arith.constant 0 : index
    %189 = vector.load %arg7[%c1_124, %c39_125, %c0_126] : memref<2x176x128xf32, #tpu.memory_space<vmem>>, vector<1x128x128xf32>
    %190 = vector.shape_cast %189 : vector<1x128x128xf32> to vector<128x128xf32>
    %191 = arith.truncf %190 : vector<128x128xf32> to vector<128x128xbf16>
    %c128_127 = arith.constant 128 : index
    %c768_128 = arith.constant 768 : index
    %192 = vector.load %arg8[%c128_127, %c768_128] : memref<256x1152xbf16, #tpu.memory_space<vmem>>, vector<128x128xbf16>
    tpu.vector_store %arg8[%c128_127, %c768_128], %191 {strides = array<i32>} : memref<256x1152xbf16, #tpu.memory_space<vmem>>, vector<128x128xbf16>,
    %c1_129 = arith.constant 1 : index
    %c40_130 = arith.constant 40 : index
    %c0_131 = arith.constant 0 : index
    %193 = vector.load %arg7[%c1_129, %c40_130, %c0_131] : memref<2x176x128xf32, #tpu.memory_space<vmem>>, vector<1x128x128xf32>
    %194 = vector.shape_cast %193 : vector<1x128x128xf32> to vector<128x128xf32>
    %195 = arith.truncf %194 : vector<128x128xf32> to vector<128x128xbf16>
    %c128_132 = arith.constant 128 : index
    %c896_133 = arith.constant 896 : index
    %196 = vector.load %arg8[%c128_132, %c896_133] : memref<256x1152xbf16, #tpu.memory_space<vmem>>, vector<128x128xbf16>
    tpu.vector_store %arg8[%c128_132, %c896_133], %195 {strides = array<i32>} : memref<256x1152xbf16, #tpu.memory_space<vmem>>, vector<128x128xbf16>,
    %c1_134 = arith.constant 1 : index
    %c41_135 = arith.constant 41 : index
    %c0_136 = arith.constant 0 : index
    %197 = vector.load %arg7[%c1_134, %c41_135, %c0_136] : memref<2x176x128xf32, #tpu.memory_space<vmem>>, vector<1x128x128xf32>
    %198 = vector.shape_cast %197 : vector<1x128x128xf32> to vector<128x128xf32>
    %199 = arith.truncf %198 : vector<128x128xf32> to vector<128x128xbf16>
    %c128_137 = arith.constant 128 : index
    %c1024_138 = arith.constant 1024 : index
    %200 = vector.load %arg8[%c128_137, %c1024_138] : memref<256x1152xbf16, #tpu.memory_space<vmem>>, vector<128x128xbf16>
    tpu.vector_store %arg8[%c128_137, %c1024_138], %199 {strides = array<i32>} : memref<256x1152xbf16, #tpu.memory_space<vmem>>, vector<128x128xbf16>,
    %c0_139 = arith.constant 0 : index
    %c0_140 = arith.constant 0 : index
    %201 = vector.load %arg8[%c0_139, %c0_140] : memref<256x1152xbf16, #tpu.memory_space<vmem>>, vector<256x1152xbf16>
    %c0_141 = arith.constant 0 : index
    %c0_142 = arith.constant 0 : index
    %202 = vector.load %arg4[%c0_141, %c0_142] : memref<1152x128xbf16, #tpu.memory_space<vmem>>, vector<1152x128xbf16>
    %cst_143 = arith.constant dense<0.000000e+00> : vector<256x128xf32>
    %203 = tpu.matmul %201, %202, %cst_143 {dimension_numbers = #tpu.dot_dimension_numbers<[1], [0], [0], [1], [0, 0, 1, 1], [], []>} : vector<256x1152xbf16>, vector<1152x128xbf16>, vector<256x128xf32> -> vector<256x128xf32>
    %204 = vector.shape_cast %203 : vector<256x128xf32> to vector<2x8x16x128xf32>
    %205 = vector.extract_strided_slice %204 {offsets = [0, 0, 0, 0], sizes = [2, 8, 8, 128], strides = [1, 1, 1, 1]} : vector<2x8x16x128xf32> to vector<2x8x8x128xf32>
    %206 = vector.shape_cast %205 : vector<2x8x8x128xf32> to vector<128x128xf32>
    %207 = vector.broadcast %4 : vector<1x128xf32> to vector<128x128xf32>
    %208 = arith.addf %206, %207 : vector<128x128xf32>
    %209 = vector.shape_cast %208 : vector<128x128xf32> to vector<2x64x128xf32>
    %cst_144 = arith.constant dense<0.000000e+00> : vector<2x128xf32>
    %210 = vector.multi_reduction <add>, %209, %cst_144 [1] : vector<2x64x128xf32> to vector<2x128xf32>
    %211 = arith.mulf %209, %209 : vector<2x64x128xf32>
    %cst_145 = arith.constant dense<0.000000e+00> : vector<2x128xf32>
    %212 = vector.multi_reduction <add>, %211, %cst_145 [1] : vector<2x64x128xf32> to vector<2x128xf32>
    %213 = tpu.concatenate %210, %212 in 0 : vector<2x128xf32>, vector<2x128xf32> -> vector<4x128xf32>
    %cst_146 = arith.constant dense<0.000000e+00> : vector<4x8xf32>
    %214 = tpu.matmul %213, %0, %cst_146 {dimension_numbers = #tpu.dot_dimension_numbers<[1], [0], [0], [1], [0, 0, 1, 1], [], []>} : vector<4x128xf32>, vector<128x8xf32>, vector<4x8xf32> -> vector<4x8xf32>
    %215 = vector.extract_strided_slice %214 {offsets = [0, 0], sizes = [2, 8], strides = [1, 1]} : vector<4x8xf32> to vector<2x8xf32>
    %cst_147 = arith.constant 9.765625E-4 : f32
    %216 = vector.broadcast %cst_147 : f32 to vector<2x8xf32>
    %217 = arith.mulf %215, %216 : vector<2x8xf32>
    %218 = vector.extract_strided_slice %214 {offsets = [2, 0], sizes = [2, 8], strides = [1, 1]} : vector<4x8xf32> to vector<2x8xf32>
    %cst_148 = arith.constant 9.765625E-4 : f32
    %219 = vector.broadcast %cst_148 : f32 to vector<2x8xf32>
    %220 = arith.mulf %218, %219 : vector<2x8xf32>
    %221 = arith.mulf %217, %217 : vector<2x8xf32>
    %222 = arith.subf %220, %221 : vector<2x8xf32>
    %cst_149 = arith.constant 0.000000e+00 : f32
    %223 = vector.broadcast %cst_149 : f32 to vector<2x8xf32>
    %224 = arith.maximumf %222, %223 : vector<2x8xf32>
    %cst_150 = arith.constant 9.99999974E-6 : f32
    %225 = vector.broadcast %cst_150 : f32 to vector<2x8xf32>
    %226 = arith.addf %224, %225 : vector<2x8xf32>
    %227 = math.rsqrt %226 : vector<2x8xf32>
    %228 = tpu.concatenate %217, %227 in 0 : vector<2x8xf32>, vector<2x8xf32> -> vector<4x8xf32>
    %cst_151 = arith.constant dense<0.000000e+00> : vector<4x128xf32>
    %229 = tpu.matmul %228, %1, %cst_151 {dimension_numbers = #tpu.dot_dimension_numbers<[1], [0], [0], [1], [0, 0, 1, 1], [], []>} : vector<4x8xf32>, vector<8x128xf32>, vector<4x128xf32> -> vector<4x128xf32>
    %230 = vector.extract_strided_slice %229 {offsets = [2, 0], sizes = [2, 128], strides = [1, 1]} : vector<4x128xf32> to vector<2x128xf32>
    %231 = vector.broadcast %5 : vector<1x128xf32> to vector<2x128xf32>
    %232 = arith.mulf %230, %231 : vector<2x128xf32>
    %233 = vector.extract_strided_slice %229 {offsets = [0, 0], sizes = [2, 128], strides = [1, 1]} : vector<4x128xf32> to vector<2x128xf32>
    %234 = arith.mulf %233, %232 : vector<2x128xf32>
    %235 = vector.broadcast %6 : vector<1x128xf32> to vector<2x128xf32>
    %236 = arith.subf %235, %234 : vector<2x128xf32>
    %237 = vector.shape_cast %232 : vector<2x128xf32> to vector<2x1x128xf32>
    %238 = vector.broadcast %237 : vector<2x1x128xf32> to vector<2x64x128xf32>
    %239 = arith.mulf %209, %238 : vector<2x64x128xf32>
    %240 = vector.shape_cast %236 : vector<2x128xf32> to vector<2x1x128xf32>
    %241 = vector.broadcast %240 : vector<2x1x128xf32> to vector<2x64x128xf32>
    %242 = arith.addf %239, %241 : vector<2x64x128xf32>
    %cst_152 = arith.constant 0.000000e+00 : f32
    %243 = vector.broadcast %cst_152 : f32 to vector<2x64x128xf32>
    %244 = arith.maximumf %242, %243 : vector<2x64x128xf32>
    %245 = vector.shape_cast %244 : vector<2x64x128xf32> to vector<128x128xf32>
    %246 = vector.shape_cast %245 : vector<128x128xf32> to vector<2x8x8x128xf32>
    %247 = vector.extract_strided_slice %246 {offsets = [0, 0, 0, 0], sizes = [1, 1, 8, 128], strides = [1, 1, 1, 1]} : vector<2x8x8x128xf32> to vector<1x1x8x128xf32>
    %248 = vector.shape_cast %247 : vector<1x1x8x128xf32> to vector<8x128xf32>
    %c0_153 = arith.constant 0 : index
    %c24_154 = arith.constant 24 : index
    %c0_155 = arith.constant 0 : index
    %249 = vector.load %arg7[%c0_153, %c24_154, %c0_155] : memref<2x176x128xf32, #tpu.memory_space<vmem>>, vector<1x8x128xf32>
    %250 = vector.shape_cast %249 : vector<1x8x128xf32> to vector<8x128xf32>
    %251 = vector.shape_cast %248 : vector<8x128xf32> to vector<1x8x128xf32>
    tpu.vector_store %arg7[%c0_153, %c24_154, %c0_155], %251 {strides = array<i32>} : memref<2x176x128xf32, #tpu.memory_space<vmem>>, vector<1x8x128xf32>,
    %252 = vector.extract_strided_slice %246 {offsets = [0, 1, 0, 0], sizes = [1, 1, 8, 128], strides = [1, 1, 1, 1]} : vector<2x8x8x128xf32> to vector<1x1x8x128xf32>
    %253 = vector.shape_cast %252 : vector<1x1x8x128xf32> to vector<8x128xf32>
    %c0_156 = arith.constant 0 : index
    %c40_157 = arith.constant 40 : index
    %c0_158 = arith.constant 0 : index
    %254 = vector.load %arg7[%c0_156, %c40_157, %c0_158] : memref<2x176x128xf32, #tpu.memory_space<vmem>>, vector<1x8x128xf32>
    %255 = vector.shape_cast %254 : vector<1x8x128xf32> to vector<8x128xf32>
    %256 = vector.shape_cast %253 : vector<8x128xf32> to vector<1x8x128xf32>
    tpu.vector_store %arg7[%c0_156, %c40_157, %c0_158], %256 {strides = array<i32>} : memref<2x176x128xf32, #tpu.memory_space<vmem>>, vector<1x8x128xf32>,
    %257 = vector.extract_strided_slice %246 {offsets = [0, 2, 0, 0], sizes = [1, 1, 8, 128], strides = [1, 1, 1, 1]} : vector<2x8x8x128xf32> to vector<1x1x8x128xf32>
    %258 = vector.shape_cast %257 : vector<1x1x8x128xf32> to vector<8x128xf32>
    %c0_159 = arith.constant 0 : index
    %c56_160 = arith.constant 56 : index
    %c0_161 = arith.constant 0 : index
    %259 = vector.load %arg7[%c0_159, %c56_160, %c0_161] : memref<2x176x128xf32, #tpu.memory_space<vmem>>, vector<1x8x128xf32>
    %260 = vector.shape_cast %259 : vector<1x8x128xf32> to vector<8x128xf32>
    %261 = vector.shape_cast %258 : vector<8x128xf32> to vector<1x8x128xf32>
    tpu.vector_store %arg7[%c0_159, %c56_160, %c0_161], %261 {strides = array<i32>} : memref<2x176x128xf32, #tpu.memory_space<vmem>>, vector<1x8x128xf32>,
    %262 = vector.extract_strided_slice %246 {offsets = [0, 3, 0, 0], sizes = [1, 1, 8, 128], strides = [1, 1, 1, 1]} : vector<2x8x8x128xf32> to vector<1x1x8x128xf32>
    %263 = vector.shape_cast %262 : vector<1x1x8x128xf32> to vector<8x128xf32>
    %c0_162 = arith.constant 0 : index
    %c72_163 = arith.constant 72 : index
    %c0_164 = arith.constant 0 : index
    %264 = vector.load %arg7[%c0_162, %c72_163, %c0_164] : memref<2x176x128xf32, #tpu.memory_space<vmem>>, vector<1x8x128xf32>
    %265 = vector.shape_cast %264 : vector<1x8x128xf32> to vector<8x128xf32>
    %266 = vector.shape_cast %263 : vector<8x128xf32> to vector<1x8x128xf32>
    tpu.vector_store %arg7[%c0_162, %c72_163, %c0_164], %266 {strides = array<i32>} : memref<2x176x128xf32, #tpu.memory_space<vmem>>, vector<1x8x128xf32>,
    %267 = vector.extract_strided_slice %246 {offsets = [0, 4, 0, 0], sizes = [1, 1, 8, 128], strides = [1, 1, 1, 1]} : vector<2x8x8x128xf32> to vector<1x1x8x128xf32>
    %268 = vector.shape_cast %267 : vector<1x1x8x128xf32> to vector<8x128xf32>
    %c0_165 = arith.constant 0 : index
    %c88_166 = arith.constant 88 : index
    %c0_167 = arith.constant 0 : index
    %269 = vector.load %arg7[%c0_165, %c88_166, %c0_167] : memref<2x176x128xf32, #tpu.memory_space<vmem>>, vector<1x8x128xf32>
    %270 = vector.shape_cast %269 : vector<1x8x128xf32> to vector<8x128xf32>
    %271 = vector.shape_cast %268 : vector<8x128xf32> to vector<1x8x128xf32>
    tpu.vector_store %arg7[%c0_165, %c88_166, %c0_167], %271 {strides = array<i32>} : memref<2x176x128xf32, #tpu.memory_space<vmem>>, vector<1x8x128xf32>,
    %272 = vector.extract_strided_slice %246 {offsets = [0, 5, 0, 0], sizes = [1, 1, 8, 128], strides = [1, 1, 1, 1]} : vector<2x8x8x128xf32> to vector<1x1x8x128xf32>
    %273 = vector.shape_cast %272 : vector<1x1x8x128xf32> to vector<8x128xf32>
    %c0_168 = arith.constant 0 : index
    %c104_169 = arith.constant 104 : index
    %c0_170 = arith.constant 0 : index
    %274 = vector.load %arg7[%c0_168, %c104_169, %c0_170] : memref<2x176x128xf32, #tpu.memory_space<vmem>>, vector<1x8x128xf32>
    %275 = vector.shape_cast %274 : vector<1x8x128xf32> to vector<8x128xf32>
    %276 = vector.shape_cast %273 : vector<8x128xf32> to vector<1x8x128xf32>
    tpu.vector_store %arg7[%c0_168, %c104_169, %c0_170], %276 {strides = array<i32>} : memref<2x176x128xf32, #tpu.memory_space<vmem>>, vector<1x8x128xf32>,
    %277 = vector.extract_strided_slice %246 {offsets = [0, 6, 0, 0], sizes = [1, 1, 8, 128], strides = [1, 1, 1, 1]} : vector<2x8x8x128xf32> to vector<1x1x8x128xf32>
    %278 = vector.shape_cast %277 : vector<1x1x8x128xf32> to vector<8x128xf32>
    %c0_171 = arith.constant 0 : index
    %c120_172 = arith.constant 120 : index
    %c0_173 = arith.constant 0 : index
    %279 = vector.load %arg7[%c0_171, %c120_172, %c0_173] : memref<2x176x128xf32, #tpu.memory_space<vmem>>, vector<1x8x128xf32>
    %280 = vector.shape_cast %279 : vector<1x8x128xf32> to vector<8x128xf32>
    %281 = vector.shape_cast %278 : vector<8x128xf32> to vector<1x8x128xf32>
    tpu.vector_store %arg7[%c0_171, %c120_172, %c0_173], %281 {strides = array<i32>} : memref<2x176x128xf32, #tpu.memory_space<vmem>>, vector<1x8x128xf32>,
    %282 = vector.extract_strided_slice %246 {offsets = [0, 7, 0, 0], sizes = [1, 1, 8, 128], strides = [1, 1, 1, 1]} : vector<2x8x8x128xf32> to vector<1x1x8x128xf32>
    %283 = vector.shape_cast %282 : vector<1x1x8x128xf32> to vector<8x128xf32>
    %c0_174 = arith.constant 0 : index
    %c136_175 = arith.constant 136 : index
    %c0_176 = arith.constant 0 : index
    %284 = vector.load %arg7[%c0_174, %c136_175, %c0_176] : memref<2x176x128xf32, #tpu.memory_space<vmem>>, vector<1x8x128xf32>
    %285 = vector.shape_cast %284 : vector<1x8x128xf32> to vector<8x128xf32>
    %286 = vector.shape_cast %283 : vector<8x128xf32> to vector<1x8x128xf32>
    tpu.vector_store %arg7[%c0_174, %c136_175, %c0_176], %286 {strides = array<i32>} : memref<2x176x128xf32, #tpu.memory_space<vmem>>, vector<1x8x128xf32>,
    %287 = vector.extract_strided_slice %246 {offsets = [1, 0, 0, 0], sizes = [1, 1, 8, 128], strides = [1, 1, 1, 1]} : vector<2x8x8x128xf32> to vector<1x1x8x128xf32>
    %288 = vector.shape_cast %287 : vector<1x1x8x128xf32> to vector<8x128xf32>
    %c1_177 = arith.constant 1 : index
    %c24_178 = arith.constant 24 : index
    %c0_179 = arith.constant 0 : index
    %289 = vector.load %arg7[%c1_177, %c24_178, %c0_179] : memref<2x176x128xf32, #tpu.memory_space<vmem>>, vector<1x8x128xf32>
    %290 = vector.shape_cast %289 : vector<1x8x128xf32> to vector<8x128xf32>
    %291 = vector.shape_cast %288 : vector<8x128xf32> to vector<1x8x128xf32>
    tpu.vector_store %arg7[%c1_177, %c24_178, %c0_179], %291 {strides = array<i32>} : memref<2x176x128xf32, #tpu.memory_space<vmem>>, vector<1x8x128xf32>,
    %292 = vector.extract_strided_slice %246 {offsets = [1, 1, 0, 0], sizes = [1, 1, 8, 128], strides = [1, 1, 1, 1]} : vector<2x8x8x128xf32> to vector<1x1x8x128xf32>
    %293 = vector.shape_cast %292 : vector<1x1x8x128xf32> to vector<8x128xf32>
    %c1_180 = arith.constant 1 : index
    %c40_181 = arith.constant 40 : index
    %c0_182 = arith.constant 0 : index
    %294 = vector.load %arg7[%c1_180, %c40_181, %c0_182] : memref<2x176x128xf32, #tpu.memory_space<vmem>>, vector<1x8x128xf32>
    %295 = vector.shape_cast %294 : vector<1x8x128xf32> to vector<8x128xf32>
    %296 = vector.shape_cast %293 : vector<8x128xf32> to vector<1x8x128xf32>
    tpu.vector_store %arg7[%c1_180, %c40_181, %c0_182], %296 {strides = array<i32>} : memref<2x176x128xf32, #tpu.memory_space<vmem>>, vector<1x8x128xf32>,
    %297 = vector.extract_strided_slice %246 {offsets = [1, 2, 0, 0], sizes = [1, 1, 8, 128], strides = [1, 1, 1, 1]} : vector<2x8x8x128xf32> to vector<1x1x8x128xf32>
    %298 = vector.shape_cast %297 : vector<1x1x8x128xf32> to vector<8x128xf32>
    %c1_183 = arith.constant 1 : index
    %c56_184 = arith.constant 56 : index
    %c0_185 = arith.constant 0 : index
    %299 = vector.load %arg7[%c1_183, %c56_184, %c0_185] : memref<2x176x128xf32, #tpu.memory_space<vmem>>, vector<1x8x128xf32>
    %300 = vector.shape_cast %299 : vector<1x8x128xf32> to vector<8x128xf32>
    %301 = vector.shape_cast %298 : vector<8x128xf32> to vector<1x8x128xf32>
    tpu.vector_store %arg7[%c1_183, %c56_184, %c0_185], %301 {strides = array<i32>} : memref<2x176x128xf32, #tpu.memory_space<vmem>>, vector<1x8x128xf32>,
    %302 = vector.extract_strided_slice %246 {offsets = [1, 3, 0, 0], sizes = [1, 1, 8, 128], strides = [1, 1, 1, 1]} : vector<2x8x8x128xf32> to vector<1x1x8x128xf32>
    %303 = vector.shape_cast %302 : vector<1x1x8x128xf32> to vector<8x128xf32>
    %c1_186 = arith.constant 1 : index
    %c72_187 = arith.constant 72 : index
    %c0_188 = arith.constant 0 : index
    %304 = vector.load %arg7[%c1_186, %c72_187, %c0_188] : memref<2x176x128xf32, #tpu.memory_space<vmem>>, vector<1x8x128xf32>
    %305 = vector.shape_cast %304 : vector<1x8x128xf32> to vector<8x128xf32>
    %306 = vector.shape_cast %303 : vector<8x128xf32> to vector<1x8x128xf32>
    tpu.vector_store %arg7[%c1_186, %c72_187, %c0_188], %306 {strides = array<i32>} : memref<2x176x128xf32, #tpu.memory_space<vmem>>, vector<1x8x128xf32>,
    %307 = vector.extract_strided_slice %246 {offsets = [1, 4, 0, 0], sizes = [1, 1, 8, 128], strides = [1, 1, 1, 1]} : vector<2x8x8x128xf32> to vector<1x1x8x128xf32>
    %308 = vector.shape_cast %307 : vector<1x1x8x128xf32> to vector<8x128xf32>
    %c1_189 = arith.constant 1 : index
    %c88_190 = arith.constant 88 : index
    %c0_191 = arith.constant 0 : index
    %309 = vector.load %arg7[%c1_189, %c88_190, %c0_191] : memref<2x176x128xf32, #tpu.memory_space<vmem>>, vector<1x8x128xf32>
    %310 = vector.shape_cast %309 : vector<1x8x128xf32> to vector<8x128xf32>
    %311 = vector.shape_cast %308 : vector<8x128xf32> to vector<1x8x128xf32>
    tpu.vector_store %arg7[%c1_189, %c88_190, %c0_191], %311 {strides = array<i32>} : memref<2x176x128xf32, #tpu.memory_space<vmem>>, vector<1x8x128xf32>,
    %312 = vector.extract_strided_slice %246 {offsets = [1, 5, 0, 0], sizes = [1, 1, 8, 128], strides = [1, 1, 1, 1]} : vector<2x8x8x128xf32> to vector<1x1x8x128xf32>
    %313 = vector.shape_cast %312 : vector<1x1x8x128xf32> to vector<8x128xf32>
    %c1_192 = arith.constant 1 : index
    %c104_193 = arith.constant 104 : index
    %c0_194 = arith.constant 0 : index
    %314 = vector.load %arg7[%c1_192, %c104_193, %c0_194] : memref<2x176x128xf32, #tpu.memory_space<vmem>>, vector<1x8x128xf32>
    %315 = vector.shape_cast %314 : vector<1x8x128xf32> to vector<8x128xf32>
    %316 = vector.shape_cast %313 : vector<8x128xf32> to vector<1x8x128xf32>
    tpu.vector_store %arg7[%c1_192, %c104_193, %c0_194], %316 {strides = array<i32>} : memref<2x176x128xf32, #tpu.memory_space<vmem>>, vector<1x8x128xf32>,
    %317 = vector.extract_strided_slice %246 {offsets = [1, 6, 0, 0], sizes = [1, 1, 8, 128], strides = [1, 1, 1, 1]} : vector<2x8x8x128xf32> to vector<1x1x8x128xf32>
    %318 = vector.shape_cast %317 : vector<1x1x8x128xf32> to vector<8x128xf32>
    %c1_195 = arith.constant 1 : index
    %c120_196 = arith.constant 120 : index
    %c0_197 = arith.constant 0 : index
    %319 = vector.load %arg7[%c1_195, %c120_196, %c0_197] : memref<2x176x128xf32, #tpu.memory_space<vmem>>, vector<1x8x128xf32>
    %320 = vector.shape_cast %319 : vector<1x8x128xf32> to vector<8x128xf32>
    %321 = vector.shape_cast %318 : vector<8x128xf32> to vector<1x8x128xf32>
    tpu.vector_store %arg7[%c1_195, %c120_196, %c0_197], %321 {strides = array<i32>} : memref<2x176x128xf32, #tpu.memory_space<vmem>>, vector<1x8x128xf32>,
    %322 = vector.extract_strided_slice %246 {offsets = [1, 7, 0, 0], sizes = [1, 1, 8, 128], strides = [1, 1, 1, 1]} : vector<2x8x8x128xf32> to vector<1x1x8x128xf32>
    %323 = vector.shape_cast %322 : vector<1x1x8x128xf32> to vector<8x128xf32>
    %c1_198 = arith.constant 1 : index
    %c136_199 = arith.constant 136 : index
    %c0_200 = arith.constant 0 : index
    %324 = vector.load %arg7[%c1_198, %c136_199, %c0_200] : memref<2x176x128xf32, #tpu.memory_space<vmem>>, vector<1x8x128xf32>
    %325 = vector.shape_cast %324 : vector<1x8x128xf32> to vector<8x128xf32>
    %326 = vector.shape_cast %323 : vector<8x128xf32> to vector<1x8x128xf32>
    tpu.vector_store %arg7[%c1_198, %c136_199, %c0_200], %326 {strides = array<i32>} : memref<2x176x128xf32, #tpu.memory_space<vmem>>, vector<1x8x128xf32>,
    %c0_201 = arith.constant 0 : index
    %c7_202 = arith.constant 7 : index
    %c0_203 = arith.constant 0 : index
    %327 = vector.load %arg7[%c0_201, %c7_202, %c0_203] : memref<2x176x128xf32, #tpu.memory_space<vmem>>, vector<1x128x128xf32>
    %328 = vector.shape_cast %327 : vector<1x128x128xf32> to vector<128x128xf32>
    %329 = arith.truncf %328 : vector<128x128xf32> to vector<128x128xbf16>
    %c0_204 = arith.constant 0 : index
    %c0_205 = arith.constant 0 : index
    %330 = vector.load %arg8[%c0_204, %c0_205] : memref<256x1152xbf16, #tpu.memory_space<vmem>>, vector<128x128xbf16>
    tpu.vector_store %arg8[%c0_204, %c0_205], %329 {strides = array<i32>} : memref<256x1152xbf16, #tpu.memory_space<vmem>>, vector<128x128xbf16>,
    %c0_206 = arith.constant 0 : index
    %c8_207 = arith.constant 8 : index
    %c0_208 = arith.constant 0 : index
    %331 = vector.load %arg7[%c0_206, %c8_207, %c0_208] : memref<2x176x128xf32, #tpu.memory_space<vmem>>, vector<1x128x128xf32>
    %332 = vector.shape_cast %331 : vector<1x128x128xf32> to vector<128x128xf32>
    %333 = arith.truncf %332 : vector<128x128xf32> to vector<128x128xbf16>
    %c0_209 = arith.constant 0 : index
    %c128_210 = arith.constant 128 : index
    %334 = vector.load %arg8[%c0_209, %c128_210] : memref<256x1152xbf16, #tpu.memory_space<vmem>>, vector<128x128xbf16>
    tpu.vector_store %arg8[%c0_209, %c128_210], %333 {strides = array<i32>} : memref<256x1152xbf16, #tpu.memory_space<vmem>>, vector<128x128xbf16>,
    %c0_211 = arith.constant 0 : index
    %c9_212 = arith.constant 9 : index
    %c0_213 = arith.constant 0 : index
    %335 = vector.load %arg7[%c0_211, %c9_212, %c0_213] : memref<2x176x128xf32, #tpu.memory_space<vmem>>, vector<1x128x128xf32>
    %336 = vector.shape_cast %335 : vector<1x128x128xf32> to vector<128x128xf32>
    %337 = arith.truncf %336 : vector<128x128xf32> to vector<128x128xbf16>
    %c0_214 = arith.constant 0 : index
    %c256_215 = arith.constant 256 : index
    %338 = vector.load %arg8[%c0_214, %c256_215] : memref<256x1152xbf16, #tpu.memory_space<vmem>>, vector<128x128xbf16>
    tpu.vector_store %arg8[%c0_214, %c256_215], %337 {strides = array<i32>} : memref<256x1152xbf16, #tpu.memory_space<vmem>>, vector<128x128xbf16>,
    %c0_216 = arith.constant 0 : index
    %c23_217 = arith.constant 23 : index
    %c0_218 = arith.constant 0 : index
    %339 = vector.load %arg7[%c0_216, %c23_217, %c0_218] : memref<2x176x128xf32, #tpu.memory_space<vmem>>, vector<1x128x128xf32>
    %340 = vector.shape_cast %339 : vector<1x128x128xf32> to vector<128x128xf32>
    %341 = arith.truncf %340 : vector<128x128xf32> to vector<128x128xbf16>
    %c0_219 = arith.constant 0 : index
    %c384_220 = arith.constant 384 : index
    %342 = vector.load %arg8[%c0_219, %c384_220] : memref<256x1152xbf16, #tpu.memory_space<vmem>>, vector<128x128xbf16>
    tpu.vector_store %arg8[%c0_219, %c384_220], %341 {strides = array<i32>} : memref<256x1152xbf16, #tpu.memory_space<vmem>>, vector<128x128xbf16>,
    %c0_221 = arith.constant 0 : index
    %c24_222 = arith.constant 24 : index
    %c0_223 = arith.constant 0 : index
    %343 = vector.load %arg7[%c0_221, %c24_222, %c0_223] : memref<2x176x128xf32, #tpu.memory_space<vmem>>, vector<1x128x128xf32>
    %344 = vector.shape_cast %343 : vector<1x128x128xf32> to vector<128x128xf32>
    %345 = arith.truncf %344 : vector<128x128xf32> to vector<128x128xbf16>
    %c0_224 = arith.constant 0 : index
    %c512_225 = arith.constant 512 : index
    %346 = vector.load %arg8[%c0_224, %c512_225] : memref<256x1152xbf16, #tpu.memory_space<vmem>>, vector<128x128xbf16>
    tpu.vector_store %arg8[%c0_224, %c512_225], %345 {strides = array<i32>} : memref<256x1152xbf16, #tpu.memory_space<vmem>>, vector<128x128xbf16>,
    %c0_226 = arith.constant 0 : index
    %c25_227 = arith.constant 25 : index
    %c0_228 = arith.constant 0 : index
    %347 = vector.load %arg7[%c0_226, %c25_227, %c0_228] : memref<2x176x128xf32, #tpu.memory_space<vmem>>, vector<1x128x128xf32>
    %348 = vector.shape_cast %347 : vector<1x128x128xf32> to vector<128x128xf32>
    %349 = arith.truncf %348 : vector<128x128xf32> to vector<128x128xbf16>
    %c0_229 = arith.constant 0 : index
    %c640_230 = arith.constant 640 : index
    %350 = vector.load %arg8[%c0_229, %c640_230] : memref<256x1152xbf16, #tpu.memory_space<vmem>>, vector<128x128xbf16>
    tpu.vector_store %arg8[%c0_229, %c640_230], %349 {strides = array<i32>} : memref<256x1152xbf16, #tpu.memory_space<vmem>>, vector<128x128xbf16>,
    %c0_231 = arith.constant 0 : index
    %c39_232 = arith.constant 39 : index
    %c0_233 = arith.constant 0 : index
    %351 = vector.load %arg7[%c0_231, %c39_232, %c0_233] : memref<2x176x128xf32, #tpu.memory_space<vmem>>, vector<1x128x128xf32>
    %352 = vector.shape_cast %351 : vector<1x128x128xf32> to vector<128x128xf32>
    %353 = arith.truncf %352 : vector<128x128xf32> to vector<128x128xbf16>
    %c0_234 = arith.constant 0 : index
    %c768_235 = arith.constant 768 : index
    %354 = vector.load %arg8[%c0_234, %c768_235] : memref<256x1152xbf16, #tpu.memory_space<vmem>>, vector<128x128xbf16>
    tpu.vector_store %arg8[%c0_234, %c768_235], %353 {strides = array<i32>} : memref<256x1152xbf16, #tpu.memory_space<vmem>>, vector<128x128xbf16>,
    %c0_236 = arith.constant 0 : index
    %c40_237 = arith.constant 40 : index
    %c0_238 = arith.constant 0 : index
    %355 = vector.load %arg7[%c0_236, %c40_237, %c0_238] : memref<2x176x128xf32, #tpu.memory_space<vmem>>, vector<1x128x128xf32>
    %356 = vector.shape_cast %355 : vector<1x128x128xf32> to vector<128x128xf32>
    %357 = arith.truncf %356 : vector<128x128xf32> to vector<128x128xbf16>
    %c0_239 = arith.constant 0 : index
    %c896_240 = arith.constant 896 : index
    %358 = vector.load %arg8[%c0_239, %c896_240] : memref<256x1152xbf16, #tpu.memory_space<vmem>>, vector<128x128xbf16>
    tpu.vector_store %arg8[%c0_239, %c896_240], %357 {strides = array<i32>} : memref<256x1152xbf16, #tpu.memory_space<vmem>>, vector<128x128xbf16>,
    %c0_241 = arith.constant 0 : index
    %c41_242 = arith.constant 41 : index
    %c0_243 = arith.constant 0 : index
    %359 = vector.load %arg7[%c0_241, %c41_242, %c0_243] : memref<2x176x128xf32, #tpu.memory_space<vmem>>, vector<1x128x128xf32>
    %360 = vector.shape_cast %359 : vector<1x128x128xf32> to vector<128x128xf32>
    %361 = arith.truncf %360 : vector<128x128xf32> to vector<128x128xbf16>
    %c0_244 = arith.constant 0 : index
    %c1024_245 = arith.constant 1024 : index
    %362 = vector.load %arg8[%c0_244, %c1024_245] : memref<256x1152xbf16, #tpu.memory_space<vmem>>, vector<128x128xbf16>
    tpu.vector_store %arg8[%c0_244, %c1024_245], %361 {strides = array<i32>} : memref<256x1152xbf16, #tpu.memory_space<vmem>>, vector<128x128xbf16>,
    %c1_246 = arith.constant 1 : index
    %c7_247 = arith.constant 7 : index
    %c0_248 = arith.constant 0 : index
    %363 = vector.load %arg7[%c1_246, %c7_247, %c0_248] : memref<2x176x128xf32, #tpu.memory_space<vmem>>, vector<1x128x128xf32>
    %364 = vector.shape_cast %363 : vector<1x128x128xf32> to vector<128x128xf32>
    %365 = arith.truncf %364 : vector<128x128xf32> to vector<128x128xbf16>
    %c128_249 = arith.constant 128 : index
    %c0_250 = arith.constant 0 : index
    %366 = vector.load %arg8[%c128_249, %c0_250] : memref<256x1152xbf16, #tpu.memory_space<vmem>>, vector<128x128xbf16>
    tpu.vector_store %arg8[%c128_249, %c0_250], %365 {strides = array<i32>} : memref<256x1152xbf16, #tpu.memory_space<vmem>>, vector<128x128xbf16>,
    %c1_251 = arith.constant 1 : index
    %c8_252 = arith.constant 8 : index
    %c0_253 = arith.constant 0 : index
    %367 = vector.load %arg7[%c1_251, %c8_252, %c0_253] : memref<2x176x128xf32, #tpu.memory_space<vmem>>, vector<1x128x128xf32>
    %368 = vector.shape_cast %367 : vector<1x128x128xf32> to vector<128x128xf32>
    %369 = arith.truncf %368 : vector<128x128xf32> to vector<128x128xbf16>
    %c128_254 = arith.constant 128 : index
    %c128_255 = arith.constant 128 : index
    %370 = vector.load %arg8[%c128_254, %c128_255] : memref<256x1152xbf16, #tpu.memory_space<vmem>>, vector<128x128xbf16>
    tpu.vector_store %arg8[%c128_254, %c128_255], %369 {strides = array<i32>} : memref<256x1152xbf16, #tpu.memory_space<vmem>>, vector<128x128xbf16>,
    %c1_256 = arith.constant 1 : index
    %c9_257 = arith.constant 9 : index
    %c0_258 = arith.constant 0 : index
    %371 = vector.load %arg7[%c1_256, %c9_257, %c0_258] : memref<2x176x128xf32, #tpu.memory_space<vmem>>, vector<1x128x128xf32>
    %372 = vector.shape_cast %371 : vector<1x128x128xf32> to vector<128x128xf32>
    %373 = arith.truncf %372 : vector<128x128xf32> to vector<128x128xbf16>
    %c128_259 = arith.constant 128 : index
    %c256_260 = arith.constant 256 : index
    %374 = vector.load %arg8[%c128_259, %c256_260] : memref<256x1152xbf16, #tpu.memory_space<vmem>>, vector<128x128xbf16>
    tpu.vector_store %arg8[%c128_259, %c256_260], %373 {strides = array<i32>} : memref<256x1152xbf16, #tpu.memory_space<vmem>>, vector<128x128xbf16>,
    %c1_261 = arith.constant 1 : index
    %c23_262 = arith.constant 23 : index
    %c0_263 = arith.constant 0 : index
    %375 = vector.load %arg7[%c1_261, %c23_262, %c0_263] : memref<2x176x128xf32, #tpu.memory_space<vmem>>, vector<1x128x128xf32>
    %376 = vector.shape_cast %375 : vector<1x128x128xf32> to vector<128x128xf32>
    %377 = arith.truncf %376 : vector<128x128xf32> to vector<128x128xbf16>
    %c128_264 = arith.constant 128 : index
    %c384_265 = arith.constant 384 : index
    %378 = vector.load %arg8[%c128_264, %c384_265] : memref<256x1152xbf16, #tpu.memory_space<vmem>>, vector<128x128xbf16>
    tpu.vector_store %arg8[%c128_264, %c384_265], %377 {strides = array<i32>} : memref<256x1152xbf16, #tpu.memory_space<vmem>>, vector<128x128xbf16>,
    %c1_266 = arith.constant 1 : index
    %c24_267 = arith.constant 24 : index
    %c0_268 = arith.constant 0 : index
    %379 = vector.load %arg7[%c1_266, %c24_267, %c0_268] : memref<2x176x128xf32, #tpu.memory_space<vmem>>, vector<1x128x128xf32>
    %380 = vector.shape_cast %379 : vector<1x128x128xf32> to vector<128x128xf32>
    %381 = arith.truncf %380 : vector<128x128xf32> to vector<128x128xbf16>
    %c128_269 = arith.constant 128 : index
    %c512_270 = arith.constant 512 : index
    %382 = vector.load %arg8[%c128_269, %c512_270] : memref<256x1152xbf16, #tpu.memory_space<vmem>>, vector<128x128xbf16>
    tpu.vector_store %arg8[%c128_269, %c512_270], %381 {strides = array<i32>} : memref<256x1152xbf16, #tpu.memory_space<vmem>>, vector<128x128xbf16>,
    %c1_271 = arith.constant 1 : index
    %c25_272 = arith.constant 25 : index
    %c0_273 = arith.constant 0 : index
    %383 = vector.load %arg7[%c1_271, %c25_272, %c0_273] : memref<2x176x128xf32, #tpu.memory_space<vmem>>, vector<1x128x128xf32>
    %384 = vector.shape_cast %383 : vector<1x128x128xf32> to vector<128x128xf32>
    %385 = arith.truncf %384 : vector<128x128xf32> to vector<128x128xbf16>
    %c128_274 = arith.constant 128 : index
    %c640_275 = arith.constant 640 : index
    %386 = vector.load %arg8[%c128_274, %c640_275] : memref<256x1152xbf16, #tpu.memory_space<vmem>>, vector<128x128xbf16>
    tpu.vector_store %arg8[%c128_274, %c640_275], %385 {strides = array<i32>} : memref<256x1152xbf16, #tpu.memory_space<vmem>>, vector<128x128xbf16>,
    %c1_276 = arith.constant 1 : index
    %c39_277 = arith.constant 39 : index
    %c0_278 = arith.constant 0 : index
    %387 = vector.load %arg7[%c1_276, %c39_277, %c0_278] : memref<2x176x128xf32, #tpu.memory_space<vmem>>, vector<1x128x128xf32>
    %388 = vector.shape_cast %387 : vector<1x128x128xf32> to vector<128x128xf32>
    %389 = arith.truncf %388 : vector<128x128xf32> to vector<128x128xbf16>
    %c128_279 = arith.constant 128 : index
    %c768_280 = arith.constant 768 : index
    %390 = vector.load %arg8[%c128_279, %c768_280] : memref<256x1152xbf16, #tpu.memory_space<vmem>>, vector<128x128xbf16>
    tpu.vector_store %arg8[%c128_279, %c768_280], %389 {strides = array<i32>} : memref<256x1152xbf16, #tpu.memory_space<vmem>>, vector<128x128xbf16>,
    %c1_281 = arith.constant 1 : index
    %c40_282 = arith.constant 40 : index
    %c0_283 = arith.constant 0 : index
    %391 = vector.load %arg7[%c1_281, %c40_282, %c0_283] : memref<2x176x128xf32, #tpu.memory_space<vmem>>, vector<1x128x128xf32>
    %392 = vector.shape_cast %391 : vector<1x128x128xf32> to vector<128x128xf32>
    %393 = arith.truncf %392 : vector<128x128xf32> to vector<128x128xbf16>
    %c128_284 = arith.constant 128 : index
    %c896_285 = arith.constant 896 : index
    %394 = vector.load %arg8[%c128_284, %c896_285] : memref<256x1152xbf16, #tpu.memory_space<vmem>>, vector<128x128xbf16>
    tpu.vector_store %arg8[%c128_284, %c896_285], %393 {strides = array<i32>} : memref<256x1152xbf16, #tpu.memory_space<vmem>>, vector<128x128xbf16>,
    %c1_286 = arith.constant 1 : index
    %c41_287 = arith.constant 41 : index
    %c0_288 = arith.constant 0 : index
    %395 = vector.load %arg7[%c1_286, %c41_287, %c0_288] : memref<2x176x128xf32, #tpu.memory_space<vmem>>, vector<1x128x128xf32>
    %396 = vector.shape_cast %395 : vector<1x128x128xf32> to vector<128x128xf32>
    %397 = arith.truncf %396 : vector<128x128xf32> to vector<128x128xbf16>
    %c128_289 = arith.constant 128 : index
    %c1024_290 = arith.constant 1024 : index
    %398 = vector.load %arg8[%c128_289, %c1024_290] : memref<256x1152xbf16, #tpu.memory_space<vmem>>, vector<128x128xbf16>
    tpu.vector_store %arg8[%c128_289, %c1024_290], %397 {strides = array<i32>} : memref<256x1152xbf16, #tpu.memory_space<vmem>>, vector<128x128xbf16>,
    %c0_291 = arith.constant 0 : index
    %c0_292 = arith.constant 0 : index
    %399 = vector.load %arg8[%c0_291, %c0_292] : memref<256x1152xbf16, #tpu.memory_space<vmem>>, vector<256x1152xbf16>
    %c0_293 = arith.constant 0 : index
    %c0_294 = arith.constant 0 : index
    %400 = vector.load %arg5[%c0_293, %c0_294] : memref<1152x128xbf16, #tpu.memory_space<vmem>>, vector<1152x128xbf16>
    %cst_295 = arith.constant dense<0.000000e+00> : vector<256x128xf32>
    %401 = tpu.matmul %399, %400, %cst_295 {dimension_numbers = #tpu.dot_dimension_numbers<[1], [0], [0], [1], [0, 0, 1, 1], [], []>} : vector<256x1152xbf16>, vector<1152x128xbf16>, vector<256x128xf32> -> vector<256x128xf32>
    %402 = vector.shape_cast %401 : vector<256x128xf32> to vector<2x8x16x128xf32>
    %403 = vector.extract_strided_slice %402 {offsets = [0, 0, 0, 0], sizes = [2, 8, 8, 128], strides = [1, 1, 1, 1]} : vector<2x8x16x128xf32> to vector<2x8x8x128xf32>
    %404 = vector.shape_cast %403 : vector<2x8x8x128xf32> to vector<128x128xf32>
    %405 = vector.broadcast %7 : vector<1x128xf32> to vector<128x128xf32>
    %406 = arith.addf %404, %405 : vector<128x128xf32>
    %c0_296 = arith.constant 0 : index
    %c0_297 = arith.constant 0 : index
    %407 = vector.load %arg1[%c0_296, %c0_297] : memref<128x128xf32, #tpu.memory_space<vmem>>, vector<128x128xf32>
    %408 = arith.addf %406, %407 : vector<128x128xf32>
    %c0_298 = arith.constant 0 : index
    %c0_299 = arith.constant 0 : index
    %409 = vector.load %arg6[%c0_298, %c0_299] : memref<128x128xf32, #tpu.memory_space<vmem>>, vector<128x128xf32>
    tpu.vector_store %arg6[%c0_298, %c0_299], %408 {strides = array<i32>} : memref<128x128xf32, #tpu.memory_space<vmem>>, vector<128x128xf32>,
    return
  }
  func.func @transform_0(%arg0: i32) -> (i32, i32) {
    %c0_i32 = arith.constant 0 : i32
    %c0_i32_0 = arith.constant 0 : i32
    %c0_i32_1 = arith.constant 0 : i32
    return %c0_i32, %c0_i32_0 : i32, i32
  }
  func.func @transform_1(%arg0: i32) -> (i32, i32) {
    %c0_i32 = arith.constant 0 : i32
    %c0_i32_0 = arith.constant 0 : i32
    %c0_i32_1 = arith.constant 0 : i32
    return %c0_i32, %c0_i32_0 : i32, i32
  }
  func.func @transform_2(%arg0: i32) -> (i32, i32) {
    %c0_i32 = arith.constant 0 : i32
    %c0_i32_0 = arith.constant 0 : i32
    %c0_i32_1 = arith.constant 0 : i32
    return %c0_i32, %c0_i32_0 : i32, i32
  }
  func.func @transform_3(%arg0: i32) -> (i32, i32) {
    %c0_i32 = arith.constant 0 : i32
    %c0_i32_0 = arith.constant 0 : i32
    %c0_i32_1 = arith.constant 0 : i32
    return %c0_i32, %c0_i32_0 : i32, i32
  }
  func.func @transform_4(%arg0: i32) -> (i32, i32) {
    %c0_i32 = arith.constant 0 : i32
    %c0_i32_0 = arith.constant 0 : i32
    %c0_i32_1 = arith.constant 0 : i32
    return %c0_i32, %c0_i32_0 : i32, i32
  }
  func.func @transform_5(%arg0: i32) -> (i32, i32) {
    %c0_i32 = arith.constant 0 : i32
    %c0_i32_0 = arith.constant 0 : i32
    %c0_i32_1 = arith.constant 0 : i32
    return %c0_i32, %c0_i32_0 : i32, i32
  }
}

</mosaic_0001>

<llo_original>
// kernel: tpu_custom_call.1
$region0: #{tpu_custom_call.1}
  #allocation0 [shape = 'u32[]', space=smem, size = 0x4, offset = 0x4, fixed_abs, tag = 'smem constant byte address 0x4 - core index']
  #allocation1 [shape = 'u32[144,128]{1,0:T(1,128)}', space=vmem, size = 0x12000, scoped, tag = 'internal scratch']
  #allocation2 [shape = 'f32[2,176,128]{2,1,0:T(8,128)}', space=vmem, size = 0x2c000, scoped, tag = 'scratch operand']
  #allocation3 [shape = 'bf16[256,1152]{1,0:T(16,128)(2,1)}', space=vmem, size = 0x90000, scoped, tag = 'scratch operand']
  %s0 = inlined_call_operand.vmem [shape: f32[128,128], index: 0, kind: input, shape index: {}]
  %s1 = inlined_call_operand.hbm [shape: f32[16,128], index: 1, kind: input, shape index: {}]
  %s2 = inlined_call_operand.vmem [shape: f32[128,8], index: 2, kind: input, shape index: {}]
  %s3 = inlined_call_operand.hbm [shape: bf16[1152,128], index: 3, kind: input, shape index: {}]
  %s4 = inlined_call_operand.hbm [shape: bf16[1152,128], index: 4, kind: input, shape index: {}]
  %s5 = inlined_call_operand.hbm [shape: f32[128,128], index: 5, kind: output, shape index: {}]
  %s6 = sld [smem:[#allocation0]]
  $region42: #{tpu_custom_call.1} parent=0
    _
  %s8 = ssub.s32 1, %s6
  %s9 = scalar_select 0, %s8, %s6
  $region1: #{tpu_custom_call.1} parent=0
    #allocation4 [shape = 'u8[8192]{0}', space=vmem, size = 0x2000, scoped, tag = 'input window, operand 1, single buffered']
    #allocation5 [shape = 's32[1]{0}', space=sflag, size = 0x4, scoped, tag = 'scoped memory for tpu_custom_call.1']
    #allocation6 [shape = 's32[1]{0}', space=sflag, size = 0x4, scoped, tag = 'scoped memory for tpu_custom_call.1']
    #allocation7 [shape = 'u8[294912]{0}', space=vmem, size = 0x48000, scoped, tag = 'input window, operand 3, single buffered']
    #allocation8 [shape = 's32[1]{0}', space=sflag, size = 0x4, scoped, tag = 'scoped memory for tpu_custom_call.1']
    #allocation9 [shape = 'u8[294912]{0}', space=vmem, size = 0x48000, scoped, tag = 'input window, operand 4, single buffered']
    #allocation10 [shape = 'u8[65536]{0}', space=vmem, size = 0x10000, scoped, tag = 'output window, operand 0, single buffered']
    %10 = vsyncpa [#allocation5], 0
    %11 = vsyncpa [#allocation8], 0
    %12 = vsyncpa [#allocation6], 0
    // Predicated region
    $region2: #{tpu_custom_call.1} parent=1 // pred_check
      _
    $region3: #{tpu_custom_call.1} parent=1 // pred_check_branch
      %14 = sbr.rel (0) target = $region5
    $region4: #{tpu_custom_call.1} parent=1 // pred_region
      _
    $region5: #{tpu_custom_call.1} parent=1 // pred_fallthru
      _
    // Predicated region
    $region6: #{tpu_custom_call.1} parent=1 // pred_check
      _
    $region7: #{tpu_custom_call.1} parent=1 // pred_check_branch
      %16 = sbr.rel (0) target = $region9
    $region8: #{tpu_custom_call.1} parent=1 // pred_region
      %s18 = ssub.s32 256, 256
      %19 = vsyncadd [#allocation5], %s18
      %s20 = sshll.u32 [#allocation4], 4
      %s21 = int_to_ptr.vmem [resolvable:$true] %s20
      %26 = dma.hbm_to_vmem [thread:$0]  %s1, 256, %s21, [#allocation5], 128, 128, 8
    $region9: #{tpu_custom_call.1} parent=1 // pred_fallthru
      _
    // Predicated region
    $region10: #{tpu_custom_call.1} parent=1 // pred_check
      _
    $region11: #{tpu_custom_call.1} parent=1 // pred_check_branch
      %28 = sbr.rel (0) target = $region13
    $region12: #{tpu_custom_call.1} parent=1 // pred_region
      _
    $region13: #{tpu_custom_call.1} parent=1 // pred_fallthru
      _
    // Predicated region
    $region14: #{tpu_custom_call.1} parent=1 // pred_check
      _
    $region15: #{tpu_custom_call.1} parent=1 // pred_check_branch
      %30 = sbr.rel (0) target = $region17
    $region16: #{tpu_custom_call.1} parent=1 // pred_region
      %s32 = ssub.s32 9216, 9216
      %33 = vsyncadd [#allocation8], %s32
      %s34 = sshll.u32 [#allocation7], 4
      %s35 = int_to_ptr.vmem [resolvable:$true] %s34
      %40 = dma.hbm_to_vmem [thread:$0]  %s3, 9216, %s35, [#allocation8], 64, 64, 4
    $region17: #{tpu_custom_call.1} parent=1 // pred_fallthru
      _
    // Predicated region
    $region18: #{tpu_custom_call.1} parent=1 // pred_check
      _
    $region19: #{tpu_custom_call.1} parent=1 // pred_check_branch
      %42 = sbr.rel (0) target = $region21
    $region20: #{tpu_custom_call.1} parent=1 // pred_region
      %s44 = ssub.s32 9216, 9216
      %45 = vsyncadd [#allocation8], %s44
      %s46 = sshll.u32 [#allocation9], 4
      %s47 = int_to_ptr.vmem [resolvable:$true] %s46
      %52 = dma.hbm_to_vmem [thread:$0]  %s4, 9216, %s47, [#allocation8], 64, 64, 4
    $region21: #{tpu_custom_call.1} parent=1 // pred_fallthru
      _
    // Predicated region
    $region22: #{tpu_custom_call.1} parent=1 // pred_check
      _
    $region23: #{tpu_custom_call.1} parent=1 // pred_check_branch
      %54 = sbr.rel (0) target = $region25
    $region24: #{tpu_custom_call.1} parent=1 // pred_region
      %55 = dma.done [#allocation5], 256
    $region25: #{tpu_custom_call.1} parent=1 // pred_fallthru
      _
    // Predicated region
    $region26: #{tpu_custom_call.1} parent=1 // pred_check
      _
    $region27: #{tpu_custom_call.1} parent=1 // pred_check_branch
      %57 = sbr.rel (0) target = $region29
    $region28: #{tpu_custom_call.1} parent=1 // pred_region
      %58 = dma.done [#allocation8], 9216
    $region29: #{tpu_custom_call.1} parent=1 // pred_fallthru
      _
    // Predicated region
    $region30: #{tpu_custom_call.1} parent=1 // pred_check
      _
    $region31: #{tpu_custom_call.1} parent=1 // pred_check_branch
      %60 = sbr.rel (0) target = $region33
    $region32: #{tpu_custom_call.1} parent=1 // pred_region
      %61 = dma.done [#allocation8], 9216
    $region33: #{tpu_custom_call.1} parent=1 // pred_fallthru
      _
    %v63 = vld [vmem:[%s2] sm:$0xff]
    %v64 = vld [vmem:[%s2 + $0x8] sm:$0xff]
    %v65 = vld [vmem:[%s2 + $0x10] sm:$0xff]
    %v66 = vld [vmem:[%s2 + $0x18] sm:$0xff]
    %v67 = vld [vmem:[%s2 + $0x20] sm:$0xff]
    %v68 = vld [vmem:[%s2 + $0x28] sm:$0xff]
    %v69 = vld [vmem:[%s2 + $0x30] sm:$0xff]
    %v70 = vld [vmem:[%s2 + $0x38] sm:$0xff]
    %v71 = vld [vmem:[%s2 + $0x40] sm:$0xff]
    %v72 = vld [vmem:[%s2 + $0x48] sm:$0xff]
    %v73 = vld [vmem:[%s2 + $0x50] sm:$0xff]
    %v74 = vld [vmem:[%s2 + $0x58] sm:$0xff]
    %v75 = vld [vmem:[%s2 + $0x60] sm:$0xff]
    %v76 = vld [vmem:[%s2 + $0x68] sm:$0xff]
    %v77 = vld [vmem:[%s2 + $0x70] sm:$0xff]
    %v78 = vld [vmem:[%s2 + $0x78] sm:$0xff]
    %v79 = vld [vmem:[#allocation4 + $0x8] sm:$0xff]
    %v80 = vld [vmem:[#allocation4] sm:$0x1]
    %v81 = vld [vmem:[#allocation4 + $0x1] sm:$0x1]
    %v82 = vld [vmem:[#allocation4 + $0x2] sm:$0x1]
    %v83 = vld [vmem:[#allocation4 + $0x3] sm:$0x1]
    %v84 = vld [vmem:[#allocation4 + $0x4] sm:$0x1]
    %v85 = vld [vmem:[#allocation4 + $0x5] sm:$0x1]
    %86 = vst [vmem:[#allocation2] sm:$0xff] 0.0
    %87 = vst [vmem:[#allocation2 + $0x8] sm:$0xff] 0.0
    %88 = vst [vmem:[#allocation2 + $0x10] sm:$0xff] 0.0
    %89 = vst [vmem:[#allocation2 + $0x18] sm:$0xff] 0.0
    %90 = vst [vmem:[#allocation2 + $0x20] sm:$0xff] 0.0
    %91 = vst [vmem:[#allocation2 + $0x28] sm:$0xff] 0.0
    %92 = vst [vmem:[#allocation2 + $0x30] sm:$0xff] 0.0
    %93 = vst [vmem:[#allocation2 + $0x38] sm:$0xff] 0.0
    %94 = vst [vmem:[#allocation2 + $0x40] sm:$0xff] 0.0
    %95 = vst [vmem:[#allocation2 + $0x48] sm:$0xff] 0.0
    %96 = vst [vmem:[#allocation2 + $0x50] sm:$0xff] 0.0
    %97 = vst [vmem:[#allocation2 + $0x58] sm:$0xff] 0.0
    %98 = vst [vmem:[#allocation2 + $0x60] sm:$0xff] 0.0
    %99 = vst [vmem:[#allocation2 + $0x68] sm:$0xff] 0.0
    %100 = vst [vmem:[#allocation2 + $0x70] sm:$0xff] 0.0
    %101 = vst [vmem:[#allocation2 + $0x78] sm:$0xff] 0.0
    %102 = vst [vmem:[#allocation2 + $0x80] sm:$0xff] 0.0
    %103 = vst [vmem:[#allocation2 + $0x88] sm:$0xff] 0.0
    %104 = vst [vmem:[#allocation2 + $0x90] sm:$0xff] 0.0
    %105 = vst [vmem:[#allocation2 + $0x98] sm:$0xff] 0.0
    %106 = vst [vmem:[#allocation2 + $0xa0] sm:$0xff] 0.0
    %107 = vst [vmem:[#allocation2 + $0xa8] sm:$0xff] 0.0
    %108 = vst [vmem:[#allocation2 + $0xb0] sm:$0xff] 0.0
    %109 = vst [vmem:[#allocation2 + $0xb8] sm:$0xff] 0.0
    %110 = vst [vmem:[#allocation2 + $0xc0] sm:$0xff] 0.0
    %111 = vst [vmem:[#allocation2 + $0xc8] sm:$0xff] 0.0
    %112 = vst [vmem:[#allocation2 + $0xd0] sm:$0xff] 0.0
    %113 = vst [vmem:[#allocation2 + $0xd8] sm:$0xff] 0.0
    %114 = vst [vmem:[#allocation2 + $0xe0] sm:$0xff] 0.0
    %115 = vst [vmem:[#allocation2 + $0xe8] sm:$0xff] 0.0
    %116 = vst [vmem:[#allocation2 + $0xf0] sm:$0xff] 0.0
    %117 = vst [vmem:[#allocation2 + $0xf8] sm:$0xff] 0.0
    %118 = vst [vmem:[#allocation2 + $0x100] sm:$0xff] 0.0
    %119 = vst [vmem:[#allocation2 + $0x108] sm:$0xff] 0.0
    %120 = vst [vmem:[#allocation2 + $0x110] sm:$0xff] 0.0
    %121 = vst [vmem:[#allocation2 + $0x118] sm:$0xff] 0.0
    %122 = vst [vmem:[#allocation2 + $0x120] sm:$0xff] 0.0
    %123 = vst [vmem:[#allocation2 + $0x128] sm:$0xff] 0.0
    %124 = vst [vmem:[#allocation2 + $0x130] sm:$0xff] 0.0
    %125 = vst [vmem:[#allocation2 + $0x138] sm:$0xff] 0.0
    %126 = vst [vmem:[#allocation2 + $0x140] sm:$0xff] 0.0
    %127 = vst [vmem:[#allocation2 + $0x148] sm:$0xff] 0.0
    %128 = vst [vmem:[#allocation2 + $0x150] sm:$0xff] 0.0
    %129 = vst [vmem:[#allocation2 + $0x158] sm:$0xff] 0.0
    %v130 = vld [vmem:[%s0] sm:$0xff]
    %v131 = vld [vmem:[%s0 + $0x8] sm:$0xff]
    %v132 = vld [vmem:[%s0 + $0x10] sm:$0xff]
    %v133 = vld [vmem:[%s0 + $0x18] sm:$0xff]
    %v134 = vld [vmem:[%s0 + $0x20] sm:$0xff]
    %v135 = vld [vmem:[%s0 + $0x28] sm:$0xff]
    %v136 = vld [vmem:[%s0 + $0x30] sm:$0xff]
    %v137 = vld [vmem:[%s0 + $0x38] sm:$0xff]
    %v138 = vld [vmem:[%s0 + $0x40] sm:$0xff]
    %v139 = vld [vmem:[%s0 + $0x48] sm:$0xff]
    %v140 = vld [vmem:[%s0 + $0x50] sm:$0xff]
    %v141 = vld [vmem:[%s0 + $0x58] sm:$0xff]
    %v142 = vld [vmem:[%s0 + $0x60] sm:$0xff]
    %v143 = vld [vmem:[%s0 + $0x68] sm:$0xff]
    %v144 = vld [vmem:[%s0 + $0x70] sm:$0xff]
    %v145 = vld [vmem:[%s0 + $0x78] sm:$0xff]
    %v146 = vadd.f32 %v130, %v131
    %v147 = vadd.f32 %v146, %v132
    %v148 = vadd.f32 %v147, %v133
    %v149 = vadd.f32 %v148, %v134
    %v150 = vadd.f32 %v149, %v135
    %v151 = vadd.f32 %v150, %v136
    %v152 = vadd.f32 %v151, %v137
    %v153 = vrot.slane %v152, 4
    %v154 = vadd.f32 %v152, %v153
    %v155 = vrot.slane %v154, 2
    %v156 = vadd.f32 %v154, %v155
    %v157 = vrot.slane %v156, 1
    %v158 = vadd.f32 %v156, %v157
    %v159 = vadd.f32 %v138, %v139
    %v160 = vadd.f32 %v159, %v140
    %v161 = vadd.f32 %v160, %v141
    %v162 = vadd.f32 %v161, %v142
    %v163 = vadd.f32 %v162, %v143
    %v164 = vadd.f32 %v163, %v144
    %v165 = vadd.f32 %v164, %v145
    %v166 = vrot.slane %v165, 4
    %v167 = vadd.f32 %v165, %v166
    %v168 = vrot.slane %v167, 2
    %v169 = vadd.f32 %v167, %v168
    %v170 = vrot.slane %v169, 1
    %v171 = vadd.f32 %v169, %v170
    %v172 = vmul.f32 %v130, %v130
    %v173 = vmul.f32 %v131, %v131
    %v174 = vmul.f32 %v132, %v132
    %v175 = vmul.f32 %v133, %v133
    %v176 = vmul.f32 %v134, %v134
    %v177 = vmul.f32 %v135, %v135
    %v178 = vmul.f32 %v136, %v136
    %v179 = vmul.f32 %v137, %v137
    %v180 = vmul.f32 %v138, %v138
    %v181 = vmul.f32 %v139, %v139
    %v182 = vmul.f32 %v140, %v140
    %v183 = vmul.f32 %v141, %v141
    %v184 = vmul.f32 %v142, %v142
    %v185 = vmul.f32 %v143, %v143
    %v186 = vmul.f32 %v144, %v144
    %v187 = vmul.f32 %v145, %v145
    %v188 = vadd.f32 %v172, %v173
    %v189 = vadd.f32 %v188, %v174
    %v190 = vadd.f32 %v189, %v175
    %v191 = vadd.f32 %v190, %v176
    %v192 = vadd.f32 %v191, %v177
    %v193 = vadd.f32 %v192, %v178
    %v194 = vadd.f32 %v193, %v179
    %v195 = vrot.slane %v194, 4
    %v196 = vadd.f32 %v194, %v195
    %v197 = vrot.slane %v196, 2
    %v198 = vadd.f32 %v196, %v197
    %v199 = vrot.slane %v198, 1
    %v200 = vadd.f32 %v198, %v199
    %v201 = vadd.f32 %v180, %v181
    %v202 = vadd.f32 %v201, %v182
    %v203 = vadd.f32 %v202, %v183
    %v204 = vadd.f32 %v203, %v184
    %v205 = vadd.f32 %v204, %v185
    %v206 = vadd.f32 %v205, %v186
    %v207 = vadd.f32 %v206, %v187
    %v208 = vrot.slane %v207, 4
    %v209 = vadd.f32 %v207, %v208
    %v210 = vrot.slane %v209, 2
    %v211 = vadd.f32 %v209, %v210
    %v212 = vrot.slane %v211, 1
    %v213 = vadd.f32 %v211, %v212
    %vm216 = vcmask 1041409
    %v217 = vsel %vm216, %v171, %v158
    %vm221 = vcmask 1043459
    %v222 = vsel %vm221, %v213, %v200
    %vm224 = vcmask 1041408
    %v225 = vsel %vm224, %v217, %v222
    %226 = vmatprep.subr.mxu0 0.0
    %227 = vmatpush1.msra.mxu0 %v63
    %228 = vmatprep.subr.mxu0 0.0
    %229 = vmatpush1.msra.mxu0 %v64
    %230 = vmatprep.subr.mxu0 0.0
    %231 = vmatpush1.msra.mxu0 %v65
    %232 = vmatprep.subr.mxu0 0.0
    %233 = vmatpush1.msra.mxu0 %v66
    %234 = vmatprep.subr.mxu0 0.0
    %235 = vmatpush1.msra.mxu0 %v67
    %236 = vmatprep.subr.mxu0 0.0
    %237 = vmatpush1.msra.mxu0 %v68
    %238 = vmatprep.subr.mxu0 0.0
    %239 = vmatpush1.msra.mxu0 %v69
    %240 = vmatprep.subr.mxu0 0.0
    %241 = vmatpush1.msra.mxu0 %v70
    %242 = vmatprep.subr.mxu0 0.0
    %243 = vmatpush1.msra.mxu0 %v71
    %244 = vmatprep.subr.mxu0 0.0
    %245 = vmatpush1.msra.mxu0 %v72
    %246 = vmatprep.subr.mxu0 0.0
    %247 = vmatpush1.msra.mxu0 %v73
    %248 = vmatprep.subr.mxu0 0.0
    %249 = vmatpush1.msra.mxu0 %v74
    %250 = vmatprep.subr.mxu0 0.0
    %251 = vmatpush1.msra.mxu0 %v75
    %252 = vmatprep.subr.mxu0 0.0
    %253 = vmatpush1.msra.mxu0 %v76
    %254 = vmatprep.subr.mxu0 0.0
    %255 = vmatpush1.msra.mxu0 %v77
    %256 = vmatprep.subr.mxu0 0.0
    %257 = vmatpush1.msra.mxu0 %v78
    %258 = vmatprep.subr.mxu0 0.0
    %259 = vmatpush1.msra.mxu0 0.0
    %260 = vmatprep.subr.mxu0 0.0
    %261 = vmatpush1.msra.mxu0 0.0
    %262 = vmatprep.subr.mxu0 0.0
    %263 = vmatpush1.msra.mxu0 0.0
    %264 = vmatprep.subr.mxu0 0.0
    %265 = vmatpush1.msra.mxu0 0.0
    %266 = vmatprep.subr.mxu0 0.0
    %267 = vmatpush1.msra.mxu0 0.0
    %268 = vmatprep.subr.mxu0 0.0
    %269 = vmatpush1.msra.mxu0 0.0
    %270 = vmatprep.subr.mxu0 0.0
    %271 = vmatpush1.msra.mxu0 0.0
    %272 = vmatprep.subr.mxu0 0.0
    %273 = vmatpush1.msra.mxu0 0.0
    %274 = vmatprep.subr.mxu0 0.0
    %275 = vmatpush1.msra.mxu0 0.0
    %276 = vmatprep.subr.mxu0 0.0
    %277 = vmatpush1.msra.mxu0 0.0
    %278 = vmatprep.subr.mxu0 0.0
    %279 = vmatpush1.msra.mxu0 0.0
    %280 = vmatprep.subr.mxu0 0.0
    %281 = vmatpush1.msra.mxu0 0.0
    %282 = vmatprep.subr.mxu0 0.0
    %283 = vmatpush1.msra.mxu0 0.0
    %284 = vmatprep.subr.mxu0 0.0
    %285 = vmatpush1.msra.mxu0 0.0
    %286 = vmatprep.subr.mxu0 0.0
    %287 = vmatpush1.msra.mxu0 0.0
    %288 = vmatprep.subr.mxu0 0.0
    %289 = vmatpush1.msra.mxu0 0.0
    %290 = vmatprep.mubr.f32.mxu0 0.0
    %291 = vmatmul.mubr.f32.gmra.mrb[0].mxu0 %v225
    %v292 = vpop.f32.mrb[0].mxu0
    %v293 = vadd.f32 0.0, %v292
    %v294 = vpop.f32.mrb[0].mxu0
    %295 = vdwg.mxu0
    %v296 = vmul.f32 %v293, 0.0009765625
    %v297 = vmul.f32 %v296, %v296
    %v299 = vrot.slane %v297, 6
    %v301 = vsub.f32 %v296, %v299
    %v302 = vmax.f32 %v301, 0.0
    %v303 = vadd.f32 %v302, 1e-05
    %v304 = vrsqrt.pop %v303
    %v305 = vsel %vm224, %v296, %v304
    %vm306 = vcmask 64512
    %v308 = vsel %vm306, %v305, 0
    %310 = vmatprep.subr.mxu0 0.0
    %311 = vmatpush1.msra.mxu0 %v79
    %312 = vmatprep.subr.mxu0 0.0
    %313 = vmatpush1.msra.mxu0 0.0
    %314 = vmatprep.subr.mxu0 0.0
    %315 = vmatpush1.msra.mxu0 0.0
    %316 = vmatprep.subr.mxu0 0.0
    %317 = vmatpush1.msra.mxu0 0.0
    %318 = vmatprep.subr.mxu0 0.0
    %319 = vmatpush1.msra.mxu0 0.0
    %320 = vmatprep.subr.mxu0 0.0
    %321 = vmatpush1.msra.mxu0 0.0
    %322 = vmatprep.subr.mxu0 0.0
    %323 = vmatpush1.msra.mxu0 0.0
    %324 = vmatprep.subr.mxu0 0.0
    %325 = vmatpush1.msra.mxu0 0.0
    %326 = vmatprep.subr.mxu0 0.0
    %327 = vmatpush1.msra.mxu0 0.0
    %328 = vmatprep.subr.mxu0 0.0
    %329 = vmatpush1.msra.mxu0 0.0
    %330 = vmatprep.subr.mxu0 0.0
    %331 = vmatpush1.msra.mxu0 0.0
    %332 = vmatprep.subr.mxu0 0.0
    %333 = vmatpush1.msra.mxu0 0.0
    %334 = vmatprep.subr.mxu0 0.0
    %335 = vmatpush1.msra.mxu0 0.0
    %336 = vmatprep.subr.mxu0 0.0
    %337 = vmatpush1.msra.mxu0 0.0
    %338 = vmatprep.subr.mxu0 0.0
    %339 = vmatpush1.msra.mxu0 0.0
    %340 = vmatprep.subr.mxu0 0.0
    %341 = vmatpush1.msra.mxu0 0.0
    %342 = vmatprep.subr.mxu0 0.0
    %343 = vmatpush1.msra.mxu0 0.0
    %344 = vmatprep.subr.mxu0 0.0
    %345 = vmatpush1.msra.mxu0 0.0
    %346 = vmatprep.subr.mxu0 0.0
    %347 = vmatpush1.msra.mxu0 0.0
    %348 = vmatprep.subr.mxu0 0.0
    %349 = vmatpush1.msra.mxu0 0.0
    %350 = vmatprep.subr.mxu0 0.0
    %351 = vmatpush1.msra.mxu0 0.0
    %352 = vmatprep.subr.mxu0 0.0
    %353 = vmatpush1.msra.mxu0 0.0
    %354 = vmatprep.subr.mxu0 0.0
    %355 = vmatpush1.msra.mxu0 0.0
    %356 = vmatprep.subr.mxu0 0.0
    %357 = vmatpush1.msra.mxu0 0.0
    %358 = vmatprep.subr.mxu0 0.0
    %359 = vmatpush1.msra.mxu0 0.0
    %360 = vmatprep.subr.mxu0 0.0
    %361 = vmatpush1.msra.mxu0 0.0
    %362 = vmatprep.subr.mxu0 0.0
    %363 = vmatpush1.msra.mxu0 0.0
    %364 = vmatprep.subr.mxu0 0.0
    %365 = vmatpush1.msra.mxu0 0.0
    %366 = vmatprep.subr.mxu0 0.0
    %367 = vmatpush1.msra.mxu0 0.0
    %368 = vmatprep.subr.mxu0 0.0
    %369 = vmatpush1.msra.mxu0 0.0
    %370 = vmatprep.subr.mxu0 0.0
    %371 = vmatpush1.msra.mxu0 0.0
    %372 = vmatprep.subr.mxu0 0.0
    %373 = vmatpush1.msra.mxu0 0.0
    %374 = vmatprep.mubr.f32.mxu0 0.0
    %375 = vmatmul.mubr.f32.gmra.mrb[0].mxu0 %v308
    %v376 = vpop.f32.mrb[0].mxu0
    %v377 = vadd.f32 0.0, %v376
    %v378 = vpop.f32.mrb[0].mxu0
    %379 = vdwg.mxu0
    %v380 = vlaneseq
    %v381 = vshrl.u32 %v380, 7
    %v382 = vsub.s32 0, %v381
    %v383 = vrot.slane %v80, %v382
    %v384 = vmul.f32 %v377, %v383
    %v386 = vrot.slane %v384, 2
    %v388 = vmul.f32 %v377, %v386
    %v389 = vlaneseq
    %v390 = vshrl.u32 %v389, 7
    %v391 = vsub.s32 0, %v390
    %v392 = vrot.slane %v81, %v391
    %v393 = vsub.f32 %v392, %v388
    %v395 = vunpack.c.l.s4 1966171168
    %v396 = vunpack.c.0.s8 %v395
    %v397 = vlaneseq
    %v398 = vshrl.u32 %v397, 7
    %v399 = vsub.s32 %v396, %v398
    %v400 = vrot.slane %v384, %v399
    %v401 = vcombine.high %v400, %v400
    %v403 = vunpack.c.l.s4 1966171168
    %v404 = vunpack.c.0.s8 %v403
    %v405 = vlaneseq
    %v406 = vshrl.u32 %v405, 7
    %v407 = vsub.s32 %v404, %v406
    %v408 = vrot.slane %v400, %v407
    %v410 = vunpack.c.l.s4 1966171168
    %v411 = vunpack.c.0.s8 %v410
    %v412 = vlaneseq
    %v413 = vshrl.u32 %v412, 7
    %v414 = vsub.s32 %v411, %v413
    %v415 = vrot.slane %v401, %v414
    %v416 = vcombine.high %v408, %v408
    %v417 = vcombine.high %v415, %v415
    %v418 = vlaneseq
    %v419 = vshrl.u32 %v418, 7
    %v420 = vsub.s32 0, %v419
    %v421 = vrot.slane %v416, %v420
    %v422 = vlaneseq
    %v423 = vshrl.u32 %v422, 7
    %v424 = vsub.s32 0, %v423
    %v425 = vrot.slane %v417, %v424
    %v428 = vmul.f32 %v130, %v421
    %v429 = vmul.f32 %v131, %v421
    %v430 = vmul.f32 %v132, %v421
    %v431 = vmul.f32 %v133, %v421
    %v432 = vmul.f32 %v134, %v421
    %v433 = vmul.f32 %v135, %v421
    %v434 = vmul.f32 %v136, %v421
    %v435 = vmul.f32 %v137, %v421
    %v436 = vmul.f32 %v138, %v425
    %v437 = vmul.f32 %v139, %v425
    %v438 = vmul.f32 %v140, %v425
    %v439 = vmul.f32 %v141, %v425
    %v440 = vmul.f32 %v142, %v425
    %v441 = vmul.f32 %v143, %v425
    %v442 = vmul.f32 %v144, %v425
    %v443 = vmul.f32 %v145, %v425
    %v446 = vunpack.c.l.s4 1966171168
    %v447 = vunpack.c.0.s8 %v446
    %v448 = vlaneseq
    %v449 = vshrl.u32 %v448, 7
    %v450 = vsub.s32 %v447, %v449
    %v451 = vrot.slane %v393, %v450
    %v452 = vcombine.high %v451, %v451
    %v454 = vunpack.c.l.s4 1966171168
    %v455 = vunpack.c.0.s8 %v454
    %v456 = vlaneseq
    %v457 = vshrl.u32 %v456, 7
    %v458 = vsub.s32 %v455, %v457
    %v459 = vrot.slane %v451, %v458
    %v461 = vunpack.c.l.s4 1966171168
    %v462 = vunpack.c.0.s8 %v461
    %v463 = vlaneseq
    %v464 = vshrl.u32 %v463, 7
    %v465 = vsub.s32 %v462, %v464
    %v466 = vrot.slane %v452, %v465
    %v467 = vlaneseq
    %v468 = vshrl.u32 %v467, 7
    %v469 = vsub.s32 0, %v468
    %v470 = vrot.slane %v459, %v469
    %v471 = vlaneseq
    %v472 = vshrl.u32 %v471, 7
    %v473 = vsub.s32 0, %v472
    %v474 = vrot.slane %v466, %v473
    %v477 = vadd.f32 %v428, %v470
    %v478 = vadd.f32 %v429, %v470
    %v479 = vadd.f32 %v430, %v470
    %v480 = vadd.f32 %v431, %v470
    %v481 = vadd.f32 %v432, %v470
    %v482 = vadd.f32 %v433, %v470
    %v483 = vadd.f32 %v434, %v470
    %v484 = vadd.f32 %v435, %v470
    %v485 = vadd.f32 %v436, %v474
    %v486 = vadd.f32 %v437, %v474
    %v487 = vadd.f32 %v438, %v474
    %v488 = vadd.f32 %v439, %v474
    %v489 = vadd.f32 %v440, %v474
    %v490 = vadd.f32 %v441, %v474
    %v491 = vadd.f32 %v442, %v474
    %v492 = vadd.f32 %v443, %v474
    %v493 = vmax.f32 %v477, 0.0
    %v494 = vmax.f32 %v478, 0.0
    %v495 = vmax.f32 %v479, 0.0
    %v496 = vmax.f32 %v480, 0.0
    %v497 = vmax.f32 %v481, 0.0
    %v498 = vmax.f32 %v482, 0.0
    %v499 = vmax.f32 %v483, 0.0
    %v500 = vmax.f32 %v484, 0.0
    %v501 = vmax.f32 %v485, 0.0
    %v502 = vmax.f32 %v486, 0.0
    %v503 = vmax.f32 %v487, 0.0
    %v504 = vmax.f32 %v488, 0.0
    %v505 = vmax.f32 %v489, 0.0
    %v506 = vmax.f32 %v490, 0.0
    %v507 = vmax.f32 %v491, 0.0
    %v508 = vmax.f32 %v492, 0.0
    %509 = vst [vmem:[#allocation2 + $0x18] sm:$0xff] %v493
    %510 = vst [vmem:[#allocation2 + $0x28] sm:$0xff] %v494
    %511 = vst [vmem:[#allocation2 + $0x38] sm:$0xff] %v495
    %512 = vst [vmem:[#allocation2 + $0x48] sm:$0xff] %v496
    %513 = vst [vmem:[#allocation2 + $0x58] sm:$0xff] %v497
    %514 = vst [vmem:[#allocation2 + $0x68] sm:$0xff] %v498
    %515 = vst [vmem:[#allocation2 + $0x78] sm:$0xff] %v499
    %516 = vst [vmem:[#allocation2 + $0x88] sm:$0xff] %v500
    %s517 = scalar_lea.vmem [#allocation2], 176
    %518 = vst [vmem:[%s517 + $0x18] sm:$0xff] %v501
    %519 = vst [vmem:[%s517 + $0x28] sm:$0xff] %v502
    %520 = vst [vmem:[%s517 + $0x38] sm:$0xff] %v503
    %521 = vst [vmem:[%s517 + $0x48] sm:$0xff] %v504
    %522 = vst [vmem:[%s517 + $0x58] sm:$0xff] %v505
    %523 = vst [vmem:[%s517 + $0x68] sm:$0xff] %v506
    %524 = vst [vmem:[%s517 + $0x78] sm:$0xff] %v507
    %525 = vst [vmem:[%s517 + $0x88] sm:$0xff] %v508
    %v526 = vld [vmem:[#allocation2 + $0x7] sm:$0xff]
    %v527 = vld [vmem:[#allocation2 + $0xf] sm:$0xff]
    %v528 = vld [vmem:[#allocation2 + $0x17] sm:$0xff]
    %v529 = vld [vmem:[#allocation2 + $0x1f] sm:$0xff]
    %v530 = vld [vmem:[#allocation2 + $0x27] sm:$0xff]
    %v531 = vld [vmem:[#allocation2 + $0x2f] sm:$0xff]
    %v532 = vld [vmem:[#allocation2 + $0x37] sm:$0xff]
    %v533 = vld [vmem:[#allocation2 + $0x3f] sm:$0xff]
    %v534 = vld [vmem:[#allocation2 + $0x47] sm:$0xff]
    %v535 = vld [vmem:[#allocation2 + $0x4f] sm:$0xff]
    %v536 = vld [vmem:[#allocation2 + $0x57] sm:$0xff]
    %v537 = vld [vmem:[#allocation2 + $0x5f] sm:$0xff]
    %v538 = vld [vmem:[#allocation2 + $0x67] sm:$0xff]
    %v539 = vld [vmem:[#allocation2 + $0x6f] sm:$0xff]
    %v540 = vld [vmem:[#allocation2 + $0x77] sm:$0xff]
    %v541 = vld [vmem:[#allocation2 + $0x7f] sm:$0xff]
    %v542 = vpack.c.bf16 %v527, %v526
    %v543 = vpack.c.bf16 %v529, %v528
    %v544 = vpack.c.bf16 %v531, %v530
    %v545 = vpack.c.bf16 %v533, %v532
    %v546 = vpack.c.bf16 %v535, %v534
    %v547 = vpack.c.bf16 %v537, %v536
    %v548 = vpack.c.bf16 %v539, %v538
    %v549 = vpack.c.bf16 %v541, %v540
    %550 = vst [vmem:[#allocation3] sm:$0xff] %v542
    %551 = vst [vmem:[#allocation3 + $0x48] sm:$0xff] %v543
    %552 = vst [vmem:[#allocation3 + $0x90] sm:$0xff] %v544
    %553 = vst [vmem:[#allocation3 + $0xd8] sm:$0xff] %v545
    %554 = vst [vmem:[#allocation3 + $0x120] sm:$0xff] %v546
    %555 = vst [vmem:[#allocation3 + $0x168] sm:$0xff] %v547
    %556 = vst [vmem:[#allocation3 + $0x1b0] sm:$0xff] %v548
    %557 = vst [vmem:[#allocation3 + $0x1f8] sm:$0xff] %v549
    %v558 = vld [vmem:[#allocation2 + $0x8] sm:$0xff]
    %v559 = vld [vmem:[#allocation2 + $0x10] sm:$0xff]
    %v560 = vld [vmem:[#allocation2 + $0x18] sm:$0xff]
    %v561 = vld [vmem:[#allocation2 + $0x20] sm:$0xff]
    %v562 = vld [vmem:[#allocation2 + $0x28] sm:$0xff]
    %v563 = vld [vmem:[#allocation2 + $0x30] sm:$0xff]
    %v564 = vld [vmem:[#allocation2 + $0x38] sm:$0xff]
    %v565 = vld [vmem:[#allocation2 + $0x40] sm:$0xff]
    %v566 = vld [vmem:[#allocation2 + $0x48] sm:$0xff]
    %v567 = vld [vmem:[#allocation2 + $0x50] sm:$0xff]
    %v568 = vld [vmem:[#allocation2 + $0x58] sm:$0xff]
    %v569 = vld [vmem:[#allocation2 + $0x60] sm:$0xff]
    %v570 = vld [vmem:[#allocation2 + $0x68] sm:$0xff]
    %v571 = vld [vmem:[#allocation2 + $0x70] sm:$0xff]
    %v572 = vld [vmem:[#allocation2 + $0x78] sm:$0xff]
    %v573 = vld [vmem:[#allocation2 + $0x80] sm:$0xff]
    %v574 = vpack.c.bf16 %v559, %v558
    %v575 = vpack.c.bf16 %v561, %v560
    %v576 = vpack.c.bf16 %v563, %v562
    %v577 = vpack.c.bf16 %v565, %v564
    %v578 = vpack.c.bf16 %v567, %v566
    %v579 = vpack.c.bf16 %v569, %v568
    %v580 = vpack.c.bf16 %v571, %v570
    %v581 = vpack.c.bf16 %v573, %v572
    %582 = vst [vmem:[#allocation3 + $0x8] sm:$0xff] %v574
    %583 = vst [vmem:[#allocation3 + $0x50] sm:$0xff] %v575
    %584 = vst [vmem:[#allocation3 + $0x98] sm:$0xff] %v576
    %585 = vst [vmem:[#allocation3 + $0xe0] sm:$0xff] %v577
    %586 = vst [vmem:[#allocation3 + $0x128] sm:$0xff] %v578
    %587 = vst [vmem:[#allocation3 + $0x170] sm:$0xff] %v579
    %588 = vst [vmem:[#allocation3 + $0x1b8] sm:$0xff] %v580
    %589 = vst [vmem:[#allocation3 + $0x200] sm:$0xff] %v581
    %v590 = vld [vmem:[#allocation2 + $0x9] sm:$0xff]
    %v591 = vld [vmem:[#allocation2 + $0x11] sm:$0xff]
    %v592 = vld [vmem:[#allocation2 + $0x19] sm:$0xff]
    %v593 = vld [vmem:[#allocation2 + $0x21] sm:$0xff]
    %v594 = vld [vmem:[#allocation2 + $0x29] sm:$0xff]
    %v595 = vld [vmem:[#allocation2 + $0x31] sm:$0xff]
    %v596 = vld [vmem:[#allocation2 + $0x39] sm:$0xff]
    %v597 = vld [vmem:[#allocation2 + $0x41] sm:$0xff]
    %v598 = vld [vmem:[#allocation2 + $0x49] sm:$0xff]
    %v599 = vld [vmem:[#allocation2 + $0x51] sm:$0xff]
    %v600 = vld [vmem:[#allocation2 + $0x59] sm:$0xff]
    %v601 = vld [vmem:[#allocation2 + $0x61] sm:$0xff]
    %v602 = vld [vmem:[#allocation2 + $0x69] sm:$0xff]
    %v603 = vld [vmem:[#allocation2 + $0x71] sm:$0xff]
    %v604 = vld [vmem:[#allocation2 + $0x79] sm:$0xff]
    %v605 = vld [vmem:[#allocation2 + $0x81] sm:$0xff]
    %v606 = vpack.c.bf16 %v591, %v590
    %v607 = vpack.c.bf16 %v593, %v592
    %v608 = vpack.c.bf16 %v595, %v594
    %v609 = vpack.c.bf16 %v597, %v596
    %v610 = vpack.c.bf16 %v599, %v598
    %v611 = vpack.c.bf16 %v601, %v600
    %v612 = vpack.c.bf16 %v603, %v602
    %v613 = vpack.c.bf16 %v605, %v604
    %614 = vst [vmem:[#allocation3 + $0x10] sm:$0xff] %v606
    %615 = vst [vmem:[#allocation3 + $0x58] sm:$0xff] %v607
    %616 = vst [vmem:[#allocation3 + $0xa0] sm:$0xff] %v608
    %617 = vst [vmem:[#allocation3 + $0xe8] sm:$0xff] %v609
    %618 = vst [vmem:[#allocation3 + $0x130] sm:$0xff] %v610
    %619 = vst [vmem:[#allocation3 + $0x178] sm:$0xff] %v611
    %620 = vst [vmem:[#allocation3 + $0x1c0] sm:$0xff] %v612
    %621 = vst [vmem:[#allocation3 + $0x208] sm:$0xff] %v613
    %v622 = vld [vmem:[#allocation2 + $0x17] sm:$0xff]
    %v623 = vld [vmem:[#allocation2 + $0x1f] sm:$0xff]
    %v624 = vld [vmem:[#allocation2 + $0x27] sm:$0xff]
    %v625 = vld [vmem:[#allocation2 + $0x2f] sm:$0xff]
    %v626 = vld [vmem:[#allocation2 + $0x37] sm:$0xff]
    %v627 = vld [vmem:[#allocation2 + $0x3f] sm:$0xff]
    %v628 = vld [vmem:[#allocation2 + $0x47] sm:$0xff]
    %v629 = vld [vmem:[#allocation2 + $0x4f] sm:$0xff]
    %v630 = vld [vmem:[#allocation2 + $0x57] sm:$0xff]
    %v631 = vld [vmem:[#allocation2 + $0x5f] sm:$0xff]
    %v632 = vld [vmem:[#allocation2 + $0x67] sm:$0xff]
    %v633 = vld [vmem:[#allocation2 + $0x6f] sm:$0xff]
    %v634 = vld [vmem:[#allocation2 + $0x77] sm:$0xff]
    %v635 = vld [vmem:[#allocation2 + $0x7f] sm:$0xff]
    %v636 = vld [vmem:[#allocation2 + $0x87] sm:$0xff]
    %v637 = vld [vmem:[#allocation2 + $0x8f] sm:$0xff]
    %v638 = vpack.c.bf16 %v623, %v622
    %v639 = vpack.c.bf16 %v625, %v624
    %v640 = vpack.c.bf16 %v627, %v626
    %v641 = vpack.c.bf16 %v629, %v628
    %v642 = vpack.c.bf16 %v631, %v630
    %v643 = vpack.c.bf16 %v633, %v632
    %v644 = vpack.c.bf16 %v635, %v634
    %v645 = vpack.c.bf16 %v637, %v636
    %646 = vst [vmem:[#allocation3 + $0x18] sm:$0xff] %v638
    %647 = vst [vmem:[#allocation3 + $0x60] sm:$0xff] %v639
    %648 = vst [vmem:[#allocation3 + $0xa8] sm:$0xff] %v640
    %649 = vst [vmem:[#allocation3 + $0xf0] sm:$0xff] %v641
    %650 = vst [vmem:[#allocation3 + $0x138] sm:$0xff] %v642
    %651 = vst [vmem:[#allocation3 + $0x180] sm:$0xff] %v643
    %652 = vst [vmem:[#allocation3 + $0x1c8] sm:$0xff] %v644
    %653 = vst [vmem:[#allocation3 + $0x210] sm:$0xff] %v645
    %v654 = vld [vmem:[#allocation2 + $0x18] sm:$0xff]
    %v655 = vld [vmem:[#allocation2 + $0x20] sm:$0xff]
    %v656 = vld [vmem:[#allocation2 + $0x28] sm:$0xff]
    %v657 = vld [vmem:[#allocation2 + $0x30] sm:$0xff]
    %v658 = vld [vmem:[#allocation2 + $0x38] sm:$0xff]
    %v659 = vld [vmem:[#allocation2 + $0x40] sm:$0xff]
    %v660 = vld [vmem:[#allocation2 + $0x48] sm:$0xff]
    %v661 = vld [vmem:[#allocation2 + $0x50] sm:$0xff]
    %v662 = vld [vmem:[#allocation2 + $0x58] sm:$0xff]
    %v663 = vld [vmem:[#allocation2 + $0x60] sm:$0xff]
    %v664 = vld [vmem:[#allocation2 + $0x68] sm:$0xff]
    %v665 = vld [vmem:[#allocation2 + $0x70] sm:$0xff]
    %v666 = vld [vmem:[#allocation2 + $0x78] sm:$0xff]
    %v667 = vld [vmem:[#allocation2 + $0x80] sm:$0xff]
    %v668 = vld [vmem:[#allocation2 + $0x88] sm:$0xff]
    %v669 = vld [vmem:[#allocation2 + $0x90] sm:$0xff]
    %v670 = vpack.c.bf16 %v655, %v654
    %v671 = vpack.c.bf16 %v657, %v656
    %v672 = vpack.c.bf16 %v659, %v658
    %v673 = vpack.c.bf16 %v661, %v660
    %v674 = vpack.c.bf16 %v663, %v662
    %v675 = vpack.c.bf16 %v665, %v664
    %v676 = vpack.c.bf16 %v667, %v666
    %v677 = vpack.c.bf16 %v669, %v668
    %678 = vst [vmem:[#allocation3 + $0x20] sm:$0xff] %v670
    %679 = vst [vmem:[#allocation3 + $0x68] sm:$0xff] %v671
    %680 = vst [vmem:[#allocation3 + $0xb0] sm:$0xff] %v672
    %681 = vst [vmem:[#allocation3 + $0xf8] sm:$0xff] %v673
    %682 = vst [vmem:[#allocation3 + $0x140] sm:$0xff] %v674
    %683 = vst [vmem:[#allocation3 + $0x188] sm:$0xff] %v675
    %684 = vst [vmem:[#allocation3 + $0x1d0] sm:$0xff] %v676
    %685 = vst [vmem:[#allocation3 + $0x218] sm:$0xff] %v677
    %v686 = vld [vmem:[#allocation2 + $0x19] sm:$0xff]
    %v687 = vld [vmem:[#allocation2 + $0x21] sm:$0xff]
    %v688 = vld [vmem:[#allocation2 + $0x29] sm:$0xff]
    %v689 = vld [vmem:[#allocation2 + $0x31] sm:$0xff]
    %v690 = vld [vmem:[#allocation2 + $0x39] sm:$0xff]
    %v691 = vld [vmem:[#allocation2 + $0x41] sm:$0xff]
    %v692 = vld [vmem:[#allocation2 + $0x49] sm:$0xff]
    %v693 = vld [vmem:[#allocation2 + $0x51] sm:$0xff]
    %v694 = vld [vmem:[#allocation2 + $0x59] sm:$0xff]
    %v695 = vld [vmem:[#allocation2 + $0x61] sm:$0xff]
    %v696 = vld [vmem:[#allocation2 + $0x69] sm:$0xff]
    %v697 = vld [vmem:[#allocation2 + $0x71] sm:$0xff]
    %v698 = vld [vmem:[#allocation2 + $0x79] sm:$0xff]
    %v699 = vld [vmem:[#allocation2 + $0x81] sm:$0xff]
    %v700 = vld [vmem:[#allocation2 + $0x89] sm:$0xff]
    %v701 = vld [vmem:[#allocation2 + $0x91] sm:$0xff]
    %v702 = vpack.c.bf16 %v687, %v686
    %v703 = vpack.c.bf16 %v689, %v688
    %v704 = vpack.c.bf16 %v691, %v690
    %v705 = vpack.c.bf16 %v693, %v692
    %v706 = vpack.c.bf16 %v695, %v694
    %v707 = vpack.c.bf16 %v697, %v696
    %v708 = vpack.c.bf16 %v699, %v698
    %v709 = vpack.c.bf16 %v701, %v700
    %710 = vst [vmem:[#allocation3 + $0x28] sm:$0xff] %v702
    %711 = vst [vmem:[#allocation3 + $0x70] sm:$0xff] %v703
    %712 = vst [vmem:[#allocation3 + $0xb8] sm:$0xff] %v704
    %713 = vst [vmem:[#allocation3 + $0x100] sm:$0xff] %v705
    %714 = vst [vmem:[#allocation3 + $0x148] sm:$0xff] %v706
    %715 = vst [vmem:[#allocation3 + $0x190] sm:$0xff] %v707
    %716 = vst [vmem:[#allocation3 + $0x1d8] sm:$0xff] %v708
    %717 = vst [vmem:[#allocation3 + $0x220] sm:$0xff] %v709
    %v718 = vld [vmem:[#allocation2 + $0x27] sm:$0xff]
    %v719 = vld [vmem:[#allocation2 + $0x2f] sm:$0xff]
    %v720 = vld [vmem:[#allocation2 + $0x37] sm:$0xff]
    %v721 = vld [vmem:[#allocation2 + $0x3f] sm:$0xff]
    %v722 = vld [vmem:[#allocation2 + $0x47] sm:$0xff]
    %v723 = vld [vmem:[#allocation2 + $0x4f] sm:$0xff]
    %v724 = vld [vmem:[#allocation2 + $0x57] sm:$0xff]
    %v725 = vld [vmem:[#allocation2 + $0x5f] sm:$0xff]
    %v726 = vld [vmem:[#allocation2 + $0x67] sm:$0xff]
    %v727 = vld [vmem:[#allocation2 + $0x6f] sm:$0xff]
    %v728 = vld [vmem:[#allocation2 + $0x77] sm:$0xff]
    %v729 = vld [vmem:[#allocation2 + $0x7f] sm:$0xff]
    %v730 = vld [vmem:[#allocation2 + $0x87] sm:$0xff]
    %v731 = vld [vmem:[#allocation2 + $0x8f] sm:$0xff]
    %v732 = vld [vmem:[#allocation2 + $0x97] sm:$0xff]
    %v733 = vld [vmem:[#allocation2 + $0x9f] sm:$0xff]
    %v734 = vpack.c.bf16 %v719, %v718
    %v735 = vpack.c.bf16 %v721, %v720
    %v736 = vpack.c.bf16 %v723, %v722
    %v737 = vpack.c.bf16 %v725, %v724
    %v738 = vpack.c.bf16 %v727, %v726
    %v739 = vpack.c.bf16 %v729, %v728
    %v740 = vpack.c.bf16 %v731, %v730
    %v741 = vpack.c.bf16 %v733, %v732
    %742 = vst [vmem:[#allocation3 + $0x30] sm:$0xff] %v734
    %743 = vst [vmem:[#allocation3 + $0x78] sm:$0xff] %v735
    %744 = vst [vmem:[#allocation3 + $0xc0] sm:$0xff] %v736
    %745 = vst [vmem:[#allocation3 + $0x108] sm:$0xff] %v737
    %746 = vst [vmem:[#allocation3 + $0x150] sm:$0xff] %v738
    %747 = vst [vmem:[#allocation3 + $0x198] sm:$0xff] %v739
    %748 = vst [vmem:[#allocation3 + $0x1e0] sm:$0xff] %v740
    %749 = vst [vmem:[#allocation3 + $0x228] sm:$0xff] %v741
    %v750 = vld [vmem:[#allocation2 + $0x28] sm:$0xff]
    %v751 = vld [vmem:[#allocation2 + $0x30] sm:$0xff]
    %v752 = vld [vmem:[#allocation2 + $0x38] sm:$0xff]
    %v753 = vld [vmem:[#allocation2 + $0x40] sm:$0xff]
    %v754 = vld [vmem:[#allocation2 + $0x48] sm:$0xff]
    %v755 = vld [vmem:[#allocation2 + $0x50] sm:$0xff]
    %v756 = vld [vmem:[#allocation2 + $0x58] sm:$0xff]
    %v757 = vld [vmem:[#allocation2 + $0x60] sm:$0xff]
    %v758 = vld [vmem:[#allocation2 + $0x68] sm:$0xff]
    %v759 = vld [vmem:[#allocation2 + $0x70] sm:$0xff]
    %v760 = vld [vmem:[#allocation2 + $0x78] sm:$0xff]
    %v761 = vld [vmem:[#allocation2 + $0x80] sm:$0xff]
    %v762 = vld [vmem:[#allocation2 + $0x88] sm:$0xff]
    %v763 = vld [vmem:[#allocation2 + $0x90] sm:$0xff]
    %v764 = vld [vmem:[#allocation2 + $0x98] sm:$0xff]
    %v765 = vld [vmem:[#allocation2 + $0xa0] sm:$0xff]
    %v766 = vpack.c.bf16 %v751, %v750
    %v767 = vpack.c.bf16 %v753, %v752
    %v768 = vpack.c.bf16 %v755, %v754
    %v769 = vpack.c.bf16 %v757, %v756
    %v770 = vpack.c.bf16 %v759, %v758
    %v771 = vpack.c.bf16 %v761, %v760
    %v772 = vpack.c.bf16 %v763, %v762
    %v773 = vpack.c.bf16 %v765, %v764
    %774 = vst [vmem:[#allocation3 + $0x38] sm:$0xff] %v766
    %775 = vst [vmem:[#allocation3 + $0x80] sm:$0xff] %v767
    %776 = vst [vmem:[#allocation3 + $0xc8] sm:$0xff] %v768
    %777 = vst [vmem:[#allocation3 + $0x110] sm:$0xff] %v769
    %778 = vst [vmem:[#allocation3 + $0x158] sm:$0xff] %v770
    %779 = vst [vmem:[#allocation3 + $0x1a0] sm:$0xff] %v771
    %780 = vst [vmem:[#allocation3 + $0x1e8] sm:$0xff] %v772
    %781 = vst [vmem:[#allocation3 + $0x230] sm:$0xff] %v773
    %v782 = vld [vmem:[#allocation2 + $0x29] sm:$0xff]
    %v783 = vld [vmem:[#allocation2 + $0x31] sm:$0xff]
    %v784 = vld [vmem:[#allocation2 + $0x39] sm:$0xff]
    %v785 = vld [vmem:[#allocation2 + $0x41] sm:$0xff]
    %v786 = vld [vmem:[#allocation2 + $0x49] sm:$0xff]
    %v787 = vld [vmem:[#allocation2 + $0x51] sm:$0xff]
    %v788 = vld [vmem:[#allocation2 + $0x59] sm:$0xff]
    %v789 = vld [vmem:[#allocation2 + $0x61] sm:$0xff]
    %v790 = vld [vmem:[#allocation2 + $0x69] sm:$0xff]
    %v791 = vld [vmem:[#allocation2 + $0x71] sm:$0xff]
    %v792 = vld [vmem:[#allocation2 + $0x79] sm:$0xff]
    %v793 = vld [vmem:[#allocation2 + $0x81] sm:$0xff]
    %v794 = vld [vmem:[#allocation2 + $0x89] sm:$0xff]
    %v795 = vld [vmem:[#allocation2 + $0x91] sm:$0xff]
    %v796 = vld [vmem:[#allocation2 + $0x99] sm:$0xff]
    %v797 = vld [vmem:[#allocation2 + $0xa1] sm:$0xff]
    %v798 = vpack.c.bf16 %v783, %v782
    %v799 = vpack.c.bf16 %v785, %v784
    %v800 = vpack.c.bf16 %v787, %v786
    %v801 = vpack.c.bf16 %v789, %v788
    %v802 = vpack.c.bf16 %v791, %v790
    %v803 = vpack.c.bf16 %v793, %v792
    %v804 = vpack.c.bf16 %v795, %v794
    %v805 = vpack.c.bf16 %v797, %v796
    %806 = vst [vmem:[#allocation3 + $0x40] sm:$0xff] %v798
    %807 = vst [vmem:[#allocation3 + $0x88] sm:$0xff] %v799
    %808 = vst [vmem:[#allocation3 + $0xd0] sm:$0xff] %v800
    %809 = vst [vmem:[#allocation3 + $0x118] sm:$0xff] %v801
    %810 = vst [vmem:[#allocation3 + $0x160] sm:$0xff] %v802
    %811 = vst [vmem:[#allocation3 + $0x1a8] sm:$0xff] %v803
    %812 = vst [vmem:[#allocation3 + $0x1f0] sm:$0xff] %v804
    %813 = vst [vmem:[#allocation3 + $0x238] sm:$0xff] %v805
    %v814 = vld [vmem:[%s517 + $0x7] sm:$0xff]
    %v815 = vld [vmem:[%s517 + $0xf] sm:$0xff]
    %v816 = vld [vmem:[%s517 + $0x17] sm:$0xff]
    %v817 = vld [vmem:[%s517 + $0x1f] sm:$0xff]
    %v818 = vld [vmem:[%s517 + $0x27] sm:$0xff]
    %v819 = vld [vmem:[%s517 + $0x2f] sm:$0xff]
    %v820 = vld [vmem:[%s517 + $0x37] sm:$0xff]
    %v821 = vld [vmem:[%s517 + $0x3f] sm:$0xff]
    %v822 = vld [vmem:[%s517 + $0x47] sm:$0xff]
    %v823 = vld [vmem:[%s517 + $0x4f] sm:$0xff]
    %v824 = vld [vmem:[%s517 + $0x57] sm:$0xff]
    %v825 = vld [vmem:[%s517 + $0x5f] sm:$0xff]
    %v826 = vld [vmem:[%s517 + $0x67] sm:$0xff]
    %v827 = vld [vmem:[%s517 + $0x6f] sm:$0xff]
    %v828 = vld [vmem:[%s517 + $0x77] sm:$0xff]
    %v829 = vld [vmem:[%s517 + $0x7f] sm:$0xff]
    %v830 = vpack.c.bf16 %v815, %v814
    %v831 = vpack.c.bf16 %v817, %v816
    %v832 = vpack.c.bf16 %v819, %v818
    %v833 = vpack.c.bf16 %v821, %v820
    %v834 = vpack.c.bf16 %v823, %v822
    %v835 = vpack.c.bf16 %v825, %v824
    %v836 = vpack.c.bf16 %v827, %v826
    %v837 = vpack.c.bf16 %v829, %v828
    %838 = vst [vmem:[#allocation3 + $0x240] sm:$0xff] %v830
    %839 = vst [vmem:[#allocation3 + $0x288] sm:$0xff] %v831
    %840 = vst [vmem:[#allocation3 + $0x2d0] sm:$0xff] %v832
    %841 = vst [vmem:[#allocation3 + $0x318] sm:$0xff] %v833
    %842 = vst [vmem:[#allocation3 + $0x360] sm:$0xff] %v834
    %843 = vst [vmem:[#allocation3 + $0x3a8] sm:$0xff] %v835
    %844 = vst [vmem:[#allocation3 + $0x3f0] sm:$0xff] %v836
    %845 = vst [vmem:[#allocation3 + $0x438] sm:$0xff] %v837
    %v846 = vld [vmem:[%s517 + $0x8] sm:$0xff]
    %v847 = vld [vmem:[%s517 + $0x10] sm:$0xff]
    %v848 = vld [vmem:[%s517 + $0x18] sm:$0xff]
    %v849 = vld [vmem:[%s517 + $0x20] sm:$0xff]
    %v850 = vld [vmem:[%s517 + $0x28] sm:$0xff]
    %v851 = vld [vmem:[%s517 + $0x30] sm:$0xff]
    %v852 = vld [vmem:[%s517 + $0x38] sm:$0xff]
    %v853 = vld [vmem:[%s517 + $0x40] sm:$0xff]
    %v854 = vld [vmem:[%s517 + $0x48] sm:$0xff]
    %v855 = vld [vmem:[%s517 + $0x50] sm:$0xff]
    %v856 = vld [vmem:[%s517 + $0x58] sm:$0xff]
    %v857 = vld [vmem:[%s517 + $0x60] sm:$0xff]
    %v858 = vld [vmem:[%s517 + $0x68] sm:$0xff]
    %v859 = vld [vmem:[%s517 + $0x70] sm:$0xff]
    %v860 = vld [vmem:[%s517 + $0x78] sm:$0xff]
    %v861 = vld [vmem:[%s517 + $0x80] sm:$0xff]
    %v862 = vpack.c.bf16 %v847, %v846
    %v863 = vpack.c.bf16 %v849, %v848
    %v864 = vpack.c.bf16 %v851, %v850
    %v865 = vpack.c.bf16 %v853, %v852
    %v866 = vpack.c.bf16 %v855, %v854
    %v867 = vpack.c.bf16 %v857, %v856
    %v868 = vpack.c.bf16 %v859, %v858
    %v869 = vpack.c.bf16 %v861, %v860
    %870 = vst [vmem:[#allocation3 + $0x248] sm:$0xff] %v862
    %871 = vst [vmem:[#allocation3 + $0x290] sm:$0xff] %v863
    %872 = vst [vmem:[#allocation3 + $0x2d8] sm:$0xff] %v864
    %873 = vst [vmem:[#allocation3 + $0x320] sm:$0xff] %v865
    %874 = vst [vmem:[#allocation3 + $0x368] sm:$0xff] %v866
    %875 = vst [vmem:[#allocation3 + $0x3b0] sm:$0xff] %v867
    %876 = vst [vmem:[#allocation3 + $0x3f8] sm:$0xff] %v868
    %877 = vst [vmem:[#allocation3 + $0x440] sm:$0xff] %v869
    %v878 = vld [vmem:[%s517 + $0x9] sm:$0xff]
    %v879 = vld [vmem:[%s517 + $0x11] sm:$0xff]
    %v880 = vld [vmem:[%s517 + $0x19] sm:$0xff]
    %v881 = vld [vmem:[%s517 + $0x21] sm:$0xff]
    %v882 = vld [vmem:[%s517 + $0x29] sm:$0xff]
    %v883 = vld [vmem:[%s517 + $0x31] sm:$0xff]
    %v884 = vld [vmem:[%s517 + $0x39] sm:$0xff]
    %v885 = vld [vmem:[%s517 + $0x41] sm:$0xff]
    %v886 = vld [vmem:[%s517 + $0x49] sm:$0xff]
    %v887 = vld [vmem:[%s517 + $0x51] sm:$0xff]
    %v888 = vld [vmem:[%s517 + $0x59] sm:$0xff]
    %v889 = vld [vmem:[%s517 + $0x61] sm:$0xff]
    %v890 = vld [vmem:[%s517 + $0x69] sm:$0xff]
    %v891 = vld [vmem:[%s517 + $0x71] sm:$0xff]
    %v892 = vld [vmem:[%s517 + $0x79] sm:$0xff]
    %v893 = vld [vmem:[%s517 + $0x81] sm:$0xff]
    %v894 = vpack.c.bf16 %v879, %v878
    %v895 = vpack.c.bf16 %v881, %v880
    %v896 = vpack.c.bf16 %v883, %v882
    %v897 = vpack.c.bf16 %v885, %v884
    %v898 = vpack.c.bf16 %v887, %v886
    %v899 = vpack.c.bf16 %v889, %v888
    %v900 = vpack.c.bf16 %v891, %v890
    %v901 = vpack.c.bf16 %v893, %v892
    %902 = vst [vmem:[#allocation3 + $0x250] sm:$0xff] %v894
    %903 = vst [vmem:[#allocation3 + $0x298] sm:$0xff] %v895
    %904 = vst [vmem:[#allocation3 + $0x2e0] sm:$0xff] %v896
    %905 = vst [vmem:[#allocation3 + $0x328] sm:$0xff] %v897
    %906 = vst [vmem:[#allocation3 + $0x370] sm:$0xff] %v898
    %907 = vst [vmem:[#allocation3 + $0x3b8] sm:$0xff] %v899
    %908 = vst [vmem:[#allocation3 + $0x400] sm:$0xff] %v900
    %909 = vst [vmem:[#allocation3 + $0x448] sm:$0xff] %v901
    %v910 = vld [vmem:[%s517 + $0x17] sm:$0xff]
    %v911 = vld [vmem:[%s517 + $0x1f] sm:$0xff]
    %v912 = vld [vmem:[%s517 + $0x27] sm:$0xff]
    %v913 = vld [vmem:[%s517 + $0x2f] sm:$0xff]
    %v914 = vld [vmem:[%s517 + $0x37] sm:$0xff]
    %v915 = vld [vmem:[%s517 + $0x3f] sm:$0xff]
    %v916 = vld [vmem:[%s517 + $0x47] sm:$0xff]
    %v917 = vld [vmem:[%s517 + $0x4f] sm:$0xff]
    %v918 = vld [vmem:[%s517 + $0x57] sm:$0xff]
    %v919 = vld [vmem:[%s517 + $0x5f] sm:$0xff]
    %v920 = vld [vmem:[%s517 + $0x67] sm:$0xff]
    %v921 = vld [vmem:[%s517 + $0x6f] sm:$0xff]
    %v922 = vld [vmem:[%s517 + $0x77] sm:$0xff]
    %v923 = vld [vmem:[%s517 + $0x7f] sm:$0xff]
    %v924 = vld [vmem:[%s517 + $0x87] sm:$0xff]
    %v925 = vld [vmem:[%s517 + $0x8f] sm:$0xff]
    %v926 = vpack.c.bf16 %v911, %v910
    %v927 = vpack.c.bf16 %v913, %v912
    %v928 = vpack.c.bf16 %v915, %v914
    %v929 = vpack.c.bf16 %v917, %v916
    %v930 = vpack.c.bf16 %v919, %v918
    %v931 = vpack.c.bf16 %v921, %v920
    %v932 = vpack.c.bf16 %v923, %v922
    %v933 = vpack.c.bf16 %v925, %v924
    %934 = vst [vmem:[#allocation3 + $0x258] sm:$0xff] %v926
    %935 = vst [vmem:[#allocation3 + $0x2a0] sm:$0xff] %v927
    %936 = vst [vmem:[#allocation3 + $0x2e8] sm:$0xff] %v928
    %937 = vst [vmem:[#allocation3 + $0x330] sm:$0xff] %v929
    %938 = vst [vmem:[#allocation3 + $0x378] sm:$0xff] %v930
    %939 = vst [vmem:[#allocation3 + $0x3c0] sm:$0xff] %v931
    %940 = vst [vmem:[#allocation3 + $0x408] sm:$0xff] %v932
    %941 = vst [vmem:[#allocation3 + $0x450] sm:$0xff] %v933
    %v942 = vld [vmem:[%s517 + $0x18] sm:$0xff]
    %v943 = vld [vmem:[%s517 + $0x20] sm:$0xff]
    %v944 = vld [vmem:[%s517 + $0x28] sm:$0xff]
    %v945 = vld [vmem:[%s517 + $0x30] sm:$0xff]
    %v946 = vld [vmem:[%s517 + $0x38] sm:$0xff]
    %v947 = vld [vmem:[%s517 + $0x40] sm:$0xff]
    %v948 = vld [vmem:[%s517 + $0x48] sm:$0xff]
    %v949 = vld [vmem:[%s517 + $0x50] sm:$0xff]
    %v950 = vld [vmem:[%s517 + $0x58] sm:$0xff]
    %v951 = vld [vmem:[%s517 + $0x60] sm:$0xff]
    %v952 = vld [vmem:[%s517 + $0x68] sm:$0xff]
    %v953 = vld [vmem:[%s517 + $0x70] sm:$0xff]
    %v954 = vld [vmem:[%s517 + $0x78] sm:$0xff]
    %v955 = vld [vmem:[%s517 + $0x80] sm:$0xff]
    %v956 = vld [vmem:[%s517 + $0x88] sm:$0xff]
    %v957 = vld [vmem:[%s517 + $0x90] sm:$0xff]
    %v958 = vpack.c.bf16 %v943, %v942
    %v959 = vpack.c.bf16 %v945, %v944
    %v960 = vpack.c.bf16 %v947, %v946
    %v961 = vpack.c.bf16 %v949, %v948
    %v962 = vpack.c.bf16 %v951, %v950
    %v963 = vpack.c.bf16 %v953, %v952
    %v964 = vpack.c.bf16 %v955, %v954
    %v965 = vpack.c.bf16 %v957, %v956
    %966 = vst [vmem:[#allocation3 + $0x260] sm:$0xff] %v958
    %967 = vst [vmem:[#allocation3 + $0x2a8] sm:$0xff] %v959
    %968 = vst [vmem:[#allocation3 + $0x2f0] sm:$0xff] %v960
    %969 = vst [vmem:[#allocation3 + $0x338] sm:$0xff] %v961
    %970 = vst [vmem:[#allocation3 + $0x380] sm:$0xff] %v962
    %971 = vst [vmem:[#allocation3 + $0x3c8] sm:$0xff] %v963
    %972 = vst [vmem:[#allocation3 + $0x410] sm:$0xff] %v964
    %973 = vst [vmem:[#allocation3 + $0x458] sm:$0xff] %v965
    %v974 = vld [vmem:[%s517 + $0x19] sm:$0xff]
    %v975 = vld [vmem:[%s517 + $0x21] sm:$0xff]
    %v976 = vld [vmem:[%s517 + $0x29] sm:$0xff]
    %v977 = vld [vmem:[%s517 + $0x31] sm:$0xff]
    %v978 = vld [vmem:[%s517 + $0x39] sm:$0xff]
    %v979 = vld [vmem:[%s517 + $0x41] sm:$0xff]
    %v980 = vld [vmem:[%s517 + $0x49] sm:$0xff]
    %v981 = vld [vmem:[%s517 + $0x51] sm:$0xff]
    %v982 = vld [vmem:[%s517 + $0x59] sm:$0xff]
    %v983 = vld [vmem:[%s517 + $0x61] sm:$0xff]
    %v984 = vld [vmem:[%s517 + $0x69] sm:$0xff]
    %v985 = vld [vmem:[%s517 + $0x71] sm:$0xff]
    %v986 = vld [vmem:[%s517 + $0x79] sm:$0xff]
    %v987 = vld [vmem:[%s517 + $0x81] sm:$0xff]
    %v988 = vld [vmem:[%s517 + $0x89] sm:$0xff]
    %v989 = vld [vmem:[%s517 + $0x91] sm:$0xff]
    %v990 = vpack.c.bf16 %v975, %v974
    %v991 = vpack.c.bf16 %v977, %v976
    %v992 = vpack.c.bf16 %v979, %v978
    %v993 = vpack.c.bf16 %v981, %v980
    %v994 = vpack.c.bf16 %v983, %v982
    %v995 = vpack.c.bf16 %v985, %v984
    %v996 = vpack.c.bf16 %v987, %v986
    %v997 = vpack.c.bf16 %v989, %v988
    %998 = vst [vmem:[#allocation3 + $0x268] sm:$0xff] %v990
    %999 = vst [vmem:[#allocation3 + $0x2b0] sm:$0xff] %v991
    %1000 = vst [vmem:[#allocation3 + $0x2f8] sm:$0xff] %v992
    %1001 = vst [vmem:[#allocation3 + $0x340] sm:$0xff] %v993
    %1002 = vst [vmem:[#allocation3 + $0x388] sm:$0xff] %v994
    %1003 = vst [vmem:[#allocation3 + $0x3d0] sm:$0xff] %v995
    %1004 = vst [vmem:[#allocation3 + $0x418] sm:$0xff] %v996
    %1005 = vst [vmem:[#allocation3 + $0x460] sm:$0xff] %v997
    %v1006 = vld [vmem:[%s517 + $0x27] sm:$0xff]
    %v1007 = vld [vmem:[%s517 + $0x2f] sm:$0xff]
    %v1008 = vld [vmem:[%s517 + $0x37] sm:$0xff]
    %v1009 = vld [vmem:[%s517 + $0x3f] sm:$0xff]
    %v1010 = vld [vmem:[%s517 + $0x47] sm:$0xff]
    %v1011 = vld [vmem:[%s517 + $0x4f] sm:$0xff]
    %v1012 = vld [vmem:[%s517 + $0x57] sm:$0xff]
    %v1013 = vld [vmem:[%s517 + $0x5f] sm:$0xff]
    %v1014 = vld [vmem:[%s517 + $0x67] sm:$0xff]
    %v1015 = vld [vmem:[%s517 + $0x6f] sm:$0xff]
    %v1016 = vld [vmem:[%s517 + $0x77] sm:$0xff]
    %v1017 = vld [vmem:[%s517 + $0x7f] sm:$0xff]
    %v1018 = vld [vmem:[%s517 + $0x87] sm:$0xff]
    %v1019 = vld [vmem:[%s517 + $0x8f] sm:$0xff]
    %v1020 = vld [vmem:[%s517 + $0x97] sm:$0xff]
    %v1021 = vld [vmem:[%s517 + $0x9f] sm:$0xff]
    %v1022 = vpack.c.bf16 %v1007, %v1006
    %v1023 = vpack.c.bf16 %v1009, %v1008
    %v1024 = vpack.c.bf16 %v1011, %v1010
    %v1025 = vpack.c.bf16 %v1013, %v1012
    %v1026 = vpack.c.bf16 %v1015, %v1014
    %v1027 = vpack.c.bf16 %v1017, %v1016
    %v1028 = vpack.c.bf16 %v1019, %v1018
    %v1029 = vpack.c.bf16 %v1021, %v1020
    %1030 = vst [vmem:[#allocation3 + $0x270] sm:$0xff] %v1022
    %1031 = vst [vmem:[#allocation3 + $0x2b8] sm:$0xff] %v1023
    %1032 = vst [vmem:[#allocation3 + $0x300] sm:$0xff] %v1024
    %1033 = vst [vmem:[#allocation3 + $0x348] sm:$0xff] %v1025
    %1034 = vst [vmem:[#allocation3 + $0x390] sm:$0xff] %v1026
    %1035 = vst [vmem:[#allocation3 + $0x3d8] sm:$0xff] %v1027
    %1036 = vst [vmem:[#allocation3 + $0x420] sm:$0xff] %v1028
    %1037 = vst [vmem:[#allocation3 + $0x468] sm:$0xff] %v1029
    %v1038 = vld [vmem:[%s517 + $0x28] sm:$0xff]
    %v1039 = vld [vmem:[%s517 + $0x30] sm:$0xff]
    %v1040 = vld [vmem:[%s517 + $0x38] sm:$0xff]
    %v1041 = vld [vmem:[%s517 + $0x40] sm:$0xff]
    %v1042 = vld [vmem:[%s517 + $0x48] sm:$0xff]
    %v1043 = vld [vmem:[%s517 + $0x50] sm:$0xff]
    %v1044 = vld [vmem:[%s517 + $0x58] sm:$0xff]
    %v1045 = vld [vmem:[%s517 + $0x60] sm:$0xff]
    %v1046 = vld [vmem:[%s517 + $0x68] sm:$0xff]
    %v1047 = vld [vmem:[%s517 + $0x70] sm:$0xff]
    %v1048 = vld [vmem:[%s517 + $0x78] sm:$0xff]
    %v1049 = vld [vmem:[%s517 + $0x80] sm:$0xff]
    %v1050 = vld [vmem:[%s517 + $0x88] sm:$0xff]
    %v1051 = vld [vmem:[%s517 + $0x90] sm:$0xff]
    %v1052 = vld [vmem:[%s517 + $0x98] sm:$0xff]
    %v1053 = vld [vmem:[%s517 + $0xa0] sm:$0xff]
    %v1054 = vpack.c.bf16 %v1039, %v1038
    %v1055 = vpack.c.bf16 %v1041, %v1040
    %v1056 = vpack.c.bf16 %v1043, %v1042
    %v1057 = vpack.c.bf16 %v1045, %v1044
    %v1058 = vpack.c.bf16 %v1047, %v1046
    %v1059 = vpack.c.bf16 %v1049, %v1048
    %v1060 = vpack.c.bf16 %v1051, %v1050
    %v1061 = vpack.c.bf16 %v1053, %v1052
    %1062 = vst [vmem:[#allocation3 + $0x278] sm:$0xff] %v1054
    %1063 = vst [vmem:[#allocation3 + $0x2c0] sm:$0xff] %v1055
    %1064 = vst [vmem:[#allocation3 + $0x308] sm:$0xff] %v1056
    %1065 = vst [vmem:[#allocation3 + $0x350] sm:$0xff] %v1057
    %1066 = vst [vmem:[#allocation3 + $0x398] sm:$0xff] %v1058
    %1067 = vst [vmem:[#allocation3 + $0x3e0] sm:$0xff] %v1059
    %1068 = vst [vmem:[#allocation3 + $0x428] sm:$0xff] %v1060
    %1069 = vst [vmem:[#allocation3 + $0x470] sm:$0xff] %v1061
    %v1070 = vld [vmem:[%s517 + $0x29] sm:$0xff]
    %v1071 = vld [vmem:[%s517 + $0x31] sm:$0xff]
    %v1072 = vld [vmem:[%s517 + $0x39] sm:$0xff]
    %v1073 = vld [vmem:[%s517 + $0x41] sm:$0xff]
    %v1074 = vld [vmem:[%s517 + $0x49] sm:$0xff]
    %v1075 = vld [vmem:[%s517 + $0x51] sm:$0xff]
    %v1076 = vld [vmem:[%s517 + $0x59] sm:$0xff]
    %v1077 = vld [vmem:[%s517 + $0x61] sm:$0xff]
    %v1078 = vld [vmem:[%s517 + $0x69] sm:$0xff]
    %v1079 = vld [vmem:[%s517 + $0x71] sm:$0xff]
    %v1080 = vld [vmem:[%s517 + $0x79] sm:$0xff]
    %v1081 = vld [vmem:[%s517 + $0x81] sm:$0xff]
    %v1082 = vld [vmem:[%s517 + $0x89] sm:$0xff]
    %v1083 = vld [vmem:[%s517 + $0x91] sm:$0xff]
    %v1084 = vld [vmem:[%s517 + $0x99] sm:$0xff]
    %v1085 = vld [vmem:[%s517 + $0xa1] sm:$0xff]
    %v1086 = vpack.c.bf16 %v1071, %v1070
    %v1087 = vpack.c.bf16 %v1073, %v1072
    %v1088 = vpack.c.bf16 %v1075, %v1074
    %v1089 = vpack.c.bf16 %v1077, %v1076
    %v1090 = vpack.c.bf16 %v1079, %v1078
    %v1091 = vpack.c.bf16 %v1081, %v1080
    %v1092 = vpack.c.bf16 %v1083, %v1082
    %v1093 = vpack.c.bf16 %v1085, %v1084
    %1094 = vst [vmem:[#allocation3 + $0x280] sm:$0xff] %v1086
    %1095 = vst [vmem:[#allocation3 + $0x2c8] sm:$0xff] %v1087
    %1096 = vst [vmem:[#allocation3 + $0x310] sm:$0xff] %v1088
    %1097 = vst [vmem:[#allocation3 + $0x358] sm:$0xff] %v1089
    %1098 = vst [vmem:[#allocation3 + $0x3a0] sm:$0xff] %v1090
    %1099 = vst [vmem:[#allocation3 + $0x3e8] sm:$0xff] %v1091
    %1100 = vst [vmem:[#allocation3 + $0x430] sm:$0xff] %v1092
    %1101 = vst [vmem:[#allocation3 + $0x478] sm:$0xff] %v1093
    %v1102 = vld [vmem:[#allocation3] sm:$0xff]
    %v1103 = vld [vmem:[#allocation3 + $0x8] sm:$0xff]
    %v1104 = vld [vmem:[#allocation3 + $0x10] sm:$0xff]
    %v1105 = vld [vmem:[#allocation3 + $0x18] sm:$0xff]
    %v1106 = vld [vmem:[#allocation3 + $0x20] sm:$0xff]
    %v1107 = vld [vmem:[#allocation3 + $0x28] sm:$0xff]
    %v1108 = vld [vmem:[#allocation3 + $0x30] sm:$0xff]
    %v1109 = vld [vmem:[#allocation3 + $0x38] sm:$0xff]
    %v1110 = vld [vmem:[#allocation3 + $0x40] sm:$0xff]
    %v1111 = vld [vmem:[#allocation3 + $0x48] sm:$0xff]
    %v1112 = vld [vmem:[#allocation3 + $0x50] sm:$0xff]
    %v1113 = vld [vmem:[#allocation3 + $0x58] sm:$0xff]
    %v1114 = vld [vmem:[#allocation3 + $0x60] sm:$0xff]
    %v1115 = vld [vmem:[#allocation3 + $0x68] sm:$0xff]
    %v1116 = vld [vmem:[#allocation3 + $0x70] sm:$0xff]
    %v1117 = vld [vmem:[#allocation3 + $0x78] sm:$0xff]
    %v1118 = vld [vmem:[#allocation3 + $0x80] sm:$0xff]
    %v1119 = vld [vmem:[#allocation3 + $0x88] sm:$0xff]
    %v1120 = vld [vmem:[#allocation3 + $0x90] sm:$0xff]
    %v1121 = vld [vmem:[#allocation3 + $0x98] sm:$0xff]
    %v1122 = vld [vmem:[#allocation3 + $0xa0] sm:$0xff]
    %v1123 = vld [vmem:[#allocation3 + $0xa8] sm:$0xff]
    %v1124 = vld [vmem:[#allocation3 + $0xb0] sm:$0xff]
    %v1125 = vld [vmem:[#allocation3 + $0xb8] sm:$0xff]
    %v1126 = vld [vmem:[#allocation3 + $0xc0] sm:$0xff]
    %v1127 = vld [vmem:[#allocation3 + $0xc8] sm:$0xff]
    %v1128 = vld [vmem:[#allocation3 + $0xd0] sm:$0xff]
    %v1129 = vld [vmem:[#allocation3 + $0xd8] sm:$0xff]
    %v1130 = vld [vmem:[#allocation3 + $0xe0] sm:$0xff]
    %v1131 = vld [vmem:[#allocation3 + $0xe8] sm:$0xff]
    %v1132 = vld [vmem:[#allocation3 + $0xf0] sm:$0xff]
    %v1133 = vld [vmem:[#allocation3 + $0xf8] sm:$0xff]
    %v1134 = vld [vmem:[#allocation3 + $0x100] sm:$0xff]
    %v1135 = vld [vmem:[#allocation3 + $0x108] sm:$0xff]
    %v1136 = vld [vmem:[#allocation3 + $0x110] sm:$0xff]
    %v1137 = vld [vmem:[#allocation3 + $0x118] sm:$0xff]
    %v1138 = vld [vmem:[#allocation3 + $0x120] sm:$0xff]
    %v1139 = vld [vmem:[#allocation3 + $0x128] sm:$0xff]
    %v1140 = vld [vmem:[#allocation3 + $0x130] sm:$0xff]
    %v1141 = vld [vmem:[#allocation3 + $0x138] sm:$0xff]
    %v1142 = vld [vmem:[#allocation3 + $0x140] sm:$0xff]
    %v1143 = vld [vmem:[#allocation3 + $0x148] sm:$0xff]
    %v1144 = vld [vmem:[#allocation3 + $0x150] sm:$0xff]
    %v1145 = vld [vmem:[#allocation3 + $0x158] sm:$0xff]
    %v1146 = vld [vmem:[#allocation3 + $0x160] sm:$0xff]
    %v1147 = vld [vmem:[#allocation3 + $0x168] sm:$0xff]
    %v1148 = vld [vmem:[#allocation3 + $0x170] sm:$0xff]
    %v1149 = vld [vmem:[#allocation3 + $0x178] sm:$0xff]
    %v1150 = vld [vmem:[#allocation3 + $0x180] sm:$0xff]
    %v1151 = vld [vmem:[#allocation3 + $0x188] sm:$0xff]
    %v1152 = vld [vmem:[#allocation3 + $0x190] sm:$0xff]
    %v1153 = vld [vmem:[#allocation3 + $0x198] sm:$0xff]
    %v1154 = vld [vmem:[#allocation3 + $0x1a0] sm:$0xff]
    %v1155 = vld [vmem:[#allocation3 + $0x1a8] sm:$0xff]
    %v1156 = vld [vmem:[#allocation3 + $0x1b0] sm:$0xff]
    %v1157 = vld [vmem:[#allocation3 + $0x1b8] sm:$0xff]
    %v1158 = vld [vmem:[#allocation3 + $0x1c0] sm:$0xff]
    %v1159 = vld [vmem:[#allocation3 + $0x1c8] sm:$0xff]
    %v1160 = vld [vmem:[#allocation3 + $0x1d0] sm:$0xff]
    %v1161 = vld [vmem:[#allocation3 + $0x1d8] sm:$0xff]
    %v1162 = vld [vmem:[#allocation3 + $0x1e0] sm:$0xff]
    %v1163 = vld [vmem:[#allocation3 + $0x1e8] sm:$0xff]
    %v1164 = vld [vmem:[#allocation3 + $0x1f0] sm:$0xff]
    %v1165 = vld [vmem:[#allocation3 + $0x1f8] sm:$0xff]
    %v1166 = vld [vmem:[#allocation3 + $0x200] sm:$0xff]
    %v1167 = vld [vmem:[#allocation3 + $0x208] sm:$0xff]
    %v1168 = vld [vmem:[#allocation3 + $0x210] sm:$0xff]
    %v1169 = vld [vmem:[#allocation3 + $0x218] sm:$0xff]
    %v1170 = vld [vmem:[#allocation3 + $0x220] sm:$0xff]
    %v1171 = vld [vmem:[#allocation3 + $0x228] sm:$0xff]
    %v1172 = vld [vmem:[#allocation3 + $0x230] sm:$0xff]
    %v1173 = vld [vmem:[#allocation3 + $0x238] sm:$0xff]
    %v1174 = vld [vmem:[#allocation3 + $0x240] sm:$0xff]
    %v1175 = vld [vmem:[#allocation3 + $0x248] sm:$0xff]
    %v1176 = vld [vmem:[#allocation3 + $0x250] sm:$0xff]
    %v1177 = vld [vmem:[#allocation3 + $0x258] sm:$0xff]
    %v1178 = vld [vmem:[#allocation3 + $0x260] sm:$0xff]
    %v1179 = vld [vmem:[#allocation3 + $0x268] sm:$0xff]
    %v1180 = vld [vmem:[#allocation3 + $0x270] sm:$0xff]
    %v1181 = vld [vmem:[#allocation3 + $0x278] sm:$0xff]
    %v1182 = vld [vmem:[#allocation3 + $0x280] sm:$0xff]
    %v1183 = vld [vmem:[#allocation3 + $0x288] sm:$0xff]
    %v1184 = vld [vmem:[#allocation3 + $0x290] sm:$0xff]
    %v1185 = vld [vmem:[#allocation3 + $0x298] sm:$0xff]
    %v1186 = vld [vmem:[#allocation3 + $0x2a0] sm:$0xff]
    %v1187 = vld [vmem:[#allocation3 + $0x2a8] sm:$0xff]
    %v1188 = vld [vmem:[#allocation3 + $0x2b0] sm:$0xff]
    %v1189 = vld [vmem:[#allocation3 + $0x2b8] sm:$0xff]
    %v1190 = vld [vmem:[#allocation3 + $0x2c0] sm:$0xff]
    %v1191 = vld [vmem:[#allocation3 + $0x2c8] sm:$0xff]
    %v1192 = vld [vmem:[#allocation3 + $0x2d0] sm:$0xff]
    %v1193 = vld [vmem:[#allocation3 + $0x2d8] sm:$0xff]
    %v1194 = vld [vmem:[#allocation3 + $0x2e0] sm:$0xff]
    %v1195 = vld [vmem:[#allocation3 + $0x2e8] sm:$0xff]
    %v1196 = vld [vmem:[#allocation3 + $0x2f0] sm:$0xff]
    %v1197 = vld [vmem:[#allocation3 + $0x2f8] sm:$0xff]
    %v1198 = vld [vmem:[#allocation3 + $0x300] sm:$0xff]
    %v1199 = vld [vmem:[#allocation3 + $0x308] sm:$0xff]
    %v1200 = vld [vmem:[#allocation3 + $0x310] sm:$0xff]
    %v1201 = vld [vmem:[#allocation3 + $0x318] sm:$0xff]
    %v1202 = vld [vmem:[#allocation3 + $0x320] sm:$0xff]
    %v1203 = vld [vmem:[#allocation3 + $0x328] sm:$0xff]
    %v1204 = vld [vmem:[#allocation3 + $0x330] sm:$0xff]
    %v1205 = vld [vmem:[#allocation3 + $0x338] sm:$0xff]
    %v1206 = vld [vmem:[#allocation3 + $0x340] sm:$0xff]
    %v1207 = vld [vmem:[#allocation3 + $0x348] sm:$0xff]
    %v1208 = vld [vmem:[#allocation3 + $0x350] sm:$0xff]
    %v1209 = vld [vmem:[#allocation3 + $0x358] sm:$0xff]
    %v1210 = vld [vmem:[#allocation3 + $0x360] sm:$0xff]
    %v1211 = vld [vmem:[#allocation3 + $0x368] sm:$0xff]
    %v1212 = vld [vmem:[#allocation3 + $0x370] sm:$0xff]
    %v1213 = vld [vmem:[#allocation3 + $0x378] sm:$0xff]
    %v1214 = vld [vmem:[#allocation3 + $0x380] sm:$0xff]
    %v1215 = vld [vmem:[#allocation3 + $0x388] sm:$0xff]
    %v1216 = vld [vmem:[#allocation3 + $0x390] sm:$0xff]
    %v1217 = vld [vmem:[#allocation3 + $0x398] sm:$0xff]
    %v1218 = vld [vmem:[#allocation3 + $0x3a0] sm:$0xff]
    %v1219 = vld [vmem:[#allocation3 + $0x3a8] sm:$0xff]
    %v1220 = vld [vmem:[#allocation3 + $0x3b0] sm:$0xff]
    %v1221 = vld [vmem:[#allocation3 + $0x3b8] sm:$0xff]
    %v1222 = vld [vmem:[#allocation3 + $0x3c0] sm:$0xff]
    %v1223 = vld [vmem:[#allocation3 + $0x3c8] sm:$0xff]
    %v1224 = vld [vmem:[#allocation3 + $0x3d0] sm:$0xff]
    %v1225 = vld [vmem:[#allocation3 + $0x3d8] sm:$0xff]
    %v1226 = vld [vmem:[#allocation3 + $0x3e0] sm:$0xff]
    %v1227 = vld [vmem:[#allocation3 + $0x3e8] sm:$0xff]
    %v1228 = vld [vmem:[#allocation3 + $0x3f0] sm:$0xff]
    %v1229 = vld [vmem:[#allocation3 + $0x3f8] sm:$0xff]
    %v1230 = vld [vmem:[#allocation3 + $0x400] sm:$0xff]
    %v1231 = vld [vmem:[#allocation3 + $0x408] sm:$0xff]
    %v1232 = vld [vmem:[#allocation3 + $0x410] sm:$0xff]
    %v1233 = vld [vmem:[#allocation3 + $0x418] sm:$0xff]
    %v1234 = vld [vmem:[#allocation3 + $0x420] sm:$0xff]
    %v1235 = vld [vmem:[#allocation3 + $0x428] sm:$0xff]
    %v1236 = vld [vmem:[#allocation3 + $0x430] sm:$0xff]
    %v1237 = vld [vmem:[#allocation3 + $0x438] sm:$0xff]
    %v1238 = vld [vmem:[#allocation3 + $0x440] sm:$0xff]
    %v1239 = vld [vmem:[#allocation3 + $0x448] sm:$0xff]
    %v1240 = vld [vmem:[#allocation3 + $0x450] sm:$0xff]
    %v1241 = vld [vmem:[#allocation3 + $0x458] sm:$0xff]
    %v1242 = vld [vmem:[#allocation3 + $0x460] sm:$0xff]
    %v1243 = vld [vmem:[#allocation3 + $0x468] sm:$0xff]
    %v1244 = vld [vmem:[#allocation3 + $0x470] sm:$0xff]
    %v1245 = vld [vmem:[#allocation3 + $0x478] sm:$0xff]
    %v1246 = vld [vmem:[#allocation7] sm:$0xf]
    %v1247 = vld [vmem:[#allocation7 + $0x4] sm:$0xf]
    %v1248 = vld [vmem:[#allocation7 + $0x8] sm:$0xf]
    %v1249 = vld [vmem:[#allocation7 + $0xc] sm:$0xf]
    %v1250 = vld [vmem:[#allocation7 + $0x10] sm:$0xf]
    %v1251 = vld [vmem:[#allocation7 + $0x14] sm:$0xf]
    %v1252 = vld [vmem:[#allocation7 + $0x18] sm:$0xf]
    %v1253 = vld [vmem:[#allocation7 + $0x1c] sm:$0xf]
    %v1254 = vld [vmem:[#allocation7 + $0x20] sm:$0xf]
    %v1255 = vld [vmem:[#allocation7 + $0x24] sm:$0xf]
    %v1256 = vld [vmem:[#allocation7 + $0x28] sm:$0xf]
    %v1257 = vld [vmem:[#allocation7 + $0x2c] sm:$0xf]
    %v1258 = vld [vmem:[#allocation7 + $0x30] sm:$0xf]
    %v1259 = vld [vmem:[#allocation7 + $0x34] sm:$0xf]
    %v1260 = vld [vmem:[#allocation7 + $0x38] sm:$0xf]
    %v1261 = vld [vmem:[#allocation7 + $0x3c] sm:$0xf]
    %v1262 = vld [vmem:[#allocation7 + $0x40] sm:$0xf]
    %v1263 = vld [vmem:[#allocation7 + $0x44] sm:$0xf]
    %v1264 = vld [vmem:[#allocation7 + $0x48] sm:$0xf]
    %v1265 = vld [vmem:[#allocation7 + $0x4c] sm:$0xf]
    %v1266 = vld [vmem:[#allocation7 + $0x50] sm:$0xf]
    %v1267 = vld [vmem:[#allocation7 + $0x54] sm:$0xf]
    %v1268 = vld [vmem:[#allocation7 + $0x58] sm:$0xf]
    %v1269 = vld [vmem:[#allocation7 + $0x5c] sm:$0xf]
    %v1270 = vld [vmem:[#allocation7 + $0x60] sm:$0xf]
    %v1271 = vld [vmem:[#allocation7 + $0x64] sm:$0xf]
    %v1272 = vld [vmem:[#allocation7 + $0x68] sm:$0xf]
    %v1273 = vld [vmem:[#allocation7 + $0x6c] sm:$0xf]
    %v1274 = vld [vmem:[#allocation7 + $0x70] sm:$0xf]
    %v1275 = vld [vmem:[#allocation7 + $0x74] sm:$0xf]
    %v1276 = vld [vmem:[#allocation7 + $0x78] sm:$0xf]
    %v1277 = vld [vmem:[#allocation7 + $0x7c] sm:$0xf]
    %v1278 = vld [vmem:[#allocation7 + $0x80] sm:$0xf]
    %v1279 = vld [vmem:[#allocation7 + $0x84] sm:$0xf]
    %v1280 = vld [vmem:[#allocation7 + $0x88] sm:$0xf]
    %v1281 = vld [vmem:[#allocation7 + $0x8c] sm:$0xf]
    %v1282 = vld [vmem:[#allocation7 + $0x90] sm:$0xf]
    %v1283 = vld [vmem:[#allocation7 + $0x94] sm:$0xf]
    %v1284 = vld [vmem:[#allocation7 + $0x98] sm:$0xf]
    %v1285 = vld [vmem:[#allocation7 + $0x9c] sm:$0xf]
    %v1286 = vld [vmem:[#allocation7 + $0xa0] sm:$0xf]
    %v1287 = vld [vmem:[#allocation7 + $0xa4] sm:$0xf]
    %v1288 = vld [vmem:[#allocation7 + $0xa8] sm:$0xf]
    %v1289 = vld [vmem:[#allocation7 + $0xac] sm:$0xf]
    %v1290 = vld [vmem:[#allocation7 + $0xb0] sm:$0xf]
    %v1291 = vld [vmem:[#allocation7 + $0xb4] sm:$0xf]
    %v1292 = vld [vmem:[#allocation7 + $0xb8] sm:$0xf]
    %v1293 = vld [vmem:[#allocation7 + $0xbc] sm:$0xf]
    %v1294 = vld [vmem:[#allocation7 + $0xc0] sm:$0xf]
    %v1295 = vld [vmem:[#allocation7 + $0xc4] sm:$0xf]
    %v1296 = vld [vmem:[#allocation7 + $0xc8] sm:$0xf]
    %v1297 = vld [vmem:[#allocation7 + $0xcc] sm:$0xf]
    %v1298 = vld [vmem:[#allocation7 + $0xd0] sm:$0xf]
    %v1299 = vld [vmem:[#allocation7 + $0xd4] sm:$0xf]
    %v1300 = vld [vmem:[#allocation7 + $0xd8] sm:$0xf]
    %v1301 = vld [vmem:[#allocation7 + $0xdc] sm:$0xf]
    %v1302 = vld [vmem:[#allocation7 + $0xe0] sm:$0xf]
    %v1303 = vld [vmem:[#allocation7 + $0xe4] sm:$0xf]
    %v1304 = vld [vmem:[#allocation7 + $0xe8] sm:$0xf]
    %v1305 = vld [vmem:[#allocation7 + $0xec] sm:$0xf]
    %v1306 = vld [vmem:[#allocation7 + $0xf0] sm:$0xf]
    %v1307 = vld [vmem:[#allocation7 + $0xf4] sm:$0xf]
    %v1308 = vld [vmem:[#allocation7 + $0xf8] sm:$0xf]
    %v1309 = vld [vmem:[#allocation7 + $0xfc] sm:$0xf]
    %v1310 = vld [vmem:[#allocation7 + $0x100] sm:$0xf]
    %v1311 = vld [vmem:[#allocation7 + $0x104] sm:$0xf]
    %v1312 = vld [vmem:[#allocation7 + $0x108] sm:$0xf]
    %v1313 = vld [vmem:[#allocation7 + $0x10c] sm:$0xf]
    %v1314 = vld [vmem:[#allocation7 + $0x110] sm:$0xf]
    %v1315 = vld [vmem:[#allocation7 + $0x114] sm:$0xf]
    %v1316 = vld [vmem:[#allocation7 + $0x118] sm:$0xf]
    %v1317 = vld [vmem:[#allocation7 + $0x11c] sm:$0xf]
    %v1318 = vld [vmem:[#allocation7 + $0x120] sm:$0xf]
    %v1319 = vld [vmem:[#allocation7 + $0x124] sm:$0xf]
    %v1320 = vld [vmem:[#allocation7 + $0x128] sm:$0xf]
    %v1321 = vld [vmem:[#allocation7 + $0x12c] sm:$0xf]
    %v1322 = vld [vmem:[#allocation7 + $0x130] sm:$0xf]
    %v1323 = vld [vmem:[#allocation7 + $0x134] sm:$0xf]
    %v1324 = vld [vmem:[#allocation7 + $0x138] sm:$0xf]
    %v1325 = vld [vmem:[#allocation7 + $0x13c] sm:$0xf]
    %v1326 = vld [vmem:[#allocation7 + $0x140] sm:$0xf]
    %v1327 = vld [vmem:[#allocation7 + $0x144] sm:$0xf]
    %v1328 = vld [vmem:[#allocation7 + $0x148] sm:$0xf]
    %v1329 = vld [vmem:[#allocation7 + $0x14c] sm:$0xf]
    %v1330 = vld [vmem:[#allocation7 + $0x150] sm:$0xf]
    %v1331 = vld [vmem:[#allocation7 + $0x154] sm:$0xf]
    %v1332 = vld [vmem:[#allocation7 + $0x158] sm:$0xf]
    %v1333 = vld [vmem:[#allocation7 + $0x15c] sm:$0xf]
    %v1334 = vld [vmem:[#allocation7 + $0x160] sm:$0xf]
    %v1335 = vld [vmem:[#allocation7 + $0x164] sm:$0xf]
    %v1336 = vld [vmem:[#allocation7 + $0x168] sm:$0xf]
    %v1337 = vld [vmem:[#allocation7 + $0x16c] sm:$0xf]
    %v1338 = vld [vmem:[#allocation7 + $0x170] sm:$0xf]
    %v1339 = vld [vmem:[#allocation7 + $0x174] sm:$0xf]
    %v1340 = vld [vmem:[#allocation7 + $0x178] sm:$0xf]
    %v1341 = vld [vmem:[#allocation7 + $0x17c] sm:$0xf]
    %v1342 = vld [vmem:[#allocation7 + $0x180] sm:$0xf]
    %v1343 = vld [vmem:[#allocation7 + $0x184] sm:$0xf]
    %v1344 = vld [vmem:[#allocation7 + $0x188] sm:$0xf]
    %v1345 = vld [vmem:[#allocation7 + $0x18c] sm:$0xf]
    %v1346 = vld [vmem:[#allocation7 + $0x190] sm:$0xf]
    %v1347 = vld [vmem:[#allocation7 + $0x194] sm:$0xf]
    %v1348 = vld [vmem:[#allocation7 + $0x198] sm:$0xf]
    %v1349 = vld [vmem:[#allocation7 + $0x19c] sm:$0xf]
    %v1350 = vld [vmem:[#allocation7 + $0x1a0] sm:$0xf]
    %v1351 = vld [vmem:[#allocation7 + $0x1a4] sm:$0xf]
    %v1352 = vld [vmem:[#allocation7 + $0x1a8] sm:$0xf]
    %v1353 = vld [vmem:[#allocation7 + $0x1ac] sm:$0xf]
    %v1354 = vld [vmem:[#allocation7 + $0x1b0] sm:$0xf]
    %v1355 = vld [vmem:[#allocation7 + $0x1b4] sm:$0xf]
    %v1356 = vld [vmem:[#allocation7 + $0x1b8] sm:$0xf]
    %v1357 = vld [vmem:[#allocation7 + $0x1bc] sm:$0xf]
    %v1358 = vld [vmem:[#allocation7 + $0x1c0] sm:$0xf]
    %v1359 = vld [vmem:[#allocation7 + $0x1c4] sm:$0xf]
    %v1360 = vld [vmem:[#allocation7 + $0x1c8] sm:$0xf]
    %v1361 = vld [vmem:[#allocation7 + $0x1cc] sm:$0xf]
    %v1362 = vld [vmem:[#allocation7 + $0x1d0] sm:$0xf]
    %v1363 = vld [vmem:[#allocation7 + $0x1d4] sm:$0xf]
    %v1364 = vld [vmem:[#allocation7 + $0x1d8] sm:$0xf]
    %v1365 = vld [vmem:[#allocation7 + $0x1dc] sm:$0xf]
    %v1366 = vld [vmem:[#allocation7 + $0x1e0] sm:$0xf]
    %v1367 = vld [vmem:[#allocation7 + $0x1e4] sm:$0xf]
    %v1368 = vld [vmem:[#allocation7 + $0x1e8] sm:$0xf]
    %v1369 = vld [vmem:[#allocation7 + $0x1ec] sm:$0xf]
    %v1370 = vld [vmem:[#allocation7 + $0x1f0] sm:$0xf]
    %v1371 = vld [vmem:[#allocation7 + $0x1f4] sm:$0xf]
    %v1372 = vld [vmem:[#allocation7 + $0x1f8] sm:$0xf]
    %v1373 = vld [vmem:[#allocation7 + $0x1fc] sm:$0xf]
    %v1374 = vld [vmem:[#allocation7 + $0x200] sm:$0xf]
    %v1375 = vld [vmem:[#allocation7 + $0x204] sm:$0xf]
    %v1376 = vld [vmem:[#allocation7 + $0x208] sm:$0xf]
    %v1377 = vld [vmem:[#allocation7 + $0x20c] sm:$0xf]
    %v1378 = vld [vmem:[#allocation7 + $0x210] sm:$0xf]
    %v1379 = vld [vmem:[#allocation7 + $0x214] sm:$0xf]
    %v1380 = vld [vmem:[#allocation7 + $0x218] sm:$0xf]
    %v1381 = vld [vmem:[#allocation7 + $0x21c] sm:$0xf]
    %v1382 = vld [vmem:[#allocation7 + $0x220] sm:$0xf]
    %v1383 = vld [vmem:[#allocation7 + $0x224] sm:$0xf]
    %v1384 = vld [vmem:[#allocation7 + $0x228] sm:$0xf]
    %v1385 = vld [vmem:[#allocation7 + $0x22c] sm:$0xf]
    %v1386 = vld [vmem:[#allocation7 + $0x230] sm:$0xf]
    %v1387 = vld [vmem:[#allocation7 + $0x234] sm:$0xf]
    %v1388 = vld [vmem:[#allocation7 + $0x238] sm:$0xf]
    %v1389 = vld [vmem:[#allocation7 + $0x23c] sm:$0xf]
    %v1534 = vunpack.c.l.b16 %v1246
    %v1535 = vunpack.c.l.b16 %v1247
    %v1536 = vunpack.c.l.b16 %v1248
    %v1537 = vunpack.c.l.b16 %v1249
    %v1538 = vunpack.c.l.b16 %v1250
    %v1539 = vunpack.c.l.b16 %v1251
    %v1540 = vunpack.c.l.b16 %v1252
    %v1541 = vunpack.c.l.b16 %v1253
    %v1542 = vunpack.c.l.b16 %v1254
    %v1543 = vunpack.c.l.b16 %v1255
    %v1544 = vunpack.c.l.b16 %v1256
    %v1545 = vunpack.c.l.b16 %v1257
    %v1546 = vunpack.c.l.b16 %v1258
    %v1547 = vunpack.c.l.b16 %v1259
    %v1548 = vunpack.c.l.b16 %v1260
    %v1549 = vunpack.c.l.b16 %v1261
    %v1550 = vunpack.c.l.b16 %v1262
    %v1551 = vunpack.c.l.b16 %v1263
    %v1552 = vunpack.c.l.b16 %v1264
    %v1553 = vunpack.c.l.b16 %v1265
    %v1554 = vunpack.c.l.b16 %v1266
    %v1555 = vunpack.c.l.b16 %v1267
    %v1556 = vunpack.c.l.b16 %v1268
    %v1557 = vunpack.c.l.b16 %v1269
    %v1558 = vunpack.c.l.b16 %v1270
    %v1559 = vunpack.c.l.b16 %v1271
    %v1560 = vunpack.c.l.b16 %v1272
    %v1561 = vunpack.c.l.b16 %v1273
    %v1562 = vunpack.c.l.b16 %v1274
    %v1563 = vunpack.c.l.b16 %v1275
    %v1564 = vunpack.c.l.b16 %v1276
    %v1565 = vunpack.c.l.b16 %v1277
    %v1566 = vunpack.c.l.b16 %v1278
    %v1567 = vunpack.c.l.b16 %v1279
    %v1568 = vunpack.c.l.b16 %v1280
    %v1569 = vunpack.c.l.b16 %v1281
    %v1570 = vunpack.c.l.b16 %v1282
    %v1571 = vunpack.c.l.b16 %v1283
    %v1572 = vunpack.c.l.b16 %v1284
    %v1573 = vunpack.c.l.b16 %v1285
    %v1574 = vunpack.c.l.b16 %v1286
    %v1575 = vunpack.c.l.b16 %v1287
    %v1576 = vunpack.c.l.b16 %v1288
    %v1577 = vunpack.c.l.b16 %v1289
    %v1578 = vunpack.c.l.b16 %v1290
    %v1579 = vunpack.c.l.b16 %v1291
    %v1580 = vunpack.c.l.b16 %v1292
    %v1581 = vunpack.c.l.b16 %v1293
    %v1582 = vunpack.c.l.b16 %v1294
    %v1583 = vunpack.c.l.b16 %v1295
    %v1584 = vunpack.c.l.b16 %v1296
    %v1585 = vunpack.c.l.b16 %v1297
    %v1586 = vunpack.c.l.b16 %v1298
    %v1587 = vunpack.c.l.b16 %v1299
    %v1588 = vunpack.c.l.b16 %v1300
    %v1589 = vunpack.c.l.b16 %v1301
    %v1590 = vunpack.c.l.b16 %v1302
    %v1591 = vunpack.c.l.b16 %v1303
    %v1592 = vunpack.c.l.b16 %v1304
    %v1593 = vunpack.c.l.b16 %v1305
    %v1594 = vunpack.c.l.b16 %v1306
    %v1595 = vunpack.c.l.b16 %v1307
    %v1596 = vunpack.c.l.b16 %v1308
    %v1597 = vunpack.c.l.b16 %v1309
    %v1598 = vunpack.c.l.b16 %v1310
    %v1599 = vunpack.c.l.b16 %v1311
    %v1600 = vunpack.c.l.b16 %v1312
    %v1601 = vunpack.c.l.b16 %v1313
    %v1602 = vunpack.c.l.b16 %v1314
    %v1603 = vunpack.c.l.b16 %v1315
    %v1604 = vunpack.c.l.b16 %v1316
    %v1605 = vunpack.c.l.b16 %v1317
    %v1606 = vunpack.c.l.b16 %v1318
    %v1607 = vunpack.c.l.b16 %v1319
    %v1608 = vunpack.c.l.b16 %v1320
    %v1609 = vunpack.c.l.b16 %v1321
    %v1610 = vunpack.c.l.b16 %v1322
    %v1611 = vunpack.c.l.b16 %v1323
    %v1612 = vunpack.c.l.b16 %v1324
    %v1613 = vunpack.c.l.b16 %v1325
    %v1614 = vunpack.c.l.b16 %v1326
    %v1615 = vunpack.c.l.b16 %v1327
    %v1616 = vunpack.c.l.b16 %v1328
    %v1617 = vunpack.c.l.b16 %v1329
    %v1618 = vunpack.c.l.b16 %v1330
    %v1619 = vunpack.c.l.b16 %v1331
    %v1620 = vunpack.c.l.b16 %v1332
    %v1621 = vunpack.c.l.b16 %v1333
    %v1622 = vunpack.c.l.b16 %v1334
    %v1623 = vunpack.c.l.b16 %v1335
    %v1624 = vunpack.c.l.b16 %v1336
    %v1625 = vunpack.c.l.b16 %v1337
    %v1626 = vunpack.c.l.b16 %v1338
    %v1627 = vunpack.c.l.b16 %v1339
    %v1628 = vunpack.c.l.b16 %v1340
    %v1629 = vunpack.c.l.b16 %v1341
    %v1630 = vunpack.c.l.b16 %v1342
    %v1631 = vunpack.c.l.b16 %v1343
    %v1632 = vunpack.c.l.b16 %v1344
    %v1633 = vunpack.c.l.b16 %v1345
    %v1634 = vunpack.c.l.b16 %v1346
    %v1635 = vunpack.c.l.b16 %v1347
    %v1636 = vunpack.c.l.b16 %v1348
    %v1637 = vunpack.c.l.b16 %v1349
    %v1638 = vunpack.c.l.b16 %v1350
    %v1639 = vunpack.c.l.b16 %v1351
    %v1640 = vunpack.c.l.b16 %v1352
    %v1641 = vunpack.c.l.b16 %v1353
    %v1642 = vunpack.c.l.b16 %v1354
    %v1643 = vunpack.c.l.b16 %v1355
    %v1644 = vunpack.c.l.b16 %v1356
    %v1645 = vunpack.c.l.b16 %v1357
    %v1646 = vunpack.c.l.b16 %v1358
    %v1647 = vunpack.c.l.b16 %v1359
    %v1648 = vunpack.c.l.b16 %v1360
    %v1649 = vunpack.c.l.b16 %v1361
    %v1650 = vunpack.c.l.b16 %v1362
    %v1651 = vunpack.c.l.b16 %v1363
    %v1652 = vunpack.c.l.b16 %v1364
    %v1653 = vunpack.c.l.b16 %v1365
    %v1654 = vunpack.c.l.b16 %v1366
    %v1655 = vunpack.c.l.b16 %v1367
    %v1656 = vunpack.c.l.b16 %v1368
    %v1657 = vunpack.c.l.b16 %v1369
    %v1658 = vunpack.c.l.b16 %v1370
    %v1659 = vunpack.c.l.b16 %v1371
    %v1660 = vunpack.c.l.b16 %v1372
    %v1661 = vunpack.c.l.b16 %v1373
    %v1662 = vunpack.c.l.b16 %v1374
    %v1663 = vunpack.c.l.b16 %v1375
    %v1664 = vunpack.c.l.b16 %v1376
    %v1665 = vunpack.c.l.b16 %v1377
    %v1666 = vunpack.c.l.b16 %v1378
    %v1667 = vunpack.c.l.b16 %v1379
    %v1668 = vunpack.c.l.b16 %v1380
    %v1669 = vunpack.c.l.b16 %v1381
    %v1670 = vunpack.c.l.b16 %v1382
    %v1671 = vunpack.c.l.b16 %v1383
    %v1672 = vunpack.c.l.b16 %v1384
    %v1673 = vunpack.c.l.b16 %v1385
    %v1674 = vunpack.c.l.b16 %v1386
    %v1675 = vunpack.c.l.b16 %v1387
    %v1676 = vunpack.c.l.b16 %v1388
    %v1677 = vunpack.c.l.b16 %v1389
    %v1678 = vpack.c.b16 %v1535, %v1534
    %v1679 = vpack.c.b16 %v1537, %v1536
    %v1680 = vpack.c.b16 %v1539, %v1538
    %v1681 = vpack.c.b16 %v1541, %v1540
    %v1682 = vpack.c.b16 %v1543, %v1542
    %v1683 = vpack.c.b16 %v1545, %v1544
    %v1684 = vpack.c.b16 %v1547, %v1546
    %v1685 = vpack.c.b16 %v1549, %v1548
    %v1686 = vpack.c.b16 %v1551, %v1550
    %v1687 = vpack.c.b16 %v1553, %v1552
    %v1688 = vpack.c.b16 %v1555, %v1554
    %v1689 = vpack.c.b16 %v1557, %v1556
    %v1690 = vpack.c.b16 %v1559, %v1558
    %v1691 = vpack.c.b16 %v1561, %v1560
    %v1692 = vpack.c.b16 %v1563, %v1562
    %v1693 = vpack.c.b16 %v1565, %v1564
    %v1694 = vpack.c.b16 %v1567, %v1566
    %v1695 = vpack.c.b16 %v1569, %v1568
    %v1696 = vpack.c.b16 %v1571, %v1570
    %v1697 = vpack.c.b16 %v1573, %v1572
    %v1698 = vpack.c.b16 %v1575, %v1574
    %v1699 = vpack.c.b16 %v1577, %v1576
    %v1700 = vpack.c.b16 %v1579, %v1578
    %v1701 = vpack.c.b16 %v1581, %v1580
    %v1702 = vpack.c.b16 %v1583, %v1582
    %v1703 = vpack.c.b16 %v1585, %v1584
    %v1704 = vpack.c.b16 %v1587, %v1586
    %v1705 = vpack.c.b16 %v1589, %v1588
    %v1706 = vpack.c.b16 %v1591, %v1590
    %v1707 = vpack.c.b16 %v1593, %v1592
    %v1708 = vpack.c.b16 %v1595, %v1594
    %v1709 = vpack.c.b16 %v1597, %v1596
    %v1710 = vpack.c.b16 %v1599, %v1598
    %v1711 = vpack.c.b16 %v1601, %v1600
    %v1712 = vpack.c.b16 %v1603, %v1602
    %v1713 = vpack.c.b16 %v1605, %v1604
    %v1714 = vpack.c.b16 %v1607, %v1606
    %v1715 = vpack.c.b16 %v1609, %v1608
    %v1716 = vpack.c.b16 %v1611, %v1610
    %v1717 = vpack.c.b16 %v1613, %v1612
    %v1718 = vpack.c.b16 %v1615, %v1614
    %v1719 = vpack.c.b16 %v1617, %v1616
    %v1720 = vpack.c.b16 %v1619, %v1618
    %v1721 = vpack.c.b16 %v1621, %v1620
    %v1722 = vpack.c.b16 %v1623, %v1622
    %v1723 = vpack.c.b16 %v1625, %v1624
    %v1724 = vpack.c.b16 %v1627, %v1626
    %v1725 = vpack.c.b16 %v1629, %v1628
    %v1726 = vpack.c.b16 %v1631, %v1630
    %v1727 = vpack.c.b16 %v1633, %v1632
    %v1728 = vpack.c.b16 %v1635, %v1634
    %v1729 = vpack.c.b16 %v1637, %v1636
    %v1730 = vpack.c.b16 %v1639, %v1638
    %v1731 = vpack.c.b16 %v1641, %v1640
    %v1732 = vpack.c.b16 %v1643, %v1642
    %v1733 = vpack.c.b16 %v1645, %v1644
    %v1734 = vpack.c.b16 %v1647, %v1646
    %v1735 = vpack.c.b16 %v1649, %v1648
    %v1736 = vpack.c.b16 %v1651, %v1650
    %v1737 = vpack.c.b16 %v1653, %v1652
    %v1738 = vpack.c.b16 %v1655, %v1654
    %v1739 = vpack.c.b16 %v1657, %v1656
    %v1740 = vpack.c.b16 %v1659, %v1658
    %v1741 = vpack.c.b16 %v1661, %v1660
    %v1742 = vpack.c.b16 %v1663, %v1662
    %v1743 = vpack.c.b16 %v1665, %v1664
    %v1744 = vpack.c.b16 %v1667, %v1666
    %v1745 = vpack.c.b16 %v1669, %v1668
    %v1746 = vpack.c.b16 %v1671, %v1670
    %v1747 = vpack.c.b16 %v1673, %v1672
    %v1748 = vpack.c.b16 %v1675, %v1674
    %v1749 = vpack.c.b16 %v1677, %v1676
    %1822 = vmatprep.subr.bf16.mxu0 0
    %1823 = vmatpush1.bf16.msra.mxu0 %v1678
    %1824 = vmatprep.subr.bf16.mxu0 0
    %1825 = vmatpush1.bf16.msra.mxu0 %v1679
    %1826 = vmatprep.subr.bf16.mxu0 0
    %1827 = vmatpush1.bf16.msra.mxu0 %v1680
    %1828 = vmatprep.subr.bf16.mxu0 0
    %1829 = vmatpush1.bf16.msra.mxu0 %v1681
    %1830 = vmatprep.subr.bf16.mxu0 0
    %1831 = vmatpush1.bf16.msra.mxu0 %v1682
    %1832 = vmatprep.subr.bf16.mxu0 0
    %1833 = vmatpush1.bf16.msra.mxu0 %v1683
    %1834 = vmatprep.subr.bf16.mxu0 0
    %1835 = vmatpush1.bf16.msra.mxu0 %v1684
    %1836 = vmatprep.subr.bf16.mxu0 0
    %1837 = vmatpush1.bf16.msra.mxu0 %v1685
    %1838 = vmatprep.subr.bf16.mxu0 0
    %1839 = vmatpush1.bf16.msra.mxu0 %v1686
    %1840 = vmatprep.subr.bf16.mxu0 0
    %1841 = vmatpush1.bf16.msra.mxu0 %v1687
    %1842 = vmatprep.subr.bf16.mxu0 0
    %1843 = vmatpush1.bf16.msra.mxu0 %v1688
    %1844 = vmatprep.subr.bf16.mxu0 0
    %1845 = vmatpush1.bf16.msra.mxu0 %v1689
    %1846 = vmatprep.subr.bf16.mxu0 0
    %1847 = vmatpush1.bf16.msra.mxu0 %v1690
    %1848 = vmatprep.subr.bf16.mxu0 0
    %1849 = vmatpush1.bf16.msra.mxu0 %v1691
    %1850 = vmatprep.subr.bf16.mxu0 0
    %1851 = vmatpush1.bf16.msra.mxu0 %v1692
    %1852 = vmatprep.subr.bf16.mxu0 0
    %1853 = vmatpush1.bf16.msra.mxu0 %v1693
    %1854 = vmatprep.mubr.bf16.mxu0 %v1103
    %1855 = vmatmul.mubr.bf16.gmra.mrb[0].mxu0 %v1102
    %v1856 = vpop.f32.mrb[0].mxu0
    %v1857 = vadd.f32 0.0, %v1856
    %v1858 = vpop.f32.mrb[0].mxu0
    %v1859 = vpop.f32.mrb[0].mxu0
    %v1860 = vpop.f32.mrb[0].mxu0
    %1861 = vmatprep.mubr.bf16.mxu0 %v1112
    %1862 = vmatmul.mubr.bf16.gmra.mrb[0].mxu0 %v1111
    %v1863 = vpop.f32.mrb[0].mxu0
    %v1864 = vadd.f32 0.0, %v1863
    %v1865 = vpop.f32.mrb[0].mxu0
    %v1866 = vpop.f32.mrb[0].mxu0
    %v1867 = vpop.f32.mrb[0].mxu0
    %1868 = vmatprep.mubr.bf16.mxu0 %v1121
    %1869 = vmatmul.mubr.bf16.gmra.mrb[0].mxu0 %v1120
    %v1870 = vpop.f32.mrb[0].mxu0
    %v1871 = vadd.f32 0.0, %v1870
    %v1872 = vpop.f32.mrb[0].mxu0
    %v1873 = vpop.f32.mrb[0].mxu0
    %v1874 = vpop.f32.mrb[0].mxu0
    %1875 = vmatprep.mubr.bf16.mxu0 %v1130
    %1876 = vmatmul.mubr.bf16.gmra.mrb[0].mxu0 %v1129
    %v1877 = vpop.f32.mrb[0].mxu0
    %v1878 = vadd.f32 0.0, %v1877
    %v1879 = vpop.f32.mrb[0].mxu0
    %v1880 = vpop.f32.mrb[0].mxu0
    %v1881 = vpop.f32.mrb[0].mxu0
    %1882 = vmatprep.mubr.bf16.mxu0 %v1139
    %1883 = vmatmul.mubr.bf16.gmra.mrb[0].mxu0 %v1138
    %v1884 = vpop.f32.mrb[0].mxu0
    %v1885 = vadd.f32 0.0, %v1884
    %v1886 = vpop.f32.mrb[0].mxu0
    %v1887 = vpop.f32.mrb[0].mxu0
    %v1888 = vpop.f32.mrb[0].mxu0
    %1889 = vmatprep.mubr.bf16.mxu0 %v1148
    %1890 = vmatmul.mubr.bf16.gmra.mrb[0].mxu0 %v1147
    %v1891 = vpop.f32.mrb[0].mxu0
    %v1892 = vadd.f32 0.0, %v1891
    %v1893 = vpop.f32.mrb[0].mxu0
    %v1894 = vpop.f32.mrb[0].mxu0
    %v1895 = vpop.f32.mrb[0].mxu0
    %1896 = vmatprep.mubr.bf16.mxu0 %v1157
    %1897 = vmatmul.mubr.bf16.gmra.mrb[0].mxu0 %v1156
    %v1898 = vpop.f32.mrb[0].mxu0
    %v1899 = vadd.f32 0.0, %v1898
    %v1900 = vpop.f32.mrb[0].mxu0
    %v1901 = vpop.f32.mrb[0].mxu0
    %v1902 = vpop.f32.mrb[0].mxu0
    %1903 = vmatprep.mubr.bf16.mxu0 %v1166
    %1904 = vmatmul.mubr.bf16.gmra.mrb[0].mxu0 %v1165
    %v1905 = vpop.f32.mrb[0].mxu0
    %v1906 = vadd.f32 0.0, %v1905
    %v1907 = vpop.f32.mrb[0].mxu0
    %v1908 = vpop.f32.mrb[0].mxu0
    %v1909 = vpop.f32.mrb[0].mxu0
    %1910 = vmatprep.mubr.bf16.mxu0 %v1175
    %1911 = vmatmul.mubr.bf16.gmra.mrb[0].mxu0 %v1174
    %v1912 = vpop.f32.mrb[0].mxu0
    %v1913 = vadd.f32 0.0, %v1912
    %v1914 = vpop.f32.mrb[0].mxu0
    %v1915 = vpop.f32.mrb[0].mxu0
    %v1916 = vpop.f32.mrb[0].mxu0
    %1917 = vmatprep.mubr.bf16.mxu0 %v1184
    %1918 = vmatmul.mubr.bf16.gmra.mrb[0].mxu0 %v1183
    %v1919 = vpop.f32.mrb[0].mxu0
    %v1920 = vadd.f32 0.0, %v1919
    %v1921 = vpop.f32.mrb[0].mxu0
    %v1922 = vpop.f32.mrb[0].mxu0
    %v1923 = vpop.f32.mrb[0].mxu0
    %1924 = vmatprep.mubr.bf16.mxu0 %v1193
    %1925 = vmatmul.mubr.bf16.gmra.mrb[0].mxu0 %v1192
    %v1926 = vpop.f32.mrb[0].mxu0
    %v1927 = vadd.f32 0.0, %v1926
    %v1928 = vpop.f32.mrb[0].mxu0
    %v1929 = vpop.f32.mrb[0].mxu0
    %v1930 = vpop.f32.mrb[0].mxu0
    %1931 = vmatprep.mubr.bf16.mxu0 %v1202
    %1932 = vmatmul.mubr.bf16.gmra.mrb[0].mxu0 %v1201
    %v1933 = vpop.f32.mrb[0].mxu0
    %v1934 = vadd.f32 0.0, %v1933
    %v1935 = vpop.f32.mrb[0].mxu0
    %v1936 = vpop.f32.mrb[0].mxu0
    %v1937 = vpop.f32.mrb[0].mxu0
    %1938 = vmatprep.mubr.bf16.mxu0 %v1211
    %1939 = vmatmul.mubr.bf16.gmra.mrb[0].mxu0 %v1210
    %v1940 = vpop.f32.mrb[0].mxu0
    %v1941 = vadd.f32 0.0, %v1940
    %v1942 = vpop.f32.mrb[0].mxu0
    %v1943 = vpop.f32.mrb[0].mxu0
    %v1944 = vpop.f32.mrb[0].mxu0
    %1945 = vmatprep.mubr.bf16.mxu0 %v1220
    %1946 = vmatmul.mubr.bf16.gmra.mrb[0].mxu0 %v1219
    %v1947 = vpop.f32.mrb[0].mxu0
    %v1948 = vadd.f32 0.0, %v1947
    %v1949 = vpop.f32.mrb[0].mxu0
    %v1950 = vpop.f32.mrb[0].mxu0
    %v1951 = vpop.f32.mrb[0].mxu0
    %1952 = vmatprep.mubr.bf16.mxu0 %v1229
    %1953 = vmatmul.mubr.bf16.gmra.mrb[0].mxu0 %v1228
    %v1954 = vpop.f32.mrb[0].mxu0
    %v1955 = vadd.f32 0.0, %v1954
    %v1956 = vpop.f32.mrb[0].mxu0
    %v1957 = vpop.f32.mrb[0].mxu0
    %v1958 = vpop.f32.mrb[0].mxu0
    %1959 = vmatprep.mubr.bf16.mxu0 %v1238
    %1960 = vmatmul.mubr.bf16.gmra.mrb[0].mxu0 %v1237
    %v1961 = vpop.f32.mrb[0].mxu0
    %v1962 = vadd.f32 0.0, %v1961
    %v1963 = vpop.f32.mrb[0].mxu0
    %v1964 = vpop.f32.mrb[0].mxu0
    %v1965 = vpop.f32.mrb[0].mxu0
    %1966 = vdwg.mxu0
    %1967 = vmatprep.subr.bf16.mxu0 0
    %1968 = vmatpush1.bf16.msra.mxu0 %v1694
    %1969 = vmatprep.subr.bf16.mxu0 0
    %1970 = vmatpush1.bf16.msra.mxu0 %v1695
    %1971 = vmatprep.subr.bf16.mxu0 0
    %1972 = vmatpush1.bf16.msra.mxu0 %v1696
    %1973 = vmatprep.subr.bf16.mxu0 0
    %1974 = vmatpush1.bf16.msra.mxu0 %v1697
    %1975 = vmatprep.subr.bf16.mxu0 0
    %1976 = vmatpush1.bf16.msra.mxu0 %v1698
    %1977 = vmatprep.subr.bf16.mxu0 0
    %1978 = vmatpush1.bf16.msra.mxu0 %v1699
    %1979 = vmatprep.subr.bf16.mxu0 0
    %1980 = vmatpush1.bf16.msra.mxu0 %v1700
    %1981 = vmatprep.subr.bf16.mxu0 0
    %1982 = vmatpush1.bf16.msra.mxu0 %v1701
    %1983 = vmatprep.subr.bf16.mxu0 0
    %1984 = vmatpush1.bf16.msra.mxu0 %v1702
    %1985 = vmatprep.subr.bf16.mxu0 0
    %1986 = vmatpush1.bf16.msra.mxu0 %v1703
    %1987 = vmatprep.subr.bf16.mxu0 0
    %1988 = vmatpush1.bf16.msra.mxu0 %v1704
    %1989 = vmatprep.subr.bf16.mxu0 0
    %1990 = vmatpush1.bf16.msra.mxu0 %v1705
    %1991 = vmatprep.subr.bf16.mxu0 0
    %1992 = vmatpush1.bf16.msra.mxu0 %v1706
    %1993 = vmatprep.subr.bf16.mxu0 0
    %1994 = vmatpush1.bf16.msra.mxu0 %v1707
    %1995 = vmatprep.subr.bf16.mxu0 0
    %1996 = vmatpush1.bf16.msra.mxu0 %v1708
    %1997 = vmatprep.subr.bf16.mxu0 0
    %1998 = vmatpush1.bf16.msra.mxu0 %v1709
    %1999 = vmatprep.mubr.bf16.mxu0 %v1105
    %2000 = vmatmul.mubr.bf16.gmra.mrb[0].mxu0 %v1104
    %v2001 = vpop.f32.mrb[0].mxu0
    %v2002 = vadd.f32 %v1857, %v2001
    %v2003 = vpop.f32.mrb[0].mxu0
    %v2004 = vpop.f32.mrb[0].mxu0
    %v2005 = vpop.f32.mrb[0].mxu0
    %2006 = vmatprep.mubr.bf16.mxu0 %v1114
    %2007 = vmatmul.mubr.bf16.gmra.mrb[0].mxu0 %v1113
    %v2008 = vpop.f32.mrb[0].mxu0
    %v2009 = vadd.f32 %v1864, %v2008
    %v2010 = vpop.f32.mrb[0].mxu0
    %v2011 = vpop.f32.mrb[0].mxu0
    %v2012 = vpop.f32.mrb[0].mxu0
    %2013 = vmatprep.mubr.bf16.mxu0 %v1123
    %2014 = vmatmul.mubr.bf16.gmra.mrb[0].mxu0 %v1122
    %v2015 = vpop.f32.mrb[0].mxu0
    %v2016 = vadd.f32 %v1871, %v2015
    %v2017 = vpop.f32.mrb[0].mxu0
    %v2018 = vpop.f32.mrb[0].mxu0
    %v2019 = vpop.f32.mrb[0].mxu0
    %2020 = vmatprep.mubr.bf16.mxu0 %v1132
    %2021 = vmatmul.mubr.bf16.gmra.mrb[0].mxu0 %v1131
    %v2022 = vpop.f32.mrb[0].mxu0
    %v2023 = vadd.f32 %v1878, %v2022
    %v2024 = vpop.f32.mrb[0].mxu0
    %v2025 = vpop.f32.mrb[0].mxu0
    %v2026 = vpop.f32.mrb[0].mxu0
    %2027 = vmatprep.mubr.bf16.mxu0 %v1141
    %2028 = vmatmul.mubr.bf16.gmra.mrb[0].mxu0 %v1140
    %v2029 = vpop.f32.mrb[0].mxu0
    %v2030 = vadd.f32 %v1885, %v2029
    %v2031 = vpop.f32.mrb[0].mxu0
    %v2032 = vpop.f32.mrb[0].mxu0
    %v2033 = vpop.f32.mrb[0].mxu0
    %2034 = vmatprep.mubr.bf16.mxu0 %v1150
    %2035 = vmatmul.mubr.bf16.gmra.mrb[0].mxu0 %v1149
    %v2036 = vpop.f32.mrb[0].mxu0
    %v2037 = vadd.f32 %v1892, %v2036
    %v2038 = vpop.f32.mrb[0].mxu0
    %v2039 = vpop.f32.mrb[0].mxu0
    %v2040 = vpop.f32.mrb[0].mxu0
    %2041 = vmatprep.mubr.bf16.mxu0 %v1159
    %2042 = vmatmul.mubr.bf16.gmra.mrb[0].mxu0 %v1158
    %v2043 = vpop.f32.mrb[0].mxu0
    %v2044 = vadd.f32 %v1899, %v2043
    %v2045 = vpop.f32.mrb[0].mxu0
    %v2046 = vpop.f32.mrb[0].mxu0
    %v2047 = vpop.f32.mrb[0].mxu0
    %2048 = vmatprep.mubr.bf16.mxu0 %v1168
    %2049 = vmatmul.mubr.bf16.gmra.mrb[0].mxu0 %v1167
    %v2050 = vpop.f32.mrb[0].mxu0
    %v2051 = vadd.f32 %v1906, %v2050
    %v2052 = vpop.f32.mrb[0].mxu0
    %v2053 = vpop.f32.mrb[0].mxu0
    %v2054 = vpop.f32.mrb[0].mxu0
    %2055 = vmatprep.mubr.bf16.mxu0 %v1177
    %2056 = vmatmul.mubr.bf16.gmra.mrb[0].mxu0 %v1176
    %v2057 = vpop.f32.mrb[0].mxu0
    %v2058 = vadd.f32 %v1913, %v2057
    %v2059 = vpop.f32.mrb[0].mxu0
    %v2060 = vpop.f32.mrb[0].mxu0
    %v2061 = vpop.f32.mrb[0].mxu0
    %2062 = vmatprep.mubr.bf16.mxu0 %v1186
    %2063 = vmatmul.mubr.bf16.gmra.mrb[0].mxu0 %v1185
    %v2064 = vpop.f32.mrb[0].mxu0
    %v2065 = vadd.f32 %v1920, %v2064
    %v2066 = vpop.f32.mrb[0].mxu0
    %v2067 = vpop.f32.mrb[0].mxu0
    %v2068 = vpop.f32.mrb[0].mxu0
    %2069 = vmatprep.mubr.bf16.mxu0 %v1195
    %2070 = vmatmul.mubr.bf16.gmra.mrb[0].mxu0 %v1194
    %v2071 = vpop.f32.mrb[0].mxu0
    %v2072 = vadd.f32 %v1927, %v2071
    %v2073 = vpop.f32.mrb[0].mxu0
    %v2074 = vpop.f32.mrb[0].mxu0
    %v2075 = vpop.f32.mrb[0].mxu0
    %2076 = vmatprep.mubr.bf16.mxu0 %v1204
    %2077 = vmatmul.mubr.bf16.gmra.mrb[0].mxu0 %v1203
    %v2078 = vpop.f32.mrb[0].mxu0
    %v2079 = vadd.f32 %v1934, %v2078
    %v2080 = vpop.f32.mrb[0].mxu0
    %v2081 = vpop.f32.mrb[0].mxu0
    %v2082 = vpop.f32.mrb[0].mxu0
    %2083 = vmatprep.mubr.bf16.mxu0 %v1213
    %2084 = vmatmul.mubr.bf16.gmra.mrb[0].mxu0 %v1212
    %v2085 = vpop.f32.mrb[0].mxu0
    %v2086 = vadd.f32 %v1941, %v2085
    %v2087 = vpop.f32.mrb[0].mxu0
    %v2088 = vpop.f32.mrb[0].mxu0
    %v2089 = vpop.f32.mrb[0].mxu0
    %2090 = vmatprep.mubr.bf16.mxu0 %v1222
    %2091 = vmatmul.mubr.bf16.gmra.mrb[0].mxu0 %v1221
    %v2092 = vpop.f32.mrb[0].mxu0
    %v2093 = vadd.f32 %v1948, %v2092
    %v2094 = vpop.f32.mrb[0].mxu0
    %v2095 = vpop.f32.mrb[0].mxu0
    %v2096 = vpop.f32.mrb[0].mxu0
    %2097 = vmatprep.mubr.bf16.mxu0 %v1231
    %2098 = vmatmul.mubr.bf16.gmra.mrb[0].mxu0 %v1230
    %v2099 = vpop.f32.mrb[0].mxu0
    %v2100 = vadd.f32 %v1955, %v2099
    %v2101 = vpop.f32.mrb[0].mxu0
    %v2102 = vpop.f32.mrb[0].mxu0
    %v2103 = vpop.f32.mrb[0].mxu0
    %2104 = vmatprep.mubr.bf16.mxu0 %v1240
    %2105 = vmatmul.mubr.bf16.gmra.mrb[0].mxu0 %v1239
    %v2106 = vpop.f32.mrb[0].mxu0
    %v2107 = vadd.f32 %v1962, %v2106
    %v2108 = vpop.f32.mrb[0].mxu0
    %v2109 = vpop.f32.mrb[0].mxu0
    %v2110 = vpop.f32.mrb[0].mxu0
    %2111 = vdwg.mxu0
    %2112 = vmatprep.subr.bf16.mxu0 0
    %2113 = vmatpush1.bf16.msra.mxu0 %v1710
    %2114 = vmatprep.subr.bf16.mxu0 0
    %2115 = vmatpush1.bf16.msra.mxu0 %v1711
    %2116 = vmatprep.subr.bf16.mxu0 0
    %2117 = vmatpush1.bf16.msra.mxu0 %v1712
    %2118 = vmatprep.subr.bf16.mxu0 0
    %2119 = vmatpush1.bf16.msra.mxu0 %v1713
    %2120 = vmatprep.subr.bf16.mxu0 0
    %2121 = vmatpush1.bf16.msra.mxu0 %v1714
    %2122 = vmatprep.subr.bf16.mxu0 0
    %2123 = vmatpush1.bf16.msra.mxu0 %v1715
    %2124 = vmatprep.subr.bf16.mxu0 0
    %2125 = vmatpush1.bf16.msra.mxu0 %v1716
    %2126 = vmatprep.subr.bf16.mxu0 0
    %2127 = vmatpush1.bf16.msra.mxu0 %v1717
    %2128 = vmatprep.subr.bf16.mxu0 0
    %2129 = vmatpush1.bf16.msra.mxu0 %v1718
    %2130 = vmatprep.subr.bf16.mxu0 0
    %2131 = vmatpush1.bf16.msra.mxu0 %v1719
    %2132 = vmatprep.subr.bf16.mxu0 0
    %2133 = vmatpush1.bf16.msra.mxu0 %v1720
    %2134 = vmatprep.subr.bf16.mxu0 0
    %2135 = vmatpush1.bf16.msra.mxu0 %v1721
    %2136 = vmatprep.subr.bf16.mxu0 0
    %2137 = vmatpush1.bf16.msra.mxu0 %v1722
    %2138 = vmatprep.subr.bf16.mxu0 0
    %2139 = vmatpush1.bf16.msra.mxu0 %v1723
    %2140 = vmatprep.subr.bf16.mxu0 0
    %2141 = vmatpush1.bf16.msra.mxu0 %v1724
    %2142 = vmatprep.subr.bf16.mxu0 0
    %2143 = vmatpush1.bf16.msra.mxu0 %v1725
    %2144 = vmatprep.mubr.bf16.mxu0 %v1107
    %2145 = vmatmul.mubr.bf16.gmra.mrb[0].mxu0 %v1106
    %v2146 = vpop.f32.mrb[0].mxu0
    %v2147 = vadd.f32 %v2002, %v2146
    %v2148 = vpop.f32.mrb[0].mxu0
    %v2149 = vpop.f32.mrb[0].mxu0
    %v2150 = vpop.f32.mrb[0].mxu0
    %2151 = vmatprep.mubr.bf16.mxu0 %v1116
    %2152 = vmatmul.mubr.bf16.gmra.mrb[0].mxu0 %v1115
    %v2153 = vpop.f32.mrb[0].mxu0
    %v2154 = vadd.f32 %v2009, %v2153
    %v2155 = vpop.f32.mrb[0].mxu0
    %v2156 = vpop.f32.mrb[0].mxu0
    %v2157 = vpop.f32.mrb[0].mxu0
    %2158 = vmatprep.mubr.bf16.mxu0 %v1125
    %2159 = vmatmul.mubr.bf16.gmra.mrb[0].mxu0 %v1124
    %v2160 = vpop.f32.mrb[0].mxu0
    %v2161 = vadd.f32 %v2016, %v2160
    %v2162 = vpop.f32.mrb[0].mxu0
    %v2163 = vpop.f32.mrb[0].mxu0
    %v2164 = vpop.f32.mrb[0].mxu0
    %2165 = vmatprep.mubr.bf16.mxu0 %v1134
    %2166 = vmatmul.mubr.bf16.gmra.mrb[0].mxu0 %v1133
    %v2167 = vpop.f32.mrb[0].mxu0
    %v2168 = vadd.f32 %v2023, %v2167
    %v2169 = vpop.f32.mrb[0].mxu0
    %v2170 = vpop.f32.mrb[0].mxu0
    %v2171 = vpop.f32.mrb[0].mxu0
    %2172 = vmatprep.mubr.bf16.mxu0 %v1143
    %2173 = vmatmul.mubr.bf16.gmra.mrb[0].mxu0 %v1142
    %v2174 = vpop.f32.mrb[0].mxu0
    %v2175 = vadd.f32 %v2030, %v2174
    %v2176 = vpop.f32.mrb[0].mxu0
    %v2177 = vpop.f32.mrb[0].mxu0
    %v2178 = vpop.f32.mrb[0].mxu0
    %2179 = vmatprep.mubr.bf16.mxu0 %v1152
    %2180 = vmatmul.mubr.bf16.gmra.mrb[0].mxu0 %v1151
    %v2181 = vpop.f32.mrb[0].mxu0
    %v2182 = vadd.f32 %v2037, %v2181
    %v2183 = vpop.f32.mrb[0].mxu0
    %v2184 = vpop.f32.mrb[0].mxu0
    %v2185 = vpop.f32.mrb[0].mxu0
    %2186 = vmatprep.mubr.bf16.mxu0 %v1161
    %2187 = vmatmul.mubr.bf16.gmra.mrb[0].mxu0 %v1160
    %v2188 = vpop.f32.mrb[0].mxu0
    %v2189 = vadd.f32 %v2044, %v2188
    %v2190 = vpop.f32.mrb[0].mxu0
    %v2191 = vpop.f32.mrb[0].mxu0
    %v2192 = vpop.f32.mrb[0].mxu0
    %2193 = vmatprep.mubr.bf16.mxu0 %v1170
    %2194 = vmatmul.mubr.bf16.gmra.mrb[0].mxu0 %v1169
    %v2195 = vpop.f32.mrb[0].mxu0
    %v2196 = vadd.f32 %v2051, %v2195
    %v2197 = vpop.f32.mrb[0].mxu0
    %v2198 = vpop.f32.mrb[0].mxu0
    %v2199 = vpop.f32.mrb[0].mxu0
    %2200 = vmatprep.mubr.bf16.mxu0 %v1179
    %2201 = vmatmul.mubr.bf16.gmra.mrb[0].mxu0 %v1178
    %v2202 = vpop.f32.mrb[0].mxu0
    %v2203 = vadd.f32 %v2058, %v2202
    %v2204 = vpop.f32.mrb[0].mxu0
    %v2205 = vpop.f32.mrb[0].mxu0
    %v2206 = vpop.f32.mrb[0].mxu0
    %2207 = vmatprep.mubr.bf16.mxu0 %v1188
    %2208 = vmatmul.mubr.bf16.gmra.mrb[0].mxu0 %v1187
    %v2209 = vpop.f32.mrb[0].mxu0
    %v2210 = vadd.f32 %v2065, %v2209
    %v2211 = vpop.f32.mrb[0].mxu0
    %v2212 = vpop.f32.mrb[0].mxu0
    %v2213 = vpop.f32.mrb[0].mxu0
    %2214 = vmatprep.mubr.bf16.mxu0 %v1197
    %2215 = vmatmul.mubr.bf16.gmra.mrb[0].mxu0 %v1196
    %v2216 = vpop.f32.mrb[0].mxu0
    %v2217 = vadd.f32 %v2072, %v2216
    %v2218 = vpop.f32.mrb[0].mxu0
    %v2219 = vpop.f32.mrb[0].mxu0
    %v2220 = vpop.f32.mrb[0].mxu0
    %2221 = vmatprep.mubr.bf16.mxu0 %v1206
    %2222 = vmatmul.mubr.bf16.gmra.mrb[0].mxu0 %v1205
    %v2223 = vpop.f32.mrb[0].mxu0
    %v2224 = vadd.f32 %v2079, %v2223
    %v2225 = vpop.f32.mrb[0].mxu0
    %v2226 = vpop.f32.mrb[0].mxu0
    %v2227 = vpop.f32.mrb[0].mxu0
    %2228 = vmatprep.mubr.bf16.mxu0 %v1215
    %2229 = vmatmul.mubr.bf16.gmra.mrb[0].mxu0 %v1214
    %v2230 = vpop.f32.mrb[0].mxu0
    %v2231 = vadd.f32 %v2086, %v2230
    %v2232 = vpop.f32.mrb[0].mxu0
    %v2233 = vpop.f32.mrb[0].mxu0
    %v2234 = vpop.f32.mrb[0].mxu0
    %2235 = vmatprep.mubr.bf16.mxu0 %v1224
    %2236 = vmatmul.mubr.bf16.gmra.mrb[0].mxu0 %v1223
    %v2237 = vpop.f32.mrb[0].mxu0
    %v2238 = vadd.f32 %v2093, %v2237
    %v2239 = vpop.f32.mrb[0].mxu0
    %v2240 = vpop.f32.mrb[0].mxu0
    %v2241 = vpop.f32.mrb[0].mxu0
    %2242 = vmatprep.mubr.bf16.mxu0 %v1233
    %2243 = vmatmul.mubr.bf16.gmra.mrb[0].mxu0 %v1232
    %v2244 = vpop.f32.mrb[0].mxu0
    %v2245 = vadd.f32 %v2100, %v2244
    %v2246 = vpop.f32.mrb[0].mxu0
    %v2247 = vpop.f32.mrb[0].mxu0
    %v2248 = vpop.f32.mrb[0].mxu0
    %2249 = vmatprep.mubr.bf16.mxu0 %v1242
    %2250 = vmatmul.mubr.bf16.gmra.mrb[0].mxu0 %v1241
    %v2251 = vpop.f32.mrb[0].mxu0
    %v2252 = vadd.f32 %v2107, %v2251
    %v2253 = vpop.f32.mrb[0].mxu0
    %v2254 = vpop.f32.mrb[0].mxu0
    %v2255 = vpop.f32.mrb[0].mxu0
    %2256 = vdwg.mxu0
    %2257 = vmatprep.subr.bf16.mxu0 0
    %2258 = vmatpush1.bf16.msra.mxu0 %v1726
    %2259 = vmatprep.subr.bf16.mxu0 0
    %2260 = vmatpush1.bf16.msra.mxu0 %v1727
    %2261 = vmatprep.subr.bf16.mxu0 0
    %2262 = vmatpush1.bf16.msra.mxu0 %v1728
    %2263 = vmatprep.subr.bf16.mxu0 0
    %2264 = vmatpush1.bf16.msra.mxu0 %v1729
    %2265 = vmatprep.subr.bf16.mxu0 0
    %2266 = vmatpush1.bf16.msra.mxu0 %v1730
    %2267 = vmatprep.subr.bf16.mxu0 0
    %2268 = vmatpush1.bf16.msra.mxu0 %v1731
    %2269 = vmatprep.subr.bf16.mxu0 0
    %2270 = vmatpush1.bf16.msra.mxu0 %v1732
    %2271 = vmatprep.subr.bf16.mxu0 0
    %2272 = vmatpush1.bf16.msra.mxu0 %v1733
    %2273 = vmatprep.subr.bf16.mxu0 0
    %2274 = vmatpush1.bf16.msra.mxu0 %v1734
    %2275 = vmatprep.subr.bf16.mxu0 0
    %2276 = vmatpush1.bf16.msra.mxu0 %v1735
    %2277 = vmatprep.subr.bf16.mxu0 0
    %2278 = vmatpush1.bf16.msra.mxu0 %v1736
    %2279 = vmatprep.subr.bf16.mxu0 0
    %2280 = vmatpush1.bf16.msra.mxu0 %v1737
    %2281 = vmatprep.subr.bf16.mxu0 0
    %2282 = vmatpush1.bf16.msra.mxu0 %v1738
    %2283 = vmatprep.subr.bf16.mxu0 0
    %2284 = vmatpush1.bf16.msra.mxu0 %v1739
    %2285 = vmatprep.subr.bf16.mxu0 0
    %2286 = vmatpush1.bf16.msra.mxu0 %v1740
    %2287 = vmatprep.subr.bf16.mxu0 0
    %2288 = vmatpush1.bf16.msra.mxu0 %v1741
    %2289 = vmatprep.mubr.bf16.mxu0 %v1109
    %2290 = vmatmul.mubr.bf16.gmra.mrb[0].mxu0 %v1108
    %v2291 = vpop.f32.mrb[0].mxu0
    %v2292 = vadd.f32 %v2147, %v2291
    %v2293 = vpop.f32.mrb[0].mxu0
    %v2294 = vpop.f32.mrb[0].mxu0
    %v2295 = vpop.f32.mrb[0].mxu0
    %2296 = vmatprep.mubr.bf16.mxu0 %v1118
    %2297 = vmatmul.mubr.bf16.gmra.mrb[0].mxu0 %v1117
    %v2298 = vpop.f32.mrb[0].mxu0
    %v2299 = vadd.f32 %v2154, %v2298
    %v2300 = vpop.f32.mrb[0].mxu0
    %v2301 = vpop.f32.mrb[0].mxu0
    %v2302 = vpop.f32.mrb[0].mxu0
    %2303 = vmatprep.mubr.bf16.mxu0 %v1127
    %2304 = vmatmul.mubr.bf16.gmra.mrb[0].mxu0 %v1126
    %v2305 = vpop.f32.mrb[0].mxu0
    %v2306 = vadd.f32 %v2161, %v2305
    %v2307 = vpop.f32.mrb[0].mxu0
    %v2308 = vpop.f32.mrb[0].mxu0
    %v2309 = vpop.f32.mrb[0].mxu0
    %2310 = vmatprep.mubr.bf16.mxu0 %v1136
    %2311 = vmatmul.mubr.bf16.gmra.mrb[0].mxu0 %v1135
    %v2312 = vpop.f32.mrb[0].mxu0
    %v2313 = vadd.f32 %v2168, %v2312
    %v2314 = vpop.f32.mrb[0].mxu0
    %v2315 = vpop.f32.mrb[0].mxu0
    %v2316 = vpop.f32.mrb[0].mxu0
    %2317 = vmatprep.mubr.bf16.mxu0 %v1145
    %2318 = vmatmul.mubr.bf16.gmra.mrb[0].mxu0 %v1144
    %v2319 = vpop.f32.mrb[0].mxu0
    %v2320 = vadd.f32 %v2175, %v2319
    %v2321 = vpop.f32.mrb[0].mxu0
    %v2322 = vpop.f32.mrb[0].mxu0
    %v2323 = vpop.f32.mrb[0].mxu0
    %2324 = vmatprep.mubr.bf16.mxu0 %v1154
    %2325 = vmatmul.mubr.bf16.gmra.mrb[0].mxu0 %v1153
    %v2326 = vpop.f32.mrb[0].mxu0
    %v2327 = vadd.f32 %v2182, %v2326
    %v2328 = vpop.f32.mrb[0].mxu0
    %v2329 = vpop.f32.mrb[0].mxu0
    %v2330 = vpop.f32.mrb[0].mxu0
    %2331 = vmatprep.mubr.bf16.mxu0 %v1163
    %2332 = vmatmul.mubr.bf16.gmra.mrb[0].mxu0 %v1162
    %v2333 = vpop.f32.mrb[0].mxu0
    %v2334 = vadd.f32 %v2189, %v2333
    %v2335 = vpop.f32.mrb[0].mxu0
    %v2336 = vpop.f32.mrb[0].mxu0
    %v2337 = vpop.f32.mrb[0].mxu0
    %2338 = vmatprep.mubr.bf16.mxu0 %v1172
    %2339 = vmatmul.mubr.bf16.gmra.mrb[0].mxu0 %v1171
    %v2340 = vpop.f32.mrb[0].mxu0
    %v2341 = vadd.f32 %v2196, %v2340
    %v2342 = vpop.f32.mrb[0].mxu0
    %v2343 = vpop.f32.mrb[0].mxu0
    %v2344 = vpop.f32.mrb[0].mxu0
    %2345 = vmatprep.mubr.bf16.mxu0 %v1181
    %2346 = vmatmul.mubr.bf16.gmra.mrb[0].mxu0 %v1180
    %v2347 = vpop.f32.mrb[0].mxu0
    %v2348 = vadd.f32 %v2203, %v2347
    %v2349 = vpop.f32.mrb[0].mxu0
    %v2350 = vpop.f32.mrb[0].mxu0
    %v2351 = vpop.f32.mrb[0].mxu0
    %2352 = vmatprep.mubr.bf16.mxu0 %v1190
    %2353 = vmatmul.mubr.bf16.gmra.mrb[0].mxu0 %v1189
    %v2354 = vpop.f32.mrb[0].mxu0
    %v2355 = vadd.f32 %v2210, %v2354
    %v2356 = vpop.f32.mrb[0].mxu0
    %v2357 = vpop.f32.mrb[0].mxu0
    %v2358 = vpop.f32.mrb[0].mxu0
    %2359 = vmatprep.mubr.bf16.mxu0 %v1199
    %2360 = vmatmul.mubr.bf16.gmra.mrb[0].mxu0 %v1198
    %v2361 = vpop.f32.mrb[0].mxu0
    %v2362 = vadd.f32 %v2217, %v2361
    %v2363 = vpop.f32.mrb[0].mxu0
    %v2364 = vpop.f32.mrb[0].mxu0
    %v2365 = vpop.f32.mrb[0].mxu0
    %2366 = vmatprep.mubr.bf16.mxu0 %v1208
    %2367 = vmatmul.mubr.bf16.gmra.mrb[0].mxu0 %v1207
    %v2368 = vpop.f32.mrb[0].mxu0
    %v2369 = vadd.f32 %v2224, %v2368
    %v2370 = vpop.f32.mrb[0].mxu0
    %v2371 = vpop.f32.mrb[0].mxu0
    %v2372 = vpop.f32.mrb[0].mxu0
    %2373 = vmatprep.mubr.bf16.mxu0 %v1217
    %2374 = vmatmul.mubr.bf16.gmra.mrb[0].mxu0 %v1216
    %v2375 = vpop.f32.mrb[0].mxu0
    %v2376 = vadd.f32 %v2231, %v2375
    %v2377 = vpop.f32.mrb[0].mxu0
    %v2378 = vpop.f32.mrb[0].mxu0
    %v2379 = vpop.f32.mrb[0].mxu0
    %2380 = vmatprep.mubr.bf16.mxu0 %v1226
    %2381 = vmatmul.mubr.bf16.gmra.mrb[0].mxu0 %v1225
    %v2382 = vpop.f32.mrb[0].mxu0
    %v2383 = vadd.f32 %v2238, %v2382
    %v2384 = vpop.f32.mrb[0].mxu0
    %v2385 = vpop.f32.mrb[0].mxu0
    %v2386 = vpop.f32.mrb[0].mxu0
    %2387 = vmatprep.mubr.bf16.mxu0 %v1235
    %2388 = vmatmul.mubr.bf16.gmra.mrb[0].mxu0 %v1234
    %v2389 = vpop.f32.mrb[0].mxu0
    %v2390 = vadd.f32 %v2245, %v2389
    %v2391 = vpop.f32.mrb[0].mxu0
    %v2392 = vpop.f32.mrb[0].mxu0
    %v2393 = vpop.f32.mrb[0].mxu0
    %2394 = vmatprep.mubr.bf16.mxu0 %v1244
    %2395 = vmatmul.mubr.bf16.gmra.mrb[0].mxu0 %v1243
    %v2396 = vpop.f32.mrb[0].mxu0
    %v2397 = vadd.f32 %v2252, %v2396
    %v2398 = vpop.f32.mrb[0].mxu0
    %v2399 = vpop.f32.mrb[0].mxu0
    %v2400 = vpop.f32.mrb[0].mxu0
    %2401 = vdwg.mxu0
    %2402 = vmatprep.subr.bf16.mxu0 0
    %2403 = vmatpush1.bf16.msra.mxu0 %v1742
    %2404 = vmatprep.subr.bf16.mxu0 0
    %2405 = vmatpush1.bf16.msra.mxu0 %v1743
    %2406 = vmatprep.subr.bf16.mxu0 0
    %2407 = vmatpush1.bf16.msra.mxu0 %v1744
    %2408 = vmatprep.subr.bf16.mxu0 0
    %2409 = vmatpush1.bf16.msra.mxu0 %v1745
    %2410 = vmatprep.subr.bf16.mxu0 0
    %2411 = vmatpush1.bf16.msra.mxu0 %v1746
    %2412 = vmatprep.subr.bf16.mxu0 0
    %2413 = vmatpush1.bf16.msra.mxu0 %v1747
    %2414 = vmatprep.subr.bf16.mxu0 0
    %2415 = vmatpush1.bf16.msra.mxu0 %v1748
    %2416 = vmatprep.subr.bf16.mxu0 0
    %2417 = vmatpush1.bf16.msra.mxu0 %v1749
    %2418 = vmatprep.subr.bf16.mxu0 0
    %2419 = vmatpush1.bf16.msra.mxu0 0
    %2420 = vmatprep.subr.bf16.mxu0 0
    %2421 = vmatpush1.bf16.msra.mxu0 0
    %2422 = vmatprep.subr.bf16.mxu0 0
    %2423 = vmatpush1.bf16.msra.mxu0 0
    %2424 = vmatprep.subr.bf16.mxu0 0
    %2425 = vmatpush1.bf16.msra.mxu0 0
    %2426 = vmatprep.subr.bf16.mxu0 0
    %2427 = vmatpush1.bf16.msra.mxu0 0
    %2428 = vmatprep.subr.bf16.mxu0 0
    %2429 = vmatpush1.bf16.msra.mxu0 0
    %2430 = vmatprep.subr.bf16.mxu0 0
    %2431 = vmatpush1.bf16.msra.mxu0 0
    %2432 = vmatprep.subr.bf16.mxu0 0
    %2433 = vmatpush1.bf16.msra.mxu0 0
    %2434 = vmatprep.mubr.bf16.mxu0 0
    %2435 = vmatmul.mubr.bf16.gmra.mrb[0].mxu0 %v1110
    %v2436 = vpop.f32.mrb[0].mxu0
    %v2437 = vadd.f32 %v2292, %v2436
    %v2438 = vpop.f32.mrb[0].mxu0
    %v2439 = vpop.f32.mrb[0].mxu0
    %v2440 = vpop.f32.mrb[0].mxu0
    %2441 = vmatprep.mubr.bf16.mxu0 0
    %2442 = vmatmul.mubr.bf16.gmra.mrb[0].mxu0 %v1119
    %v2443 = vpop.f32.mrb[0].mxu0
    %v2444 = vadd.f32 %v2299, %v2443
    %v2445 = vpop.f32.mrb[0].mxu0
    %v2446 = vpop.f32.mrb[0].mxu0
    %v2447 = vpop.f32.mrb[0].mxu0
    %2448 = vmatprep.mubr.bf16.mxu0 0
    %2449 = vmatmul.mubr.bf16.gmra.mrb[0].mxu0 %v1128
    %v2450 = vpop.f32.mrb[0].mxu0
    %v2451 = vadd.f32 %v2306, %v2450
    %v2452 = vpop.f32.mrb[0].mxu0
    %v2453 = vpop.f32.mrb[0].mxu0
    %v2454 = vpop.f32.mrb[0].mxu0
    %2455 = vmatprep.mubr.bf16.mxu0 0
    %2456 = vmatmul.mubr.bf16.gmra.mrb[0].mxu0 %v1137
    %v2457 = vpop.f32.mrb[0].mxu0
    %v2458 = vadd.f32 %v2313, %v2457
    %v2459 = vpop.f32.mrb[0].mxu0
    %v2460 = vpop.f32.mrb[0].mxu0
    %v2461 = vpop.f32.mrb[0].mxu0
    %2462 = vmatprep.mubr.bf16.mxu0 0
    %2463 = vmatmul.mubr.bf16.gmra.mrb[0].mxu0 %v1146
    %v2464 = vpop.f32.mrb[0].mxu0
    %v2465 = vadd.f32 %v2320, %v2464
    %v2466 = vpop.f32.mrb[0].mxu0
    %v2467 = vpop.f32.mrb[0].mxu0
    %v2468 = vpop.f32.mrb[0].mxu0
    %2469 = vmatprep.mubr.bf16.mxu0 0
    %2470 = vmatmul.mubr.bf16.gmra.mrb[0].mxu0 %v1155
    %v2471 = vpop.f32.mrb[0].mxu0
    %v2472 = vadd.f32 %v2327, %v2471
    %v2473 = vpop.f32.mrb[0].mxu0
    %v2474 = vpop.f32.mrb[0].mxu0
    %v2475 = vpop.f32.mrb[0].mxu0
    %2476 = vmatprep.mubr.bf16.mxu0 0
    %2477 = vmatmul.mubr.bf16.gmra.mrb[0].mxu0 %v1164
    %v2478 = vpop.f32.mrb[0].mxu0
    %v2479 = vadd.f32 %v2334, %v2478
    %v2480 = vpop.f32.mrb[0].mxu0
    %v2481 = vpop.f32.mrb[0].mxu0
    %v2482 = vpop.f32.mrb[0].mxu0
    %2483 = vmatprep.mubr.bf16.mxu0 0
    %2484 = vmatmul.mubr.bf16.gmra.mrb[0].mxu0 %v1173
    %v2485 = vpop.f32.mrb[0].mxu0
    %v2486 = vadd.f32 %v2341, %v2485
    %v2487 = vpop.f32.mrb[0].mxu0
    %v2488 = vpop.f32.mrb[0].mxu0
    %v2489 = vpop.f32.mrb[0].mxu0
    %2490 = vmatprep.mubr.bf16.mxu0 0
    %2491 = vmatmul.mubr.bf16.gmra.mrb[0].mxu0 %v1182
    %v2492 = vpop.f32.mrb[0].mxu0
    %v2493 = vadd.f32 %v2348, %v2492
    %v2494 = vpop.f32.mrb[0].mxu0
    %v2495 = vpop.f32.mrb[0].mxu0
    %v2496 = vpop.f32.mrb[0].mxu0
    %2497 = vmatprep.mubr.bf16.mxu0 0
    %2498 = vmatmul.mubr.bf16.gmra.mrb[0].mxu0 %v1191
    %v2499 = vpop.f32.mrb[0].mxu0
    %v2500 = vadd.f32 %v2355, %v2499
    %v2501 = vpop.f32.mrb[0].mxu0
    %v2502 = vpop.f32.mrb[0].mxu0
    %v2503 = vpop.f32.mrb[0].mxu0
    %2504 = vmatprep.mubr.bf16.mxu0 0
    %2505 = vmatmul.mubr.bf16.gmra.mrb[0].mxu0 %v1200
    %v2506 = vpop.f32.mrb[0].mxu0
    %v2507 = vadd.f32 %v2362, %v2506
    %v2508 = vpop.f32.mrb[0].mxu0
    %v2509 = vpop.f32.mrb[0].mxu0
    %v2510 = vpop.f32.mrb[0].mxu0
    %2511 = vmatprep.mubr.bf16.mxu0 0
    %2512 = vmatmul.mubr.bf16.gmra.mrb[0].mxu0 %v1209
    %v2513 = vpop.f32.mrb[0].mxu0
    %v2514 = vadd.f32 %v2369, %v2513
    %v2515 = vpop.f32.mrb[0].mxu0
    %v2516 = vpop.f32.mrb[0].mxu0
    %v2517 = vpop.f32.mrb[0].mxu0
    %2518 = vmatprep.mubr.bf16.mxu0 0
    %2519 = vmatmul.mubr.bf16.gmra.mrb[0].mxu0 %v1218
    %v2520 = vpop.f32.mrb[0].mxu0
    %v2521 = vadd.f32 %v2376, %v2520
    %v2522 = vpop.f32.mrb[0].mxu0
    %v2523 = vpop.f32.mrb[0].mxu0
    %v2524 = vpop.f32.mrb[0].mxu0
    %2525 = vmatprep.mubr.bf16.mxu0 0
    %2526 = vmatmul.mubr.bf16.gmra.mrb[0].mxu0 %v1227
    %v2527 = vpop.f32.mrb[0].mxu0
    %v2528 = vadd.f32 %v2383, %v2527
    %v2529 = vpop.f32.mrb[0].mxu0
    %v2530 = vpop.f32.mrb[0].mxu0
    %v2531 = vpop.f32.mrb[0].mxu0
    %2532 = vmatprep.mubr.bf16.mxu0 0
    %2533 = vmatmul.mubr.bf16.gmra.mrb[0].mxu0 %v1236
    %v2534 = vpop.f32.mrb[0].mxu0
    %v2535 = vadd.f32 %v2390, %v2534
    %v2536 = vpop.f32.mrb[0].mxu0
    %v2537 = vpop.f32.mrb[0].mxu0
    %v2538 = vpop.f32.mrb[0].mxu0
    %2539 = vmatprep.mubr.bf16.mxu0 0
    %2540 = vmatmul.mubr.bf16.gmra.mrb[0].mxu0 %v1245
    %v2541 = vpop.f32.mrb[0].mxu0
    %v2542 = vadd.f32 %v2397, %v2541
    %v2543 = vpop.f32.mrb[0].mxu0
    %v2544 = vpop.f32.mrb[0].mxu0
    %v2545 = vpop.f32.mrb[0].mxu0
    %2546 = vdwg.mxu0
    %v2547 = vlaneseq
    %v2548 = vshrl.u32 %v2547, 7
    %v2549 = vsub.s32 0, %v2548
    %v2550 = vrot.slane %v82, %v2549
    %v2551 = vadd.f32 %v2437, %v2550
    %v2552 = vadd.f32 %v2444, %v2550
    %v2553 = vadd.f32 %v2451, %v2550
    %v2554 = vadd.f32 %v2458, %v2550
    %v2555 = vadd.f32 %v2465, %v2550
    %v2556 = vadd.f32 %v2472, %v2550
    %v2557 = vadd.f32 %v2479, %v2550
    %v2558 = vadd.f32 %v2486, %v2550
    %v2559 = vadd.f32 %v2493, %v2550
    %v2560 = vadd.f32 %v2500, %v2550
    %v2561 = vadd.f32 %v2507, %v2550
    %v2562 = vadd.f32 %v2514, %v2550
    %v2563 = vadd.f32 %v2521, %v2550
    %v2564 = vadd.f32 %v2528, %v2550
    %v2565 = vadd.f32 %v2535, %v2550
    %v2566 = vadd.f32 %v2542, %v2550
    %v2567 = vadd.f32 %v2551, %v2552
    %v2568 = vadd.f32 %v2567, %v2553
    %v2569 = vadd.f32 %v2568, %v2554
    %v2570 = vadd.f32 %v2569, %v2555
    %v2571 = vadd.f32 %v2570, %v2556
    %v2572 = vadd.f32 %v2571, %v2557
    %v2573 = vadd.f32 %v2572, %v2558
    %v2574 = vrot.slane %v2573, 4
    %v2575 = vadd.f32 %v2573, %v2574
    %v2576 = vrot.slane %v2575, 2
    %v2577 = vadd.f32 %v2575, %v2576
    %v2578 = vrot.slane %v2577, 1
    %v2579 = vadd.f32 %v2577, %v2578
    %v2580 = vadd.f32 %v2559, %v2560
    %v2581 = vadd.f32 %v2580, %v2561
    %v2582 = vadd.f32 %v2581, %v2562
    %v2583 = vadd.f32 %v2582, %v2563
    %v2584 = vadd.f32 %v2583, %v2564
    %v2585 = vadd.f32 %v2584, %v2565
    %v2586 = vadd.f32 %v2585, %v2566
    %v2587 = vrot.slane %v2586, 4
    %v2588 = vadd.f32 %v2586, %v2587
    %v2589 = vrot.slane %v2588, 2
    %v2590 = vadd.f32 %v2588, %v2589
    %v2591 = vrot.slane %v2590, 1
    %v2592 = vadd.f32 %v2590, %v2591
    %v2593 = vmul.f32 %v2551, %v2551
    %v2594 = vmul.f32 %v2552, %v2552
    %v2595 = vmul.f32 %v2553, %v2553
    %v2596 = vmul.f32 %v2554, %v2554
    %v2597 = vmul.f32 %v2555, %v2555
    %v2598 = vmul.f32 %v2556, %v2556
    %v2599 = vmul.f32 %v2557, %v2557
    %v2600 = vmul.f32 %v2558, %v2558
    %v2601 = vmul.f32 %v2559, %v2559
    %v2602 = vmul.f32 %v2560, %v2560
    %v2603 = vmul.f32 %v2561, %v2561
    %v2604 = vmul.f32 %v2562, %v2562
    %v2605 = vmul.f32 %v2563, %v2563
    %v2606 = vmul.f32 %v2564, %v2564
    %v2607 = vmul.f32 %v2565, %v2565
    %v2608 = vmul.f32 %v2566, %v2566
    %v2609 = vadd.f32 %v2593, %v2594
    %v2610 = vadd.f32 %v2609, %v2595
    %v2611 = vadd.f32 %v2610, %v2596
    %v2612 = vadd.f32 %v2611, %v2597
    %v2613 = vadd.f32 %v2612, %v2598
    %v2614 = vadd.f32 %v2613, %v2599
    %v2615 = vadd.f32 %v2614, %v2600
    %v2616 = vrot.slane %v2615, 4
    %v2617 = vadd.f32 %v2615, %v2616
    %v2618 = vrot.slane %v2617, 2
    %v2619 = vadd.f32 %v2617, %v2618
    %v2620 = vrot.slane %v2619, 1
    %v2621 = vadd.f32 %v2619, %v2620
    %v2622 = vadd.f32 %v2601, %v2602
    %v2623 = vadd.f32 %v2622, %v2603
    %v2624 = vadd.f32 %v2623, %v2604
    %v2625 = vadd.f32 %v2624, %v2605
    %v2626 = vadd.f32 %v2625, %v2606
    %v2627 = vadd.f32 %v2626, %v2607
    %v2628 = vadd.f32 %v2627, %v2608
    %v2629 = vrot.slane %v2628, 4
    %v2630 = vadd.f32 %v2628, %v2629
    %v2631 = vrot.slane %v2630, 2
    %v2632 = vadd.f32 %v2630, %v2631
    %v2633 = vrot.slane %v2632, 1
    %v2634 = vadd.f32 %v2632, %v2633
    %v2637 = vsel %vm216, %v2592, %v2579
    %v2641 = vsel %vm221, %v2634, %v2621
    %v2643 = vsel %vm224, %v2637, %v2641
    %2644 = vmatprep.subr.mxu0 0.0
    %2645 = vmatpush1.msra.mxu0 %v63
    %2646 = vmatprep.subr.mxu0 0.0
    %2647 = vmatpush1.msra.mxu0 %v64
    %2648 = vmatprep.subr.mxu0 0.0
    %2649 = vmatpush1.msra.mxu0 %v65
    %2650 = vmatprep.subr.mxu0 0.0
    %2651 = vmatpush1.msra.mxu0 %v66
    %2652 = vmatprep.subr.mxu0 0.0
    %2653 = vmatpush1.msra.mxu0 %v67
    %2654 = vmatprep.subr.mxu0 0.0
    %2655 = vmatpush1.msra.mxu0 %v68
    %2656 = vmatprep.subr.mxu0 0.0
    %2657 = vmatpush1.msra.mxu0 %v69
    %2658 = vmatprep.subr.mxu0 0.0
    %2659 = vmatpush1.msra.mxu0 %v70
    %2660 = vmatprep.subr.mxu0 0.0
    %2661 = vmatpush1.msra.mxu0 %v71
    %2662 = vmatprep.subr.mxu0 0.0
    %2663 = vmatpush1.msra.mxu0 %v72
    %2664 = vmatprep.subr.mxu0 0.0
    %2665 = vmatpush1.msra.mxu0 %v73
    %2666 = vmatprep.subr.mxu0 0.0
    %2667 = vmatpush1.msra.mxu0 %v74
    %2668 = vmatprep.subr.mxu0 0.0
    %2669 = vmatpush1.msra.mxu0 %v75
    %2670 = vmatprep.subr.mxu0 0.0
    %2671 = vmatpush1.msra.mxu0 %v76
    %2672 = vmatprep.subr.mxu0 0.0
    %2673 = vmatpush1.msra.mxu0 %v77
    %2674 = vmatprep.subr.mxu0 0.0
    %2675 = vmatpush1.msra.mxu0 %v78
    %2676 = vmatprep.subr.mxu0 0.0
    %2677 = vmatpush1.msra.mxu0 0.0
    %2678 = vmatprep.subr.mxu0 0.0
    %2679 = vmatpush1.msra.mxu0 0.0
    %2680 = vmatprep.subr.mxu0 0.0
    %2681 = vmatpush1.msra.mxu0 0.0
    %2682 = vmatprep.subr.mxu0 0.0
    %2683 = vmatpush1.msra.mxu0 0.0
    %2684 = vmatprep.subr.mxu0 0.0
    %2685 = vmatpush1.msra.mxu0 0.0
    %2686 = vmatprep.subr.mxu0 0.0
    %2687 = vmatpush1.msra.mxu0 0.0
    %2688 = vmatprep.subr.mxu0 0.0
    %2689 = vmatpush1.msra.mxu0 0.0
    %2690 = vmatprep.subr.mxu0 0.0
    %2691 = vmatpush1.msra.mxu0 0.0
    %2692 = vmatprep.subr.mxu0 0.0
    %2693 = vmatpush1.msra.mxu0 0.0
    %2694 = vmatprep.subr.mxu0 0.0
    %2695 = vmatpush1.msra.mxu0 0.0
    %2696 = vmatprep.subr.mxu0 0.0
    %2697 = vmatpush1.msra.mxu0 0.0
    %2698 = vmatprep.subr.mxu0 0.0
    %2699 = vmatpush1.msra.mxu0 0.0
    %2700 = vmatprep.subr.mxu0 0.0
    %2701 = vmatpush1.msra.mxu0 0.0
    %2702 = vmatprep.subr.mxu0 0.0
    %2703 = vmatpush1.msra.mxu0 0.0
    %2704 = vmatprep.subr.mxu0 0.0
    %2705 = vmatpush1.msra.mxu0 0.0
    %2706 = vmatprep.subr.mxu0 0.0
    %2707 = vmatpush1.msra.mxu0 0.0
    %2708 = vmatprep.mubr.f32.mxu0 0.0
    %2709 = vmatmul.mubr.f32.gmra.mrb[0].mxu0 %v2643
    %v2710 = vpop.f32.mrb[0].mxu0
    %v2711 = vadd.f32 0.0, %v2710
    %v2712 = vpop.f32.mrb[0].mxu0
    %2713 = vdwg.mxu0
    %v2714 = vmul.f32 %v2711, 0.0009765625
    %v2715 = vmul.f32 %v2714, %v2714
    %v2717 = vrot.slane %v2715, 6
    %v2719 = vsub.f32 %v2714, %v2717
    %v2720 = vmax.f32 %v2719, 0.0
    %v2721 = vadd.f32 %v2720, 1e-05
    %v2722 = vrsqrt.pop %v2721
    %v2723 = vsel %vm224, %v2714, %v2722
    %v2725 = vsel %vm306, %v2723, 0
    %2727 = vmatprep.subr.mxu0 0.0
    %2728 = vmatpush1.msra.mxu0 %v79
    %2729 = vmatprep.subr.mxu0 0.0
    %2730 = vmatpush1.msra.mxu0 0.0
    %2731 = vmatprep.subr.mxu0 0.0
    %2732 = vmatpush1.msra.mxu0 0.0
    %2733 = vmatprep.subr.mxu0 0.0
    %2734 = vmatpush1.msra.mxu0 0.0
    %2735 = vmatprep.subr.mxu0 0.0
    %2736 = vmatpush1.msra.mxu0 0.0
    %2737 = vmatprep.subr.mxu0 0.0
    %2738 = vmatpush1.msra.mxu0 0.0
    %2739 = vmatprep.subr.mxu0 0.0
    %2740 = vmatpush1.msra.mxu0 0.0
    %2741 = vmatprep.subr.mxu0 0.0
    %2742 = vmatpush1.msra.mxu0 0.0
    %2743 = vmatprep.subr.mxu0 0.0
    %2744 = vmatpush1.msra.mxu0 0.0
    %2745 = vmatprep.subr.mxu0 0.0
    %2746 = vmatpush1.msra.mxu0 0.0
    %2747 = vmatprep.subr.mxu0 0.0
    %2748 = vmatpush1.msra.mxu0 0.0
    %2749 = vmatprep.subr.mxu0 0.0
    %2750 = vmatpush1.msra.mxu0 0.0
    %2751 = vmatprep.subr.mxu0 0.0
    %2752 = vmatpush1.msra.mxu0 0.0
    %2753 = vmatprep.subr.mxu0 0.0
    %2754 = vmatpush1.msra.mxu0 0.0
    %2755 = vmatprep.subr.mxu0 0.0
    %2756 = vmatpush1.msra.mxu0 0.0
    %2757 = vmatprep.subr.mxu0 0.0
    %2758 = vmatpush1.msra.mxu0 0.0
    %2759 = vmatprep.subr.mxu0 0.0
    %2760 = vmatpush1.msra.mxu0 0.0
    %2761 = vmatprep.subr.mxu0 0.0
    %2762 = vmatpush1.msra.mxu0 0.0
    %2763 = vmatprep.subr.mxu0 0.0
    %2764 = vmatpush1.msra.mxu0 0.0
    %2765 = vmatprep.subr.mxu0 0.0
    %2766 = vmatpush1.msra.mxu0 0.0
    %2767 = vmatprep.subr.mxu0 0.0
    %2768 = vmatpush1.msra.mxu0 0.0
    %2769 = vmatprep.subr.mxu0 0.0
    %2770 = vmatpush1.msra.mxu0 0.0
    %2771 = vmatprep.subr.mxu0 0.0
    %2772 = vmatpush1.msra.mxu0 0.0
    %2773 = vmatprep.subr.mxu0 0.0
    %2774 = vmatpush1.msra.mxu0 0.0
    %2775 = vmatprep.subr.mxu0 0.0
    %2776 = vmatpush1.msra.mxu0 0.0
    %2777 = vmatprep.subr.mxu0 0.0
    %2778 = vmatpush1.msra.mxu0 0.0
    %2779 = vmatprep.subr.mxu0 0.0
    %2780 = vmatpush1.msra.mxu0 0.0
    %2781 = vmatprep.subr.mxu0 0.0
    %2782 = vmatpush1.msra.mxu0 0.0
    %2783 = vmatprep.subr.mxu0 0.0
    %2784 = vmatpush1.msra.mxu0 0.0
    %2785 = vmatprep.subr.mxu0 0.0
    %2786 = vmatpush1.msra.mxu0 0.0
    %2787 = vmatprep.subr.mxu0 0.0
    %2788 = vmatpush1.msra.mxu0 0.0
    %2789 = vmatprep.subr.mxu0 0.0
    %2790 = vmatpush1.msra.mxu0 0.0
    %2791 = vmatprep.mubr.f32.mxu0 0.0
    %2792 = vmatmul.mubr.f32.gmra.mrb[0].mxu0 %v2725
    %v2793 = vpop.f32.mrb[0].mxu0
    %v2794 = vadd.f32 0.0, %v2793
    %v2795 = vpop.f32.mrb[0].mxu0
    %2796 = vdwg.mxu0
    %v2797 = vlaneseq
    %v2798 = vshrl.u32 %v2797, 7
    %v2799 = vsub.s32 0, %v2798
    %v2800 = vrot.slane %v83, %v2799
    %v2801 = vmul.f32 %v2794, %v2800
    %v2803 = vrot.slane %v2801, 2
    %v2805 = vmul.f32 %v2794, %v2803
    %v2806 = vlaneseq
    %v2807 = vshrl.u32 %v2806, 7
    %v2808 = vsub.s32 0, %v2807
    %v2809 = vrot.slane %v84, %v2808
    %v2810 = vsub.f32 %v2809, %v2805
    %v2812 = vunpack.c.l.s4 1966171168
    %v2813 = vunpack.c.0.s8 %v2812
    %v2814 = vlaneseq
    %v2815 = vshrl.u32 %v2814, 7
    %v2816 = vsub.s32 %v2813, %v2815
    %v2817 = vrot.slane %v2801, %v2816
    %v2818 = vcombine.high %v2817, %v2817
    %v2820 = vunpack.c.l.s4 1966171168
    %v2821 = vunpack.c.0.s8 %v2820
    %v2822 = vlaneseq
    %v2823 = vshrl.u32 %v2822, 7
    %v2824 = vsub.s32 %v2821, %v2823
    %v2825 = vrot.slane %v2817, %v2824
    %v2827 = vunpack.c.l.s4 1966171168
    %v2828 = vunpack.c.0.s8 %v2827
    %v2829 = vlaneseq
    %v2830 = vshrl.u32 %v2829, 7
    %v2831 = vsub.s32 %v2828, %v2830
    %v2832 = vrot.slane %v2818, %v2831
    %v2833 = vcombine.high %v2825, %v2825
    %v2834 = vcombine.high %v2832, %v2832
    %v2835 = vlaneseq
    %v2836 = vshrl.u32 %v2835, 7
    %v2837 = vsub.s32 0, %v2836
    %v2838 = vrot.slane %v2833, %v2837
    %v2839 = vlaneseq
    %v2840 = vshrl.u32 %v2839, 7
    %v2841 = vsub.s32 0, %v2840
    %v2842 = vrot.slane %v2834, %v2841
    %v2845 = vmul.f32 %v2551, %v2838
    %v2846 = vmul.f32 %v2552, %v2838
    %v2847 = vmul.f32 %v2553, %v2838
    %v2848 = vmul.f32 %v2554, %v2838
    %v2849 = vmul.f32 %v2555, %v2838
    %v2850 = vmul.f32 %v2556, %v2838
    %v2851 = vmul.f32 %v2557, %v2838
    %v2852 = vmul.f32 %v2558, %v2838
    %v2853 = vmul.f32 %v2559, %v2842
    %v2854 = vmul.f32 %v2560, %v2842
    %v2855 = vmul.f32 %v2561, %v2842
    %v2856 = vmul.f32 %v2562, %v2842
    %v2857 = vmul.f32 %v2563, %v2842
    %v2858 = vmul.f32 %v2564, %v2842
    %v2859 = vmul.f32 %v2565, %v2842
    %v2860 = vmul.f32 %v2566, %v2842
    %v2863 = vunpack.c.l.s4 1966171168
    %v2864 = vunpack.c.0.s8 %v2863
    %v2865 = vlaneseq
    %v2866 = vshrl.u32 %v2865, 7
    %v2867 = vsub.s32 %v2864, %v2866
    %v2868 = vrot.slane %v2810, %v2867
    %v2869 = vcombine.high %v2868, %v2868
    %v2871 = vunpack.c.l.s4 1966171168
    %v2872 = vunpack.c.0.s8 %v2871
    %v2873 = vlaneseq
    %v2874 = vshrl.u32 %v2873, 7
    %v2875 = vsub.s32 %v2872, %v2874
    %v2876 = vrot.slane %v2868, %v2875
    %v2878 = vunpack.c.l.s4 1966171168
    %v2879 = vunpack.c.0.s8 %v2878
    %v2880 = vlaneseq
    %v2881 = vshrl.u32 %v2880, 7
    %v2882 = vsub.s32 %v2879, %v2881
    %v2883 = vrot.slane %v2869, %v2882
    %v2884 = vlaneseq
    %v2885 = vshrl.u32 %v2884, 7
    %v2886 = vsub.s32 0, %v2885
    %v2887 = vrot.slane %v2876, %v2886
    %v2888 = vlaneseq
    %v2889 = vshrl.u32 %v2888, 7
    %v2890 = vsub.s32 0, %v2889
    %v2891 = vrot.slane %v2883, %v2890
    %v2894 = vadd.f32 %v2845, %v2887
    %v2895 = vadd.f32 %v2846, %v2887
    %v2896 = vadd.f32 %v2847, %v2887
    %v2897 = vadd.f32 %v2848, %v2887
    %v2898 = vadd.f32 %v2849, %v2887
    %v2899 = vadd.f32 %v2850, %v2887
    %v2900 = vadd.f32 %v2851, %v2887
    %v2901 = vadd.f32 %v2852, %v2887
    %v2902 = vadd.f32 %v2853, %v2891
    %v2903 = vadd.f32 %v2854, %v2891
    %v2904 = vadd.f32 %v2855, %v2891
    %v2905 = vadd.f32 %v2856, %v2891
    %v2906 = vadd.f32 %v2857, %v2891
    %v2907 = vadd.f32 %v2858, %v2891
    %v2908 = vadd.f32 %v2859, %v2891
    %v2909 = vadd.f32 %v2860, %v2891
    %v2910 = vmax.f32 %v2894, 0.0
    %v2911 = vmax.f32 %v2895, 0.0
    %v2912 = vmax.f32 %v2896, 0.0
    %v2913 = vmax.f32 %v2897, 0.0
    %v2914 = vmax.f32 %v2898, 0.0
    %v2915 = vmax.f32 %v2899, 0.0
    %v2916 = vmax.f32 %v2900, 0.0
    %v2917 = vmax.f32 %v2901, 0.0
    %v2918 = vmax.f32 %v2902, 0.0
    %v2919 = vmax.f32 %v2903, 0.0
    %v2920 = vmax.f32 %v2904, 0.0
    %v2921 = vmax.f32 %v2905, 0.0
    %v2922 = vmax.f32 %v2906, 0.0
    %v2923 = vmax.f32 %v2907, 0.0
    %v2924 = vmax.f32 %v2908, 0.0
    %v2925 = vmax.f32 %v2909, 0.0
    %2926 = vst [vmem:[#allocation2 + $0x18] sm:$0xff] %v2910
    %2927 = vst [vmem:[#allocation2 + $0x28] sm:$0xff] %v2911
    %2928 = vst [vmem:[#allocation2 + $0x38] sm:$0xff] %v2912
    %2929 = vst [vmem:[#allocation2 + $0x48] sm:$0xff] %v2913
    %2930 = vst [vmem:[#allocation2 + $0x58] sm:$0xff] %v2914
    %2931 = vst [vmem:[#allocation2 + $0x68] sm:$0xff] %v2915
    %2932 = vst [vmem:[#allocation2 + $0x78] sm:$0xff] %v2916
    %2933 = vst [vmem:[#allocation2 + $0x88] sm:$0xff] %v2917
    %2934 = vst [vmem:[%s517 + $0x18] sm:$0xff] %v2918
    %2935 = vst [vmem:[%s517 + $0x28] sm:$0xff] %v2919
    %2936 = vst [vmem:[%s517 + $0x38] sm:$0xff] %v2920
    %2937 = vst [vmem:[%s517 + $0x48] sm:$0xff] %v2921
    %2938 = vst [vmem:[%s517 + $0x58] sm:$0xff] %v2922
    %2939 = vst [vmem:[%s517 + $0x68] sm:$0xff] %v2923
    %2940 = vst [vmem:[%s517 + $0x78] sm:$0xff] %v2924
    %2941 = vst [vmem:[%s517 + $0x88] sm:$0xff] %v2925
    %v2942 = vld [vmem:[#allocation2 + $0x7] sm:$0xff]
    %v2943 = vld [vmem:[#allocation2 + $0xf] sm:$0xff]
    %v2944 = vld [vmem:[#allocation2 + $0x17] sm:$0xff]
    %v2945 = vld [vmem:[#allocation2 + $0x1f] sm:$0xff]
    %v2946 = vld [vmem:[#allocation2 + $0x27] sm:$0xff]
    %v2947 = vld [vmem:[#allocation2 + $0x2f] sm:$0xff]
    %v2948 = vld [vmem:[#allocation2 + $0x37] sm:$0xff]
    %v2949 = vld [vmem:[#allocation2 + $0x3f] sm:$0xff]
    %v2950 = vld [vmem:[#allocation2 + $0x47] sm:$0xff]
    %v2951 = vld [vmem:[#allocation2 + $0x4f] sm:$0xff]
    %v2952 = vld [vmem:[#allocation2 + $0x57] sm:$0xff]
    %v2953 = vld [vmem:[#allocation2 + $0x5f] sm:$0xff]
    %v2954 = vld [vmem:[#allocation2 + $0x67] sm:$0xff]
    %v2955 = vld [vmem:[#allocation2 + $0x6f] sm:$0xff]
    %v2956 = vld [vmem:[#allocation2 + $0x77] sm:$0xff]
    %v2957 = vld [vmem:[#allocation2 + $0x7f] sm:$0xff]
    %v2958 = vpack.c.bf16 %v2943, %v2942
    %v2959 = vpack.c.bf16 %v2945, %v2944
    %v2960 = vpack.c.bf16 %v2947, %v2946
    %v2961 = vpack.c.bf16 %v2949, %v2948
    %v2962 = vpack.c.bf16 %v2951, %v2950
    %v2963 = vpack.c.bf16 %v2953, %v2952
    %v2964 = vpack.c.bf16 %v2955, %v2954
    %v2965 = vpack.c.bf16 %v2957, %v2956
    %2966 = vst [vmem:[#allocation3] sm:$0xff] %v2958
    %2967 = vst [vmem:[#allocation3 + $0x48] sm:$0xff] %v2959
    %2968 = vst [vmem:[#allocation3 + $0x90] sm:$0xff] %v2960
    %2969 = vst [vmem:[#allocation3 + $0xd8] sm:$0xff] %v2961
    %2970 = vst [vmem:[#allocation3 + $0x120] sm:$0xff] %v2962
    %2971 = vst [vmem:[#allocation3 + $0x168] sm:$0xff] %v2963
    %2972 = vst [vmem:[#allocation3 + $0x1b0] sm:$0xff] %v2964
    %2973 = vst [vmem:[#allocation3 + $0x1f8] sm:$0xff] %v2965
    %v2974 = vld [vmem:[#allocation2 + $0x8] sm:$0xff]
    %v2975 = vld [vmem:[#allocation2 + $0x10] sm:$0xff]
    %v2976 = vld [vmem:[#allocation2 + $0x18] sm:$0xff]
    %v2977 = vld [vmem:[#allocation2 + $0x20] sm:$0xff]
    %v2978 = vld [vmem:[#allocation2 + $0x28] sm:$0xff]
    %v2979 = vld [vmem:[#allocation2 + $0x30] sm:$0xff]
    %v2980 = vld [vmem:[#allocation2 + $0x38] sm:$0xff]
    %v2981 = vld [vmem:[#allocation2 + $0x40] sm:$0xff]
    %v2982 = vld [vmem:[#allocation2 + $0x48] sm:$0xff]
    %v2983 = vld [vmem:[#allocation2 + $0x50] sm:$0xff]
    %v2984 = vld [vmem:[#allocation2 + $0x58] sm:$0xff]
    %v2985 = vld [vmem:[#allocation2 + $0x60] sm:$0xff]
    %v2986 = vld [vmem:[#allocation2 + $0x68] sm:$0xff]
    %v2987 = vld [vmem:[#allocation2 + $0x70] sm:$0xff]
    %v2988 = vld [vmem:[#allocation2 + $0x78] sm:$0xff]
    %v2989 = vld [vmem:[#allocation2 + $0x80] sm:$0xff]
    %v2990 = vpack.c.bf16 %v2975, %v2974
    %v2991 = vpack.c.bf16 %v2977, %v2976
    %v2992 = vpack.c.bf16 %v2979, %v2978
    %v2993 = vpack.c.bf16 %v2981, %v2980
    %v2994 = vpack.c.bf16 %v2983, %v2982
    %v2995 = vpack.c.bf16 %v2985, %v2984
    %v2996 = vpack.c.bf16 %v2987, %v2986
    %v2997 = vpack.c.bf16 %v2989, %v2988
    %2998 = vst [vmem:[#allocation3 + $0x8] sm:$0xff] %v2990
    %2999 = vst [vmem:[#allocation3 + $0x50] sm:$0xff] %v2991
    %3000 = vst [vmem:[#allocation3 + $0x98] sm:$0xff] %v2992
    %3001 = vst [vmem:[#allocation3 + $0xe0] sm:$0xff] %v2993
    %3002 = vst [vmem:[#allocation3 + $0x128] sm:$0xff] %v2994
    %3003 = vst [vmem:[#allocation3 + $0x170] sm:$0xff] %v2995
    %3004 = vst [vmem:[#allocation3 + $0x1b8] sm:$0xff] %v2996
    %3005 = vst [vmem:[#allocation3 + $0x200] sm:$0xff] %v2997
    %v3006 = vld [vmem:[#allocation2 + $0x9] sm:$0xff]
    %v3007 = vld [vmem:[#allocation2 + $0x11] sm:$0xff]
    %v3008 = vld [vmem:[#allocation2 + $0x19] sm:$0xff]
    %v3009 = vld [vmem:[#allocation2 + $0x21] sm:$0xff]
    %v3010 = vld [vmem:[#allocation2 + $0x29] sm:$0xff]
    %v3011 = vld [vmem:[#allocation2 + $0x31] sm:$0xff]
    %v3012 = vld [vmem:[#allocation2 + $0x39] sm:$0xff]
    %v3013 = vld [vmem:[#allocation2 + $0x41] sm:$0xff]
    %v3014 = vld [vmem:[#allocation2 + $0x49] sm:$0xff]
    %v3015 = vld [vmem:[#allocation2 + $0x51] sm:$0xff]
    %v3016 = vld [vmem:[#allocation2 + $0x59] sm:$0xff]
    %v3017 = vld [vmem:[#allocation2 + $0x61] sm:$0xff]
    %v3018 = vld [vmem:[#allocation2 + $0x69] sm:$0xff]
    %v3019 = vld [vmem:[#allocation2 + $0x71] sm:$0xff]
    %v3020 = vld [vmem:[#allocation2 + $0x79] sm:$0xff]
    %v3021 = vld [vmem:[#allocation2 + $0x81] sm:$0xff]
    %v3022 = vpack.c.bf16 %v3007, %v3006
    %v3023 = vpack.c.bf16 %v3009, %v3008
    %v3024 = vpack.c.bf16 %v3011, %v3010
    %v3025 = vpack.c.bf16 %v3013, %v3012
    %v3026 = vpack.c.bf16 %v3015, %v3014
    %v3027 = vpack.c.bf16 %v3017, %v3016
    %v3028 = vpack.c.bf16 %v3019, %v3018
    %v3029 = vpack.c.bf16 %v3021, %v3020
    %3030 = vst [vmem:[#allocation3 + $0x10] sm:$0xff] %v3022
    %3031 = vst [vmem:[#allocation3 + $0x58] sm:$0xff] %v3023
    %3032 = vst [vmem:[#allocation3 + $0xa0] sm:$0xff] %v3024
    %3033 = vst [vmem:[#allocation3 + $0xe8] sm:$0xff] %v3025
    %3034 = vst [vmem:[#allocation3 + $0x130] sm:$0xff] %v3026
    %3035 = vst [vmem:[#allocation3 + $0x178] sm:$0xff] %v3027
    %3036 = vst [vmem:[#allocation3 + $0x1c0] sm:$0xff] %v3028
    %3037 = vst [vmem:[#allocation3 + $0x208] sm:$0xff] %v3029
    %v3038 = vld [vmem:[#allocation2 + $0x17] sm:$0xff]
    %v3039 = vld [vmem:[#allocation2 + $0x1f] sm:$0xff]
    %v3040 = vld [vmem:[#allocation2 + $0x27] sm:$0xff]
    %v3041 = vld [vmem:[#allocation2 + $0x2f] sm:$0xff]
    %v3042 = vld [vmem:[#allocation2 + $0x37] sm:$0xff]
    %v3043 = vld [vmem:[#allocation2 + $0x3f] sm:$0xff]
    %v3044 = vld [vmem:[#allocation2 + $0x47] sm:$0xff]
    %v3045 = vld [vmem:[#allocation2 + $0x4f] sm:$0xff]
    %v3046 = vld [vmem:[#allocation2 + $0x57] sm:$0xff]
    %v3047 = vld [vmem:[#allocation2 + $0x5f] sm:$0xff]
    %v3048 = vld [vmem:[#allocation2 + $0x67] sm:$0xff]
    %v3049 = vld [vmem:[#allocation2 + $0x6f] sm:$0xff]
    %v3050 = vld [vmem:[#allocation2 + $0x77] sm:$0xff]
    %v3051 = vld [vmem:[#allocation2 + $0x7f] sm:$0xff]
    %v3052 = vld [vmem:[#allocation2 + $0x87] sm:$0xff]
    %v3053 = vld [vmem:[#allocation2 + $0x8f] sm:$0xff]
    %v3054 = vpack.c.bf16 %v3039, %v3038
    %v3055 = vpack.c.bf16 %v3041, %v3040
    %v3056 = vpack.c.bf16 %v3043, %v3042
    %v3057 = vpack.c.bf16 %v3045, %v3044
    %v3058 = vpack.c.bf16 %v3047, %v3046
    %v3059 = vpack.c.bf16 %v3049, %v3048
    %v3060 = vpack.c.bf16 %v3051, %v3050
    %v3061 = vpack.c.bf16 %v3053, %v3052
    %3062 = vst [vmem:[#allocation3 + $0x18] sm:$0xff] %v3054
    %3063 = vst [vmem:[#allocation3 + $0x60] sm:$0xff] %v3055
    %3064 = vst [vmem:[#allocation3 + $0xa8] sm:$0xff] %v3056
    %3065 = vst [vmem:[#allocation3 + $0xf0] sm:$0xff] %v3057
    %3066 = vst [vmem:[#allocation3 + $0x138] sm:$0xff] %v3058
    %3067 = vst [vmem:[#allocation3 + $0x180] sm:$0xff] %v3059
    %3068 = vst [vmem:[#allocation3 + $0x1c8] sm:$0xff] %v3060
    %3069 = vst [vmem:[#allocation3 + $0x210] sm:$0xff] %v3061
    %v3070 = vld [vmem:[#allocation2 + $0x18] sm:$0xff]
    %v3071 = vld [vmem:[#allocation2 + $0x20] sm:$0xff]
    %v3072 = vld [vmem:[#allocation2 + $0x28] sm:$0xff]
    %v3073 = vld [vmem:[#allocation2 + $0x30] sm:$0xff]
    %v3074 = vld [vmem:[#allocation2 + $0x38] sm:$0xff]
    %v3075 = vld [vmem:[#allocation2 + $0x40] sm:$0xff]
    %v3076 = vld [vmem:[#allocation2 + $0x48] sm:$0xff]
    %v3077 = vld [vmem:[#allocation2 + $0x50] sm:$0xff]
    %v3078 = vld [vmem:[#allocation2 + $0x58] sm:$0xff]
    %v3079 = vld [vmem:[#allocation2 + $0x60] sm:$0xff]
    %v3080 = vld [vmem:[#allocation2 + $0x68] sm:$0xff]
    %v3081 = vld [vmem:[#allocation2 + $0x70] sm:$0xff]
    %v3082 = vld [vmem:[#allocation2 + $0x78] sm:$0xff]
    %v3083 = vld [vmem:[#allocation2 + $0x80] sm:$0xff]
    %v3084 = vld [vmem:[#allocation2 + $0x88] sm:$0xff]
    %v3085 = vld [vmem:[#allocation2 + $0x90] sm:$0xff]
    %v3086 = vpack.c.bf16 %v3071, %v3070
    %v3087 = vpack.c.bf16 %v3073, %v3072
    %v3088 = vpack.c.bf16 %v3075, %v3074
    %v3089 = vpack.c.bf16 %v3077, %v3076
    %v3090 = vpack.c.bf16 %v3079, %v3078
    %v3091 = vpack.c.bf16 %v3081, %v3080
    %v3092 = vpack.c.bf16 %v3083, %v3082
    %v3093 = vpack.c.bf16 %v3085, %v3084
    %3094 = vst [vmem:[#allocation3 + $0x20] sm:$0xff] %v3086
    %3095 = vst [vmem:[#allocation3 + $0x68] sm:$0xff] %v3087
    %3096 = vst [vmem:[#allocation3 + $0xb0] sm:$0xff] %v3088
    %3097 = vst [vmem:[#allocation3 + $0xf8] sm:$0xff] %v3089
    %3098 = vst [vmem:[#allocation3 + $0x140] sm:$0xff] %v3090
    %3099 = vst [vmem:[#allocation3 + $0x188] sm:$0xff] %v3091
    %3100 = vst [vmem:[#allocation3 + $0x1d0] sm:$0xff] %v3092
    %3101 = vst [vmem:[#allocation3 + $0x218] sm:$0xff] %v3093
    %v3102 = vld [vmem:[#allocation2 + $0x19] sm:$0xff]
    %v3103 = vld [vmem:[#allocation2 + $0x21] sm:$0xff]
    %v3104 = vld [vmem:[#allocation2 + $0x29] sm:$0xff]
    %v3105 = vld [vmem:[#allocation2 + $0x31] sm:$0xff]
    %v3106 = vld [vmem:[#allocation2 + $0x39] sm:$0xff]
    %v3107 = vld [vmem:[#allocation2 + $0x41] sm:$0xff]
    %v3108 = vld [vmem:[#allocation2 + $0x49] sm:$0xff]
    %v3109 = vld [vmem:[#allocation2 + $0x51] sm:$0xff]
    %v3110 = vld [vmem:[#allocation2 + $0x59] sm:$0xff]
    %v3111 = vld [vmem:[#allocation2 + $0x61] sm:$0xff]
    %v3112 = vld [vmem:[#allocation2 + $0x69] sm:$0xff]
    %v3113 = vld [vmem:[#allocation2 + $0x71] sm:$0xff]
    %v3114 = vld [vmem:[#allocation2 + $0x79] sm:$0xff]
    %v3115 = vld [vmem:[#allocation2 + $0x81] sm:$0xff]
    %v3116 = vld [vmem:[#allocation2 + $0x89] sm:$0xff]
    %v3117 = vld [vmem:[#allocation2 + $0x91] sm:$0xff]
    %v3118 = vpack.c.bf16 %v3103, %v3102
    %v3119 = vpack.c.bf16 %v3105, %v3104
    %v3120 = vpack.c.bf16 %v3107, %v3106
    %v3121 = vpack.c.bf16 %v3109, %v3108
    %v3122 = vpack.c.bf16 %v3111, %v3110
    %v3123 = vpack.c.bf16 %v3113, %v3112
    %v3124 = vpack.c.bf16 %v3115, %v3114
    %v3125 = vpack.c.bf16 %v3117, %v3116
    %3126 = vst [vmem:[#allocation3 + $0x28] sm:$0xff] %v3118
    %3127 = vst [vmem:[#allocation3 + $0x70] sm:$0xff] %v3119
    %3128 = vst [vmem:[#allocation3 + $0xb8] sm:$0xff] %v3120
    %3129 = vst [vmem:[#allocation3 + $0x100] sm:$0xff] %v3121
    %3130 = vst [vmem:[#allocation3 + $0x148] sm:$0xff] %v3122
    %3131 = vst [vmem:[#allocation3 + $0x190] sm:$0xff] %v3123
    %3132 = vst [vmem:[#allocation3 + $0x1d8] sm:$0xff] %v3124
    %3133 = vst [vmem:[#allocation3 + $0x220] sm:$0xff] %v3125
    %v3134 = vld [vmem:[#allocation2 + $0x27] sm:$0xff]
    %v3135 = vld [vmem:[#allocation2 + $0x2f] sm:$0xff]
    %v3136 = vld [vmem:[#allocation2 + $0x37] sm:$0xff]
    %v3137 = vld [vmem:[#allocation2 + $0x3f] sm:$0xff]
    %v3138 = vld [vmem:[#allocation2 + $0x47] sm:$0xff]
    %v3139 = vld [vmem:[#allocation2 + $0x4f] sm:$0xff]
    %v3140 = vld [vmem:[#allocation2 + $0x57] sm:$0xff]
    %v3141 = vld [vmem:[#allocation2 + $0x5f] sm:$0xff]
    %v3142 = vld [vmem:[#allocation2 + $0x67] sm:$0xff]
    %v3143 = vld [vmem:[#allocation2 + $0x6f] sm:$0xff]
    %v3144 = vld [vmem:[#allocation2 + $0x77] sm:$0xff]
    %v3145 = vld [vmem:[#allocation2 + $0x7f] sm:$0xff]
    %v3146 = vld [vmem:[#allocation2 + $0x87] sm:$0xff]
    %v3147 = vld [vmem:[#allocation2 + $0x8f] sm:$0xff]
    %v3148 = vld [vmem:[#allocation2 + $0x97] sm:$0xff]
    %v3149 = vld [vmem:[#allocation2 + $0x9f] sm:$0xff]
    %v3150 = vpack.c.bf16 %v3135, %v3134
    %v3151 = vpack.c.bf16 %v3137, %v3136
    %v3152 = vpack.c.bf16 %v3139, %v3138
    %v3153 = vpack.c.bf16 %v3141, %v3140
    %v3154 = vpack.c.bf16 %v3143, %v3142
    %v3155 = vpack.c.bf16 %v3145, %v3144
    %v3156 = vpack.c.bf16 %v3147, %v3146
    %v3157 = vpack.c.bf16 %v3149, %v3148
    %3158 = vst [vmem:[#allocation3 + $0x30] sm:$0xff] %v3150
    %3159 = vst [vmem:[#allocation3 + $0x78] sm:$0xff] %v3151
    %3160 = vst [vmem:[#allocation3 + $0xc0] sm:$0xff] %v3152
    %3161 = vst [vmem:[#allocation3 + $0x108] sm:$0xff] %v3153
    %3162 = vst [vmem:[#allocation3 + $0x150] sm:$0xff] %v3154
    %3163 = vst [vmem:[#allocation3 + $0x198] sm:$0xff] %v3155
    %3164 = vst [vmem:[#allocation3 + $0x1e0] sm:$0xff] %v3156
    %3165 = vst [vmem:[#allocation3 + $0x228] sm:$0xff] %v3157
    %v3166 = vld [vmem:[#allocation2 + $0x28] sm:$0xff]
    %v3167 = vld [vmem:[#allocation2 + $0x30] sm:$0xff]
    %v3168 = vld [vmem:[#allocation2 + $0x38] sm:$0xff]
    %v3169 = vld [vmem:[#allocation2 + $0x40] sm:$0xff]
    %v3170 = vld [vmem:[#allocation2 + $0x48] sm:$0xff]
    %v3171 = vld [vmem:[#allocation2 + $0x50] sm:$0xff]
    %v3172 = vld [vmem:[#allocation2 + $0x58] sm:$0xff]
    %v3173 = vld [vmem:[#allocation2 + $0x60] sm:$0xff]
    %v3174 = vld [vmem:[#allocation2 + $0x68] sm:$0xff]
    %v3175 = vld [vmem:[#allocation2 + $0x70] sm:$0xff]
    %v3176 = vld [vmem:[#allocation2 + $0x78] sm:$0xff]
    %v3177 = vld [vmem:[#allocation2 + $0x80] sm:$0xff]
    %v3178 = vld [vmem:[#allocation2 + $0x88] sm:$0xff]
    %v3179 = vld [vmem:[#allocation2 + $0x90] sm:$0xff]
    %v3180 = vld [vmem:[#allocation2 + $0x98] sm:$0xff]
    %v3181 = vld [vmem:[#allocation2 + $0xa0] sm:$0xff]
    %v3182 = vpack.c.bf16 %v3167, %v3166
    %v3183 = vpack.c.bf16 %v3169, %v3168
    %v3184 = vpack.c.bf16 %v3171, %v3170
    %v3185 = vpack.c.bf16 %v3173, %v3172
    %v3186 = vpack.c.bf16 %v3175, %v3174
    %v3187 = vpack.c.bf16 %v3177, %v3176
    %v3188 = vpack.c.bf16 %v3179, %v3178
    %v3189 = vpack.c.bf16 %v3181, %v3180
    %3190 = vst [vmem:[#allocation3 + $0x38] sm:$0xff] %v3182
    %3191 = vst [vmem:[#allocation3 + $0x80] sm:$0xff] %v3183
    %3192 = vst [vmem:[#allocation3 + $0xc8] sm:$0xff] %v3184
    %3193 = vst [vmem:[#allocation3 + $0x110] sm:$0xff] %v3185
    %3194 = vst [vmem:[#allocation3 + $0x158] sm:$0xff] %v3186
    %3195 = vst [vmem:[#allocation3 + $0x1a0] sm:$0xff] %v3187
    %3196 = vst [vmem:[#allocation3 + $0x1e8] sm:$0xff] %v3188
    %3197 = vst [vmem:[#allocation3 + $0x230] sm:$0xff] %v3189
    %v3198 = vld [vmem:[#allocation2 + $0x29] sm:$0xff]
    %v3199 = vld [vmem:[#allocation2 + $0x31] sm:$0xff]
    %v3200 = vld [vmem:[#allocation2 + $0x39] sm:$0xff]
    %v3201 = vld [vmem:[#allocation2 + $0x41] sm:$0xff]
    %v3202 = vld [vmem:[#allocation2 + $0x49] sm:$0xff]
    %v3203 = vld [vmem:[#allocation2 + $0x51] sm:$0xff]
    %v3204 = vld [vmem:[#allocation2 + $0x59] sm:$0xff]
    %v3205 = vld [vmem:[#allocation2 + $0x61] sm:$0xff]
    %v3206 = vld [vmem:[#allocation2 + $0x69] sm:$0xff]
    %v3207 = vld [vmem:[#allocation2 + $0x71] sm:$0xff]
    %v3208 = vld [vmem:[#allocation2 + $0x79] sm:$0xff]
    %v3209 = vld [vmem:[#allocation2 + $0x81] sm:$0xff]
    %v3210 = vld [vmem:[#allocation2 + $0x89] sm:$0xff]
    %v3211 = vld [vmem:[#allocation2 + $0x91] sm:$0xff]
    %v3212 = vld [vmem:[#allocation2 + $0x99] sm:$0xff]
    %v3213 = vld [vmem:[#allocation2 + $0xa1] sm:$0xff]
    %v3214 = vpack.c.bf16 %v3199, %v3198
    %v3215 = vpack.c.bf16 %v3201, %v3200
    %v3216 = vpack.c.bf16 %v3203, %v3202
    %v3217 = vpack.c.bf16 %v3205, %v3204
    %v3218 = vpack.c.bf16 %v3207, %v3206
    %v3219 = vpack.c.bf16 %v3209, %v3208
    %v3220 = vpack.c.bf16 %v3211, %v3210
    %v3221 = vpack.c.bf16 %v3213, %v3212
    %3222 = vst [vmem:[#allocation3 + $0x40] sm:$0xff] %v3214
    %3223 = vst [vmem:[#allocation3 + $0x88] sm:$0xff] %v3215
    %3224 = vst [vmem:[#allocation3 + $0xd0] sm:$0xff] %v3216
    %3225 = vst [vmem:[#allocation3 + $0x118] sm:$0xff] %v3217
    %3226 = vst [vmem:[#allocation3 + $0x160] sm:$0xff] %v3218
    %3227 = vst [vmem:[#allocation3 + $0x1a8] sm:$0xff] %v3219
    %3228 = vst [vmem:[#allocation3 + $0x1f0] sm:$0xff] %v3220
    %3229 = vst [vmem:[#allocation3 + $0x238] sm:$0xff] %v3221
    %v3230 = vld [vmem:[%s517 + $0x7] sm:$0xff]
    %v3231 = vld [vmem:[%s517 + $0xf] sm:$0xff]
    %v3232 = vld [vmem:[%s517 + $0x17] sm:$0xff]
    %v3233 = vld [vmem:[%s517 + $0x1f] sm:$0xff]
    %v3234 = vld [vmem:[%s517 + $0x27] sm:$0xff]
    %v3235 = vld [vmem:[%s517 + $0x2f] sm:$0xff]
    %v3236 = vld [vmem:[%s517 + $0x37] sm:$0xff]
    %v3237 = vld [vmem:[%s517 + $0x3f] sm:$0xff]
    %v3238 = vld [vmem:[%s517 + $0x47] sm:$0xff]
    %v3239 = vld [vmem:[%s517 + $0x4f] sm:$0xff]
    %v3240 = vld [vmem:[%s517 + $0x57] sm:$0xff]
    %v3241 = vld [vmem:[%s517 + $0x5f] sm:$0xff]
    %v3242 = vld [vmem:[%s517 + $0x67] sm:$0xff]
    %v3243 = vld [vmem:[%s517 + $0x6f] sm:$0xff]
    %v3244 = vld [vmem:[%s517 + $0x77] sm:$0xff]
    %v3245 = vld [vmem:[%s517 + $0x7f] sm:$0xff]
    %v3246 = vpack.c.bf16 %v3231, %v3230
    %v3247 = vpack.c.bf16 %v3233, %v3232
    %v3248 = vpack.c.bf16 %v3235, %v3234
    %v3249 = vpack.c.bf16 %v3237, %v3236
    %v3250 = vpack.c.bf16 %v3239, %v3238
    %v3251 = vpack.c.bf16 %v3241, %v3240
    %v3252 = vpack.c.bf16 %v3243, %v3242
    %v3253 = vpack.c.bf16 %v3245, %v3244
    %3254 = vst [vmem:[#allocation3 + $0x240] sm:$0xff] %v3246
    %3255 = vst [vmem:[#allocation3 + $0x288] sm:$0xff] %v3247
    %3256 = vst [vmem:[#allocation3 + $0x2d0] sm:$0xff] %v3248
    %3257 = vst [vmem:[#allocation3 + $0x318] sm:$0xff] %v3249
    %3258 = vst [vmem:[#allocation3 + $0x360] sm:$0xff] %v3250
    %3259 = vst [vmem:[#allocation3 + $0x3a8] sm:$0xff] %v3251
    %3260 = vst [vmem:[#allocation3 + $0x3f0] sm:$0xff] %v3252
    %3261 = vst [vmem:[#allocation3 + $0x438] sm:$0xff] %v3253
    %v3262 = vld [vmem:[%s517 + $0x8] sm:$0xff]
    %v3263 = vld [vmem:[%s517 + $0x10] sm:$0xff]
    %v3264 = vld [vmem:[%s517 + $0x18] sm:$0xff]
    %v3265 = vld [vmem:[%s517 + $0x20] sm:$0xff]
    %v3266 = vld [vmem:[%s517 + $0x28] sm:$0xff]
    %v3267 = vld [vmem:[%s517 + $0x30] sm:$0xff]
    %v3268 = vld [vmem:[%s517 + $0x38] sm:$0xff]
    %v3269 = vld [vmem:[%s517 + $0x40] sm:$0xff]
    %v3270 = vld [vmem:[%s517 + $0x48] sm:$0xff]
    %v3271 = vld [vmem:[%s517 + $0x50] sm:$0xff]
    %v3272 = vld [vmem:[%s517 + $0x58] sm:$0xff]
    %v3273 = vld [vmem:[%s517 + $0x60] sm:$0xff]
    %v3274 = vld [vmem:[%s517 + $0x68] sm:$0xff]
    %v3275 = vld [vmem:[%s517 + $0x70] sm:$0xff]
    %v3276 = vld [vmem:[%s517 + $0x78] sm:$0xff]
    %v3277 = vld [vmem:[%s517 + $0x80] sm:$0xff]
    %v3278 = vpack.c.bf16 %v3263, %v3262
    %v3279 = vpack.c.bf16 %v3265, %v3264
    %v3280 = vpack.c.bf16 %v3267, %v3266
    %v3281 = vpack.c.bf16 %v3269, %v3268
    %v3282 = vpack.c.bf16 %v3271, %v3270
    %v3283 = vpack.c.bf16 %v3273, %v3272
    %v3284 = vpack.c.bf16 %v3275, %v3274
    %v3285 = vpack.c.bf16 %v3277, %v3276
    %3286 = vst [vmem:[#allocation3 + $0x248] sm:$0xff] %v3278
    %3287 = vst [vmem:[#allocation3 + $0x290] sm:$0xff] %v3279
    %3288 = vst [vmem:[#allocation3 + $0x2d8] sm:$0xff] %v3280
    %3289 = vst [vmem:[#allocation3 + $0x320] sm:$0xff] %v3281
    %3290 = vst [vmem:[#allocation3 + $0x368] sm:$0xff] %v3282
    %3291 = vst [vmem:[#allocation3 + $0x3b0] sm:$0xff] %v3283
    %3292 = vst [vmem:[#allocation3 + $0x3f8] sm:$0xff] %v3284
    %3293 = vst [vmem:[#allocation3 + $0x440] sm:$0xff] %v3285
    %v3294 = vld [vmem:[%s517 + $0x9] sm:$0xff]
    %v3295 = vld [vmem:[%s517 + $0x11] sm:$0xff]
    %v3296 = vld [vmem:[%s517 + $0x19] sm:$0xff]
    %v3297 = vld [vmem:[%s517 + $0x21] sm:$0xff]
    %v3298 = vld [vmem:[%s517 + $0x29] sm:$0xff]
    %v3299 = vld [vmem:[%s517 + $0x31] sm:$0xff]
    %v3300 = vld [vmem:[%s517 + $0x39] sm:$0xff]
    %v3301 = vld [vmem:[%s517 + $0x41] sm:$0xff]
    %v3302 = vld [vmem:[%s517 + $0x49] sm:$0xff]
    %v3303 = vld [vmem:[%s517 + $0x51] sm:$0xff]
    %v3304 = vld [vmem:[%s517 + $0x59] sm:$0xff]
    %v3305 = vld [vmem:[%s517 + $0x61] sm:$0xff]
    %v3306 = vld [vmem:[%s517 + $0x69] sm:$0xff]
    %v3307 = vld [vmem:[%s517 + $0x71] sm:$0xff]
    %v3308 = vld [vmem:[%s517 + $0x79] sm:$0xff]
    %v3309 = vld [vmem:[%s517 + $0x81] sm:$0xff]
    %v3310 = vpack.c.bf16 %v3295, %v3294
    %v3311 = vpack.c.bf16 %v3297, %v3296
    %v3312 = vpack.c.bf16 %v3299, %v3298
    %v3313 = vpack.c.bf16 %v3301, %v3300
    %v3314 = vpack.c.bf16 %v3303, %v3302
    %v3315 = vpack.c.bf16 %v3305, %v3304
    %v3316 = vpack.c.bf16 %v3307, %v3306
    %v3317 = vpack.c.bf16 %v3309, %v3308
    %3318 = vst [vmem:[#allocation3 + $0x250] sm:$0xff] %v3310
    %3319 = vst [vmem:[#allocation3 + $0x298] sm:$0xff] %v3311
    %3320 = vst [vmem:[#allocation3 + $0x2e0] sm:$0xff] %v3312
    %3321 = vst [vmem:[#allocation3 + $0x328] sm:$0xff] %v3313
    %3322 = vst [vmem:[#allocation3 + $0x370] sm:$0xff] %v3314
    %3323 = vst [vmem:[#allocation3 + $0x3b8] sm:$0xff] %v3315
    %3324 = vst [vmem:[#allocation3 + $0x400] sm:$0xff] %v3316
    %3325 = vst [vmem:[#allocation3 + $0x448] sm:$0xff] %v3317
    %v3326 = vld [vmem:[%s517 + $0x17] sm:$0xff]
    %v3327 = vld [vmem:[%s517 + $0x1f] sm:$0xff]
    %v3328 = vld [vmem:[%s517 + $0x27] sm:$0xff]
    %v3329 = vld [vmem:[%s517 + $0x2f] sm:$0xff]
    %v3330 = vld [vmem:[%s517 + $0x37] sm:$0xff]
    %v3331 = vld [vmem:[%s517 + $0x3f] sm:$0xff]
    %v3332 = vld [vmem:[%s517 + $0x47] sm:$0xff]
    %v3333 = vld [vmem:[%s517 + $0x4f] sm:$0xff]
    %v3334 = vld [vmem:[%s517 + $0x57] sm:$0xff]
    %v3335 = vld [vmem:[%s517 + $0x5f] sm:$0xff]
    %v3336 = vld [vmem:[%s517 + $0x67] sm:$0xff]
    %v3337 = vld [vmem:[%s517 + $0x6f] sm:$0xff]
    %v3338 = vld [vmem:[%s517 + $0x77] sm:$0xff]
    %v3339 = vld [vmem:[%s517 + $0x7f] sm:$0xff]
    %v3340 = vld [vmem:[%s517 + $0x87] sm:$0xff]
    %v3341 = vld [vmem:[%s517 + $0x8f] sm:$0xff]
    %v3342 = vpack.c.bf16 %v3327, %v3326
    %v3343 = vpack.c.bf16 %v3329, %v3328
    %v3344 = vpack.c.bf16 %v3331, %v3330
    %v3345 = vpack.c.bf16 %v3333, %v3332
    %v3346 = vpack.c.bf16 %v3335, %v3334
    %v3347 = vpack.c.bf16 %v3337, %v3336
    %v3348 = vpack.c.bf16 %v3339, %v3338
    %v3349 = vpack.c.bf16 %v3341, %v3340
    %3350 = vst [vmem:[#allocation3 + $0x258] sm:$0xff] %v3342
    %3351 = vst [vmem:[#allocation3 + $0x2a0] sm:$0xff] %v3343
    %3352 = vst [vmem:[#allocation3 + $0x2e8] sm:$0xff] %v3344
    %3353 = vst [vmem:[#allocation3 + $0x330] sm:$0xff] %v3345
    %3354 = vst [vmem:[#allocation3 + $0x378] sm:$0xff] %v3346
    %3355 = vst [vmem:[#allocation3 + $0x3c0] sm:$0xff] %v3347
    %3356 = vst [vmem:[#allocation3 + $0x408] sm:$0xff] %v3348
    %3357 = vst [vmem:[#allocation3 + $0x450] sm:$0xff] %v3349
    %v3358 = vld [vmem:[%s517 + $0x18] sm:$0xff]
    %v3359 = vld [vmem:[%s517 + $0x20] sm:$0xff]
    %v3360 = vld [vmem:[%s517 + $0x28] sm:$0xff]
    %v3361 = vld [vmem:[%s517 + $0x30] sm:$0xff]
    %v3362 = vld [vmem:[%s517 + $0x38] sm:$0xff]
    %v3363 = vld [vmem:[%s517 + $0x40] sm:$0xff]
    %v3364 = vld [vmem:[%s517 + $0x48] sm:$0xff]
    %v3365 = vld [vmem:[%s517 + $0x50] sm:$0xff]
    %v3366 = vld [vmem:[%s517 + $0x58] sm:$0xff]
    %v3367 = vld [vmem:[%s517 + $0x60] sm:$0xff]
    %v3368 = vld [vmem:[%s517 + $0x68] sm:$0xff]
    %v3369 = vld [vmem:[%s517 + $0x70] sm:$0xff]
    %v3370 = vld [vmem:[%s517 + $0x78] sm:$0xff]
    %v3371 = vld [vmem:[%s517 + $0x80] sm:$0xff]
    %v3372 = vld [vmem:[%s517 + $0x88] sm:$0xff]
    %v3373 = vld [vmem:[%s517 + $0x90] sm:$0xff]
    %v3374 = vpack.c.bf16 %v3359, %v3358
    %v3375 = vpack.c.bf16 %v3361, %v3360
    %v3376 = vpack.c.bf16 %v3363, %v3362
    %v3377 = vpack.c.bf16 %v3365, %v3364
    %v3378 = vpack.c.bf16 %v3367, %v3366
    %v3379 = vpack.c.bf16 %v3369, %v3368
    %v3380 = vpack.c.bf16 %v3371, %v3370
    %v3381 = vpack.c.bf16 %v3373, %v3372
    %3382 = vst [vmem:[#allocation3 + $0x260] sm:$0xff] %v3374
    %3383 = vst [vmem:[#allocation3 + $0x2a8] sm:$0xff] %v3375
    %3384 = vst [vmem:[#allocation3 + $0x2f0] sm:$0xff] %v3376
    %3385 = vst [vmem:[#allocation3 + $0x338] sm:$0xff] %v3377
    %3386 = vst [vmem:[#allocation3 + $0x380] sm:$0xff] %v3378
    %3387 = vst [vmem:[#allocation3 + $0x3c8] sm:$0xff] %v3379
    %3388 = vst [vmem:[#allocation3 + $0x410] sm:$0xff] %v3380
    %3389 = vst [vmem:[#allocation3 + $0x458] sm:$0xff] %v3381
    %v3390 = vld [vmem:[%s517 + $0x19] sm:$0xff]
    %v3391 = vld [vmem:[%s517 + $0x21] sm:$0xff]
    %v3392 = vld [vmem:[%s517 + $0x29] sm:$0xff]
    %v3393 = vld [vmem:[%s517 + $0x31] sm:$0xff]
    %v3394 = vld [vmem:[%s517 + $0x39] sm:$0xff]
    %v3395 = vld [vmem:[%s517 + $0x41] sm:$0xff]
    %v3396 = vld [vmem:[%s517 + $0x49] sm:$0xff]
    %v3397 = vld [vmem:[%s517 + $0x51] sm:$0xff]
    %v3398 = vld [vmem:[%s517 + $0x59] sm:$0xff]
    %v3399 = vld [vmem:[%s517 + $0x61] sm:$0xff]
    %v3400 = vld [vmem:[%s517 + $0x69] sm:$0xff]
    %v3401 = vld [vmem:[%s517 + $0x71] sm:$0xff]
    %v3402 = vld [vmem:[%s517 + $0x79] sm:$0xff]
    %v3403 = vld [vmem:[%s517 + $0x81] sm:$0xff]
    %v3404 = vld [vmem:[%s517 + $0x89] sm:$0xff]
    %v3405 = vld [vmem:[%s517 + $0x91] sm:$0xff]
    %v3406 = vpack.c.bf16 %v3391, %v3390
    %v3407 = vpack.c.bf16 %v3393, %v3392
    %v3408 = vpack.c.bf16 %v3395, %v3394
    %v3409 = vpack.c.bf16 %v3397, %v3396
    %v3410 = vpack.c.bf16 %v3399, %v3398
    %v3411 = vpack.c.bf16 %v3401, %v3400
    %v3412 = vpack.c.bf16 %v3403, %v3402
    %v3413 = vpack.c.bf16 %v3405, %v3404
    %3414 = vst [vmem:[#allocation3 + $0x268] sm:$0xff] %v3406
    %3415 = vst [vmem:[#allocation3 + $0x2b0] sm:$0xff] %v3407
    %3416 = vst [vmem:[#allocation3 + $0x2f8] sm:$0xff] %v3408
    %3417 = vst [vmem:[#allocation3 + $0x340] sm:$0xff] %v3409
    %3418 = vst [vmem:[#allocation3 + $0x388] sm:$0xff] %v3410
    %3419 = vst [vmem:[#allocation3 + $0x3d0] sm:$0xff] %v3411
    %3420 = vst [vmem:[#allocation3 + $0x418] sm:$0xff] %v3412
    %3421 = vst [vmem:[#allocation3 + $0x460] sm:$0xff] %v3413
    %v3422 = vld [vmem:[%s517 + $0x27] sm:$0xff]
    %v3423 = vld [vmem:[%s517 + $0x2f] sm:$0xff]
    %v3424 = vld [vmem:[%s517 + $0x37] sm:$0xff]
    %v3425 = vld [vmem:[%s517 + $0x3f] sm:$0xff]
    %v3426 = vld [vmem:[%s517 + $0x47] sm:$0xff]
    %v3427 = vld [vmem:[%s517 + $0x4f] sm:$0xff]
    %v3428 = vld [vmem:[%s517 + $0x57] sm:$0xff]
    %v3429 = vld [vmem:[%s517 + $0x5f] sm:$0xff]
    %v3430 = vld [vmem:[%s517 + $0x67] sm:$0xff]
    %v3431 = vld [vmem:[%s517 + $0x6f] sm:$0xff]
    %v3432 = vld [vmem:[%s517 + $0x77] sm:$0xff]
    %v3433 = vld [vmem:[%s517 + $0x7f] sm:$0xff]
    %v3434 = vld [vmem:[%s517 + $0x87] sm:$0xff]
    %v3435 = vld [vmem:[%s517 + $0x8f] sm:$0xff]
    %v3436 = vld [vmem:[%s517 + $0x97] sm:$0xff]
    %v3437 = vld [vmem:[%s517 + $0x9f] sm:$0xff]
    %v3438 = vpack.c.bf16 %v3423, %v3422
    %v3439 = vpack.c.bf16 %v3425, %v3424
    %v3440 = vpack.c.bf16 %v3427, %v3426
    %v3441 = vpack.c.bf16 %v3429, %v3428
    %v3442 = vpack.c.bf16 %v3431, %v3430
    %v3443 = vpack.c.bf16 %v3433, %v3432
    %v3444 = vpack.c.bf16 %v3435, %v3434
    %v3445 = vpack.c.bf16 %v3437, %v3436
    %3446 = vst [vmem:[#allocation3 + $0x270] sm:$0xff] %v3438
    %3447 = vst [vmem:[#allocation3 + $0x2b8] sm:$0xff] %v3439
    %3448 = vst [vmem:[#allocation3 + $0x300] sm:$0xff] %v3440
    %3449 = vst [vmem:[#allocation3 + $0x348] sm:$0xff] %v3441
    %3450 = vst [vmem:[#allocation3 + $0x390] sm:$0xff] %v3442
    %3451 = vst [vmem:[#allocation3 + $0x3d8] sm:$0xff] %v3443
    %3452 = vst [vmem:[#allocation3 + $0x420] sm:$0xff] %v3444
    %3453 = vst [vmem:[#allocation3 + $0x468] sm:$0xff] %v3445
    %v3454 = vld [vmem:[%s517 + $0x28] sm:$0xff]
    %v3455 = vld [vmem:[%s517 + $0x30] sm:$0xff]
    %v3456 = vld [vmem:[%s517 + $0x38] sm:$0xff]
    %v3457 = vld [vmem:[%s517 + $0x40] sm:$0xff]
    %v3458 = vld [vmem:[%s517 + $0x48] sm:$0xff]
    %v3459 = vld [vmem:[%s517 + $0x50] sm:$0xff]
    %v3460 = vld [vmem:[%s517 + $0x58] sm:$0xff]
    %v3461 = vld [vmem:[%s517 + $0x60] sm:$0xff]
    %v3462 = vld [vmem:[%s517 + $0x68] sm:$0xff]
    %v3463 = vld [vmem:[%s517 + $0x70] sm:$0xff]
    %v3464 = vld [vmem:[%s517 + $0x78] sm:$0xff]
    %v3465 = vld [vmem:[%s517 + $0x80] sm:$0xff]
    %v3466 = vld [vmem:[%s517 + $0x88] sm:$0xff]
    %v3467 = vld [vmem:[%s517 + $0x90] sm:$0xff]
    %v3468 = vld [vmem:[%s517 + $0x98] sm:$0xff]
    %v3469 = vld [vmem:[%s517 + $0xa0] sm:$0xff]
    %v3470 = vpack.c.bf16 %v3455, %v3454
    %v3471 = vpack.c.bf16 %v3457, %v3456
    %v3472 = vpack.c.bf16 %v3459, %v3458
    %v3473 = vpack.c.bf16 %v3461, %v3460
    %v3474 = vpack.c.bf16 %v3463, %v3462
    %v3475 = vpack.c.bf16 %v3465, %v3464
    %v3476 = vpack.c.bf16 %v3467, %v3466
    %v3477 = vpack.c.bf16 %v3469, %v3468
    %3478 = vst [vmem:[#allocation3 + $0x278] sm:$0xff] %v3470
    %3479 = vst [vmem:[#allocation3 + $0x2c0] sm:$0xff] %v3471
    %3480 = vst [vmem:[#allocation3 + $0x308] sm:$0xff] %v3472
    %3481 = vst [vmem:[#allocation3 + $0x350] sm:$0xff] %v3473
    %3482 = vst [vmem:[#allocation3 + $0x398] sm:$0xff] %v3474
    %3483 = vst [vmem:[#allocation3 + $0x3e0] sm:$0xff] %v3475
    %3484 = vst [vmem:[#allocation3 + $0x428] sm:$0xff] %v3476
    %3485 = vst [vmem:[#allocation3 + $0x470] sm:$0xff] %v3477
    %v3486 = vld [vmem:[%s517 + $0x29] sm:$0xff]
    %v3487 = vld [vmem:[%s517 + $0x31] sm:$0xff]
    %v3488 = vld [vmem:[%s517 + $0x39] sm:$0xff]
    %v3489 = vld [vmem:[%s517 + $0x41] sm:$0xff]
    %v3490 = vld [vmem:[%s517 + $0x49] sm:$0xff]
    %v3491 = vld [vmem:[%s517 + $0x51] sm:$0xff]
    %v3492 = vld [vmem:[%s517 + $0x59] sm:$0xff]
    %v3493 = vld [vmem:[%s517 + $0x61] sm:$0xff]
    %v3494 = vld [vmem:[%s517 + $0x69] sm:$0xff]
    %v3495 = vld [vmem:[%s517 + $0x71] sm:$0xff]
    %v3496 = vld [vmem:[%s517 + $0x79] sm:$0xff]
    %v3497 = vld [vmem:[%s517 + $0x81] sm:$0xff]
    %v3498 = vld [vmem:[%s517 + $0x89] sm:$0xff]
    %v3499 = vld [vmem:[%s517 + $0x91] sm:$0xff]
    %v3500 = vld [vmem:[%s517 + $0x99] sm:$0xff]
    %v3501 = vld [vmem:[%s517 + $0xa1] sm:$0xff]
    %v3502 = vpack.c.bf16 %v3487, %v3486
    %v3503 = vpack.c.bf16 %v3489, %v3488
    %v3504 = vpack.c.bf16 %v3491, %v3490
    %v3505 = vpack.c.bf16 %v3493, %v3492
    %v3506 = vpack.c.bf16 %v3495, %v3494
    %v3507 = vpack.c.bf16 %v3497, %v3496
    %v3508 = vpack.c.bf16 %v3499, %v3498
    %v3509 = vpack.c.bf16 %v3501, %v3500
    %3510 = vst [vmem:[#allocation3 + $0x280] sm:$0xff] %v3502
    %3511 = vst [vmem:[#allocation3 + $0x2c8] sm:$0xff] %v3503
    %3512 = vst [vmem:[#allocation3 + $0x310] sm:$0xff] %v3504
    %3513 = vst [vmem:[#allocation3 + $0x358] sm:$0xff] %v3505
    %3514 = vst [vmem:[#allocation3 + $0x3a0] sm:$0xff] %v3506
    %3515 = vst [vmem:[#allocation3 + $0x3e8] sm:$0xff] %v3507
    %3516 = vst [vmem:[#allocation3 + $0x430] sm:$0xff] %v3508
    %3517 = vst [vmem:[#allocation3 + $0x478] sm:$0xff] %v3509
    %v3518 = vld [vmem:[#allocation3] sm:$0xff]
    %v3519 = vld [vmem:[#allocation3 + $0x8] sm:$0xff]
    %v3520 = vld [vmem:[#allocation3 + $0x10] sm:$0xff]
    %v3521 = vld [vmem:[#allocation3 + $0x18] sm:$0xff]
    %v3522 = vld [vmem:[#allocation3 + $0x20] sm:$0xff]
    %v3523 = vld [vmem:[#allocation3 + $0x28] sm:$0xff]
    %v3524 = vld [vmem:[#allocation3 + $0x30] sm:$0xff]
    %v3525 = vld [vmem:[#allocation3 + $0x38] sm:$0xff]
    %v3526 = vld [vmem:[#allocation3 + $0x40] sm:$0xff]
    %v3527 = vld [vmem:[#allocation3 + $0x48] sm:$0xff]
    %v3528 = vld [vmem:[#allocation3 + $0x50] sm:$0xff]
    %v3529 = vld [vmem:[#allocation3 + $0x58] sm:$0xff]
    %v3530 = vld [vmem:[#allocation3 + $0x60] sm:$0xff]
    %v3531 = vld [vmem:[#allocation3 + $0x68] sm:$0xff]
    %v3532 = vld [vmem:[#allocation3 + $0x70] sm:$0xff]
    %v3533 = vld [vmem:[#allocation3 + $0x78] sm:$0xff]
    %v3534 = vld [vmem:[#allocation3 + $0x80] sm:$0xff]
    %v3535 = vld [vmem:[#allocation3 + $0x88] sm:$0xff]
    %v3536 = vld [vmem:[#allocation3 + $0x90] sm:$0xff]
    %v3537 = vld [vmem:[#allocation3 + $0x98] sm:$0xff]
    %v3538 = vld [vmem:[#allocation3 + $0xa0] sm:$0xff]
    %v3539 = vld [vmem:[#allocation3 + $0xa8] sm:$0xff]
    %v3540 = vld [vmem:[#allocation3 + $0xb0] sm:$0xff]
    %v3541 = vld [vmem:[#allocation3 + $0xb8] sm:$0xff]
    %v3542 = vld [vmem:[#allocation3 + $0xc0] sm:$0xff]
    %v3543 = vld [vmem:[#allocation3 + $0xc8] sm:$0xff]
    %v3544 = vld [vmem:[#allocation3 + $0xd0] sm:$0xff]
    %v3545 = vld [vmem:[#allocation3 + $0xd8] sm:$0xff]
    %v3546 = vld [vmem:[#allocation3 + $0xe0] sm:$0xff]
    %v3547 = vld [vmem:[#allocation3 + $0xe8] sm:$0xff]
    %v3548 = vld [vmem:[#allocation3 + $0xf0] sm:$0xff]
    %v3549 = vld [vmem:[#allocation3 + $0xf8] sm:$0xff]
    %v3550 = vld [vmem:[#allocation3 + $0x100] sm:$0xff]
    %v3551 = vld [vmem:[#allocation3 + $0x108] sm:$0xff]
    %v3552 = vld [vmem:[#allocation3 + $0x110] sm:$0xff]
    %v3553 = vld [vmem:[#allocation3 + $0x118] sm:$0xff]
    %v3554 = vld [vmem:[#allocation3 + $0x120] sm:$0xff]
    %v3555 = vld [vmem:[#allocation3 + $0x128] sm:$0xff]
    %v3556 = vld [vmem:[#allocation3 + $0x130] sm:$0xff]
    %v3557 = vld [vmem:[#allocation3 + $0x138] sm:$0xff]
    %v3558 = vld [vmem:[#allocation3 + $0x140] sm:$0xff]
    %v3559 = vld [vmem:[#allocation3 + $0x148] sm:$0xff]
    %v3560 = vld [vmem:[#allocation3 + $0x150] sm:$0xff]
    %v3561 = vld [vmem:[#allocation3 + $0x158] sm:$0xff]
    %v3562 = vld [vmem:[#allocation3 + $0x160] sm:$0xff]
    %v3563 = vld [vmem:[#allocation3 + $0x168] sm:$0xff]
    %v3564 = vld [vmem:[#allocation3 + $0x170] sm:$0xff]
    %v3565 = vld [vmem:[#allocation3 + $0x178] sm:$0xff]
    %v3566 = vld [vmem:[#allocation3 + $0x180] sm:$0xff]
    %v3567 = vld [vmem:[#allocation3 + $0x188] sm:$0xff]
    %v3568 = vld [vmem:[#allocation3 + $0x190] sm:$0xff]
    %v3569 = vld [vmem:[#allocation3 + $0x198] sm:$0xff]
    %v3570 = vld [vmem:[#allocation3 + $0x1a0] sm:$0xff]
    %v3571 = vld [vmem:[#allocation3 + $0x1a8] sm:$0xff]
    %v3572 = vld [vmem:[#allocation3 + $0x1b0] sm:$0xff]
    %v3573 = vld [vmem:[#allocation3 + $0x1b8] sm:$0xff]
    %v3574 = vld [vmem:[#allocation3 + $0x1c0] sm:$0xff]
    %v3575 = vld [vmem:[#allocation3 + $0x1c8] sm:$0xff]
    %v3576 = vld [vmem:[#allocation3 + $0x1d0] sm:$0xff]
    %v3577 = vld [vmem:[#allocation3 + $0x1d8] sm:$0xff]
    %v3578 = vld [vmem:[#allocation3 + $0x1e0] sm:$0xff]
    %v3579 = vld [vmem:[#allocation3 + $0x1e8] sm:$0xff]
    %v3580 = vld [vmem:[#allocation3 + $0x1f0] sm:$0xff]
    %v3581 = vld [vmem:[#allocation3 + $0x1f8] sm:$0xff]
    %v3582 = vld [vmem:[#allocation3 + $0x200] sm:$0xff]
    %v3583 = vld [vmem:[#allocation3 + $0x208] sm:$0xff]
    %v3584 = vld [vmem:[#allocation3 + $0x210] sm:$0xff]
    %v3585 = vld [vmem:[#allocation3 + $0x218] sm:$0xff]
    %v3586 = vld [vmem:[#allocation3 + $0x220] sm:$0xff]
    %v3587 = vld [vmem:[#allocation3 + $0x228] sm:$0xff]
    %v3588 = vld [vmem:[#allocation3 + $0x230] sm:$0xff]
    %v3589 = vld [vmem:[#allocation3 + $0x238] sm:$0xff]
    %v3590 = vld [vmem:[#allocation3 + $0x240] sm:$0xff]
    %v3591 = vld [vmem:[#allocation3 + $0x248] sm:$0xff]
    %v3592 = vld [vmem:[#allocation3 + $0x250] sm:$0xff]
    %v3593 = vld [vmem:[#allocation3 + $0x258] sm:$0xff]
    %v3594 = vld [vmem:[#allocation3 + $0x260] sm:$0xff]
    %v3595 = vld [vmem:[#allocation3 + $0x268] sm:$0xff]
    %v3596 = vld [vmem:[#allocation3 + $0x270] sm:$0xff]
    %v3597 = vld [vmem:[#allocation3 + $0x278] sm:$0xff]
    %v3598 = vld [vmem:[#allocation3 + $0x280] sm:$0xff]
    %v3599 = vld [vmem:[#allocation3 + $0x288] sm:$0xff]
    %v3600 = vld [vmem:[#allocation3 + $0x290] sm:$0xff]
    %v3601 = vld [vmem:[#allocation3 + $0x298] sm:$0xff]
    %v3602 = vld [vmem:[#allocation3 + $0x2a0] sm:$0xff]
    %v3603 = vld [vmem:[#allocation3 + $0x2a8] sm:$0xff]
    %v3604 = vld [vmem:[#allocation3 + $0x2b0] sm:$0xff]
    %v3605 = vld [vmem:[#allocation3 + $0x2b8] sm:$0xff]
    %v3606 = vld [vmem:[#allocation3 + $0x2c0] sm:$0xff]
    %v3607 = vld [vmem:[#allocation3 + $0x2c8] sm:$0xff]
    %v3608 = vld [vmem:[#allocation3 + $0x2d0] sm:$0xff]
    %v3609 = vld [vmem:[#allocation3 + $0x2d8] sm:$0xff]
    %v3610 = vld [vmem:[#allocation3 + $0x2e0] sm:$0xff]
    %v3611 = vld [vmem:[#allocation3 + $0x2e8] sm:$0xff]
    %v3612 = vld [vmem:[#allocation3 + $0x2f0] sm:$0xff]
    %v3613 = vld [vmem:[#allocation3 + $0x2f8] sm:$0xff]
    %v3614 = vld [vmem:[#allocation3 + $0x300] sm:$0xff]
    %v3615 = vld [vmem:[#allocation3 + $0x308] sm:$0xff]
    %v3616 = vld [vmem:[#allocation3 + $0x310] sm:$0xff]
    %v3617 = vld [vmem:[#allocation3 + $0x318] sm:$0xff]
    %v3618 = vld [vmem:[#allocation3 + $0x320] sm:$0xff]
    %v3619 = vld [vmem:[#allocation3 + $0x328] sm:$0xff]
    %v3620 = vld [vmem:[#allocation3 + $0x330] sm:$0xff]
    %v3621 = vld [vmem:[#allocation3 + $0x338] sm:$0xff]
    %v3622 = vld [vmem:[#allocation3 + $0x340] sm:$0xff]
    %v3623 = vld [vmem:[#allocation3 + $0x348] sm:$0xff]
    %v3624 = vld [vmem:[#allocation3 + $0x350] sm:$0xff]
    %v3625 = vld [vmem:[#allocation3 + $0x358] sm:$0xff]
    %v3626 = vld [vmem:[#allocation3 + $0x360] sm:$0xff]
    %v3627 = vld [vmem:[#allocation3 + $0x368] sm:$0xff]
    %v3628 = vld [vmem:[#allocation3 + $0x370] sm:$0xff]
    %v3629 = vld [vmem:[#allocation3 + $0x378] sm:$0xff]
    %v3630 = vld [vmem:[#allocation3 + $0x380] sm:$0xff]
    %v3631 = vld [vmem:[#allocation3 + $0x388] sm:$0xff]
    %v3632 = vld [vmem:[#allocation3 + $0x390] sm:$0xff]
    %v3633 = vld [vmem:[#allocation3 + $0x398] sm:$0xff]
    %v3634 = vld [vmem:[#allocation3 + $0x3a0] sm:$0xff]
    %v3635 = vld [vmem:[#allocation3 + $0x3a8] sm:$0xff]
    %v3636 = vld [vmem:[#allocation3 + $0x3b0] sm:$0xff]
    %v3637 = vld [vmem:[#allocation3 + $0x3b8] sm:$0xff]
    %v3638 = vld [vmem:[#allocation3 + $0x3c0] sm:$0xff]
    %v3639 = vld [vmem:[#allocation3 + $0x3c8] sm:$0xff]
    %v3640 = vld [vmem:[#allocation3 + $0x3d0] sm:$0xff]
    %v3641 = vld [vmem:[#allocation3 + $0x3d8] sm:$0xff]
    %v3642 = vld [vmem:[#allocation3 + $0x3e0] sm:$0xff]
    %v3643 = vld [vmem:[#allocation3 + $0x3e8] sm:$0xff]
    %v3644 = vld [vmem:[#allocation3 + $0x3f0] sm:$0xff]
    %v3645 = vld [vmem:[#allocation3 + $0x3f8] sm:$0xff]
    %v3646 = vld [vmem:[#allocation3 + $0x400] sm:$0xff]
    %v3647 = vld [vmem:[#allocation3 + $0x408] sm:$0xff]
    %v3648 = vld [vmem:[#allocation3 + $0x410] sm:$0xff]
    %v3649 = vld [vmem:[#allocation3 + $0x418] sm:$0xff]
    %v3650 = vld [vmem:[#allocation3 + $0x420] sm:$0xff]
    %v3651 = vld [vmem:[#allocation3 + $0x428] sm:$0xff]
    %v3652 = vld [vmem:[#allocation3 + $0x430] sm:$0xff]
    %v3653 = vld [vmem:[#allocation3 + $0x438] sm:$0xff]
    %v3654 = vld [vmem:[#allocation3 + $0x440] sm:$0xff]
    %v3655 = vld [vmem:[#allocation3 + $0x448] sm:$0xff]
    %v3656 = vld [vmem:[#allocation3 + $0x450] sm:$0xff]
    %v3657 = vld [vmem:[#allocation3 + $0x458] sm:$0xff]
    %v3658 = vld [vmem:[#allocation3 + $0x460] sm:$0xff]
    %v3659 = vld [vmem:[#allocation3 + $0x468] sm:$0xff]
    %v3660 = vld [vmem:[#allocation3 + $0x470] sm:$0xff]
    %v3661 = vld [vmem:[#allocation3 + $0x478] sm:$0xff]
    %v3662 = vld [vmem:[#allocation9] sm:$0xf]
    %v3663 = vld [vmem:[#allocation9 + $0x4] sm:$0xf]
    %v3664 = vld [vmem:[#allocation9 + $0x8] sm:$0xf]
    %v3665 = vld [vmem:[#allocation9 + $0xc] sm:$0xf]
    %v3666 = vld [vmem:[#allocation9 + $0x10] sm:$0xf]
    %v3667 = vld [vmem:[#allocation9 + $0x14] sm:$0xf]
    %v3668 = vld [vmem:[#allocation9 + $0x18] sm:$0xf]
    %v3669 = vld [vmem:[#allocation9 + $0x1c] sm:$0xf]
    %v3670 = vld [vmem:[#allocation9 + $0x20] sm:$0xf]
    %v3671 = vld [vmem:[#allocation9 + $0x24] sm:$0xf]
    %v3672 = vld [vmem:[#allocation9 + $0x28] sm:$0xf]
    %v3673 = vld [vmem:[#allocation9 + $0x2c] sm:$0xf]
    %v3674 = vld [vmem:[#allocation9 + $0x30] sm:$0xf]
    %v3675 = vld [vmem:[#allocation9 + $0x34] sm:$0xf]
    %v3676 = vld [vmem:[#allocation9 + $0x38] sm:$0xf]
    %v3677 = vld [vmem:[#allocation9 + $0x3c] sm:$0xf]
    %v3678 = vld [vmem:[#allocation9 + $0x40] sm:$0xf]
    %v3679 = vld [vmem:[#allocation9 + $0x44] sm:$0xf]
    %v3680 = vld [vmem:[#allocation9 + $0x48] sm:$0xf]
    %v3681 = vld [vmem:[#allocation9 + $0x4c] sm:$0xf]
    %v3682 = vld [vmem:[#allocation9 + $0x50] sm:$0xf]
    %v3683 = vld [vmem:[#allocation9 + $0x54] sm:$0xf]
    %v3684 = vld [vmem:[#allocation9 + $0x58] sm:$0xf]
    %v3685 = vld [vmem:[#allocation9 + $0x5c] sm:$0xf]
    %v3686 = vld [vmem:[#allocation9 + $0x60] sm:$0xf]
    %v3687 = vld [vmem:[#allocation9 + $0x64] sm:$0xf]
    %v3688 = vld [vmem:[#allocation9 + $0x68] sm:$0xf]
    %v3689 = vld [vmem:[#allocation9 + $0x6c] sm:$0xf]
    %v3690 = vld [vmem:[#allocation9 + $0x70] sm:$0xf]
    %v3691 = vld [vmem:[#allocation9 + $0x74] sm:$0xf]
    %v3692 = vld [vmem:[#allocation9 + $0x78] sm:$0xf]
    %v3693 = vld [vmem:[#allocation9 + $0x7c] sm:$0xf]
    %v3694 = vld [vmem:[#allocation9 + $0x80] sm:$0xf]
    %v3695 = vld [vmem:[#allocation9 + $0x84] sm:$0xf]
    %v3696 = vld [vmem:[#allocation9 + $0x88] sm:$0xf]
    %v3697 = vld [vmem:[#allocation9 + $0x8c] sm:$0xf]
    %v3698 = vld [vmem:[#allocation9 + $0x90] sm:$0xf]
    %v3699 = vld [vmem:[#allocation9 + $0x94] sm:$0xf]
    %v3700 = vld [vmem:[#allocation9 + $0x98] sm:$0xf]
    %v3701 = vld [vmem:[#allocation9 + $0x9c] sm:$0xf]
    %v3702 = vld [vmem:[#allocation9 + $0xa0] sm:$0xf]
    %v3703 = vld [vmem:[#allocation9 + $0xa4] sm:$0xf]
    %v3704 = vld [vmem:[#allocation9 + $0xa8] sm:$0xf]
    %v3705 = vld [vmem:[#allocation9 + $0xac] sm:$0xf]
    %v3706 = vld [vmem:[#allocation9 + $0xb0] sm:$0xf]
    %v3707 = vld [vmem:[#allocation9 + $0xb4] sm:$0xf]
    %v3708 = vld [vmem:[#allocation9 + $0xb8] sm:$0xf]
    %v3709 = vld [vmem:[#allocation9 + $0xbc] sm:$0xf]
    %v3710 = vld [vmem:[#allocation9 + $0xc0] sm:$0xf]
    %v3711 = vld [vmem:[#allocation9 + $0xc4] sm:$0xf]
    %v3712 = vld [vmem:[#allocation9 + $0xc8] sm:$0xf]
    %v3713 = vld [vmem:[#allocation9 + $0xcc] sm:$0xf]
    %v3714 = vld [vmem:[#allocation9 + $0xd0] sm:$0xf]
    %v3715 = vld [vmem:[#allocation9 + $0xd4] sm:$0xf]
    %v3716 = vld [vmem:[#allocation9 + $0xd8] sm:$0xf]
    %v3717 = vld [vmem:[#allocation9 + $0xdc] sm:$0xf]
    %v3718 = vld [vmem:[#allocation9 + $0xe0] sm:$0xf]
    %v3719 = vld [vmem:[#allocation9 + $0xe4] sm:$0xf]
    %v3720 = vld [vmem:[#allocation9 + $0xe8] sm:$0xf]
    %v3721 = vld [vmem:[#allocation9 + $0xec] sm:$0xf]
    %v3722 = vld [vmem:[#allocation9 + $0xf0] sm:$0xf]
    %v3723 = vld [vmem:[#allocation9 + $0xf4] sm:$0xf]
    %v3724 = vld [vmem:[#allocation9 + $0xf8] sm:$0xf]
    %v3725 = vld [vmem:[#allocation9 + $0xfc] sm:$0xf]
    %v3726 = vld [vmem:[#allocation9 + $0x100] sm:$0xf]
    %v3727 = vld [vmem:[#allocation9 + $0x104] sm:$0xf]
    %v3728 = vld [vmem:[#allocation9 + $0x108] sm:$0xf]
    %v3729 = vld [vmem:[#allocation9 + $0x10c] sm:$0xf]
    %v3730 = vld [vmem:[#allocation9 + $0x110] sm:$0xf]
    %v3731 = vld [vmem:[#allocation9 + $0x114] sm:$0xf]
    %v3732 = vld [vmem:[#allocation9 + $0x118] sm:$0xf]
    %v3733 = vld [vmem:[#allocation9 + $0x11c] sm:$0xf]
    %v3734 = vld [vmem:[#allocation9 + $0x120] sm:$0xf]
    %v3735 = vld [vmem:[#allocation9 + $0x124] sm:$0xf]
    %v3736 = vld [vmem:[#allocation9 + $0x128] sm:$0xf]
    %v3737 = vld [vmem:[#allocation9 + $0x12c] sm:$0xf]
    %v3738 = vld [vmem:[#allocation9 + $0x130] sm:$0xf]
    %v3739 = vld [vmem:[#allocation9 + $0x134] sm:$0xf]
    %v3740 = vld [vmem:[#allocation9 + $0x138] sm:$0xf]
    %v3741 = vld [vmem:[#allocation9 + $0x13c] sm:$0xf]
    %v3742 = vld [vmem:[#allocation9 + $0x140] sm:$0xf]
    %v3743 = vld [vmem:[#allocation9 + $0x144] sm:$0xf]
    %v3744 = vld [vmem:[#allocation9 + $0x148] sm:$0xf]
    %v3745 = vld [vmem:[#allocation9 + $0x14c] sm:$0xf]
    %v3746 = vld [vmem:[#allocation9 + $0x150] sm:$0xf]
    %v3747 = vld [vmem:[#allocation9 + $0x154] sm:$0xf]
    %v3748 = vld [vmem:[#allocation9 + $0x158] sm:$0xf]
    %v3749 = vld [vmem:[#allocation9 + $0x15c] sm:$0xf]
    %v3750 = vld [vmem:[#allocation9 + $0x160] sm:$0xf]
    %v3751 = vld [vmem:[#allocation9 + $0x164] sm:$0xf]
    %v3752 = vld [vmem:[#allocation9 + $0x168] sm:$0xf]
    %v3753 = vld [vmem:[#allocation9 + $0x16c] sm:$0xf]
    %v3754 = vld [vmem:[#allocation9 + $0x170] sm:$0xf]
    %v3755 = vld [vmem:[#allocation9 + $0x174] sm:$0xf]
    %v3756 = vld [vmem:[#allocation9 + $0x178] sm:$0xf]
    %v3757 = vld [vmem:[#allocation9 + $0x17c] sm:$0xf]
    %v3758 = vld [vmem:[#allocation9 + $0x180] sm:$0xf]
    %v3759 = vld [vmem:[#allocation9 + $0x184] sm:$0xf]
    %v3760 = vld [vmem:[#allocation9 + $0x188] sm:$0xf]
    %v3761 = vld [vmem:[#allocation9 + $0x18c] sm:$0xf]
    %v3762 = vld [vmem:[#allocation9 + $0x190] sm:$0xf]
    %v3763 = vld [vmem:[#allocation9 + $0x194] sm:$0xf]
    %v3764 = vld [vmem:[#allocation9 + $0x198] sm:$0xf]
    %v3765 = vld [vmem:[#allocation9 + $0x19c] sm:$0xf]
    %v3766 = vld [vmem:[#allocation9 + $0x1a0] sm:$0xf]
    %v3767 = vld [vmem:[#allocation9 + $0x1a4] sm:$0xf]
    %v3768 = vld [vmem:[#allocation9 + $0x1a8] sm:$0xf]
    %v3769 = vld [vmem:[#allocation9 + $0x1ac] sm:$0xf]
    %v3770 = vld [vmem:[#allocation9 + $0x1b0] sm:$0xf]
    %v3771 = vld [vmem:[#allocation9 + $0x1b4] sm:$0xf]
    %v3772 = vld [vmem:[#allocation9 + $0x1b8] sm:$0xf]
    %v3773 = vld [vmem:[#allocation9 + $0x1bc] sm:$0xf]
    %v3774 = vld [vmem:[#allocation9 + $0x1c0] sm:$0xf]
    %v3775 = vld [vmem:[#allocation9 + $0x1c4] sm:$0xf]
    %v3776 = vld [vmem:[#allocation9 + $0x1c8] sm:$0xf]
    %v3777 = vld [vmem:[#allocation9 + $0x1cc] sm:$0xf]
    %v3778 = vld [vmem:[#allocation9 + $0x1d0] sm:$0xf]
    %v3779 = vld [vmem:[#allocation9 + $0x1d4] sm:$0xf]
    %v3780 = vld [vmem:[#allocation9 + $0x1d8] sm:$0xf]
    %v3781 = vld [vmem:[#allocation9 + $0x1dc] sm:$0xf]
    %v3782 = vld [vmem:[#allocation9 + $0x1e0] sm:$0xf]
    %v3783 = vld [vmem:[#allocation9 + $0x1e4] sm:$0xf]
    %v3784 = vld [vmem:[#allocation9 + $0x1e8] sm:$0xf]
    %v3785 = vld [vmem:[#allocation9 + $0x1ec] sm:$0xf]
    %v3786 = vld [vmem:[#allocation9 + $0x1f0] sm:$0xf]
    %v3787 = vld [vmem:[#allocation9 + $0x1f4] sm:$0xf]
    %v3788 = vld [vmem:[#allocation9 + $0x1f8] sm:$0xf]
    %v3789 = vld [vmem:[#allocation9 + $0x1fc] sm:$0xf]
    %v3790 = vld [vmem:[#allocation9 + $0x200] sm:$0xf]
    %v3791 = vld [vmem:[#allocation9 + $0x204] sm:$0xf]
    %v3792 = vld [vmem:[#allocation9 + $0x208] sm:$0xf]
    %v3793 = vld [vmem:[#allocation9 + $0x20c] sm:$0xf]
    %v3794 = vld [vmem:[#allocation9 + $0x210] sm:$0xf]
    %v3795 = vld [vmem:[#allocation9 + $0x214] sm:$0xf]
    %v3796 = vld [vmem:[#allocation9 + $0x218] sm:$0xf]
    %v3797 = vld [vmem:[#allocation9 + $0x21c] sm:$0xf]
    %v3798 = vld [vmem:[#allocation9 + $0x220] sm:$0xf]
    %v3799 = vld [vmem:[#allocation9 + $0x224] sm:$0xf]
    %v3800 = vld [vmem:[#allocation9 + $0x228] sm:$0xf]
    %v3801 = vld [vmem:[#allocation9 + $0x22c] sm:$0xf]
    %v3802 = vld [vmem:[#allocation9 + $0x230] sm:$0xf]
    %v3803 = vld [vmem:[#allocation9 + $0x234] sm:$0xf]
    %v3804 = vld [vmem:[#allocation9 + $0x238] sm:$0xf]
    %v3805 = vld [vmem:[#allocation9 + $0x23c] sm:$0xf]
    %v3950 = vunpack.c.l.b16 %v3662
    %v3951 = vunpack.c.l.b16 %v3663
    %v3952 = vunpack.c.l.b16 %v3664
    %v3953 = vunpack.c.l.b16 %v3665
    %v3954 = vunpack.c.l.b16 %v3666
    %v3955 = vunpack.c.l.b16 %v3667
    %v3956 = vunpack.c.l.b16 %v3668
    %v3957 = vunpack.c.l.b16 %v3669
    %v3958 = vunpack.c.l.b16 %v3670
    %v3959 = vunpack.c.l.b16 %v3671
    %v3960 = vunpack.c.l.b16 %v3672
    %v3961 = vunpack.c.l.b16 %v3673
    %v3962 = vunpack.c.l.b16 %v3674
    %v3963 = vunpack.c.l.b16 %v3675
    %v3964 = vunpack.c.l.b16 %v3676
    %v3965 = vunpack.c.l.b16 %v3677
    %v3966 = vunpack.c.l.b16 %v3678
    %v3967 = vunpack.c.l.b16 %v3679
    %v3968 = vunpack.c.l.b16 %v3680
    %v3969 = vunpack.c.l.b16 %v3681
    %v3970 = vunpack.c.l.b16 %v3682
    %v3971 = vunpack.c.l.b16 %v3683
    %v3972 = vunpack.c.l.b16 %v3684
    %v3973 = vunpack.c.l.b16 %v3685
    %v3974 = vunpack.c.l.b16 %v3686
    %v3975 = vunpack.c.l.b16 %v3687
    %v3976 = vunpack.c.l.b16 %v3688
    %v3977 = vunpack.c.l.b16 %v3689
    %v3978 = vunpack.c.l.b16 %v3690
    %v3979 = vunpack.c.l.b16 %v3691
    %v3980 = vunpack.c.l.b16 %v3692
    %v3981 = vunpack.c.l.b16 %v3693
    %v3982 = vunpack.c.l.b16 %v3694
    %v3983 = vunpack.c.l.b16 %v3695
    %v3984 = vunpack.c.l.b16 %v3696
    %v3985 = vunpack.c.l.b16 %v3697
    %v3986 = vunpack.c.l.b16 %v3698
    %v3987 = vunpack.c.l.b16 %v3699
    %v3988 = vunpack.c.l.b16 %v3700
    %v3989 = vunpack.c.l.b16 %v3701
    %v3990 = vunpack.c.l.b16 %v3702
    %v3991 = vunpack.c.l.b16 %v3703
    %v3992 = vunpack.c.l.b16 %v3704
    %v3993 = vunpack.c.l.b16 %v3705
    %v3994 = vunpack.c.l.b16 %v3706
    %v3995 = vunpack.c.l.b16 %v3707
    %v3996 = vunpack.c.l.b16 %v3708
    %v3997 = vunpack.c.l.b16 %v3709
    %v3998 = vunpack.c.l.b16 %v3710
    %v3999 = vunpack.c.l.b16 %v3711
    %v4000 = vunpack.c.l.b16 %v3712
    %v4001 = vunpack.c.l.b16 %v3713
    %v4002 = vunpack.c.l.b16 %v3714
    %v4003 = vunpack.c.l.b16 %v3715
    %v4004 = vunpack.c.l.b16 %v3716
    %v4005 = vunpack.c.l.b16 %v3717
    %v4006 = vunpack.c.l.b16 %v3718
    %v4007 = vunpack.c.l.b16 %v3719
    %v4008 = vunpack.c.l.b16 %v3720
    %v4009 = vunpack.c.l.b16 %v3721
    %v4010 = vunpack.c.l.b16 %v3722
    %v4011 = vunpack.c.l.b16 %v3723
    %v4012 = vunpack.c.l.b16 %v3724
    %v4013 = vunpack.c.l.b16 %v3725
    %v4014 = vunpack.c.l.b16 %v3726
    %v4015 = vunpack.c.l.b16 %v3727
    %v4016 = vunpack.c.l.b16 %v3728
    %v4017 = vunpack.c.l.b16 %v3729
    %v4018 = vunpack.c.l.b16 %v3730
    %v4019 = vunpack.c.l.b16 %v3731
    %v4020 = vunpack.c.l.b16 %v3732
    %v4021 = vunpack.c.l.b16 %v3733
    %v4022 = vunpack.c.l.b16 %v3734
    %v4023 = vunpack.c.l.b16 %v3735
    %v4024 = vunpack.c.l.b16 %v3736
    %v4025 = vunpack.c.l.b16 %v3737
    %v4026 = vunpack.c.l.b16 %v3738
    %v4027 = vunpack.c.l.b16 %v3739
    %v4028 = vunpack.c.l.b16 %v3740
    %v4029 = vunpack.c.l.b16 %v3741
    %v4030 = vunpack.c.l.b16 %v3742
    %v4031 = vunpack.c.l.b16 %v3743
    %v4032 = vunpack.c.l.b16 %v3744
    %v4033 = vunpack.c.l.b16 %v3745
    %v4034 = vunpack.c.l.b16 %v3746
    %v4035 = vunpack.c.l.b16 %v3747
    %v4036 = vunpack.c.l.b16 %v3748
    %v4037 = vunpack.c.l.b16 %v3749
    %v4038 = vunpack.c.l.b16 %v3750
    %v4039 = vunpack.c.l.b16 %v3751
    %v4040 = vunpack.c.l.b16 %v3752
    %v4041 = vunpack.c.l.b16 %v3753
    %v4042 = vunpack.c.l.b16 %v3754
    %v4043 = vunpack.c.l.b16 %v3755
    %v4044 = vunpack.c.l.b16 %v3756
    %v4045 = vunpack.c.l.b16 %v3757
    %v4046 = vunpack.c.l.b16 %v3758
    %v4047 = vunpack.c.l.b16 %v3759
    %v4048 = vunpack.c.l.b16 %v3760
    %v4049 = vunpack.c.l.b16 %v3761
    %v4050 = vunpack.c.l.b16 %v3762
    %v4051 = vunpack.c.l.b16 %v3763
    %v4052 = vunpack.c.l.b16 %v3764
    %v4053 = vunpack.c.l.b16 %v3765
    %v4054 = vunpack.c.l.b16 %v3766
    %v4055 = vunpack.c.l.b16 %v3767
    %v4056 = vunpack.c.l.b16 %v3768
    %v4057 = vunpack.c.l.b16 %v3769
    %v4058 = vunpack.c.l.b16 %v3770
    %v4059 = vunpack.c.l.b16 %v3771
    %v4060 = vunpack.c.l.b16 %v3772
    %v4061 = vunpack.c.l.b16 %v3773
    %v4062 = vunpack.c.l.b16 %v3774
    %v4063 = vunpack.c.l.b16 %v3775
    %v4064 = vunpack.c.l.b16 %v3776
    %v4065 = vunpack.c.l.b16 %v3777
    %v4066 = vunpack.c.l.b16 %v3778
    %v4067 = vunpack.c.l.b16 %v3779
    %v4068 = vunpack.c.l.b16 %v3780
    %v4069 = vunpack.c.l.b16 %v3781
    %v4070 = vunpack.c.l.b16 %v3782
    %v4071 = vunpack.c.l.b16 %v3783
    %v4072 = vunpack.c.l.b16 %v3784
    %v4073 = vunpack.c.l.b16 %v3785
    %v4074 = vunpack.c.l.b16 %v3786
    %v4075 = vunpack.c.l.b16 %v3787
    %v4076 = vunpack.c.l.b16 %v3788
    %v4077 = vunpack.c.l.b16 %v3789
    %v4078 = vunpack.c.l.b16 %v3790
    %v4079 = vunpack.c.l.b16 %v3791
    %v4080 = vunpack.c.l.b16 %v3792
    %v4081 = vunpack.c.l.b16 %v3793
    %v4082 = vunpack.c.l.b16 %v3794
    %v4083 = vunpack.c.l.b16 %v3795
    %v4084 = vunpack.c.l.b16 %v3796
    %v4085 = vunpack.c.l.b16 %v3797
    %v4086 = vunpack.c.l.b16 %v3798
    %v4087 = vunpack.c.l.b16 %v3799
    %v4088 = vunpack.c.l.b16 %v3800
    %v4089 = vunpack.c.l.b16 %v3801
    %v4090 = vunpack.c.l.b16 %v3802
    %v4091 = vunpack.c.l.b16 %v3803
    %v4092 = vunpack.c.l.b16 %v3804
    %v4093 = vunpack.c.l.b16 %v3805
    %v4094 = vpack.c.b16 %v3951, %v3950
    %v4095 = vpack.c.b16 %v3953, %v3952
    %v4096 = vpack.c.b16 %v3955, %v3954
    %v4097 = vpack.c.b16 %v3957, %v3956
    %v4098 = vpack.c.b16 %v3959, %v3958
    %v4099 = vpack.c.b16 %v3961, %v3960
    %v4100 = vpack.c.b16 %v3963, %v3962
    %v4101 = vpack.c.b16 %v3965, %v3964
    %v4102 = vpack.c.b16 %v3967, %v3966
    %v4103 = vpack.c.b16 %v3969, %v3968
    %v4104 = vpack.c.b16 %v3971, %v3970
    %v4105 = vpack.c.b16 %v3973, %v3972
    %v4106 = vpack.c.b16 %v3975, %v3974
    %v4107 = vpack.c.b16 %v3977, %v3976
    %v4108 = vpack.c.b16 %v3979, %v3978
    %v4109 = vpack.c.b16 %v3981, %v3980
    %v4110 = vpack.c.b16 %v3983, %v3982
    %v4111 = vpack.c.b16 %v3985, %v3984
    %v4112 = vpack.c.b16 %v3987, %v3986
    %v4113 = vpack.c.b16 %v3989, %v3988
    %v4114 = vpack.c.b16 %v3991, %v3990
    %v4115 = vpack.c.b16 %v3993, %v3992
    %v4116 = vpack.c.b16 %v3995, %v3994
    %v4117 = vpack.c.b16 %v3997, %v3996
    %v4118 = vpack.c.b16 %v3999, %v3998
    %v4119 = vpack.c.b16 %v4001, %v4000
    %v4120 = vpack.c.b16 %v4003, %v4002
    %v4121 = vpack.c.b16 %v4005, %v4004
    %v4122 = vpack.c.b16 %v4007, %v4006
    %v4123 = vpack.c.b16 %v4009, %v4008
    %v4124 = vpack.c.b16 %v4011, %v4010
    %v4125 = vpack.c.b16 %v4013, %v4012
    %v4126 = vpack.c.b16 %v4015, %v4014
    %v4127 = vpack.c.b16 %v4017, %v4016
    %v4128 = vpack.c.b16 %v4019, %v4018
    %v4129 = vpack.c.b16 %v4021, %v4020
    %v4130 = vpack.c.b16 %v4023, %v4022
    %v4131 = vpack.c.b16 %v4025, %v4024
    %v4132 = vpack.c.b16 %v4027, %v4026
    %v4133 = vpack.c.b16 %v4029, %v4028
    %v4134 = vpack.c.b16 %v4031, %v4030
    %v4135 = vpack.c.b16 %v4033, %v4032
    %v4136 = vpack.c.b16 %v4035, %v4034
    %v4137 = vpack.c.b16 %v4037, %v4036
    %v4138 = vpack.c.b16 %v4039, %v4038
    %v4139 = vpack.c.b16 %v4041, %v4040
    %v4140 = vpack.c.b16 %v4043, %v4042
    %v4141 = vpack.c.b16 %v4045, %v4044
    %v4142 = vpack.c.b16 %v4047, %v4046
    %v4143 = vpack.c.b16 %v4049, %v4048
    %v4144 = vpack.c.b16 %v4051, %v4050
    %v4145 = vpack.c.b16 %v4053, %v4052
    %v4146 = vpack.c.b16 %v4055, %v4054
    %v4147 = vpack.c.b16 %v4057, %v4056
    %v4148 = vpack.c.b16 %v4059, %v4058
    %v4149 = vpack.c.b16 %v4061, %v4060
    %v4150 = vpack.c.b16 %v4063, %v4062
    %v4151 = vpack.c.b16 %v4065, %v4064
    %v4152 = vpack.c.b16 %v4067, %v4066
    %v4153 = vpack.c.b16 %v4069, %v4068
    %v4154 = vpack.c.b16 %v4071, %v4070
    %v4155 = vpack.c.b16 %v4073, %v4072
    %v4156 = vpack.c.b16 %v4075, %v4074
    %v4157 = vpack.c.b16 %v4077, %v4076
    %v4158 = vpack.c.b16 %v4079, %v4078
    %v4159 = vpack.c.b16 %v4081, %v4080
    %v4160 = vpack.c.b16 %v4083, %v4082
    %v4161 = vpack.c.b16 %v4085, %v4084
    %v4162 = vpack.c.b16 %v4087, %v4086
    %v4163 = vpack.c.b16 %v4089, %v4088
    %v4164 = vpack.c.b16 %v4091, %v4090
    %v4165 = vpack.c.b16 %v4093, %v4092
    %4238 = vmatprep.subr.bf16.mxu0 0
    %4239 = vmatpush1.bf16.msra.mxu0 %v4094
    %4240 = vmatprep.subr.bf16.mxu0 0
    %4241 = vmatpush1.bf16.msra.mxu0 %v4095
    %4242 = vmatprep.subr.bf16.mxu0 0
    %4243 = vmatpush1.bf16.msra.mxu0 %v4096
    %4244 = vmatprep.subr.bf16.mxu0 0
    %4245 = vmatpush1.bf16.msra.mxu0 %v4097
    %4246 = vmatprep.subr.bf16.mxu0 0
    %4247 = vmatpush1.bf16.msra.mxu0 %v4098
    %4248 = vmatprep.subr.bf16.mxu0 0
    %4249 = vmatpush1.bf16.msra.mxu0 %v4099
    %4250 = vmatprep.subr.bf16.mxu0 0
    %4251 = vmatpush1.bf16.msra.mxu0 %v4100
    %4252 = vmatprep.subr.bf16.mxu0 0
    %4253 = vmatpush1.bf16.msra.mxu0 %v4101
    %4254 = vmatprep.subr.bf16.mxu0 0
    %4255 = vmatpush1.bf16.msra.mxu0 %v4102
    %4256 = vmatprep.subr.bf16.mxu0 0
    %4257 = vmatpush1.bf16.msra.mxu0 %v4103
    %4258 = vmatprep.subr.bf16.mxu0 0
    %4259 = vmatpush1.bf16.msra.mxu0 %v4104
    %4260 = vmatprep.subr.bf16.mxu0 0
    %4261 = vmatpush1.bf16.msra.mxu0 %v4105
    %4262 = vmatprep.subr.bf16.mxu0 0
    %4263 = vmatpush1.bf16.msra.mxu0 %v4106
    %4264 = vmatprep.subr.bf16.mxu0 0
    %4265 = vmatpush1.bf16.msra.mxu0 %v4107
    %4266 = vmatprep.subr.bf16.mxu0 0
    %4267 = vmatpush1.bf16.msra.mxu0 %v4108
    %4268 = vmatprep.subr.bf16.mxu0 0
    %4269 = vmatpush1.bf16.msra.mxu0 %v4109
    %4270 = vmatprep.mubr.bf16.mxu0 %v3519
    %4271 = vmatmul.mubr.bf16.gmra.mrb[0].mxu0 %v3518
    %v4272 = vpop.f32.mrb[0].mxu0
    %v4273 = vadd.f32 0.0, %v4272
    %v4274 = vpop.f32.mrb[0].mxu0
    %v4275 = vpop.f32.mrb[0].mxu0
    %v4276 = vpop.f32.mrb[0].mxu0
    %4277 = vmatprep.mubr.bf16.mxu0 %v3528
    %4278 = vmatmul.mubr.bf16.gmra.mrb[0].mxu0 %v3527
    %v4279 = vpop.f32.mrb[0].mxu0
    %v4280 = vadd.f32 0.0, %v4279
    %v4281 = vpop.f32.mrb[0].mxu0
    %v4282 = vpop.f32.mrb[0].mxu0
    %v4283 = vpop.f32.mrb[0].mxu0
    %4284 = vmatprep.mubr.bf16.mxu0 %v3537
    %4285 = vmatmul.mubr.bf16.gmra.mrb[0].mxu0 %v3536
    %v4286 = vpop.f32.mrb[0].mxu0
    %v4287 = vadd.f32 0.0, %v4286
    %v4288 = vpop.f32.mrb[0].mxu0
    %v4289 = vpop.f32.mrb[0].mxu0
    %v4290 = vpop.f32.mrb[0].mxu0
    %4291 = vmatprep.mubr.bf16.mxu0 %v3546
    %4292 = vmatmul.mubr.bf16.gmra.mrb[0].mxu0 %v3545
    %v4293 = vpop.f32.mrb[0].mxu0
    %v4294 = vadd.f32 0.0, %v4293
    %v4295 = vpop.f32.mrb[0].mxu0
    %v4296 = vpop.f32.mrb[0].mxu0
    %v4297 = vpop.f32.mrb[0].mxu0
    %4298 = vmatprep.mubr.bf16.mxu0 %v3555
    %4299 = vmatmul.mubr.bf16.gmra.mrb[0].mxu0 %v3554
    %v4300 = vpop.f32.mrb[0].mxu0
    %v4301 = vadd.f32 0.0, %v4300
    %v4302 = vpop.f32.mrb[0].mxu0
    %v4303 = vpop.f32.mrb[0].mxu0
    %v4304 = vpop.f32.mrb[0].mxu0
    %4305 = vmatprep.mubr.bf16.mxu0 %v3564
    %4306 = vmatmul.mubr.bf16.gmra.mrb[0].mxu0 %v3563
    %v4307 = vpop.f32.mrb[0].mxu0
    %v4308 = vadd.f32 0.0, %v4307
    %v4309 = vpop.f32.mrb[0].mxu0
    %v4310 = vpop.f32.mrb[0].mxu0
    %v4311 = vpop.f32.mrb[0].mxu0
    %4312 = vmatprep.mubr.bf16.mxu0 %v3573
    %4313 = vmatmul.mubr.bf16.gmra.mrb[0].mxu0 %v3572
    %v4314 = vpop.f32.mrb[0].mxu0
    %v4315 = vadd.f32 0.0, %v4314
    %v4316 = vpop.f32.mrb[0].mxu0
    %v4317 = vpop.f32.mrb[0].mxu0
    %v4318 = vpop.f32.mrb[0].mxu0
    %4319 = vmatprep.mubr.bf16.mxu0 %v3582
    %4320 = vmatmul.mubr.bf16.gmra.mrb[0].mxu0 %v3581
    %v4321 = vpop.f32.mrb[0].mxu0
    %v4322 = vadd.f32 0.0, %v4321
    %v4323 = vpop.f32.mrb[0].mxu0
    %v4324 = vpop.f32.mrb[0].mxu0
    %v4325 = vpop.f32.mrb[0].mxu0
    %4326 = vmatprep.mubr.bf16.mxu0 %v3591
    %4327 = vmatmul.mubr.bf16.gmra.mrb[0].mxu0 %v3590
    %v4328 = vpop.f32.mrb[0].mxu0
    %v4329 = vadd.f32 0.0, %v4328
    %v4330 = vpop.f32.mrb[0].mxu0
    %v4331 = vpop.f32.mrb[0].mxu0
    %v4332 = vpop.f32.mrb[0].mxu0
    %4333 = vmatprep.mubr.bf16.mxu0 %v3600
    %4334 = vmatmul.mubr.bf16.gmra.mrb[0].mxu0 %v3599
    %v4335 = vpop.f32.mrb[0].mxu0
    %v4336 = vadd.f32 0.0, %v4335
    %v4337 = vpop.f32.mrb[0].mxu0
    %v4338 = vpop.f32.mrb[0].mxu0
    %v4339 = vpop.f32.mrb[0].mxu0
    %4340 = vmatprep.mubr.bf16.mxu0 %v3609
    %4341 = vmatmul.mubr.bf16.gmra.mrb[0].mxu0 %v3608
    %v4342 = vpop.f32.mrb[0].mxu0
    %v4343 = vadd.f32 0.0, %v4342
    %v4344 = vpop.f32.mrb[0].mxu0
    %v4345 = vpop.f32.mrb[0].mxu0
    %v4346 = vpop.f32.mrb[0].mxu0
    %4347 = vmatprep.mubr.bf16.mxu0 %v3618
    %4348 = vmatmul.mubr.bf16.gmra.mrb[0].mxu0 %v3617
    %v4349 = vpop.f32.mrb[0].mxu0
    %v4350 = vadd.f32 0.0, %v4349
    %v4351 = vpop.f32.mrb[0].mxu0
    %v4352 = vpop.f32.mrb[0].mxu0
    %v4353 = vpop.f32.mrb[0].mxu0
    %4354 = vmatprep.mubr.bf16.mxu0 %v3627
    %4355 = vmatmul.mubr.bf16.gmra.mrb[0].mxu0 %v3626
    %v4356 = vpop.f32.mrb[0].mxu0
    %v4357 = vadd.f32 0.0, %v4356
    %v4358 = vpop.f32.mrb[0].mxu0
    %v4359 = vpop.f32.mrb[0].mxu0
    %v4360 = vpop.f32.mrb[0].mxu0
    %4361 = vmatprep.mubr.bf16.mxu0 %v3636
    %4362 = vmatmul.mubr.bf16.gmra.mrb[0].mxu0 %v3635
    %v4363 = vpop.f32.mrb[0].mxu0
    %v4364 = vadd.f32 0.0, %v4363
    %v4365 = vpop.f32.mrb[0].mxu0
    %v4366 = vpop.f32.mrb[0].mxu0
    %v4367 = vpop.f32.mrb[0].mxu0
    %4368 = vmatprep.mubr.bf16.mxu0 %v3645
    %4369 = vmatmul.mubr.bf16.gmra.mrb[0].mxu0 %v3644
    %v4370 = vpop.f32.mrb[0].mxu0
    %v4371 = vadd.f32 0.0, %v4370
    %v4372 = vpop.f32.mrb[0].mxu0
    %v4373 = vpop.f32.mrb[0].mxu0
    %v4374 = vpop.f32.mrb[0].mxu0
    %4375 = vmatprep.mubr.bf16.mxu0 %v3654
    %4376 = vmatmul.mubr.bf16.gmra.mrb[0].mxu0 %v3653
    %v4377 = vpop.f32.mrb[0].mxu0
    %v4378 = vadd.f32 0.0, %v4377
    %v4379 = vpop.f32.mrb[0].mxu0
    %v4380 = vpop.f32.mrb[0].mxu0
    %v4381 = vpop.f32.mrb[0].mxu0
    %4382 = vdwg.mxu0
    %4383 = vmatprep.subr.bf16.mxu0 0
    %4384 = vmatpush1.bf16.msra.mxu0 %v4110
    %4385 = vmatprep.subr.bf16.mxu0 0
    %4386 = vmatpush1.bf16.msra.mxu0 %v4111
    %4387 = vmatprep.subr.bf16.mxu0 0
    %4388 = vmatpush1.bf16.msra.mxu0 %v4112
    %4389 = vmatprep.subr.bf16.mxu0 0
    %4390 = vmatpush1.bf16.msra.mxu0 %v4113
    %4391 = vmatprep.subr.bf16.mxu0 0
    %4392 = vmatpush1.bf16.msra.mxu0 %v4114
    %4393 = vmatprep.subr.bf16.mxu0 0
    %4394 = vmatpush1.bf16.msra.mxu0 %v4115
    %4395 = vmatprep.subr.bf16.mxu0 0
    %4396 = vmatpush1.bf16.msra.mxu0 %v4116
    %4397 = vmatprep.subr.bf16.mxu0 0
    %4398 = vmatpush1.bf16.msra.mxu0 %v4117
    %4399 = vmatprep.subr.bf16.mxu0 0
    %4400 = vmatpush1.bf16.msra.mxu0 %v4118
    %4401 = vmatprep.subr.bf16.mxu0 0
    %4402 = vmatpush1.bf16.msra.mxu0 %v4119
    %4403 = vmatprep.subr.bf16.mxu0 0
    %4404 = vmatpush1.bf16.msra.mxu0 %v4120
    %4405 = vmatprep.subr.bf16.mxu0 0
    %4406 = vmatpush1.bf16.msra.mxu0 %v4121
    %4407 = vmatprep.subr.bf16.mxu0 0
    %4408 = vmatpush1.bf16.msra.mxu0 %v4122
    %4409 = vmatprep.subr.bf16.mxu0 0
    %4410 = vmatpush1.bf16.msra.mxu0 %v4123
    %4411 = vmatprep.subr.bf16.mxu0 0
    %4412 = vmatpush1.bf16.msra.mxu0 %v4124
    %4413 = vmatprep.subr.bf16.mxu0 0
    %4414 = vmatpush1.bf16.msra.mxu0 %v4125
    %4415 = vmatprep.mubr.bf16.mxu0 %v3521
    %4416 = vmatmul.mubr.bf16.gmra.mrb[0].mxu0 %v3520
    %v4417 = vpop.f32.mrb[0].mxu0
    %v4418 = vadd.f32 %v4273, %v4417
    %v4419 = vpop.f32.mrb[0].mxu0
    %v4420 = vpop.f32.mrb[0].mxu0
    %v4421 = vpop.f32.mrb[0].mxu0
    %4422 = vmatprep.mubr.bf16.mxu0 %v3530
    %4423 = vmatmul.mubr.bf16.gmra.mrb[0].mxu0 %v3529
    %v4424 = vpop.f32.mrb[0].mxu0
    %v4425 = vadd.f32 %v4280, %v4424
    %v4426 = vpop.f32.mrb[0].mxu0
    %v4427 = vpop.f32.mrb[0].mxu0
    %v4428 = vpop.f32.mrb[0].mxu0
    %4429 = vmatprep.mubr.bf16.mxu0 %v3539
    %4430 = vmatmul.mubr.bf16.gmra.mrb[0].mxu0 %v3538
    %v4431 = vpop.f32.mrb[0].mxu0
    %v4432 = vadd.f32 %v4287, %v4431
    %v4433 = vpop.f32.mrb[0].mxu0
    %v4434 = vpop.f32.mrb[0].mxu0
    %v4435 = vpop.f32.mrb[0].mxu0
    %4436 = vmatprep.mubr.bf16.mxu0 %v3548
    %4437 = vmatmul.mubr.bf16.gmra.mrb[0].mxu0 %v3547
    %v4438 = vpop.f32.mrb[0].mxu0
    %v4439 = vadd.f32 %v4294, %v4438
    %v4440 = vpop.f32.mrb[0].mxu0
    %v4441 = vpop.f32.mrb[0].mxu0
    %v4442 = vpop.f32.mrb[0].mxu0
    %4443 = vmatprep.mubr.bf16.mxu0 %v3557
    %4444 = vmatmul.mubr.bf16.gmra.mrb[0].mxu0 %v3556
    %v4445 = vpop.f32.mrb[0].mxu0
    %v4446 = vadd.f32 %v4301, %v4445
    %v4447 = vpop.f32.mrb[0].mxu0
    %v4448 = vpop.f32.mrb[0].mxu0
    %v4449 = vpop.f32.mrb[0].mxu0
    %4450 = vmatprep.mubr.bf16.mxu0 %v3566
    %4451 = vmatmul.mubr.bf16.gmra.mrb[0].mxu0 %v3565
    %v4452 = vpop.f32.mrb[0].mxu0
    %v4453 = vadd.f32 %v4308, %v4452
    %v4454 = vpop.f32.mrb[0].mxu0
    %v4455 = vpop.f32.mrb[0].mxu0
    %v4456 = vpop.f32.mrb[0].mxu0
    %4457 = vmatprep.mubr.bf16.mxu0 %v3575
    %4458 = vmatmul.mubr.bf16.gmra.mrb[0].mxu0 %v3574
    %v4459 = vpop.f32.mrb[0].mxu0
    %v4460 = vadd.f32 %v4315, %v4459
    %v4461 = vpop.f32.mrb[0].mxu0
    %v4462 = vpop.f32.mrb[0].mxu0
    %v4463 = vpop.f32.mrb[0].mxu0
    %4464 = vmatprep.mubr.bf16.mxu0 %v3584
    %4465 = vmatmul.mubr.bf16.gmra.mrb[0].mxu0 %v3583
    %v4466 = vpop.f32.mrb[0].mxu0
    %v4467 = vadd.f32 %v4322, %v4466
    %v4468 = vpop.f32.mrb[0].mxu0
    %v4469 = vpop.f32.mrb[0].mxu0
    %v4470 = vpop.f32.mrb[0].mxu0
    %4471 = vmatprep.mubr.bf16.mxu0 %v3593
    %4472 = vmatmul.mubr.bf16.gmra.mrb[0].mxu0 %v3592
    %v4473 = vpop.f32.mrb[0].mxu0
    %v4474 = vadd.f32 %v4329, %v4473
    %v4475 = vpop.f32.mrb[0].mxu0
    %v4476 = vpop.f32.mrb[0].mxu0
    %v4477 = vpop.f32.mrb[0].mxu0
    %4478 = vmatprep.mubr.bf16.mxu0 %v3602
    %4479 = vmatmul.mubr.bf16.gmra.mrb[0].mxu0 %v3601
    %v4480 = vpop.f32.mrb[0].mxu0
    %v4481 = vadd.f32 %v4336, %v4480
    %v4482 = vpop.f32.mrb[0].mxu0
    %v4483 = vpop.f32.mrb[0].mxu0
    %v4484 = vpop.f32.mrb[0].mxu0
    %4485 = vmatprep.mubr.bf16.mxu0 %v3611
    %4486 = vmatmul.mubr.bf16.gmra.mrb[0].mxu0 %v3610
    %v4487 = vpop.f32.mrb[0].mxu0
    %v4488 = vadd.f32 %v4343, %v4487
    %v4489 = vpop.f32.mrb[0].mxu0
    %v4490 = vpop.f32.mrb[0].mxu0
    %v4491 = vpop.f32.mrb[0].mxu0
    %4492 = vmatprep.mubr.bf16.mxu0 %v3620
    %4493 = vmatmul.mubr.bf16.gmra.mrb[0].mxu0 %v3619
    %v4494 = vpop.f32.mrb[0].mxu0
    %v4495 = vadd.f32 %v4350, %v4494
    %v4496 = vpop.f32.mrb[0].mxu0
    %v4497 = vpop.f32.mrb[0].mxu0
    %v4498 = vpop.f32.mrb[0].mxu0
    %4499 = vmatprep.mubr.bf16.mxu0 %v3629
    %4500 = vmatmul.mubr.bf16.gmra.mrb[0].mxu0 %v3628
    %v4501 = vpop.f32.mrb[0].mxu0
    %v4502 = vadd.f32 %v4357, %v4501
    %v4503 = vpop.f32.mrb[0].mxu0
    %v4504 = vpop.f32.mrb[0].mxu0
    %v4505 = vpop.f32.mrb[0].mxu0
    %4506 = vmatprep.mubr.bf16.mxu0 %v3638
    %4507 = vmatmul.mubr.bf16.gmra.mrb[0].mxu0 %v3637
    %v4508 = vpop.f32.mrb[0].mxu0
    %v4509 = vadd.f32 %v4364, %v4508
    %v4510 = vpop.f32.mrb[0].mxu0
    %v4511 = vpop.f32.mrb[0].mxu0
    %v4512 = vpop.f32.mrb[0].mxu0
    %4513 = vmatprep.mubr.bf16.mxu0 %v3647
    %4514 = vmatmul.mubr.bf16.gmra.mrb[0].mxu0 %v3646
    %v4515 = vpop.f32.mrb[0].mxu0
    %v4516 = vadd.f32 %v4371, %v4515
    %v4517 = vpop.f32.mrb[0].mxu0
    %v4518 = vpop.f32.mrb[0].mxu0
    %v4519 = vpop.f32.mrb[0].mxu0
    %4520 = vmatprep.mubr.bf16.mxu0 %v3656
    %4521 = vmatmul.mubr.bf16.gmra.mrb[0].mxu0 %v3655
    %v4522 = vpop.f32.mrb[0].mxu0
    %v4523 = vadd.f32 %v4378, %v4522
    %v4524 = vpop.f32.mrb[0].mxu0
    %v4525 = vpop.f32.mrb[0].mxu0
    %v4526 = vpop.f32.mrb[0].mxu0
    %4527 = vdwg.mxu0
    %4528 = vmatprep.subr.bf16.mxu0 0
    %4529 = vmatpush1.bf16.msra.mxu0 %v4126
    %4530 = vmatprep.subr.bf16.mxu0 0
    %4531 = vmatpush1.bf16.msra.mxu0 %v4127
    %4532 = vmatprep.subr.bf16.mxu0 0
    %4533 = vmatpush1.bf16.msra.mxu0 %v4128
    %4534 = vmatprep.subr.bf16.mxu0 0
    %4535 = vmatpush1.bf16.msra.mxu0 %v4129
    %4536 = vmatprep.subr.bf16.mxu0 0
    %4537 = vmatpush1.bf16.msra.mxu0 %v4130
    %4538 = vmatprep.subr.bf16.mxu0 0
    %4539 = vmatpush1.bf16.msra.mxu0 %v4131
    %4540 = vmatprep.subr.bf16.mxu0 0
    %4541 = vmatpush1.bf16.msra.mxu0 %v4132
    %4542 = vmatprep.subr.bf16.mxu0 0
    %4543 = vmatpush1.bf16.msra.mxu0 %v4133
    %4544 = vmatprep.subr.bf16.mxu0 0
    %4545 = vmatpush1.bf16.msra.mxu0 %v4134
    %4546 = vmatprep.subr.bf16.mxu0 0
    %4547 = vmatpush1.bf16.msra.mxu0 %v4135
    %4548 = vmatprep.subr.bf16.mxu0 0
    %4549 = vmatpush1.bf16.msra.mxu0 %v4136
    %4550 = vmatprep.subr.bf16.mxu0 0
    %4551 = vmatpush1.bf16.msra.mxu0 %v4137
    %4552 = vmatprep.subr.bf16.mxu0 0
    %4553 = vmatpush1.bf16.msra.mxu0 %v4138
    %4554 = vmatprep.subr.bf16.mxu0 0
    %4555 = vmatpush1.bf16.msra.mxu0 %v4139
    %4556 = vmatprep.subr.bf16.mxu0 0
    %4557 = vmatpush1.bf16.msra.mxu0 %v4140
    %4558 = vmatprep.subr.bf16.mxu0 0
    %4559 = vmatpush1.bf16.msra.mxu0 %v4141
    %4560 = vmatprep.mubr.bf16.mxu0 %v3523
    %4561 = vmatmul.mubr.bf16.gmra.mrb[0].mxu0 %v3522
    %v4562 = vpop.f32.mrb[0].mxu0
    %v4563 = vadd.f32 %v4418, %v4562
    %v4564 = vpop.f32.mrb[0].mxu0
    %v4565 = vpop.f32.mrb[0].mxu0
    %v4566 = vpop.f32.mrb[0].mxu0
    %4567 = vmatprep.mubr.bf16.mxu0 %v3532
    %4568 = vmatmul.mubr.bf16.gmra.mrb[0].mxu0 %v3531
    %v4569 = vpop.f32.mrb[0].mxu0
    %v4570 = vadd.f32 %v4425, %v4569
    %v4571 = vpop.f32.mrb[0].mxu0
    %v4572 = vpop.f32.mrb[0].mxu0
    %v4573 = vpop.f32.mrb[0].mxu0
    %4574 = vmatprep.mubr.bf16.mxu0 %v3541
    %4575 = vmatmul.mubr.bf16.gmra.mrb[0].mxu0 %v3540
    %v4576 = vpop.f32.mrb[0].mxu0
    %v4577 = vadd.f32 %v4432, %v4576
    %v4578 = vpop.f32.mrb[0].mxu0
    %v4579 = vpop.f32.mrb[0].mxu0
    %v4580 = vpop.f32.mrb[0].mxu0
    %4581 = vmatprep.mubr.bf16.mxu0 %v3550
    %4582 = vmatmul.mubr.bf16.gmra.mrb[0].mxu0 %v3549
    %v4583 = vpop.f32.mrb[0].mxu0
    %v4584 = vadd.f32 %v4439, %v4583
    %v4585 = vpop.f32.mrb[0].mxu0
    %v4586 = vpop.f32.mrb[0].mxu0
    %v4587 = vpop.f32.mrb[0].mxu0
    %4588 = vmatprep.mubr.bf16.mxu0 %v3559
    %4589 = vmatmul.mubr.bf16.gmra.mrb[0].mxu0 %v3558
    %v4590 = vpop.f32.mrb[0].mxu0
    %v4591 = vadd.f32 %v4446, %v4590
    %v4592 = vpop.f32.mrb[0].mxu0
    %v4593 = vpop.f32.mrb[0].mxu0
    %v4594 = vpop.f32.mrb[0].mxu0
    %4595 = vmatprep.mubr.bf16.mxu0 %v3568
    %4596 = vmatmul.mubr.bf16.gmra.mrb[0].mxu0 %v3567
    %v4597 = vpop.f32.mrb[0].mxu0
    %v4598 = vadd.f32 %v4453, %v4597
    %v4599 = vpop.f32.mrb[0].mxu0
    %v4600 = vpop.f32.mrb[0].mxu0
    %v4601 = vpop.f32.mrb[0].mxu0
    %4602 = vmatprep.mubr.bf16.mxu0 %v3577
    %4603 = vmatmul.mubr.bf16.gmra.mrb[0].mxu0 %v3576
    %v4604 = vpop.f32.mrb[0].mxu0
    %v4605 = vadd.f32 %v4460, %v4604
    %v4606 = vpop.f32.mrb[0].mxu0
    %v4607 = vpop.f32.mrb[0].mxu0
    %v4608 = vpop.f32.mrb[0].mxu0
    %4609 = vmatprep.mubr.bf16.mxu0 %v3586
    %4610 = vmatmul.mubr.bf16.gmra.mrb[0].mxu0 %v3585
    %v4611 = vpop.f32.mrb[0].mxu0
    %v4612 = vadd.f32 %v4467, %v4611
    %v4613 = vpop.f32.mrb[0].mxu0
    %v4614 = vpop.f32.mrb[0].mxu0
    %v4615 = vpop.f32.mrb[0].mxu0
    %4616 = vmatprep.mubr.bf16.mxu0 %v3595
    %4617 = vmatmul.mubr.bf16.gmra.mrb[0].mxu0 %v3594
    %v4618 = vpop.f32.mrb[0].mxu0
    %v4619 = vadd.f32 %v4474, %v4618
    %v4620 = vpop.f32.mrb[0].mxu0
    %v4621 = vpop.f32.mrb[0].mxu0
    %v4622 = vpop.f32.mrb[0].mxu0
    %4623 = vmatprep.mubr.bf16.mxu0 %v3604
    %4624 = vmatmul.mubr.bf16.gmra.mrb[0].mxu0 %v3603
    %v4625 = vpop.f32.mrb[0].mxu0
    %v4626 = vadd.f32 %v4481, %v4625
    %v4627 = vpop.f32.mrb[0].mxu0
    %v4628 = vpop.f32.mrb[0].mxu0
    %v4629 = vpop.f32.mrb[0].mxu0
    %4630 = vmatprep.mubr.bf16.mxu0 %v3613
    %4631 = vmatmul.mubr.bf16.gmra.mrb[0].mxu0 %v3612
    %v4632 = vpop.f32.mrb[0].mxu0
    %v4633 = vadd.f32 %v4488, %v4632
    %v4634 = vpop.f32.mrb[0].mxu0
    %v4635 = vpop.f32.mrb[0].mxu0
    %v4636 = vpop.f32.mrb[0].mxu0
    %4637 = vmatprep.mubr.bf16.mxu0 %v3622
    %4638 = vmatmul.mubr.bf16.gmra.mrb[0].mxu0 %v3621
    %v4639 = vpop.f32.mrb[0].mxu0
    %v4640 = vadd.f32 %v4495, %v4639
    %v4641 = vpop.f32.mrb[0].mxu0
    %v4642 = vpop.f32.mrb[0].mxu0
    %v4643 = vpop.f32.mrb[0].mxu0
    %4644 = vmatprep.mubr.bf16.mxu0 %v3631
    %4645 = vmatmul.mubr.bf16.gmra.mrb[0].mxu0 %v3630
    %v4646 = vpop.f32.mrb[0].mxu0
    %v4647 = vadd.f32 %v4502, %v4646
    %v4648 = vpop.f32.mrb[0].mxu0
    %v4649 = vpop.f32.mrb[0].mxu0
    %v4650 = vpop.f32.mrb[0].mxu0
    %4651 = vmatprep.mubr.bf16.mxu0 %v3640
    %4652 = vmatmul.mubr.bf16.gmra.mrb[0].mxu0 %v3639
    %v4653 = vpop.f32.mrb[0].mxu0
    %v4654 = vadd.f32 %v4509, %v4653
    %v4655 = vpop.f32.mrb[0].mxu0
    %v4656 = vpop.f32.mrb[0].mxu0
    %v4657 = vpop.f32.mrb[0].mxu0
    %4658 = vmatprep.mubr.bf16.mxu0 %v3649
    %4659 = vmatmul.mubr.bf16.gmra.mrb[0].mxu0 %v3648
    %v4660 = vpop.f32.mrb[0].mxu0
    %v4661 = vadd.f32 %v4516, %v4660
    %v4662 = vpop.f32.mrb[0].mxu0
    %v4663 = vpop.f32.mrb[0].mxu0
    %v4664 = vpop.f32.mrb[0].mxu0
    %4665 = vmatprep.mubr.bf16.mxu0 %v3658
    %4666 = vmatmul.mubr.bf16.gmra.mrb[0].mxu0 %v3657
    %v4667 = vpop.f32.mrb[0].mxu0
    %v4668 = vadd.f32 %v4523, %v4667
    %v4669 = vpop.f32.mrb[0].mxu0
    %v4670 = vpop.f32.mrb[0].mxu0
    %v4671 = vpop.f32.mrb[0].mxu0
    %4672 = vdwg.mxu0
    %4673 = vmatprep.subr.bf16.mxu0 0
    %4674 = vmatpush1.bf16.msra.mxu0 %v4142
    %4675 = vmatprep.subr.bf16.mxu0 0
    %4676 = vmatpush1.bf16.msra.mxu0 %v4143
    %4677 = vmatprep.subr.bf16.mxu0 0
    %4678 = vmatpush1.bf16.msra.mxu0 %v4144
    %4679 = vmatprep.subr.bf16.mxu0 0
    %4680 = vmatpush1.bf16.msra.mxu0 %v4145
    %4681 = vmatprep.subr.bf16.mxu0 0
    %4682 = vmatpush1.bf16.msra.mxu0 %v4146
    %4683 = vmatprep.subr.bf16.mxu0 0
    %4684 = vmatpush1.bf16.msra.mxu0 %v4147
    %4685 = vmatprep.subr.bf16.mxu0 0
    %4686 = vmatpush1.bf16.msra.mxu0 %v4148
    %4687 = vmatprep.subr.bf16.mxu0 0
    %4688 = vmatpush1.bf16.msra.mxu0 %v4149
    %4689 = vmatprep.subr.bf16.mxu0 0
    %4690 = vmatpush1.bf16.msra.mxu0 %v4150
    %4691 = vmatprep.subr.bf16.mxu0 0
    %4692 = vmatpush1.bf16.msra.mxu0 %v4151
    %4693 = vmatprep.subr.bf16.mxu0 0
    %4694 = vmatpush1.bf16.msra.mxu0 %v4152
    %4695 = vmatprep.subr.bf16.mxu0 0
    %4696 = vmatpush1.bf16.msra.mxu0 %v4153
    %4697 = vmatprep.subr.bf16.mxu0 0
    %4698 = vmatpush1.bf16.msra.mxu0 %v4154
    %4699 = vmatprep.subr.bf16.mxu0 0
    %4700 = vmatpush1.bf16.msra.mxu0 %v4155
    %4701 = vmatprep.subr.bf16.mxu0 0
    %4702 = vmatpush1.bf16.msra.mxu0 %v4156
    %4703 = vmatprep.subr.bf16.mxu0 0
    %4704 = vmatpush1.bf16.msra.mxu0 %v4157
    %4705 = vmatprep.mubr.bf16.mxu0 %v3525
    %4706 = vmatmul.mubr.bf16.gmra.mrb[0].mxu0 %v3524
    %v4707 = vpop.f32.mrb[0].mxu0
    %v4708 = vadd.f32 %v4563, %v4707
    %v4709 = vpop.f32.mrb[0].mxu0
    %v4710 = vpop.f32.mrb[0].mxu0
    %v4711 = vpop.f32.mrb[0].mxu0
    %4712 = vmatprep.mubr.bf16.mxu0 %v3534
    %4713 = vmatmul.mubr.bf16.gmra.mrb[0].mxu0 %v3533
    %v4714 = vpop.f32.mrb[0].mxu0
    %v4715 = vadd.f32 %v4570, %v4714
    %v4716 = vpop.f32.mrb[0].mxu0
    %v4717 = vpop.f32.mrb[0].mxu0
    %v4718 = vpop.f32.mrb[0].mxu0
    %4719 = vmatprep.mubr.bf16.mxu0 %v3543
    %4720 = vmatmul.mubr.bf16.gmra.mrb[0].mxu0 %v3542
    %v4721 = vpop.f32.mrb[0].mxu0
    %v4722 = vadd.f32 %v4577, %v4721
    %v4723 = vpop.f32.mrb[0].mxu0
    %v4724 = vpop.f32.mrb[0].mxu0
    %v4725 = vpop.f32.mrb[0].mxu0
    %4726 = vmatprep.mubr.bf16.mxu0 %v3552
    %4727 = vmatmul.mubr.bf16.gmra.mrb[0].mxu0 %v3551
    %v4728 = vpop.f32.mrb[0].mxu0
    %v4729 = vadd.f32 %v4584, %v4728
    %v4730 = vpop.f32.mrb[0].mxu0
    %v4731 = vpop.f32.mrb[0].mxu0
    %v4732 = vpop.f32.mrb[0].mxu0
    %4733 = vmatprep.mubr.bf16.mxu0 %v3561
    %4734 = vmatmul.mubr.bf16.gmra.mrb[0].mxu0 %v3560
    %v4735 = vpop.f32.mrb[0].mxu0
    %v4736 = vadd.f32 %v4591, %v4735
    %v4737 = vpop.f32.mrb[0].mxu0
    %v4738 = vpop.f32.mrb[0].mxu0
    %v4739 = vpop.f32.mrb[0].mxu0
    %4740 = vmatprep.mubr.bf16.mxu0 %v3570
    %4741 = vmatmul.mubr.bf16.gmra.mrb[0].mxu0 %v3569
    %v4742 = vpop.f32.mrb[0].mxu0
    %v4743 = vadd.f32 %v4598, %v4742
    %v4744 = vpop.f32.mrb[0].mxu0
    %v4745 = vpop.f32.mrb[0].mxu0
    %v4746 = vpop.f32.mrb[0].mxu0
    %4747 = vmatprep.mubr.bf16.mxu0 %v3579
    %4748 = vmatmul.mubr.bf16.gmra.mrb[0].mxu0 %v3578
    %v4749 = vpop.f32.mrb[0].mxu0
    %v4750 = vadd.f32 %v4605, %v4749
    %v4751 = vpop.f32.mrb[0].mxu0
    %v4752 = vpop.f32.mrb[0].mxu0
    %v4753 = vpop.f32.mrb[0].mxu0
    %4754 = vmatprep.mubr.bf16.mxu0 %v3588
    %4755 = vmatmul.mubr.bf16.gmra.mrb[0].mxu0 %v3587
    %v4756 = vpop.f32.mrb[0].mxu0
    %v4757 = vadd.f32 %v4612, %v4756
    %v4758 = vpop.f32.mrb[0].mxu0
    %v4759 = vpop.f32.mrb[0].mxu0
    %v4760 = vpop.f32.mrb[0].mxu0
    %4761 = vmatprep.mubr.bf16.mxu0 %v3597
    %4762 = vmatmul.mubr.bf16.gmra.mrb[0].mxu0 %v3596
    %v4763 = vpop.f32.mrb[0].mxu0
    %v4764 = vadd.f32 %v4619, %v4763
    %v4765 = vpop.f32.mrb[0].mxu0
    %v4766 = vpop.f32.mrb[0].mxu0
    %v4767 = vpop.f32.mrb[0].mxu0
    %4768 = vmatprep.mubr.bf16.mxu0 %v3606
    %4769 = vmatmul.mubr.bf16.gmra.mrb[0].mxu0 %v3605
    %v4770 = vpop.f32.mrb[0].mxu0
    %v4771 = vadd.f32 %v4626, %v4770
    %v4772 = vpop.f32.mrb[0].mxu0
    %v4773 = vpop.f32.mrb[0].mxu0
    %v4774 = vpop.f32.mrb[0].mxu0
    %4775 = vmatprep.mubr.bf16.mxu0 %v3615
    %4776 = vmatmul.mubr.bf16.gmra.mrb[0].mxu0 %v3614
    %v4777 = vpop.f32.mrb[0].mxu0
    %v4778 = vadd.f32 %v4633, %v4777
    %v4779 = vpop.f32.mrb[0].mxu0
    %v4780 = vpop.f32.mrb[0].mxu0
    %v4781 = vpop.f32.mrb[0].mxu0
    %4782 = vmatprep.mubr.bf16.mxu0 %v3624
    %4783 = vmatmul.mubr.bf16.gmra.mrb[0].mxu0 %v3623
    %v4784 = vpop.f32.mrb[0].mxu0
    %v4785 = vadd.f32 %v4640, %v4784
    %v4786 = vpop.f32.mrb[0].mxu0
    %v4787 = vpop.f32.mrb[0].mxu0
    %v4788 = vpop.f32.mrb[0].mxu0
    %4789 = vmatprep.mubr.bf16.mxu0 %v3633
    %4790 = vmatmul.mubr.bf16.gmra.mrb[0].mxu0 %v3632
    %v4791 = vpop.f32.mrb[0].mxu0
    %v4792 = vadd.f32 %v4647, %v4791
    %v4793 = vpop.f32.mrb[0].mxu0
    %v4794 = vpop.f32.mrb[0].mxu0
    %v4795 = vpop.f32.mrb[0].mxu0
    %4796 = vmatprep.mubr.bf16.mxu0 %v3642
    %4797 = vmatmul.mubr.bf16.gmra.mrb[0].mxu0 %v3641
    %v4798 = vpop.f32.mrb[0].mxu0
    %v4799 = vadd.f32 %v4654, %v4798
    %v4800 = vpop.f32.mrb[0].mxu0
    %v4801 = vpop.f32.mrb[0].mxu0
    %v4802 = vpop.f32.mrb[0].mxu0
    %4803 = vmatprep.mubr.bf16.mxu0 %v3651
    %4804 = vmatmul.mubr.bf16.gmra.mrb[0].mxu0 %v3650
    %v4805 = vpop.f32.mrb[0].mxu0
    %v4806 = vadd.f32 %v4661, %v4805
    %v4807 = vpop.f32.mrb[0].mxu0
    %v4808 = vpop.f32.mrb[0].mxu0
    %v4809 = vpop.f32.mrb[0].mxu0
    %4810 = vmatprep.mubr.bf16.mxu0 %v3660
    %4811 = vmatmul.mubr.bf16.gmra.mrb[0].mxu0 %v3659
    %v4812 = vpop.f32.mrb[0].mxu0
    %v4813 = vadd.f32 %v4668, %v4812
    %v4814 = vpop.f32.mrb[0].mxu0
    %v4815 = vpop.f32.mrb[0].mxu0
    %v4816 = vpop.f32.mrb[0].mxu0
    %4817 = vdwg.mxu0
    %4818 = vmatprep.subr.bf16.mxu0 0
    %4819 = vmatpush1.bf16.msra.mxu0 %v4158
    %4820 = vmatprep.subr.bf16.mxu0 0
    %4821 = vmatpush1.bf16.msra.mxu0 %v4159
    %4822 = vmatprep.subr.bf16.mxu0 0
    %4823 = vmatpush1.bf16.msra.mxu0 %v4160
    %4824 = vmatprep.subr.bf16.mxu0 0
    %4825 = vmatpush1.bf16.msra.mxu0 %v4161
    %4826 = vmatprep.subr.bf16.mxu0 0
    %4827 = vmatpush1.bf16.msra.mxu0 %v4162
    %4828 = vmatprep.subr.bf16.mxu0 0
    %4829 = vmatpush1.bf16.msra.mxu0 %v4163
    %4830 = vmatprep.subr.bf16.mxu0 0
    %4831 = vmatpush1.bf16.msra.mxu0 %v4164
    %4832 = vmatprep.subr.bf16.mxu0 0
    %4833 = vmatpush1.bf16.msra.mxu0 %v4165
    %4834 = vmatprep.subr.bf16.mxu0 0
    %4835 = vmatpush1.bf16.msra.mxu0 0
    %4836 = vmatprep.subr.bf16.mxu0 0
    %4837 = vmatpush1.bf16.msra.mxu0 0
    %4838 = vmatprep.subr.bf16.mxu0 0
    %4839 = vmatpush1.bf16.msra.mxu0 0
    %4840 = vmatprep.subr.bf16.mxu0 0
    %4841 = vmatpush1.bf16.msra.mxu0 0
    %4842 = vmatprep.subr.bf16.mxu0 0
    %4843 = vmatpush1.bf16.msra.mxu0 0
    %4844 = vmatprep.subr.bf16.mxu0 0
    %4845 = vmatpush1.bf16.msra.mxu0 0
    %4846 = vmatprep.subr.bf16.mxu0 0
    %4847 = vmatpush1.bf16.msra.mxu0 0
    %4848 = vmatprep.subr.bf16.mxu0 0
    %4849 = vmatpush1.bf16.msra.mxu0 0
    %4850 = vmatprep.mubr.bf16.mxu0 0
    %4851 = vmatmul.mubr.bf16.gmra.mrb[0].mxu0 %v3526
    %v4852 = vpop.f32.mrb[0].mxu0
    %v4853 = vadd.f32 %v4708, %v4852
    %v4854 = vpop.f32.mrb[0].mxu0
    %v4855 = vpop.f32.mrb[0].mxu0
    %v4856 = vpop.f32.mrb[0].mxu0
    %4857 = vmatprep.mubr.bf16.mxu0 0
    %4858 = vmatmul.mubr.bf16.gmra.mrb[0].mxu0 %v3535
    %v4859 = vpop.f32.mrb[0].mxu0
    %v4860 = vadd.f32 %v4715, %v4859
    %v4861 = vpop.f32.mrb[0].mxu0
    %v4862 = vpop.f32.mrb[0].mxu0
    %v4863 = vpop.f32.mrb[0].mxu0
    %4864 = vmatprep.mubr.bf16.mxu0 0
    %4865 = vmatmul.mubr.bf16.gmra.mrb[0].mxu0 %v3544
    %v4866 = vpop.f32.mrb[0].mxu0
    %v4867 = vadd.f32 %v4722, %v4866
    %v4868 = vpop.f32.mrb[0].mxu0
    %v4869 = vpop.f32.mrb[0].mxu0
    %v4870 = vpop.f32.mrb[0].mxu0
    %4871 = vmatprep.mubr.bf16.mxu0 0
    %4872 = vmatmul.mubr.bf16.gmra.mrb[0].mxu0 %v3553
    %v4873 = vpop.f32.mrb[0].mxu0
    %v4874 = vadd.f32 %v4729, %v4873
    %v4875 = vpop.f32.mrb[0].mxu0
    %v4876 = vpop.f32.mrb[0].mxu0
    %v4877 = vpop.f32.mrb[0].mxu0
    %4878 = vmatprep.mubr.bf16.mxu0 0
    %4879 = vmatmul.mubr.bf16.gmra.mrb[0].mxu0 %v3562
    %v4880 = vpop.f32.mrb[0].mxu0
    %v4881 = vadd.f32 %v4736, %v4880
    %v4882 = vpop.f32.mrb[0].mxu0
    %v4883 = vpop.f32.mrb[0].mxu0
    %v4884 = vpop.f32.mrb[0].mxu0
    %4885 = vmatprep.mubr.bf16.mxu0 0
    %4886 = vmatmul.mubr.bf16.gmra.mrb[0].mxu0 %v3571
    %v4887 = vpop.f32.mrb[0].mxu0
    %v4888 = vadd.f32 %v4743, %v4887
    %v4889 = vpop.f32.mrb[0].mxu0
    %v4890 = vpop.f32.mrb[0].mxu0
    %v4891 = vpop.f32.mrb[0].mxu0
    %4892 = vmatprep.mubr.bf16.mxu0 0
    %4893 = vmatmul.mubr.bf16.gmra.mrb[0].mxu0 %v3580
    %v4894 = vpop.f32.mrb[0].mxu0
    %v4895 = vadd.f32 %v4750, %v4894
    %v4896 = vpop.f32.mrb[0].mxu0
    %v4897 = vpop.f32.mrb[0].mxu0
    %v4898 = vpop.f32.mrb[0].mxu0
    %4899 = vmatprep.mubr.bf16.mxu0 0
    %4900 = vmatmul.mubr.bf16.gmra.mrb[0].mxu0 %v3589
    %v4901 = vpop.f32.mrb[0].mxu0
    %v4902 = vadd.f32 %v4757, %v4901
    %v4903 = vpop.f32.mrb[0].mxu0
    %v4904 = vpop.f32.mrb[0].mxu0
    %v4905 = vpop.f32.mrb[0].mxu0
    %4906 = vmatprep.mubr.bf16.mxu0 0
    %4907 = vmatmul.mubr.bf16.gmra.mrb[0].mxu0 %v3598
    %v4908 = vpop.f32.mrb[0].mxu0
    %v4909 = vadd.f32 %v4764, %v4908
    %v4910 = vpop.f32.mrb[0].mxu0
    %v4911 = vpop.f32.mrb[0].mxu0
    %v4912 = vpop.f32.mrb[0].mxu0
    %4913 = vmatprep.mubr.bf16.mxu0 0
    %4914 = vmatmul.mubr.bf16.gmra.mrb[0].mxu0 %v3607
    %v4915 = vpop.f32.mrb[0].mxu0
    %v4916 = vadd.f32 %v4771, %v4915
    %v4917 = vpop.f32.mrb[0].mxu0
    %v4918 = vpop.f32.mrb[0].mxu0
    %v4919 = vpop.f32.mrb[0].mxu0
    %4920 = vmatprep.mubr.bf16.mxu0 0
    %4921 = vmatmul.mubr.bf16.gmra.mrb[0].mxu0 %v3616
    %v4922 = vpop.f32.mrb[0].mxu0
    %v4923 = vadd.f32 %v4778, %v4922
    %v4924 = vpop.f32.mrb[0].mxu0
    %v4925 = vpop.f32.mrb[0].mxu0
    %v4926 = vpop.f32.mrb[0].mxu0
    %4927 = vmatprep.mubr.bf16.mxu0 0
    %4928 = vmatmul.mubr.bf16.gmra.mrb[0].mxu0 %v3625
    %v4929 = vpop.f32.mrb[0].mxu0
    %v4930 = vadd.f32 %v4785, %v4929
    %v4931 = vpop.f32.mrb[0].mxu0
    %v4932 = vpop.f32.mrb[0].mxu0
    %v4933 = vpop.f32.mrb[0].mxu0
    %4934 = vmatprep.mubr.bf16.mxu0 0
    %4935 = vmatmul.mubr.bf16.gmra.mrb[0].mxu0 %v3634
    %v4936 = vpop.f32.mrb[0].mxu0
    %v4937 = vadd.f32 %v4792, %v4936
    %v4938 = vpop.f32.mrb[0].mxu0
    %v4939 = vpop.f32.mrb[0].mxu0
    %v4940 = vpop.f32.mrb[0].mxu0
    %4941 = vmatprep.mubr.bf16.mxu0 0
    %4942 = vmatmul.mubr.bf16.gmra.mrb[0].mxu0 %v3643
    %v4943 = vpop.f32.mrb[0].mxu0
    %v4944 = vadd.f32 %v4799, %v4943
    %v4945 = vpop.f32.mrb[0].mxu0
    %v4946 = vpop.f32.mrb[0].mxu0
    %v4947 = vpop.f32.mrb[0].mxu0
    %4948 = vmatprep.mubr.bf16.mxu0 0
    %4949 = vmatmul.mubr.bf16.gmra.mrb[0].mxu0 %v3652
    %v4950 = vpop.f32.mrb[0].mxu0
    %v4951 = vadd.f32 %v4806, %v4950
    %v4952 = vpop.f32.mrb[0].mxu0
    %v4953 = vpop.f32.mrb[0].mxu0
    %v4954 = vpop.f32.mrb[0].mxu0
    %4955 = vmatprep.mubr.bf16.mxu0 0
    %4956 = vmatmul.mubr.bf16.gmra.mrb[0].mxu0 %v3661
    %v4957 = vpop.f32.mrb[0].mxu0
    %v4958 = vadd.f32 %v4813, %v4957
    %v4959 = vpop.f32.mrb[0].mxu0
    %v4960 = vpop.f32.mrb[0].mxu0
    %v4961 = vpop.f32.mrb[0].mxu0
    %4962 = vdwg.mxu0
    %v4963 = vlaneseq
    %v4964 = vshrl.u32 %v4963, 7
    %v4965 = vsub.s32 0, %v4964
    %v4966 = vrot.slane %v85, %v4965
    %v4967 = vadd.f32 %v4853, %v4966
    %v4968 = vadd.f32 %v4860, %v4966
    %v4969 = vadd.f32 %v4867, %v4966
    %v4970 = vadd.f32 %v4874, %v4966
    %v4971 = vadd.f32 %v4881, %v4966
    %v4972 = vadd.f32 %v4888, %v4966
    %v4973 = vadd.f32 %v4895, %v4966
    %v4974 = vadd.f32 %v4902, %v4966
    %v4975 = vadd.f32 %v4909, %v4966
    %v4976 = vadd.f32 %v4916, %v4966
    %v4977 = vadd.f32 %v4923, %v4966
    %v4978 = vadd.f32 %v4930, %v4966
    %v4979 = vadd.f32 %v4937, %v4966
    %v4980 = vadd.f32 %v4944, %v4966
    %v4981 = vadd.f32 %v4951, %v4966
    %v4982 = vadd.f32 %v4958, %v4966
    %v4983 = vld [vmem:[%s0] sm:$0xff]
    %v4984 = vld [vmem:[%s0 + $0x8] sm:$0xff]
    %v4985 = vld [vmem:[%s0 + $0x10] sm:$0xff]
    %v4986 = vld [vmem:[%s0 + $0x18] sm:$0xff]
    %v4987 = vld [vmem:[%s0 + $0x20] sm:$0xff]
    %v4988 = vld [vmem:[%s0 + $0x28] sm:$0xff]
    %v4989 = vld [vmem:[%s0 + $0x30] sm:$0xff]
    %v4990 = vld [vmem:[%s0 + $0x38] sm:$0xff]
    %v4991 = vld [vmem:[%s0 + $0x40] sm:$0xff]
    %v4992 = vld [vmem:[%s0 + $0x48] sm:$0xff]
    %v4993 = vld [vmem:[%s0 + $0x50] sm:$0xff]
    %v4994 = vld [vmem:[%s0 + $0x58] sm:$0xff]
    %v4995 = vld [vmem:[%s0 + $0x60] sm:$0xff]
    %v4996 = vld [vmem:[%s0 + $0x68] sm:$0xff]
    %v4997 = vld [vmem:[%s0 + $0x70] sm:$0xff]
    %v4998 = vld [vmem:[%s0 + $0x78] sm:$0xff]
    %v4999 = vadd.f32 %v4967, %v4983
    %v5000 = vadd.f32 %v4968, %v4984
    %v5001 = vadd.f32 %v4969, %v4985
    %v5002 = vadd.f32 %v4970, %v4986
    %v5003 = vadd.f32 %v4971, %v4987
    %v5004 = vadd.f32 %v4972, %v4988
    %v5005 = vadd.f32 %v4973, %v4989
    %v5006 = vadd.f32 %v4974, %v4990
    %v5007 = vadd.f32 %v4975, %v4991
    %v5008 = vadd.f32 %v4976, %v4992
    %v5009 = vadd.f32 %v4977, %v4993
    %v5010 = vadd.f32 %v4978, %v4994
    %v5011 = vadd.f32 %v4979, %v4995
    %v5012 = vadd.f32 %v4980, %v4996
    %v5013 = vadd.f32 %v4981, %v4997
    %v5014 = vadd.f32 %v4982, %v4998
    %5015 = vst [vmem:[#allocation10] sm:$0xff] %v4999
    %5016 = vst [vmem:[#allocation10 + $0x8] sm:$0xff] %v5000
    %5017 = vst [vmem:[#allocation10 + $0x10] sm:$0xff] %v5001
    %5018 = vst [vmem:[#allocation10 + $0x18] sm:$0xff] %v5002
    %5019 = vst [vmem:[#allocation10 + $0x20] sm:$0xff] %v5003
    %5020 = vst [vmem:[#allocation10 + $0x28] sm:$0xff] %v5004
    %5021 = vst [vmem:[#allocation10 + $0x30] sm:$0xff] %v5005
    %5022 = vst [vmem:[#allocation10 + $0x38] sm:$0xff] %v5006
    %5023 = vst [vmem:[#allocation10 + $0x40] sm:$0xff] %v5007
    %5024 = vst [vmem:[#allocation10 + $0x48] sm:$0xff] %v5008
    %5025 = vst [vmem:[#allocation10 + $0x50] sm:$0xff] %v5009
    %5026 = vst [vmem:[#allocation10 + $0x58] sm:$0xff] %v5010
    %5027 = vst [vmem:[#allocation10 + $0x60] sm:$0xff] %v5011
    %5028 = vst [vmem:[#allocation10 + $0x68] sm:$0xff] %v5012
    %5029 = vst [vmem:[#allocation10 + $0x70] sm:$0xff] %v5013
    %5030 = vst [vmem:[#allocation10 + $0x78] sm:$0xff] %v5014
    // Predicated region
    $region34: #{tpu_custom_call.1} parent=1 // pred_check
      _
    $region35: #{tpu_custom_call.1} parent=1 // pred_check_branch
      %5032 = sbr.rel (0) target = $region37
    $region36: #{tpu_custom_call.1} parent=1 // pred_region
      %s5034 = ssub.s32 2048, 2048
      %5035 = vsyncadd [#allocation6], %s5034
      %s5036 = sshll.u32 [#allocation10], 4
      %s5037 = int_to_ptr.vmem [resolvable:$true] %s5036
      %5042 = dma.vmem_to_hbm [thread:$0]  %s5037, 2048, %s5, [#allocation6], 128, 128, 8
    $region37: #{tpu_custom_call.1} parent=1 // pred_fallthru
      _
    // Predicated region
    $region38: #{tpu_custom_call.1} parent=1 // pred_check
      _
    $region39: #{tpu_custom_call.1} parent=1 // pred_check_branch
      %5044 = sbr.rel (0) target = $region41
    $region40: #{tpu_custom_call.1} parent=1 // pred_region
      %5045 = dma.done [#allocation6], 2048
    $region41: #{tpu_custom_call.1} parent=1 // pred_fallthru
      _
    %5046 = vsyncpa [#allocation5], 1
    %5047 = vsyncpa [#allocation8], 1
    %5048 = vsyncpa [#allocation6], 1

</llo_original>
